<compile_context>
chip_gen: v7x
topology: tpu7x:2x2x1
jax: 0.10.0
libtpu: 0.0.40
codegen_flags: <defaults>
</compile_context>

<pallas_src>
import functools
import math

import jax
import jax.numpy as jnp
from jax import lax
from jax.experimental import pallas as pl
from jax.experimental.pallas import tpu as pltpu

CPAD = 8        # tiny channel counts (image_channels=1) zero-padded to 8 lanes
ROW_ALIGN = 8   # flat-row (sublane) alignment; padded width Wp is a multiple of this
GUARD = 8       # guard rows around the im2col patch buffer (for the +/-1 dx shifts)


def _round_up(x, m):
    return (x + m - 1) // m * m


def _nbytes(a):
    return a.size * a.dtype.itemsize


# ------------------------------ fused Pallas kernel ------------------------------ #

def _make_dncnn_kernel(*, depth, ch, cpad, M, Wp, pad):
    g = GUARD
    kp = 3 * ch                      # patch width (layer 0 only uses the first 3*cpad)

    def kernel(x_ref, mask_ref, w0_ref, wm_ref, wl_ref, b_ref,
               o_ref, act_ref, patch_ref):
        # Guard rows are never written below, so only they need (re)zeroing; this is a
        # tiny (2*pad + 2*g rows) store instead of a full-buffer clear.  The interior
        # [pad, pad+M) is fully overwritten by layer 0 before it is ever read.
        act_ref[0:pad, :] = jnp.zeros((pad, ch), jnp.bfloat16)
        act_ref[pad + M:pad + M + pad, :] = jnp.zeros((pad, ch), jnp.bfloat16)
        patch_ref[0:g, :] = jnp.zeros((g, kp), jnp.bfloat16)
        patch_ref[g + M:g + M + g, :] = jnp.zeros((g, kp), jnp.bfloat16)

        def conv3x3(build_patch, cin, get_w, bias):
            # dy-only im2col: 3 sublane-aligned copies into patch[:, :3*cin], then 3
            # MXU matmuls (K = 3*cin) over dx-shifted reads of the same patch buffer.
            # Same total MXU K-depth as a full 9-tap im2col, 3x smaller patch scratch.
            build_patch()
            K = 3 * cin
            acc = jnp.dot(patch_ref[g - 1:g - 1 + M, :K], get_w(0),
                          preferred_element_type=jnp.float32)
            acc = acc + jnp.dot(patch_ref[g:g + M, :K], get_w(1),
                                preferred_element_type=jnp.float32)
            acc = acc + jnp.dot(patch_ref[g + 1:g + 1 + M, :K], get_w(2),
                                preferred_element_type=jnp.float32)
            return acc + bias        # Linear(1,1): weight 0.025 folded into w, bias here

        # ---- layer 0: image_channels (padded to cpad lanes) -> n_channels ----
        def build_from_x():
            for dy in range(3):
                off = pad + (dy - 1) * Wp                 # multiple of 8 (aligned copy)
                patch_ref[g:g + M, dy * cpad:(dy + 1) * cpad] = (
                    x_ref[0, off:off + M, :].astype(jnp.bfloat16))

        out0 = jnp.maximum(
            conv3x3(build_from_x, cpad, lambda dx: w0_ref[dx], b_ref[0]), 0.0)
        # mask keeps the zero-padding ring exactly zero for the next layer
        act_ref[pad:pad + M, :] = (out0 * mask_ref[...]).astype(jnp.bfloat16)

        # ---- depth-2 hidden layers: bf16 activation stays resident in VMEM ----
        def build_from_act():
            for dy in range(3):
                off = pad + (dy - 1) * Wp                 # multiple of 8 (aligned copy)
                patch_ref[g:g + M, dy * ch:(dy + 1) * ch] = act_ref[off:off + M, :]

        def hidden(i, carry):
            out = jnp.maximum(
                conv3x3(build_from_act, ch, lambda dx: wm_ref[i * 3 + dx],
                        b_ref[1 + i]), 0.0)
            act_ref[pad:pad + M, :] = (out * mask_ref[...]).astype(jnp.bfloat16)
            return carry

        lax.fori_loop(0, depth - 2, hidden, 0)

        # ---- last layer (no ReLU; no mask needed, halo is sliced away on the host) ----
        out_l = conv3x3(build_from_act, ch, lambda dx: wl_ref[dx], b_ref[depth - 1])
        # fused residual: o = x - (0.025 * conv + b)
        o_ref[0] = x_ref[0, pad:pad + M, :] - out_l

    return kernel


# ---------------------------------- forward ---------------------------------- #

def dncnn_sn_forward(x_nchw, params, image_channels):
    w0, w_mid, w_last, b = params["w0"], params["w_mid"], params["w_last"], params["b"]
    depth = int(b.shape[0])
    ch = int(w0.shape[-1])
    assert depth >= 3 and ch >= CPAD

    N, C, H, W = x_nchw.shape
    assert C == image_channels
    Hp = H + 2
    Wp = _round_up(W + 2, ROW_ALIGN)   # width padded so all dy tap offsets are aligned
    M = Hp * Wp
    pad = Wp                           # guard rows = one padded image row on each side
    m_tot = pad + M + pad
    g = GUARD

    # One-time layout glue (not per layer): NCHW -> zero-halo NHWC (right-padded to
    # Wp), flatten rows, zero-pad channels to CPAD lanes, add guard rows.  All layers
    # then work in this flat layout, entirely in VMEM.
    x = jnp.transpose(x_nchw, (0, 2, 3, 1)).astype(jnp.float32)              # (N,H,W,C)
    xp = jnp.pad(x, ((0, 0), (1, 1), (1, Wp - W - 1), (0, CPAD - image_channels)))
    xf = jnp.pad(xp.reshape(N, M, CPAD), ((0, 0), (pad, pad), (0, 0)))        # (N,m_tot,8)

    # Interior mask (1 inside the image, 0 on the padding ring), pre-broadcast to ch
    # lanes on the host so the kernel never re-broadcasts it per layer.
    mask2d = jnp.pad(jnp.ones((H, W), jnp.float32), ((1, 1), (1, Wp - W - 1)))
    mask = jnp.broadcast_to(mask2d.reshape(M, 1), (M, ch))

    kernel = _make_dncnn_kernel(depth=depth, ch=ch, cpad=CPAD, M=M, Wp=Wp, pad=pad)

    flops = 2 * N * M * (9 * CPAD * ch + (depth - 2) * 9 * ch * ch + 9 * ch * CPAD)
    bytes_accessed = (_nbytes(xf) + _nbytes(mask) + _nbytes(w0) + _nbytes(w_mid)
                      + _nbytes(w_last) + _nbytes(b) + N * M * CPAD * 4)

    # Generation-aware VMEM limit: actual scratch + (conservatively double-buffered)
    # block footprint + headroom, clipped to ~90% of this chip's physical VMEM.
    scratch_bytes = m_tot * ch * 2 + (M + 2 * g) * (3 * ch) * 2
    io_bytes = 2 * (m_tot * CPAD * 4 + M * CPAD * 4 + _nbytes(mask)
                    + _nbytes(w0) + _nbytes(w_mid) + _nbytes(w_last))
    try:
        vmem_cap = int(pltpu.get_tpu_info().vmem_capacity_bytes)
    except Exception:  # conservative fallback (v7x per-core VMEM)
        vmem_cap = 64 * 1024 * 1024
    vmem_limit = int(min(max(scratch_bytes + io_bytes + (8 << 20), 32 << 20),
                         int(0.9 * vmem_cap)))

    out_flat = pl.pallas_call(
        kernel,
        out_shape=jax.ShapeDtypeStruct((N, M, CPAD), jnp.float32),
        grid_spec=pltpu.PrefetchScalarGridSpec(
            num_scalar_prefetch=0,
            grid=(N,),
            in_specs=[
                pl.BlockSpec((1, m_tot, CPAD), lambda n: (n, 0, 0)),          # x (flat)
                pl.BlockSpec((M, ch), lambda n: (0, 0)),                      # mask
                pl.BlockSpec((3, 3 * CPAD, ch), lambda n: (0, 0, 0)),         # first W
                pl.BlockSpec((3 * (depth - 2), 3 * ch, ch), lambda n: (0, 0, 0)),  # hidden W
                pl.BlockSpec((3, 3 * ch, CPAD), lambda n: (0, 0, 0)),         # last W
                pl.BlockSpec(memory_space=pltpu.MemorySpace.SMEM),            # biases
            ],
            out_specs=pl.BlockSpec((1, M, CPAD), lambda n: (n, 0, 0)),
            scratch_shapes=[
                pltpu.VMEM((m_tot, ch), jnp.bfloat16),          # resident activation
                pltpu.VMEM((M + 2 * g, 3 * ch), jnp.bfloat16),  # dy-only im2col patch
            ],
        ),
        compiler_params=pltpu.CompilerParams(
            dimension_semantics=("parallel",),                  # batch elements independent
            vmem_limit_bytes=vmem_limit,
        ),
        cost_estimate=pl.CostEstimate(flops=flops, transcendentals=0,
                                      bytes_accessed=bytes_accessed),
    )(xf, mask, w0, w_mid, w_last, b)

    # Final output is small (image_channels deep); un-flatten / slice / NCHW in XLA.
    out = out_flat.reshape(N, Hp, Wp, CPAD)[:, 1:H + 1, 1:W + 1, :image_channels]
    return jnp.transpose(out, (0, 3, 1, 2))


# --------------------------- parameter setup (glue) --------------------------- #

def _spectral_sigma(w_mat, iters=30, eps=1e-12):
    """Largest singular value via power iteration.  PyTorch spectral_norm keeps
    persistent u/v vectors updated once per forward; here we iterate to convergence
    at init time (weight preprocessing, not a kernel op)."""
    u = jnp.ones((w_mat.shape[0],), jnp.float32)
    u = u / (jnp.linalg.norm(u) + eps)
    v = jnp.zeros((w_mat.shape[1],), jnp.float32)
    for _ in range(iters):
        v = w_mat.T @ u
        v = v / (jnp.linalg.norm(v) + eps)
        u = w_mat @ v
        u = u / (jnp.linalg.norm(u) + eps)
    return u @ (w_mat @ v)


def init_dncnn_sn_params(key, depth, n_channels, image_channels):
    """Deterministic init mirroring DnCNN_SN.__init__/_initialize_weights.
    Returns raw per-layer (W_sn (Cout,Cin,3,3) f32, bias) for the pure-JAX reference."""
    raw = []
    for i in range(depth):
        cin = image_channels if i == 0 else n_channels
        cout = image_channels if i == depth - 1 else n_channels
        key, kw, kb = jax.random.split(key, 3)
        std = math.sqrt(2.0 / (cin * 9))                        # kaiming_normal_(a=0, fan_in)
        w = std * jax.random.normal(kw, (cout, cin, 3, 3), jnp.float32)
        w = w / _spectral_sigma(w.reshape(cout, cin * 9))       # spectral norm
        bias = jax.random.uniform(kb, (), jnp.float32, -1.0, 1.0)  # default Linear(1,1) bias
        raw.append((w, bias))
    return raw


def pack_params(raw_params, n_channels, image_channels):
    """Fold the Linear(1,1) weight (0.025) into the conv weights and pack them in the
    dx-major / (dy, cin)-flattened layout the fused kernel consumes:
        W_col[dx][dy*cin + c, cout] = 0.025 * W_sn[cout, c, dy, dx]
    with tiny channel counts zero-padded to CPAD lanes."""
    scale = 0.025

    def dx_major(w, cin_pad=0, cout_pad=0):        # (Cout,Cin,3,3) -> (3, 3*Cin', Cout')
        t = jnp.transpose(w, (3, 2, 1, 0)) * scale  # (dx, dy, cin, cout)
        t = jnp.pad(t, ((0, 0), (0, 0), (0, cin_pad), (0, cout_pad)))
        dx, dy, cin, cout = t.shape
        return t.reshape(dx, dy * cin, cout)

    w0 = dx_major(raw_params[0][0],
                  cin_pad=CPAD - image_channels).astype(jnp.bfloat16)     # (3, 3*CPAD, ch)
    w_mid = jnp.concatenate([dx_major(w) for (w, _) in raw_params[1:-1]],
                            axis=0).astype(jnp.bfloat16)                  # (3*(depth-2), 3*ch, ch)
    w_last = dx_major(raw_params[-1][0],
                      cout_pad=CPAD - image_channels).astype(jnp.bfloat16)  # (3, 3*ch, CPAD)
    b = jnp.stack([bb for (_, bb) in raw_params]).astype(jnp.float32)
    return {"w0": w0, "w_mid": w_mid, "w_last": w_last, "b": b}


# ------------------------------ pure-JAX reference ----------------------------- #

def dncnn_sn_reference(x_nchw, raw_params):
    dn = ("NCHW", "OIHW", "NCHW")
    out = x_nchw
    last = len(raw_params) - 1
    for i, (w, bias) in enumerate(raw_params):
        out = lax.conv_general_dilated(out, w, (1, 1), ((1, 1), (1, 1)),
                                       dimension_numbers=dn)
        out = 0.025 * out + bias
        if i != last:
            out = jax.nn.relu(out)
    return x_nchw - out


# ----------------------------------- main ------------------------------------- #

if __name__ == "__main__":
    key = jax.random.PRNGKey(0)
    k_x, k_p = jax.random.split(key)

    # Small config consistent with the module (defaults depth=20, n_channels=64,
    # image_channels=1); scaled down for a quick synthetic run.
    depth, n_channels, image_channels = 5, 32, 1
    N, H, W = 2, 16, 16

    x = jax.random.normal(k_x, (N, image_channels, H, W), jnp.float32)
    raw_params = init_dncnn_sn_params(k_p, depth, n_channels, image_channels)
    params = pack_params(raw_params, n_channels, image_channels)

    fwd = jax.jit(functools.partial(dncnn_sn_forward, image_channels=image_channels))
    y = fwd(x, params)
    jax.block_until_ready(y)

    assert y.shape == (N, image_channels, H, W)
    assert y.dtype == jnp.float32

    # Numerical check against a pure-JAX reference (bf16 MXU operands => loose tol).
    y_ref = dncnn_sn_reference(x, raw_params)
    err = float(jnp.max(jnp.abs(y - y_ref)))
    assert err < 2e-2, f"max abs err vs reference: {err}"

    print("KERNEL_OK")
</pallas_src>

<mosaic_0001>
module attributes {stable_mosaic.version = 11 : i64} {
  func.func @kernel(%arg0: i32, %arg1: memref<1x480x8xf32, #tpu.memory_space<vmem>>, %arg2: memref<432x32xf32, #tpu.memory_space<vmem>>, %arg3: memref<3x24x32xbf16, #tpu.memory_space<vmem>>, %arg4: memref<9x96x32xbf16, #tpu.memory_space<vmem>>, %arg5: memref<3x96x8xbf16, #tpu.memory_space<vmem>>, %arg6: memref<5xf32, #tpu.memory_space<smem>>, %arg7: memref<1x432x8xf32, #tpu.memory_space<vmem>>, %arg8: memref<480x32xbf16, #tpu.memory_space<vmem>>, %arg9: memref<448x96xbf16, #tpu.memory_space<vmem>>) attributes {dimension_semantics = [#tpu.dimension_semantics<parallel>], iteration_bounds = array<i64: 2>, scalar_prefetch = 0 : i64, scratch_operands = 2 : i64, tpu.core_type = #tpu.core_type<tc>, window_params = [{transform_indices = @transform_0, window_bounds = array<i64: 1, 480, 8>}, {pipeline_mode = #tpu.pipeline_mode<synchronous>, transform_indices = @transform_1, window_bounds = array<i64: 432, 32>}, {pipeline_mode = #tpu.pipeline_mode<synchronous>, transform_indices = @transform_2, window_bounds = array<i64: 3, 24, 32>}, {pipeline_mode = #tpu.pipeline_mode<synchronous>, transform_indices = @transform_3, window_bounds = array<i64: 9, 96, 32>}, {pipeline_mode = #tpu.pipeline_mode<synchronous>, transform_indices = @transform_4, window_bounds = array<i64: 3, 96, 8>}, {transform_indices = @transform_5, window_bounds = array<i64: 5>}, {transform_indices = @transform_6, window_bounds = array<i64: 1, 432, 8>}]} {
    %cst = arith.constant 0.000000e+00 : bf16
    %0 = vector.broadcast %cst : bf16 to vector<24x32xbf16>
    %c0 = arith.constant 0 : index
    %c0_0 = arith.constant 0 : index
    %1 = vector.load %arg8[%c0, %c0_0] : memref<480x32xbf16, #tpu.memory_space<vmem>>, vector<24x32xbf16>
    tpu.vector_store %arg8[%c0, %c0_0], %0 {strides = array<i32>} : memref<480x32xbf16, #tpu.memory_space<vmem>>, vector<24x32xbf16>,
    %cst_1 = arith.constant 0.000000e+00 : bf16
    %2 = vector.broadcast %cst_1 : bf16 to vector<24x32xbf16>
    %c456 = arith.constant 456 : index
    %c0_2 = arith.constant 0 : index
    %3 = vector.load %arg8[%c456, %c0_2] : memref<480x32xbf16, #tpu.memory_space<vmem>>, vector<24x32xbf16>
    tpu.vector_store %arg8[%c456, %c0_2], %2 {strides = array<i32>} : memref<480x32xbf16, #tpu.memory_space<vmem>>, vector<24x32xbf16>,
    %cst_3 = arith.constant 0.000000e+00 : bf16
    %4 = vector.broadcast %cst_3 : bf16 to vector<8x96xbf16>
    %c0_4 = arith.constant 0 : index
    %c0_5 = arith.constant 0 : index
    %5 = vector.load %arg9[%c0_4, %c0_5] : memref<448x96xbf16, #tpu.memory_space<vmem>>, vector<8x96xbf16>
    tpu.vector_store %arg9[%c0_4, %c0_5], %4 {strides = array<i32>} : memref<448x96xbf16, #tpu.memory_space<vmem>>, vector<8x96xbf16>,
    %cst_6 = arith.constant 0.000000e+00 : bf16
    %6 = vector.broadcast %cst_6 : bf16 to vector<8x96xbf16>
    %c440 = arith.constant 440 : index
    %c0_7 = arith.constant 0 : index
    %7 = vector.load %arg9[%c440, %c0_7] : memref<448x96xbf16, #tpu.memory_space<vmem>>, vector<8x96xbf16>
    tpu.vector_store %arg9[%c440, %c0_7], %6 {strides = array<i32>} : memref<448x96xbf16, #tpu.memory_space<vmem>>, vector<8x96xbf16>,
    %c0_8 = arith.constant 0 : index
    %8 = memref.load %arg6[%c0_8] : memref<5xf32, #tpu.memory_space<smem>>
    %c0_9 = arith.constant 0 : index
    %c0_10 = arith.constant 0 : index
    %c0_11 = arith.constant 0 : index
    %9 = vector.load %arg1[%c0_9, %c0_10, %c0_11] : memref<1x480x8xf32, #tpu.memory_space<vmem>>, vector<1x432x8xf32>
    %10 = vector.shape_cast %9 : vector<1x432x8xf32> to vector<432x8xf32>
    %11 = arith.truncf %10 : vector<432x8xf32> to vector<432x8xbf16>
    %c8 = arith.constant 8 : index
    %c0_12 = arith.constant 0 : index
    %12 = vector.load %arg9[%c8, %c0_12] : memref<448x96xbf16, #tpu.memory_space<vmem>>, vector<432x8xbf16>
    tpu.vector_store %arg9[%c8, %c0_12], %11 {strides = array<i32>} : memref<448x96xbf16, #tpu.memory_space<vmem>>, vector<432x8xbf16>,
    %c0_13 = arith.constant 0 : index
    %c24 = arith.constant 24 : index
    %c0_14 = arith.constant 0 : index
    %13 = vector.load %arg1[%c0_13, %c24, %c0_14] : memref<1x480x8xf32, #tpu.memory_space<vmem>>, vector<1x432x8xf32>
    %14 = vector.shape_cast %13 : vector<1x432x8xf32> to vector<432x8xf32>
    %15 = arith.truncf %14 : vector<432x8xf32> to vector<432x8xbf16>
    %c8_15 = arith.constant 8 : index
    %c8_16 = arith.constant 8 : index
    %16 = vector.load %arg9[%c8_15, %c8_16] : memref<448x96xbf16, #tpu.memory_space<vmem>>, vector<432x8xbf16>
    tpu.vector_store %arg9[%c8_15, %c8_16], %15 {strides = array<i32>} : memref<448x96xbf16, #tpu.memory_space<vmem>>, vector<432x8xbf16>,
    %c0_17 = arith.constant 0 : index
    %c48 = arith.constant 48 : index
    %c0_18 = arith.constant 0 : index
    %17 = vector.load %arg1[%c0_17, %c48, %c0_18] : memref<1x480x8xf32, #tpu.memory_space<vmem>>, vector<1x432x8xf32>
    %18 = vector.shape_cast %17 : vector<1x432x8xf32> to vector<432x8xf32>
    %19 = arith.truncf %18 : vector<432x8xf32> to vector<432x8xbf16>
    %c8_19 = arith.constant 8 : index
    %c16 = arith.constant 16 : index
    %20 = vector.load %arg9[%c8_19, %c16] : memref<448x96xbf16, #tpu.memory_space<vmem>>, vector<432x8xbf16>
    tpu.vector_store %arg9[%c8_19, %c16], %19 {strides = array<i32>} : memref<448x96xbf16, #tpu.memory_space<vmem>>, vector<432x8xbf16>,
    %c7 = arith.constant 7 : index
    %c0_20 = arith.constant 0 : index
    %21 = vector.load %arg9[%c7, %c0_20] : memref<448x96xbf16, #tpu.memory_space<vmem>>, vector<432x24xbf16>
    %c0_21 = arith.constant 0 : index
    %c0_22 = arith.constant 0 : index
    %c0_23 = arith.constant 0 : index
    %22 = vector.load %arg3[%c0_21, %c0_22, %c0_23] : memref<3x24x32xbf16, #tpu.memory_space<vmem>>, vector<1x24x32xbf16>
    %23 = vector.shape_cast %22 : vector<1x24x32xbf16> to vector<24x32xbf16>
    %cst_24 = arith.constant dense<0.000000e+00> : vector<432x32xf32>
    %24 = tpu.matmul %21, %23, %cst_24 {dimension_numbers = #tpu.dot_dimension_numbers<[1], [0], [0], [1], [0, 0, 1, 1], [], []>} : vector<432x24xbf16>, vector<24x32xbf16>, vector<432x32xf32> -> vector<432x32xf32>
    %c8_25 = arith.constant 8 : index
    %c0_26 = arith.constant 0 : index
    %25 = vector.load %arg9[%c8_25, %c0_26] : memref<448x96xbf16, #tpu.memory_space<vmem>>, vector<432x24xbf16>
    %c1 = arith.constant 1 : index
    %c0_27 = arith.constant 0 : index
    %c0_28 = arith.constant 0 : index
    %26 = vector.load %arg3[%c1, %c0_27, %c0_28] : memref<3x24x32xbf16, #tpu.memory_space<vmem>>, vector<1x24x32xbf16>
    %27 = vector.shape_cast %26 : vector<1x24x32xbf16> to vector<24x32xbf16>
    %cst_29 = arith.constant dense<0.000000e+00> : vector<432x32xf32>
    %28 = tpu.matmul %25, %27, %cst_29 {dimension_numbers = #tpu.dot_dimension_numbers<[1], [0], [0], [1], [0, 0, 1, 1], [], []>} : vector<432x24xbf16>, vector<24x32xbf16>, vector<432x32xf32> -> vector<432x32xf32>
    %29 = arith.addf %24, %28 : vector<432x32xf32>
    %c9 = arith.constant 9 : index
    %c0_30 = arith.constant 0 : index
    %30 = vector.load %arg9[%c9, %c0_30] : memref<448x96xbf16, #tpu.memory_space<vmem>>, vector<432x24xbf16>
    %c2 = arith.constant 2 : index
    %c0_31 = arith.constant 0 : index
    %c0_32 = arith.constant 0 : index
    %31 = vector.load %arg3[%c2, %c0_31, %c0_32] : memref<3x24x32xbf16, #tpu.memory_space<vmem>>, vector<1x24x32xbf16>
    %32 = vector.shape_cast %31 : vector<1x24x32xbf16> to vector<24x32xbf16>
    %cst_33 = arith.constant dense<0.000000e+00> : vector<432x32xf32>
    %33 = tpu.matmul %30, %32, %cst_33 {dimension_numbers = #tpu.dot_dimension_numbers<[1], [0], [0], [1], [0, 0, 1, 1], [], []>} : vector<432x24xbf16>, vector<24x32xbf16>, vector<432x32xf32> -> vector<432x32xf32>
    %34 = arith.addf %29, %33 : vector<432x32xf32>
    %35 = vector.broadcast %8 : f32 to vector<432x32xf32>
    %36 = arith.addf %34, %35 : vector<432x32xf32>
    %cst_34 = arith.constant 0.000000e+00 : f32
    %37 = vector.broadcast %cst_34 : f32 to vector<432x32xf32>
    %38 = arith.maximumf %36, %37 : vector<432x32xf32>
    %c0_35 = arith.constant 0 : index
    %c0_36 = arith.constant 0 : index
    %39 = vector.load %arg2[%c0_35, %c0_36] : memref<432x32xf32, #tpu.memory_space<vmem>>, vector<432x32xf32>
    %40 = arith.mulf %38, %39 : vector<432x32xf32>
    %41 = arith.truncf %40 : vector<432x32xf32> to vector<432x32xbf16>
    %c24_37 = arith.constant 24 : index
    %c0_38 = arith.constant 0 : index
    %42 = vector.load %arg8[%c24_37, %c0_38] : memref<480x32xbf16, #tpu.memory_space<vmem>>, vector<432x32xbf16>
    tpu.vector_store %arg8[%c24_37, %c0_38], %41 {strides = array<i32>} : memref<480x32xbf16, #tpu.memory_space<vmem>>, vector<432x32xbf16>,
    %c0_i32 = arith.constant 0 : i32
    %c3_i32 = arith.constant 3 : i32
    %43 = arith.addi %c0_i32, %c3_i32 : i32
    %c1_i32 = arith.constant 1 : i32
    scf.for %arg10 = %c0_i32 to %43 step %c1_i32  : i32 {
      %c1_i32_74 = arith.constant 1 : i32
      %73 = arith.addi %c1_i32_74, %arg10 : i32
      %74 = arith.index_cast %73 : i32 to index
      %75 = memref.load %arg6[%74] : memref<5xf32, #tpu.memory_space<smem>>
      %c0_75 = arith.constant 0 : index
      %c0_76 = arith.constant 0 : index
      %76 = vector.load %arg8[%c0_75, %c0_76] : memref<480x32xbf16, #tpu.memory_space<vmem>>, vector<432x32xbf16>
      %c8_77 = arith.constant 8 : index
      %c0_78 = arith.constant 0 : index
      %77 = vector.load %arg9[%c8_77, %c0_78] : memref<448x96xbf16, #tpu.memory_space<vmem>>, vector<432x32xbf16>
      tpu.vector_store %arg9[%c8_77, %c0_78], %76 {strides = array<i32>} : memref<448x96xbf16, #tpu.memory_space<vmem>>, vector<432x32xbf16>,
      %c24_79 = arith.constant 24 : index
      %c0_80 = arith.constant 0 : index
      %78 = vector.load %arg8[%c24_79, %c0_80] : memref<480x32xbf16, #tpu.memory_space<vmem>>, vector<432x32xbf16>
      %c8_81 = arith.constant 8 : index
      %c32_82 = arith.constant 32 : index
      %79 = vector.load %arg9[%c8_81, %c32_82] : memref<448x96xbf16, #tpu.memory_space<vmem>>, vector<432x32xbf16>
      tpu.vector_store %arg9[%c8_81, %c32_82], %78 {strides = array<i32>} : memref<448x96xbf16, #tpu.memory_space<vmem>>, vector<432x32xbf16>,
      %c48_83 = arith.constant 48 : index
      %c0_84 = arith.constant 0 : index
      %80 = vector.load %arg8[%c48_83, %c0_84] : memref<480x32xbf16, #tpu.memory_space<vmem>>, vector<432x32xbf16>
      %c8_85 = arith.constant 8 : index
      %c64_86 = arith.constant 64 : index
      %81 = vector.load %arg9[%c8_85, %c64_86] : memref<448x96xbf16, #tpu.memory_space<vmem>>, vector<432x32xbf16>
      tpu.vector_store %arg9[%c8_85, %c64_86], %80 {strides = array<i32>} : memref<448x96xbf16, #tpu.memory_space<vmem>>, vector<432x32xbf16>,
      %c7_87 = arith.constant 7 : index
      %c0_88 = arith.constant 0 : index
      %82 = vector.load %arg9[%c7_87, %c0_88] : memref<448x96xbf16, #tpu.memory_space<vmem>>, vector<432x96xbf16>
      %c3_i32_89 = arith.constant 3 : i32
      %83 = arith.muli %arg10, %c3_i32_89 : i32
      %c0_i32_90 = arith.constant 0 : i32
      %84 = arith.addi %83, %c0_i32_90 : i32
      %85 = arith.index_cast %84 : i32 to index
      %c0_91 = arith.constant 0 : index
      %c0_92 = arith.constant 0 : index
      %86 = vector.load %arg4[%85, %c0_91, %c0_92] : memref<9x96x32xbf16, #tpu.memory_space<vmem>>, vector<1x96x32xbf16>
      %87 = vector.shape_cast %86 : vector<1x96x32xbf16> to vector<96x32xbf16>
      %cst_93 = arith.constant dense<0.000000e+00> : vector<432x32xf32>
      %88 = tpu.matmul %82, %87, %cst_93 {dimension_numbers = #tpu.dot_dimension_numbers<[1], [0], [0], [1], [0, 0, 1, 1], [], []>} : vector<432x96xbf16>, vector<96x32xbf16>, vector<432x32xf32> -> vector<432x32xf32>
      %c8_94 = arith.constant 8 : index
      %c0_95 = arith.constant 0 : index
      %89 = vector.load %arg9[%c8_94, %c0_95] : memref<448x96xbf16, #tpu.memory_space<vmem>>, vector<432x96xbf16>
      %c3_i32_96 = arith.constant 3 : i32
      %90 = arith.muli %arg10, %c3_i32_96 : i32
      %c1_i32_97 = arith.constant 1 : i32
      %91 = arith.addi %90, %c1_i32_97 : i32
      %92 = arith.index_cast %91 : i32 to index
      %c0_98 = arith.constant 0 : index
      %c0_99 = arith.constant 0 : index
      %93 = vector.load %arg4[%92, %c0_98, %c0_99] : memref<9x96x32xbf16, #tpu.memory_space<vmem>>, vector<1x96x32xbf16>
      %94 = vector.shape_cast %93 : vector<1x96x32xbf16> to vector<96x32xbf16>
      %cst_100 = arith.constant dense<0.000000e+00> : vector<432x32xf32>
      %95 = tpu.matmul %89, %94, %cst_100 {dimension_numbers = #tpu.dot_dimension_numbers<[1], [0], [0], [1], [0, 0, 1, 1], [], []>} : vector<432x96xbf16>, vector<96x32xbf16>, vector<432x32xf32> -> vector<432x32xf32>
      %96 = arith.addf %88, %95 : vector<432x32xf32>
      %c9_101 = arith.constant 9 : index
      %c0_102 = arith.constant 0 : index
      %97 = vector.load %arg9[%c9_101, %c0_102] : memref<448x96xbf16, #tpu.memory_space<vmem>>, vector<432x96xbf16>
      %c3_i32_103 = arith.constant 3 : i32
      %98 = arith.muli %arg10, %c3_i32_103 : i32
      %c2_i32 = arith.constant 2 : i32
      %99 = arith.addi %98, %c2_i32 : i32
      %100 = arith.index_cast %99 : i32 to index
      %c0_104 = arith.constant 0 : index
      %c0_105 = arith.constant 0 : index
      %101 = vector.load %arg4[%100, %c0_104, %c0_105] : memref<9x96x32xbf16, #tpu.memory_space<vmem>>, vector<1x96x32xbf16>
      %102 = vector.shape_cast %101 : vector<1x96x32xbf16> to vector<96x32xbf16>
      %cst_106 = arith.constant dense<0.000000e+00> : vector<432x32xf32>
      %103 = tpu.matmul %97, %102, %cst_106 {dimension_numbers = #tpu.dot_dimension_numbers<[1], [0], [0], [1], [0, 0, 1, 1], [], []>} : vector<432x96xbf16>, vector<96x32xbf16>, vector<432x32xf32> -> vector<432x32xf32>
      %104 = arith.addf %96, %103 : vector<432x32xf32>
      %105 = vector.broadcast %75 : f32 to vector<432x32xf32>
      %106 = arith.addf %104, %105 : vector<432x32xf32>
      %cst_107 = arith.constant 0.000000e+00 : f32
      %107 = vector.broadcast %cst_107 : f32 to vector<432x32xf32>
      %108 = arith.maximumf %106, %107 : vector<432x32xf32>
      %c0_108 = arith.constant 0 : index
      %c0_109 = arith.constant 0 : index
      %109 = vector.load %arg2[%c0_108, %c0_109] : memref<432x32xf32, #tpu.memory_space<vmem>>, vector<432x32xf32>
      %110 = arith.mulf %108, %109 : vector<432x32xf32>
      %111 = arith.truncf %110 : vector<432x32xf32> to vector<432x32xbf16>
      %c24_110 = arith.constant 24 : index
      %c0_111 = arith.constant 0 : index
      %112 = vector.load %arg8[%c24_110, %c0_111] : memref<480x32xbf16, #tpu.memory_space<vmem>>, vector<432x32xbf16>
      tpu.vector_store %arg8[%c24_110, %c0_111], %111 {strides = array<i32>} : memref<480x32xbf16, #tpu.memory_space<vmem>>, vector<432x32xbf16>,
    }
    %c3_i32_39 = arith.constant 3 : i32
    %c4 = arith.constant 4 : index
    %44 = memref.load %arg6[%c4] : memref<5xf32, #tpu.memory_space<smem>>
    %c0_40 = arith.constant 0 : index
    %c0_41 = arith.constant 0 : index
    %45 = vector.load %arg8[%c0_40, %c0_41] : memref<480x32xbf16, #tpu.memory_space<vmem>>, vector<432x32xbf16>
    %c8_42 = arith.constant 8 : index
    %c0_43 = arith.constant 0 : index
    %46 = vector.load %arg9[%c8_42, %c0_43] : memref<448x96xbf16, #tpu.memory_space<vmem>>, vector<432x32xbf16>
    tpu.vector_store %arg9[%c8_42, %c0_43], %45 {strides = array<i32>} : memref<448x96xbf16, #tpu.memory_space<vmem>>, vector<432x32xbf16>,
    %c24_44 = arith.constant 24 : index
    %c0_45 = arith.constant 0 : index
    %47 = vector.load %arg8[%c24_44, %c0_45] : memref<480x32xbf16, #tpu.memory_space<vmem>>, vector<432x32xbf16>
    %c8_46 = arith.constant 8 : index
    %c32 = arith.constant 32 : index
    %48 = vector.load %arg9[%c8_46, %c32] : memref<448x96xbf16, #tpu.memory_space<vmem>>, vector<432x32xbf16>
    tpu.vector_store %arg9[%c8_46, %c32], %47 {strides = array<i32>} : memref<448x96xbf16, #tpu.memory_space<vmem>>, vector<432x32xbf16>,
    %c48_47 = arith.constant 48 : index
    %c0_48 = arith.constant 0 : index
    %49 = vector.load %arg8[%c48_47, %c0_48] : memref<480x32xbf16, #tpu.memory_space<vmem>>, vector<432x32xbf16>
    %c8_49 = arith.constant 8 : index
    %c64 = arith.constant 64 : index
    %50 = vector.load %arg9[%c8_49, %c64] : memref<448x96xbf16, #tpu.memory_space<vmem>>, vector<432x32xbf16>
    tpu.vector_store %arg9[%c8_49, %c64], %49 {strides = array<i32>} : memref<448x96xbf16, #tpu.memory_space<vmem>>, vector<432x32xbf16>,
    %c7_50 = arith.constant 7 : index
    %c0_51 = arith.constant 0 : index
    %51 = vector.load %arg9[%c7_50, %c0_51] : memref<448x96xbf16, #tpu.memory_space<vmem>>, vector<432x96xbf16>
    %c0_52 = arith.constant 0 : index
    %c0_53 = arith.constant 0 : index
    %c0_54 = arith.constant 0 : index
    %52 = vector.load %arg5[%c0_52, %c0_53, %c0_54] : memref<3x96x8xbf16, #tpu.memory_space<vmem>>, vector<1x96x8xbf16>
    %53 = vector.shape_cast %52 : vector<1x96x8xbf16> to vector<96x8xbf16>
    %cst_55 = arith.constant dense<0.000000e+00> : vector<432x8xf32>
    %54 = tpu.matmul %51, %53, %cst_55 {dimension_numbers = #tpu.dot_dimension_numbers<[1], [0], [0], [1], [0, 0, 1, 1], [], []>} : vector<432x96xbf16>, vector<96x8xbf16>, vector<432x8xf32> -> vector<432x8xf32>
    %c8_56 = arith.constant 8 : index
    %c0_57 = arith.constant 0 : index
    %55 = vector.load %arg9[%c8_56, %c0_57] : memref<448x96xbf16, #tpu.memory_space<vmem>>, vector<432x96xbf16>
    %c1_58 = arith.constant 1 : index
    %c0_59 = arith.constant 0 : index
    %c0_60 = arith.constant 0 : index
    %56 = vector.load %arg5[%c1_58, %c0_59, %c0_60] : memref<3x96x8xbf16, #tpu.memory_space<vmem>>, vector<1x96x8xbf16>
    %57 = vector.shape_cast %56 : vector<1x96x8xbf16> to vector<96x8xbf16>
    %cst_61 = arith.constant dense<0.000000e+00> : vector<432x8xf32>
    %58 = tpu.matmul %55, %57, %cst_61 {dimension_numbers = #tpu.dot_dimension_numbers<[1], [0], [0], [1], [0, 0, 1, 1], [], []>} : vector<432x96xbf16>, vector<96x8xbf16>, vector<432x8xf32> -> vector<432x8xf32>
    %59 = arith.addf %54, %58 : vector<432x8xf32>
    %c9_62 = arith.constant 9 : index
    %c0_63 = arith.constant 0 : index
    %60 = vector.load %arg9[%c9_62, %c0_63] : memref<448x96xbf16, #tpu.memory_space<vmem>>, vector<432x96xbf16>
    %c2_64 = arith.constant 2 : index
    %c0_65 = arith.constant 0 : index
    %c0_66 = arith.constant 0 : index
    %61 = vector.load %arg5[%c2_64, %c0_65, %c0_66] : memref<3x96x8xbf16, #tpu.memory_space<vmem>>, vector<1x96x8xbf16>
    %62 = vector.shape_cast %61 : vector<1x96x8xbf16> to vector<96x8xbf16>
    %cst_67 = arith.constant dense<0.000000e+00> : vector<432x8xf32>
    %63 = tpu.matmul %60, %62, %cst_67 {dimension_numbers = #tpu.dot_dimension_numbers<[1], [0], [0], [1], [0, 0, 1, 1], [], []>} : vector<432x96xbf16>, vector<96x8xbf16>, vector<432x8xf32> -> vector<432x8xf32>
    %64 = arith.addf %59, %63 : vector<432x8xf32>
    %65 = vector.broadcast %44 : f32 to vector<432x8xf32>
    %66 = arith.addf %64, %65 : vector<432x8xf32>
    %c0_68 = arith.constant 0 : index
    %c24_69 = arith.constant 24 : index
    %c0_70 = arith.constant 0 : index
    %67 = vector.load %arg1[%c0_68, %c24_69, %c0_70] : memref<1x480x8xf32, #tpu.memory_space<vmem>>, vector<1x432x8xf32>
    %68 = vector.shape_cast %67 : vector<1x432x8xf32> to vector<432x8xf32>
    %69 = arith.subf %68, %66 : vector<432x8xf32>
    %c0_71 = arith.constant 0 : index
    %c0_72 = arith.constant 0 : index
    %c0_73 = arith.constant 0 : index
    %70 = vector.load %arg7[%c0_71, %c0_72, %c0_73] : memref<1x432x8xf32, #tpu.memory_space<vmem>>, vector<1x432x8xf32>
    %71 = vector.shape_cast %70 : vector<1x432x8xf32> to vector<432x8xf32>
    %72 = vector.shape_cast %69 : vector<432x8xf32> to vector<1x432x8xf32>
    tpu.vector_store %arg7[%c0_71, %c0_72, %c0_73], %72 {strides = array<i32>} : memref<1x432x8xf32, #tpu.memory_space<vmem>>, vector<1x432x8xf32>,
    return
  }
  func.func @transform_0(%arg0: i32) -> (i32, i32, i32) {
    %c0_i32 = arith.constant 0 : i32
    %c0_i32_0 = arith.constant 0 : i32
    %c0_i32_1 = arith.constant 0 : i32
    return %arg0, %c0_i32, %c0_i32_0 : i32, i32, i32
  }
  func.func @transform_1(%arg0: i32) -> (i32, i32) {
    %c0_i32 = arith.constant 0 : i32
    %c0_i32_0 = arith.constant 0 : i32
    %c0_i32_1 = arith.constant 0 : i32
    return %c0_i32, %c0_i32_0 : i32, i32
  }
  func.func @transform_2(%arg0: i32) -> (i32, i32, i32) {
    %c0_i32 = arith.constant 0 : i32
    %c0_i32_0 = arith.constant 0 : i32
    %c0_i32_1 = arith.constant 0 : i32
    %c0_i32_2 = arith.constant 0 : i32
    return %c0_i32, %c0_i32_0, %c0_i32_1 : i32, i32, i32
  }
  func.func @transform_3(%arg0: i32) -> (i32, i32, i32) {
    %c0_i32 = arith.constant 0 : i32
    %c0_i32_0 = arith.constant 0 : i32
    %c0_i32_1 = arith.constant 0 : i32
    %c0_i32_2 = arith.constant 0 : i32
    return %c0_i32, %c0_i32_0, %c0_i32_1 : i32, i32, i32
  }
  func.func @transform_4(%arg0: i32) -> (i32, i32, i32) {
    %c0_i32 = arith.constant 0 : i32
    %c0_i32_0 = arith.constant 0 : i32
    %c0_i32_1 = arith.constant 0 : i32
    %c0_i32_2 = arith.constant 0 : i32
    return %c0_i32, %c0_i32_0, %c0_i32_1 : i32, i32, i32
  }
  func.func @transform_5(%arg0: i32) -> i32 {
    %c0_i32 = arith.constant 0 : i32
    %c0_i32_0 = arith.constant 0 : i32
    return %c0_i32 : i32
  }
  func.func @transform_6(%arg0: i32) -> (i32, i32, i32) {
    %c0_i32 = arith.constant 0 : i32
    %c0_i32_0 = arith.constant 0 : i32
    %c0_i32_1 = arith.constant 0 : i32
    return %arg0, %c0_i32, %c0_i32_0 : i32, i32, i32
  }
}

</mosaic_0001>

<llo_original>
// kernel: dncnn_sn_forward.1
$region0: #{dncnn_sn_forward.1}
  #allocation0 [shape = 'u32[]', space=smem, size = 0x4, offset = 0x4, fixed_abs, tag = 'smem constant byte address 0x4 - core index']
  #allocation1 [shape = 'u32[144,128]{1,0:T(1,128)}', space=vmem, size = 0x12000, scoped, tag = 'internal scratch']
  #allocation2 [shape = 'bf16[480,32]{1,0:T(16,128)(2,1)}', space=vmem, size = 0x1e000, scoped, tag = 'scratch operand']
  #allocation3 [shape = 'bf16[448,96]{1,0:T(16,128)(2,1)}', space=vmem, size = 0x1c000, scoped, tag = 'scratch operand']
  %s0 = inlined_call_operand.vmem [shape: f32[2,480,8], index: 0, kind: input, shape index: {}]
  %s1 = inlined_call_operand.vmem [shape: f32[432,32], index: 1, kind: input, shape index: {}]
  %s2 = inlined_call_operand.vmem [shape: bf16[3,24,32], index: 2, kind: input, shape index: {}]
  %s3 = inlined_call_operand.vmem [shape: bf16[9,96,32], index: 3, kind: input, shape index: {}]
  %s4 = inlined_call_operand.vmem [shape: bf16[3,96,8], index: 4, kind: input, shape index: {}]
  %s5 = inlined_call_operand.vmem [shape: f32[5], index: 5, kind: input, shape index: {}]
  %s6 = inlined_call_operand.vmem [shape: f32[2,432,8], index: 6, kind: output, shape index: {}]
  %s7 = sld [smem:[#allocation0]]
  $region68: #{dncnn_sn_forward.1} parent=0
    _
  %s9 = ssub.s32 1, %s7
  %s10 = scalar_select 0, %s9, %s7
  $region1: #{dncnn_sn_forward.1} parent=0
    #allocation4 [shape = 'u8[512]{0}', space=smem, size = 0x200, scoped, tag = 'input window, operand 5, single buffered']
    #allocation5 [shape = 's32[2]{0}', space=sflag, size = 0x8, scoped, tag = 'scoped memory for dncnn_sn_forward.1']
    %11 = vsyncpa [#allocation5], 0
    loop: start=0, step=1, limit=4
    $region2: #{dncnn_sn_forward.1} parent=1 // loop_pre_header
      _
    $region3: #{dncnn_sn_forward.1} parent=1 // loop_header
      %s13 = sphi 0, %s17
      %p14 = scmp.ge.s32.totalorder %s13, 4
      %s23 = sphi 0, %s25
      %s26 = sphi 0, %s23
      %s27 = sphi 0, %s26
      %s43 = sphi 0, %s27
      %s47 = sphi 0, %s47
      %s49 = sphi 0, %s47
      %s50 = sphi 0, %s49
      %s64 = sphi 0, %s50
      %s68 = sphi 0, %s68
      %s70 = sphi 0, %s68
      %s71 = sphi 0, %s70
      %s85 = sphi 0, %s71
      %s89 = sphi 0, %s89
      %s91 = sphi 0, %s89
      %s92 = sphi 0, %s91
      %s106 = sphi 0, %s92
      %s110 = sphi 0, %s110
      %s112 = sphi 0, %s110
      %s113 = sphi 0, %s112
      %s127 = sphi 0, %s113
      %s131 = sphi 0, %s131
      %s133 = sphi 0, %s131
      %s134 = sphi 0, %s133
      %s148 = sphi 0, %s134
      %s154 = sphi 0, %s156
      %s157 = sphi 0, %s154
      %s158 = sphi 0, %s157
      %s174 = sphi 0, %s158
    $region4: #{dncnn_sn_forward.1} parent=1 // loop_header_branch
      %16 = sbr.rel (%p14) target = $region8
    $region5: #{dncnn_sn_forward.1} parent=1 // loop_body
      %s18 = ssub.s32 %s13, 1
      %s19 = ssub.s32 %s13, 2
      %s20 = sadd.s32 %s13, 1
      %s21 = ssub.s32 %s13, %s20
      %p22 = scmp.eq.s32.totalorder %s21, 0
      %s24 = sadd.s32 %s23, 1
      %s25 = scalar_select %p22, %s23, %s24
      %p28 = pneg %p22
      %p29 = scmp.eq.s32.totalorder %s13, 1
      %p30 = por %p28, %p29
      %p31 = scmp.ne.s32.totalorder %s23, %s26
      %p32 = scmp.eq.s32.totalorder %s13, 0
      %p33 = por %p31, %p32
      %p34 = scmp.ne.s32.totalorder %s23, %s26
      %p35 = scmp.eq.s32.totalorder %s18, 1
      %p36 = por %p34, %p35
      %p37 = scmp.ne.s32.totalorder %s26, %s27
      %p38 = scmp.eq.s32.totalorder %s18, 0
      %p39 = por %p37, %p38
      %p40 = scmp.ne.s32.totalorder %s26, %s27
      %p41 = scmp.eq.s32.totalorder %s19, 1
      %p42 = por %p40, %p41
      %p44 = scmp.ne.s32.totalorder %s27, %s43
      %p45 = scmp.eq.s32.totalorder %s19, 0
      %p46 = por %p44, %p45
      %s48 = sadd.s32 %s47, 1
      %p51 = scmp.eq.s32.totalorder %s13, 1
      %p52 = scmp.ne.s32.totalorder %s47, %s49
      %p53 = scmp.eq.s32.totalorder %s13, 0
      %p54 = por %p52, %p53
      %p55 = scmp.ne.s32.totalorder %s47, %s49
      %p56 = scmp.eq.s32.totalorder %s18, 1
      %p57 = por %p55, %p56
      %p58 = scmp.ne.s32.totalorder %s49, %s50
      %p59 = scmp.eq.s32.totalorder %s18, 0
      %p60 = por %p58, %p59
      %p61 = scmp.ne.s32.totalorder %s49, %s50
      %p62 = scmp.eq.s32.totalorder %s19, 1
      %p63 = por %p61, %p62
      %p65 = scmp.ne.s32.totalorder %s50, %s64
      %p66 = scmp.eq.s32.totalorder %s19, 0
      %p67 = por %p65, %p66
      %s69 = sadd.s32 %s68, 1
      %p72 = scmp.eq.s32.totalorder %s13, 1
      %p73 = scmp.ne.s32.totalorder %s68, %s70
      %p74 = scmp.eq.s32.totalorder %s13, 0
      %p75 = por %p73, %p74
      %p76 = scmp.ne.s32.totalorder %s68, %s70
      %p77 = scmp.eq.s32.totalorder %s18, 1
      %p78 = por %p76, %p77
      %p79 = scmp.ne.s32.totalorder %s70, %s71
      %p80 = scmp.eq.s32.totalorder %s18, 0
      %p81 = por %p79, %p80
      %p82 = scmp.ne.s32.totalorder %s70, %s71
      %p83 = scmp.eq.s32.totalorder %s19, 1
      %p84 = por %p82, %p83
      %p86 = scmp.ne.s32.totalorder %s71, %s85
      %p87 = scmp.eq.s32.totalorder %s19, 0
      %p88 = por %p86, %p87
      %s90 = sadd.s32 %s89, 1
      %p93 = scmp.eq.s32.totalorder %s13, 1
      %p94 = scmp.ne.s32.totalorder %s89, %s91
      %p95 = scmp.eq.s32.totalorder %s13, 0
      %p96 = por %p94, %p95
      %p97 = scmp.ne.s32.totalorder %s89, %s91
      %p98 = scmp.eq.s32.totalorder %s18, 1
      %p99 = por %p97, %p98
      %p100 = scmp.ne.s32.totalorder %s91, %s92
      %p101 = scmp.eq.s32.totalorder %s18, 0
      %p102 = por %p100, %p101
      %p103 = scmp.ne.s32.totalorder %s91, %s92
      %p104 = scmp.eq.s32.totalorder %s19, 1
      %p105 = por %p103, %p104
      %p107 = scmp.ne.s32.totalorder %s92, %s106
      %p108 = scmp.eq.s32.totalorder %s19, 0
      %p109 = por %p107, %p108
      %s111 = sadd.s32 %s110, 1
      %p114 = scmp.eq.s32.totalorder %s13, 1
      %p115 = scmp.ne.s32.totalorder %s110, %s112
      %p116 = scmp.eq.s32.totalorder %s13, 0
      %p117 = por %p115, %p116
      %p118 = scmp.ne.s32.totalorder %s110, %s112
      %p119 = scmp.eq.s32.totalorder %s18, 1
      %p120 = por %p118, %p119
      %p121 = scmp.ne.s32.totalorder %s112, %s113
      %p122 = scmp.eq.s32.totalorder %s18, 0
      %p123 = por %p121, %p122
      %p124 = scmp.ne.s32.totalorder %s112, %s113
      %p125 = scmp.eq.s32.totalorder %s19, 1
      %p126 = por %p124, %p125
      %p128 = scmp.ne.s32.totalorder %s113, %s127
      %p129 = scmp.eq.s32.totalorder %s19, 0
      %p130 = por %p128, %p129
      %s132 = sadd.s32 %s131, 1
      %p135 = scmp.eq.s32.totalorder %s13, 1
      %p136 = scmp.ne.s32.totalorder %s131, %s133
      %p137 = scmp.eq.s32.totalorder %s13, 0
      %p138 = por %p136, %p137
      %p139 = scmp.ne.s32.totalorder %s131, %s133
      %p140 = scmp.eq.s32.totalorder %s18, 1
      %p141 = por %p139, %p140
      %p142 = scmp.ne.s32.totalorder %s133, %s134
      %p143 = scmp.eq.s32.totalorder %s18, 0
      %p144 = por %p142, %p143
      %p145 = scmp.ne.s32.totalorder %s133, %s134
      %p146 = scmp.eq.s32.totalorder %s19, 1
      %p147 = por %p145, %p146
      %p149 = scmp.ne.s32.totalorder %s134, %s148
      %p150 = scmp.eq.s32.totalorder %s19, 0
      %p151 = por %p149, %p150
      %s152 = ssub.s32 %s13, %s20
      %p153 = scmp.eq.s32.totalorder %s152, 0
      %s155 = sadd.s32 %s154, 1
      %s156 = scalar_select %p153, %s154, %s155
      %p159 = pneg %p153
      %p160 = scmp.eq.s32.totalorder %s13, 1
      %p161 = por %p159, %p160
      %p162 = scmp.ne.s32.totalorder %s154, %s157
      %p163 = scmp.eq.s32.totalorder %s13, 0
      %p164 = por %p162, %p163
      %p165 = scmp.ne.s32.totalorder %s154, %s157
      %p166 = scmp.eq.s32.totalorder %s18, 1
      %p167 = por %p165, %p166
      %p168 = scmp.ne.s32.totalorder %s157, %s158
      %p169 = scmp.eq.s32.totalorder %s18, 0
      %p170 = por %p168, %p169
      %p171 = scmp.ne.s32.totalorder %s157, %s158
      %p172 = scmp.eq.s32.totalorder %s19, 1
      %p173 = por %p171, %p172
      %p175 = scmp.ne.s32.totalorder %s158, %s174
      %p176 = scmp.eq.s32.totalorder %s19, 0
      %p177 = por %p175, %p176
      %p178 = scmp.le.s32.totalorder 1, %s13
      %p179 = scmp.lt.s32.totalorder %s13, 3
      %p180 = pnand %p178, %p179
      %p181 = pneg %p180
      // Predicated region
      $region9: #{dncnn_sn_forward.1} parent=5 // pred_check
        _
      $region10: #{dncnn_sn_forward.1} parent=5 // pred_check_branch
        %183 = sbr.rel (%p180) target = $region12
      $region11: #{dncnn_sn_forward.1} parent=5 // pred_region
        %s184 = ssub.s32 %s13, 1
        // Predicated region
        $region13: #{dncnn_sn_forward.1} parent=11 // pred_check
          %p185 = pneg %p60
        $region14: #{dncnn_sn_forward.1} parent=11 // pred_check_branch
          %187 = sbr.rel (%p185) target = $region16
        $region15: #{dncnn_sn_forward.1} parent=11 // pred_region
          _
        $region16: #{dncnn_sn_forward.1} parent=11 // pred_fallthru
          _
        // Predicated region
        $region17: #{dncnn_sn_forward.1} parent=11 // pred_check
          %p188 = pneg %p81
        $region18: #{dncnn_sn_forward.1} parent=11 // pred_check_branch
          %190 = sbr.rel (%p188) target = $region20
        $region19: #{dncnn_sn_forward.1} parent=11 // pred_region
          _
        $region20: #{dncnn_sn_forward.1} parent=11 // pred_fallthru
          _
        // Predicated region
        $region21: #{dncnn_sn_forward.1} parent=11 // pred_check
          %p191 = pneg %p102
        $region22: #{dncnn_sn_forward.1} parent=11 // pred_check_branch
          %193 = sbr.rel (%p191) target = $region24
        $region23: #{dncnn_sn_forward.1} parent=11 // pred_region
          _
        $region24: #{dncnn_sn_forward.1} parent=11 // pred_fallthru
          _
        // Predicated region
        $region25: #{dncnn_sn_forward.1} parent=11 // pred_check
          %p194 = pneg %p123
        $region26: #{dncnn_sn_forward.1} parent=11 // pred_check_branch
          %196 = sbr.rel (%p194) target = $region28
        $region27: #{dncnn_sn_forward.1} parent=11 // pred_region
          _
        $region28: #{dncnn_sn_forward.1} parent=11 // pred_fallthru
          _
        // Predicated region
        $region29: #{dncnn_sn_forward.1} parent=11 // pred_check
          %p197 = pneg %p144
        $region30: #{dncnn_sn_forward.1} parent=11 // pred_check_branch
          %199 = sbr.rel (%p197) target = $region32
        $region31: #{dncnn_sn_forward.1} parent=11 // pred_region
          %s201 = ssub.s32 16, 16
          %202 = vsyncadd [#allocation5], %s201
          %s204 = sshll.u32 %s5, 4
          %s205 = int_to_ptr.vmem [resolvable:$true] %s204
          %207 = dma.vmem_to_smem %s205, 16, [#allocation4], [#allocation5]
        $region32: #{dncnn_sn_forward.1} parent=11 // pred_fallthru
          _
      $region12: #{dncnn_sn_forward.1} parent=5 // pred_fallthru
        _
      %p208 = scmp.lt.s32.totalorder %s13, 2
      // Predicated region
      $region33: #{dncnn_sn_forward.1} parent=5 // pred_check
        %p209 = pneg %p208
      $region34: #{dncnn_sn_forward.1} parent=5 // pred_check_branch
        %211 = sbr.rel (%p209) target = $region36
      $region35: #{dncnn_sn_forward.1} parent=5 // pred_region
        // Predicated region
        $region37: #{dncnn_sn_forward.1} parent=35 // pred_check
          %p212 = pneg %p33
        $region38: #{dncnn_sn_forward.1} parent=35 // pred_check_branch
          %214 = sbr.rel (%p212) target = $region40
        $region39: #{dncnn_sn_forward.1} parent=35 // pred_region
          %p215 = scmp.lt.s32.totalorder %s13, 1
          %s216 = scalar_select %p215, %s13, 1
          %s217 = smul.addr %s216, 60
          %s218 = smul.addr %s217, 8
          %s219 = scalar_lea.vmem %s0, %s218
        $region40: #{dncnn_sn_forward.1} parent=35 // pred_fallthru
          _
      $region36: #{dncnn_sn_forward.1} parent=5 // pred_fallthru
        _
      %p220 = scmp.le.s32.totalorder 1, %s13
      %p221 = scmp.lt.s32.totalorder %s13, 3
      %p222 = pnand %p220, %p221
      %p223 = pneg %p222
      // Predicated region
      $region41: #{dncnn_sn_forward.1} parent=5 // pred_check
        _
      $region42: #{dncnn_sn_forward.1} parent=5 // pred_check_branch
        %225 = sbr.rel (%p222) target = $region44
      $region43: #{dncnn_sn_forward.1} parent=5 // pred_region
        %s226 = ssub.s32 %s13, 1
        // Predicated region
        $region45: #{dncnn_sn_forward.1} parent=43 // pred_check
          %p227 = pneg %p144
        $region46: #{dncnn_sn_forward.1} parent=43 // pred_check_branch
          %229 = sbr.rel (%p227) target = $region48
        $region47: #{dncnn_sn_forward.1} parent=43 // pred_region
          %230 = dma.done [#allocation5], 16
        $region48: #{dncnn_sn_forward.1} parent=43 // pred_fallthru
          _
        %231 = sfence
        %p232 = scmp.lt.s32.totalorder %s18, 1
        %s233 = scalar_select %p232, %s18, 1
        %s234 = smul.addr %s233, 60
        %s235 = smul.addr %s234, 8
        %s236 = scalar_lea.vmem %s0, %s235
        %p237 = pneg %p39
        %p238 = pneg %p36
        %p239 = pneg %p60
        %p240 = pneg %p57
        %p241 = pneg %p81
        %p242 = pneg %p78
        %p243 = pneg %p102
        %p244 = pneg %p99
        %p245 = pneg %p123
        %p246 = pneg %p120
        %p247 = pneg %p144
        %p248 = pneg %p141
        %p249 = pneg %p170
        %p250 = pneg %p167
        %p251 = scmp.lt.s32.totalorder %s18, 1
        %s252 = scalar_select %p251, %s18, 1
        %s253 = smul.addr %s252, 54
        %s254 = smul.addr %s253, 8
        %s255 = scalar_lea.vmem %s6, %s254
        %p256 = scmp.lt.s32.totalorder %s18, 1
        %s257 = scalar_select %p256, %s18, 1
        %s258 = smul.addr %s257, 60
        %s259 = smul.addr %s258, 8
        %s260 = scalar_lea.vmem %s0, %s259
        %p261 = scmp.lt.s32.totalorder %s18, 1
        %s262 = scalar_select %p261, %s18, 1
        %s263 = smul.addr %s262, 54
        %s264 = smul.addr %s263, 8
        %s265 = scalar_lea.vmem %s6, %s264
        %vm267 = vcmask 261120
        %268 = vst.msk [vmem:[#allocation2] sm:$0xff] %vm267, 0
        %vm269 = vcmask 257024
        %270 = vst.msk [vmem:[#allocation2 + $0x8] sm:$0xf] %vm269, 0
        %vm271 = vcmask 261124
        %272 = vst.msk [vmem:[#allocation2 + $0xe0] sm:$0xf0] %vm271, 0
        %273 = vst.msk [vmem:[#allocation2 + $0xe8] sm:$0xff] %vm267, 0
        %vm274 = vcmask 781312
        %275 = vst.msk [vmem:[#allocation3] sm:$0xf] %vm274, 0
        %vm276 = vcmask 785412
        %277 = vst.msk [vmem:[#allocation3 + $0xd8] sm:$0xf0] %vm276, 0
        %s278 = sld [smem:[#allocation4]]
        %v279 = vld [vmem:[%s260] sm:$0xff]
        %v280 = vld [vmem:[%s260 + $0x8] sm:$0xff]
        %v281 = vld [vmem:[%s260 + $0x10] sm:$0xff]
        %v282 = vld [vmem:[%s260 + $0x18] sm:$0xff]
        %v283 = vld [vmem:[%s260 + $0x20] sm:$0xff]
        %v284 = vld [vmem:[%s260 + $0x28] sm:$0xff]
        %v285 = vld [vmem:[%s260 + $0x30] sm:$0xff]
        %v286 = vld [vmem:[%s260 + $0x38] sm:$0xff]
        %v287 = vld [vmem:[%s260 + $0x40] sm:$0xff]
        %v288 = vld [vmem:[%s260 + $0x48] sm:$0xff]
        %v289 = vld [vmem:[%s260 + $0x50] sm:$0xff]
        %v290 = vld [vmem:[%s260 + $0x58] sm:$0xff]
        %v291 = vld [vmem:[%s260 + $0x60] sm:$0xff]
        %v292 = vld [vmem:[%s260 + $0x68] sm:$0xff]
        %v293 = vld [vmem:[%s260 + $0x70] sm:$0xff]
        %v294 = vld [vmem:[%s260 + $0x78] sm:$0xff]
        %v295 = vld [vmem:[%s260 + $0x80] sm:$0xff]
        %v296 = vld [vmem:[%s260 + $0x88] sm:$0xff]
        %v297 = vld [vmem:[%s260 + $0x90] sm:$0xff]
        %v298 = vld [vmem:[%s260 + $0x98] sm:$0xff]
        %v299 = vld [vmem:[%s260 + $0xa0] sm:$0xff]
        %v300 = vld [vmem:[%s260 + $0xa8] sm:$0xff]
        %v301 = vld [vmem:[%s260 + $0xb0] sm:$0xff]
        %v302 = vld [vmem:[%s260 + $0xb8] sm:$0xff]
        %v303 = vld [vmem:[%s260 + $0xc0] sm:$0xff]
        %v304 = vld [vmem:[%s260 + $0xc8] sm:$0xff]
        %v305 = vld [vmem:[%s260 + $0xd0] sm:$0xff]
        %v306 = vld [vmem:[%s260 + $0xd8] sm:$0xff]
        %v307 = vld [vmem:[%s260 + $0xe0] sm:$0xff]
        %v308 = vld [vmem:[%s260 + $0xe8] sm:$0xff]
        %v309 = vld [vmem:[%s260 + $0xf0] sm:$0xff]
        %v310 = vld [vmem:[%s260 + $0xf8] sm:$0xff]
        %v311 = vld [vmem:[%s260 + $0x100] sm:$0xff]
        %v312 = vld [vmem:[%s260 + $0x108] sm:$0xff]
        %v313 = vld [vmem:[%s260 + $0x110] sm:$0xff]
        %v314 = vld [vmem:[%s260 + $0x118] sm:$0xff]
        %v315 = vld [vmem:[%s260 + $0x120] sm:$0xff]
        %v316 = vld [vmem:[%s260 + $0x128] sm:$0xff]
        %v317 = vld [vmem:[%s260 + $0x130] sm:$0xff]
        %v318 = vld [vmem:[%s260 + $0x138] sm:$0xff]
        %v319 = vld [vmem:[%s260 + $0x140] sm:$0xff]
        %v320 = vld [vmem:[%s260 + $0x148] sm:$0xff]
        %v321 = vld [vmem:[%s260 + $0x150] sm:$0xff]
        %v322 = vld [vmem:[%s260 + $0x158] sm:$0xff]
        %v323 = vld [vmem:[%s260 + $0x160] sm:$0xff]
        %v324 = vld [vmem:[%s260 + $0x168] sm:$0xff]
        %v325 = vld [vmem:[%s260 + $0x170] sm:$0xff]
        %v326 = vld [vmem:[%s260 + $0x178] sm:$0xff]
        %v327 = vld [vmem:[%s260 + $0x180] sm:$0xff]
        %v328 = vld [vmem:[%s260 + $0x188] sm:$0xff]
        %v329 = vld [vmem:[%s260 + $0x190] sm:$0xff]
        %v330 = vld [vmem:[%s260 + $0x198] sm:$0xff]
        %v331 = vld [vmem:[%s260 + $0x1a0] sm:$0xff]
        %v332 = vld [vmem:[%s260 + $0x1a8] sm:$0xff]
        %v333 = vpack.c.bf16 %v280, %v279
        %v334 = vpack.c.bf16 %v282, %v281
        %v335 = vpack.c.bf16 %v284, %v283
        %v336 = vpack.c.bf16 %v286, %v285
        %v337 = vpack.c.bf16 %v288, %v287
        %v338 = vpack.c.bf16 %v290, %v289
        %v339 = vpack.c.bf16 %v292, %v291
        %v340 = vpack.c.bf16 %v294, %v293
        %v341 = vpack.c.bf16 %v296, %v295
        %v342 = vpack.c.bf16 %v298, %v297
        %v343 = vpack.c.bf16 %v300, %v299
        %v344 = vpack.c.bf16 %v302, %v301
        %v345 = vpack.c.bf16 %v304, %v303
        %v346 = vpack.c.bf16 %v306, %v305
        %v347 = vpack.c.bf16 %v308, %v307
        %v348 = vpack.c.bf16 %v310, %v309
        %v349 = vpack.c.bf16 %v312, %v311
        %v350 = vpack.c.bf16 %v314, %v313
        %v351 = vpack.c.bf16 %v316, %v315
        %v352 = vpack.c.bf16 %v318, %v317
        %v353 = vpack.c.bf16 %v320, %v319
        %v354 = vpack.c.bf16 %v322, %v321
        %v355 = vpack.c.bf16 %v324, %v323
        %v356 = vpack.c.bf16 %v326, %v325
        %v357 = vpack.c.bf16 %v328, %v327
        %v358 = vpack.c.bf16 %v330, %v329
        %v359 = vpack.c.bf16 %v332, %v331
        %vm387 = vcmask 1043456
        %v388 = vrot.slane %v333, 4
        %v389 = vrot.slane %v334, 4
        %v390 = vsel %vm387, %v388, %v389
        %v391 = vrot.slane %v335, 4
        %v392 = vsel %vm387, %v389, %v391
        %v393 = vrot.slane %v336, 4
        %v394 = vsel %vm387, %v391, %v393
        %v395 = vrot.slane %v337, 4
        %v396 = vsel %vm387, %v393, %v395
        %v397 = vrot.slane %v338, 4
        %v398 = vsel %vm387, %v395, %v397
        %v399 = vrot.slane %v339, 4
        %v400 = vsel %vm387, %v397, %v399
        %v401 = vrot.slane %v340, 4
        %v402 = vsel %vm387, %v399, %v401
        %v403 = vrot.slane %v341, 4
        %v404 = vsel %vm387, %v401, %v403
        %v405 = vrot.slane %v342, 4
        %v406 = vsel %vm387, %v403, %v405
        %v407 = vrot.slane %v343, 4
        %v408 = vsel %vm387, %v405, %v407
        %v409 = vrot.slane %v344, 4
        %v410 = vsel %vm387, %v407, %v409
        %v411 = vrot.slane %v345, 4
        %v412 = vsel %vm387, %v409, %v411
        %v413 = vrot.slane %v346, 4
        %v414 = vsel %vm387, %v411, %v413
        %v415 = vrot.slane %v347, 4
        %v416 = vsel %vm387, %v413, %v415
        %v417 = vrot.slane %v348, 4
        %v418 = vsel %vm387, %v415, %v417
        %v419 = vrot.slane %v349, 4
        %v420 = vsel %vm387, %v417, %v419
        %v421 = vrot.slane %v350, 4
        %v422 = vsel %vm387, %v419, %v421
        %v423 = vrot.slane %v351, 4
        %v424 = vsel %vm387, %v421, %v423
        %v425 = vrot.slane %v352, 4
        %v426 = vsel %vm387, %v423, %v425
        %v427 = vrot.slane %v353, 4
        %v428 = vsel %vm387, %v425, %v427
        %v429 = vrot.slane %v354, 4
        %v430 = vsel %vm387, %v427, %v429
        %v431 = vrot.slane %v355, 4
        %v432 = vsel %vm387, %v429, %v431
        %v433 = vrot.slane %v356, 4
        %v434 = vsel %vm387, %v431, %v433
        %v435 = vrot.slane %v357, 4
        %v436 = vsel %vm387, %v433, %v435
        %v437 = vrot.slane %v358, 4
        %v438 = vsel %vm387, %v435, %v437
        %v439 = vrot.slane %v359, 4
        %v440 = vsel %vm387, %v437, %v439
        %vm469 = vcmask 64516
        %470 = vst.msk [vmem:[#allocation3] sm:$0xf0] %vm469, %v388
        %vm471 = vcmask 64512
        %472 = vst.msk [vmem:[#allocation3 + $0x8] sm:$0xff] %vm471, %v390
        %473 = vst.msk [vmem:[#allocation3 + $0x10] sm:$0xff] %vm471, %v392
        %474 = vst.msk [vmem:[#allocation3 + $0x18] sm:$0xff] %vm471, %v394
        %475 = vst.msk [vmem:[#allocation3 + $0x20] sm:$0xff] %vm471, %v396
        %476 = vst.msk [vmem:[#allocation3 + $0x28] sm:$0xff] %vm471, %v398
        %477 = vst.msk [vmem:[#allocation3 + $0x30] sm:$0xff] %vm471, %v400
        %478 = vst.msk [vmem:[#allocation3 + $0x38] sm:$0xff] %vm471, %v402
        %479 = vst.msk [vmem:[#allocation3 + $0x40] sm:$0xff] %vm471, %v404
        %480 = vst.msk [vmem:[#allocation3 + $0x48] sm:$0xff] %vm471, %v406
        %481 = vst.msk [vmem:[#allocation3 + $0x50] sm:$0xff] %vm471, %v408
        %482 = vst.msk [vmem:[#allocation3 + $0x58] sm:$0xff] %vm471, %v410
        %483 = vst.msk [vmem:[#allocation3 + $0x60] sm:$0xff] %vm471, %v412
        %484 = vst.msk [vmem:[#allocation3 + $0x68] sm:$0xff] %vm471, %v414
        %485 = vst.msk [vmem:[#allocation3 + $0x70] sm:$0xff] %vm471, %v416
        %486 = vst.msk [vmem:[#allocation3 + $0x78] sm:$0xff] %vm471, %v418
        %487 = vst.msk [vmem:[#allocation3 + $0x80] sm:$0xff] %vm471, %v420
        %488 = vst.msk [vmem:[#allocation3 + $0x88] sm:$0xff] %vm471, %v422
        %489 = vst.msk [vmem:[#allocation3 + $0x90] sm:$0xff] %vm471, %v424
        %490 = vst.msk [vmem:[#allocation3 + $0x98] sm:$0xff] %vm471, %v426
        %491 = vst.msk [vmem:[#allocation3 + $0xa0] sm:$0xff] %vm471, %v428
        %492 = vst.msk [vmem:[#allocation3 + $0xa8] sm:$0xff] %vm471, %v430
        %493 = vst.msk [vmem:[#allocation3 + $0xb0] sm:$0xff] %vm471, %v432
        %494 = vst.msk [vmem:[#allocation3 + $0xb8] sm:$0xff] %vm471, %v434
        %495 = vst.msk [vmem:[#allocation3 + $0xc0] sm:$0xff] %vm471, %v436
        %496 = vst.msk [vmem:[#allocation3 + $0xc8] sm:$0xff] %vm471, %v438
        %497 = vst.msk [vmem:[#allocation3 + $0xd0] sm:$0xff] %vm471, %v440
        %vm498 = vcmask 60416
        %499 = vst.msk [vmem:[#allocation3 + $0xd8] sm:$0xf] %vm498, %v439
        %v500 = vld [vmem:[%s260 + $0x18] sm:$0xff]
        %v501 = vld [vmem:[%s260 + $0x20] sm:$0xff]
        %v502 = vld [vmem:[%s260 + $0x28] sm:$0xff]
        %v503 = vld [vmem:[%s260 + $0x30] sm:$0xff]
        %v504 = vld [vmem:[%s260 + $0x38] sm:$0xff]
        %v505 = vld [vmem:[%s260 + $0x40] sm:$0xff]
        %v506 = vld [vmem:[%s260 + $0x48] sm:$0xff]
        %v507 = vld [vmem:[%s260 + $0x50] sm:$0xff]
        %v508 = vld [vmem:[%s260 + $0x58] sm:$0xff]
        %v509 = vld [vmem:[%s260 + $0x60] sm:$0xff]
        %v510 = vld [vmem:[%s260 + $0x68] sm:$0xff]
        %v511 = vld [vmem:[%s260 + $0x70] sm:$0xff]
        %v512 = vld [vmem:[%s260 + $0x78] sm:$0xff]
        %v513 = vld [vmem:[%s260 + $0x80] sm:$0xff]
        %v514 = vld [vmem:[%s260 + $0x88] sm:$0xff]
        %v515 = vld [vmem:[%s260 + $0x90] sm:$0xff]
        %v516 = vld [vmem:[%s260 + $0x98] sm:$0xff]
        %v517 = vld [vmem:[%s260 + $0xa0] sm:$0xff]
        %v518 = vld [vmem:[%s260 + $0xa8] sm:$0xff]
        %v519 = vld [vmem:[%s260 + $0xb0] sm:$0xff]
        %v520 = vld [vmem:[%s260 + $0xb8] sm:$0xff]
        %v521 = vld [vmem:[%s260 + $0xc0] sm:$0xff]
        %v522 = vld [vmem:[%s260 + $0xc8] sm:$0xff]
        %v523 = vld [vmem:[%s260 + $0xd0] sm:$0xff]
        %v524 = vld [vmem:[%s260 + $0xd8] sm:$0xff]
        %v525 = vld [vmem:[%s260 + $0xe0] sm:$0xff]
        %v526 = vld [vmem:[%s260 + $0xe8] sm:$0xff]
        %v527 = vld [vmem:[%s260 + $0xf0] sm:$0xff]
        %v528 = vld [vmem:[%s260 + $0xf8] sm:$0xff]
        %v529 = vld [vmem:[%s260 + $0x100] sm:$0xff]
        %v530 = vld [vmem:[%s260 + $0x108] sm:$0xff]
        %v531 = vld [vmem:[%s260 + $0x110] sm:$0xff]
        %v532 = vld [vmem:[%s260 + $0x118] sm:$0xff]
        %v533 = vld [vmem:[%s260 + $0x120] sm:$0xff]
        %v534 = vld [vmem:[%s260 + $0x128] sm:$0xff]
        %v535 = vld [vmem:[%s260 + $0x130] sm:$0xff]
        %v536 = vld [vmem:[%s260 + $0x138] sm:$0xff]
        %v537 = vld [vmem:[%s260 + $0x140] sm:$0xff]
        %v538 = vld [vmem:[%s260 + $0x148] sm:$0xff]
        %v539 = vld [vmem:[%s260 + $0x150] sm:$0xff]
        %v540 = vld [vmem:[%s260 + $0x158] sm:$0xff]
        %v541 = vld [vmem:[%s260 + $0x160] sm:$0xff]
        %v542 = vld [vmem:[%s260 + $0x168] sm:$0xff]
        %v543 = vld [vmem:[%s260 + $0x170] sm:$0xff]
        %v544 = vld [vmem:[%s260 + $0x178] sm:$0xff]
        %v545 = vld [vmem:[%s260 + $0x180] sm:$0xff]
        %v546 = vld [vmem:[%s260 + $0x188] sm:$0xff]
        %v547 = vld [vmem:[%s260 + $0x190] sm:$0xff]
        %v548 = vld [vmem:[%s260 + $0x198] sm:$0xff]
        %v549 = vld [vmem:[%s260 + $0x1a0] sm:$0xff]
        %v550 = vld [vmem:[%s260 + $0x1a8] sm:$0xff]
        %v551 = vld [vmem:[%s260 + $0x1b0] sm:$0xff]
        %v552 = vld [vmem:[%s260 + $0x1b8] sm:$0xff]
        %v553 = vld [vmem:[%s260 + $0x1c0] sm:$0xff]
        %v554 = vpack.c.bf16 %v501, %v500
        %v555 = vpack.c.bf16 %v503, %v502
        %v556 = vpack.c.bf16 %v505, %v504
        %v557 = vpack.c.bf16 %v507, %v506
        %v558 = vpack.c.bf16 %v509, %v508
        %v559 = vpack.c.bf16 %v511, %v510
        %v560 = vpack.c.bf16 %v513, %v512
        %v561 = vpack.c.bf16 %v515, %v514
        %v562 = vpack.c.bf16 %v517, %v516
        %v563 = vpack.c.bf16 %v519, %v518
        %v564 = vpack.c.bf16 %v521, %v520
        %v565 = vpack.c.bf16 %v523, %v522
        %v566 = vpack.c.bf16 %v525, %v524
        %v567 = vpack.c.bf16 %v527, %v526
        %v568 = vpack.c.bf16 %v529, %v528
        %v569 = vpack.c.bf16 %v531, %v530
        %v570 = vpack.c.bf16 %v533, %v532
        %v571 = vpack.c.bf16 %v535, %v534
        %v572 = vpack.c.bf16 %v537, %v536
        %v573 = vpack.c.bf16 %v539, %v538
        %v574 = vpack.c.bf16 %v541, %v540
        %v575 = vpack.c.bf16 %v543, %v542
        %v576 = vpack.c.bf16 %v545, %v544
        %v577 = vpack.c.bf16 %v547, %v546
        %v578 = vpack.c.bf16 %v549, %v548
        %v579 = vpack.c.bf16 %v551, %v550
        %v580 = vpack.c.bf16 %v553, %v552
        %v608 = vrot.slane %v554, 4
        %v609 = vrot.slane %v555, 4
        %v610 = vsel %vm387, %v608, %v609
        %v611 = vrot.slane %v556, 4
        %v612 = vsel %vm387, %v609, %v611
        %v613 = vrot.slane %v557, 4
        %v614 = vsel %vm387, %v611, %v613
        %v615 = vrot.slane %v558, 4
        %v616 = vsel %vm387, %v613, %v615
        %v617 = vrot.slane %v559, 4
        %v618 = vsel %vm387, %v615, %v617
        %v619 = vrot.slane %v560, 4
        %v620 = vsel %vm387, %v617, %v619
        %v621 = vrot.slane %v561, 4
        %v622 = vsel %vm387, %v619, %v621
        %v623 = vrot.slane %v562, 4
        %v624 = vsel %vm387, %v621, %v623
        %v625 = vrot.slane %v563, 4
        %v626 = vsel %vm387, %v623, %v625
        %v627 = vrot.slane %v564, 4
        %v628 = vsel %vm387, %v625, %v627
        %v629 = vrot.slane %v565, 4
        %v630 = vsel %vm387, %v627, %v629
        %v631 = vrot.slane %v566, 4
        %v632 = vsel %vm387, %v629, %v631
        %v633 = vrot.slane %v567, 4
        %v634 = vsel %vm387, %v631, %v633
        %v635 = vrot.slane %v568, 4
        %v636 = vsel %vm387, %v633, %v635
        %v637 = vrot.slane %v569, 4
        %v638 = vsel %vm387, %v635, %v637
        %v639 = vrot.slane %v570, 4
        %v640 = vsel %vm387, %v637, %v639
        %v641 = vrot.slane %v571, 4
        %v642 = vsel %vm387, %v639, %v641
        %v643 = vrot.slane %v572, 4
        %v644 = vsel %vm387, %v641, %v643
        %v645 = vrot.slane %v573, 4
        %v646 = vsel %vm387, %v643, %v645
        %v647 = vrot.slane %v574, 4
        %v648 = vsel %vm387, %v645, %v647
        %v649 = vrot.slane %v575, 4
        %v650 = vsel %vm387, %v647, %v649
        %v651 = vrot.slane %v576, 4
        %v652 = vsel %vm387, %v649, %v651
        %v653 = vrot.slane %v577, 4
        %v654 = vsel %vm387, %v651, %v653
        %v655 = vrot.slane %v578, 4
        %v656 = vsel %vm387, %v653, %v655
        %v657 = vrot.slane %v579, 4
        %v658 = vsel %vm387, %v655, %v657
        %v659 = vrot.slane %v580, 4
        %v660 = vsel %vm387, %v657, %v659
        %661 = vrot.lane.b32.xlu0 %v608, 8
        %v662 = vpop.permute.xlu0 %661
        %663 = vrot.lane.b32.xlu0 %v610, 8
        %v664 = vpop.permute.xlu0 %663
        %665 = vrot.lane.b32.xlu0 %v612, 8
        %v666 = vpop.permute.xlu0 %665
        %667 = vrot.lane.b32.xlu0 %v614, 8
        %v668 = vpop.permute.xlu0 %667
        %669 = vrot.lane.b32.xlu0 %v616, 8
        %v670 = vpop.permute.xlu0 %669
        %671 = vrot.lane.b32.xlu0 %v618, 8
        %v672 = vpop.permute.xlu0 %671
        %673 = vrot.lane.b32.xlu0 %v620, 8
        %v674 = vpop.permute.xlu0 %673
        %675 = vrot.lane.b32.xlu0 %v622, 8
        %v676 = vpop.permute.xlu0 %675
        %677 = vrot.lane.b32.xlu0 %v624, 8
        %v678 = vpop.permute.xlu0 %677
        %679 = vrot.lane.b32.xlu0 %v626, 8
        %v680 = vpop.permute.xlu0 %679
        %681 = vrot.lane.b32.xlu0 %v628, 8
        %v682 = vpop.permute.xlu0 %681
        %683 = vrot.lane.b32.xlu0 %v630, 8
        %v684 = vpop.permute.xlu0 %683
        %685 = vrot.lane.b32.xlu0 %v632, 8
        %v686 = vpop.permute.xlu0 %685
        %687 = vrot.lane.b32.xlu0 %v634, 8
        %v688 = vpop.permute.xlu0 %687
        %689 = vrot.lane.b32.xlu0 %v636, 8
        %v690 = vpop.permute.xlu0 %689
        %691 = vrot.lane.b32.xlu0 %v638, 8
        %v692 = vpop.permute.xlu0 %691
        %693 = vrot.lane.b32.xlu0 %v640, 8
        %v694 = vpop.permute.xlu0 %693
        %695 = vrot.lane.b32.xlu0 %v642, 8
        %v696 = vpop.permute.xlu0 %695
        %697 = vrot.lane.b32.xlu0 %v644, 8
        %v698 = vpop.permute.xlu0 %697
        %699 = vrot.lane.b32.xlu0 %v646, 8
        %v700 = vpop.permute.xlu0 %699
        %701 = vrot.lane.b32.xlu0 %v648, 8
        %v702 = vpop.permute.xlu0 %701
        %703 = vrot.lane.b32.xlu0 %v650, 8
        %v704 = vpop.permute.xlu0 %703
        %705 = vrot.lane.b32.xlu0 %v652, 8
        %v706 = vpop.permute.xlu0 %705
        %707 = vrot.lane.b32.xlu0 %v654, 8
        %v708 = vpop.permute.xlu0 %707
        %709 = vrot.lane.b32.xlu0 %v656, 8
        %v710 = vpop.permute.xlu0 %709
        %711 = vrot.lane.b32.xlu0 %v658, 8
        %v712 = vpop.permute.xlu0 %711
        %713 = vrot.lane.b32.xlu0 %v660, 8
        %v714 = vpop.permute.xlu0 %713
        %715 = vrot.lane.b32.xlu0 %v659, 8
        %v716 = vpop.permute.xlu0 %715
        %vm745 = vcmask 130116
        %746 = vst.msk [vmem:[#allocation3] sm:$0xf0] %vm745, %v662
        %vm747 = vcmask 130112
        %748 = vst.msk [vmem:[#allocation3 + $0x8] sm:$0xff] %vm747, %v664
        %749 = vst.msk [vmem:[#allocation3 + $0x10] sm:$0xff] %vm747, %v666
        %750 = vst.msk [vmem:[#allocation3 + $0x18] sm:$0xff] %vm747, %v668
        %751 = vst.msk [vmem:[#allocation3 + $0x20] sm:$0xff] %vm747, %v670
        %752 = vst.msk [vmem:[#allocation3 + $0x28] sm:$0xff] %vm747, %v672
        %753 = vst.msk [vmem:[#allocation3 + $0x30] sm:$0xff] %vm747, %v674
        %754 = vst.msk [vmem:[#allocation3 + $0x38] sm:$0xff] %vm747, %v676
        %755 = vst.msk [vmem:[#allocation3 + $0x40] sm:$0xff] %vm747, %v678
        %756 = vst.msk [vmem:[#allocation3 + $0x48] sm:$0xff] %vm747, %v680
        %757 = vst.msk [vmem:[#allocation3 + $0x50] sm:$0xff] %vm747, %v682
        %758 = vst.msk [vmem:[#allocation3 + $0x58] sm:$0xff] %vm747, %v684
        %759 = vst.msk [vmem:[#allocation3 + $0x60] sm:$0xff] %vm747, %v686
        %760 = vst.msk [vmem:[#allocation3 + $0x68] sm:$0xff] %vm747, %v688
        %761 = vst.msk [vmem:[#allocation3 + $0x70] sm:$0xff] %vm747, %v690
        %762 = vst.msk [vmem:[#allocation3 + $0x78] sm:$0xff] %vm747, %v692
        %763 = vst.msk [vmem:[#allocation3 + $0x80] sm:$0xff] %vm747, %v694
        %764 = vst.msk [vmem:[#allocation3 + $0x88] sm:$0xff] %vm747, %v696
        %765 = vst.msk [vmem:[#allocation3 + $0x90] sm:$0xff] %vm747, %v698
        %766 = vst.msk [vmem:[#allocation3 + $0x98] sm:$0xff] %vm747, %v700
        %767 = vst.msk [vmem:[#allocation3 + $0xa0] sm:$0xff] %vm747, %v702
        %768 = vst.msk [vmem:[#allocation3 + $0xa8] sm:$0xff] %vm747, %v704
        %769 = vst.msk [vmem:[#allocation3 + $0xb0] sm:$0xff] %vm747, %v706
        %770 = vst.msk [vmem:[#allocation3 + $0xb8] sm:$0xff] %vm747, %v708
        %771 = vst.msk [vmem:[#allocation3 + $0xc0] sm:$0xff] %vm747, %v710
        %772 = vst.msk [vmem:[#allocation3 + $0xc8] sm:$0xff] %vm747, %v712
        %773 = vst.msk [vmem:[#allocation3 + $0xd0] sm:$0xff] %vm747, %v714
        %vm774 = vcmask 126016
        %775 = vst.msk [vmem:[#allocation3 + $0xd8] sm:$0xf] %vm774, %v716
        %v776 = vld [vmem:[%s260 + $0x30] sm:$0xff]
        %v777 = vld [vmem:[%s260 + $0x38] sm:$0xff]
        %v778 = vld [vmem:[%s260 + $0x40] sm:$0xff]
        %v779 = vld [vmem:[%s260 + $0x48] sm:$0xff]
        %v780 = vld [vmem:[%s260 + $0x50] sm:$0xff]
        %v781 = vld [vmem:[%s260 + $0x58] sm:$0xff]
        %v782 = vld [vmem:[%s260 + $0x60] sm:$0xff]
        %v783 = vld [vmem:[%s260 + $0x68] sm:$0xff]
        %v784 = vld [vmem:[%s260 + $0x70] sm:$0xff]
        %v785 = vld [vmem:[%s260 + $0x78] sm:$0xff]
        %v786 = vld [vmem:[%s260 + $0x80] sm:$0xff]
        %v787 = vld [vmem:[%s260 + $0x88] sm:$0xff]
        %v788 = vld [vmem:[%s260 + $0x90] sm:$0xff]
        %v789 = vld [vmem:[%s260 + $0x98] sm:$0xff]
        %v790 = vld [vmem:[%s260 + $0xa0] sm:$0xff]
        %v791 = vld [vmem:[%s260 + $0xa8] sm:$0xff]
        %v792 = vld [vmem:[%s260 + $0xb0] sm:$0xff]
        %v793 = vld [vmem:[%s260 + $0xb8] sm:$0xff]
        %v794 = vld [vmem:[%s260 + $0xc0] sm:$0xff]
        %v795 = vld [vmem:[%s260 + $0xc8] sm:$0xff]
        %v796 = vld [vmem:[%s260 + $0xd0] sm:$0xff]
        %v797 = vld [vmem:[%s260 + $0xd8] sm:$0xff]
        %v798 = vld [vmem:[%s260 + $0xe0] sm:$0xff]
        %v799 = vld [vmem:[%s260 + $0xe8] sm:$0xff]
        %v800 = vld [vmem:[%s260 + $0xf0] sm:$0xff]
        %v801 = vld [vmem:[%s260 + $0xf8] sm:$0xff]
        %v802 = vld [vmem:[%s260 + $0x100] sm:$0xff]
        %v803 = vld [vmem:[%s260 + $0x108] sm:$0xff]
        %v804 = vld [vmem:[%s260 + $0x110] sm:$0xff]
        %v805 = vld [vmem:[%s260 + $0x118] sm:$0xff]
        %v806 = vld [vmem:[%s260 + $0x120] sm:$0xff]
        %v807 = vld [vmem:[%s260 + $0x128] sm:$0xff]
        %v808 = vld [vmem:[%s260 + $0x130] sm:$0xff]
        %v809 = vld [vmem:[%s260 + $0x138] sm:$0xff]
        %v810 = vld [vmem:[%s260 + $0x140] sm:$0xff]
        %v811 = vld [vmem:[%s260 + $0x148] sm:$0xff]
        %v812 = vld [vmem:[%s260 + $0x150] sm:$0xff]
        %v813 = vld [vmem:[%s260 + $0x158] sm:$0xff]
        %v814 = vld [vmem:[%s260 + $0x160] sm:$0xff]
        %v815 = vld [vmem:[%s260 + $0x168] sm:$0xff]
        %v816 = vld [vmem:[%s260 + $0x170] sm:$0xff]
        %v817 = vld [vmem:[%s260 + $0x178] sm:$0xff]
        %v818 = vld [vmem:[%s260 + $0x180] sm:$0xff]
        %v819 = vld [vmem:[%s260 + $0x188] sm:$0xff]
        %v820 = vld [vmem:[%s260 + $0x190] sm:$0xff]
        %v821 = vld [vmem:[%s260 + $0x198] sm:$0xff]
        %v822 = vld [vmem:[%s260 + $0x1a0] sm:$0xff]
        %v823 = vld [vmem:[%s260 + $0x1a8] sm:$0xff]
        %v824 = vld [vmem:[%s260 + $0x1b0] sm:$0xff]
        %v825 = vld [vmem:[%s260 + $0x1b8] sm:$0xff]
        %v826 = vld [vmem:[%s260 + $0x1c0] sm:$0xff]
        %v827 = vld [vmem:[%s260 + $0x1c8] sm:$0xff]
        %v828 = vld [vmem:[%s260 + $0x1d0] sm:$0xff]
        %v829 = vld [vmem:[%s260 + $0x1d8] sm:$0xff]
        %v830 = vpack.c.bf16 %v777, %v776
        %v831 = vpack.c.bf16 %v779, %v778
        %v832 = vpack.c.bf16 %v781, %v780
        %v833 = vpack.c.bf16 %v783, %v782
        %v834 = vpack.c.bf16 %v785, %v784
        %v835 = vpack.c.bf16 %v787, %v786
        %v836 = vpack.c.bf16 %v789, %v788
        %v837 = vpack.c.bf16 %v791, %v790
        %v838 = vpack.c.bf16 %v793, %v792
        %v839 = vpack.c.bf16 %v795, %v794
        %v840 = vpack.c.bf16 %v797, %v796
        %v841 = vpack.c.bf16 %v799, %v798
        %v842 = vpack.c.bf16 %v801, %v800
        %v843 = vpack.c.bf16 %v803, %v802
        %v844 = vpack.c.bf16 %v805, %v804
        %v845 = vpack.c.bf16 %v807, %v806
        %v846 = vpack.c.bf16 %v809, %v808
        %v847 = vpack.c.bf16 %v811, %v810
        %v848 = vpack.c.bf16 %v813, %v812
        %v849 = vpack.c.bf16 %v815, %v814
        %v850 = vpack.c.bf16 %v817, %v816
        %v851 = vpack.c.bf16 %v819, %v818
        %v852 = vpack.c.bf16 %v821, %v820
        %v853 = vpack.c.bf16 %v823, %v822
        %v854 = vpack.c.bf16 %v825, %v824
        %v855 = vpack.c.bf16 %v827, %v826
        %v856 = vpack.c.bf16 %v829, %v828
        %v884 = vrot.slane %v830, 4
        %v885 = vrot.slane %v831, 4
        %v886 = vsel %vm387, %v884, %v885
        %v887 = vrot.slane %v832, 4
        %v888 = vsel %vm387, %v885, %v887
        %v889 = vrot.slane %v833, 4
        %v890 = vsel %vm387, %v887, %v889
        %v891 = vrot.slane %v834, 4
        %v892 = vsel %vm387, %v889, %v891
        %v893 = vrot.slane %v835, 4
        %v894 = vsel %vm387, %v891, %v893
        %v895 = vrot.slane %v836, 4
        %v896 = vsel %vm387, %v893, %v895
        %v897 = vrot.slane %v837, 4
        %v898 = vsel %vm387, %v895, %v897
        %v899 = vrot.slane %v838, 4
        %v900 = vsel %vm387, %v897, %v899
        %v901 = vrot.slane %v839, 4
        %v902 = vsel %vm387, %v899, %v901
        %v903 = vrot.slane %v840, 4
        %v904 = vsel %vm387, %v901, %v903
        %v905 = vrot.slane %v841, 4
        %v906 = vsel %vm387, %v903, %v905
        %v907 = vrot.slane %v842, 4
        %v908 = vsel %vm387, %v905, %v907
        %v909 = vrot.slane %v843, 4
        %v910 = vsel %vm387, %v907, %v909
        %v911 = vrot.slane %v844, 4
        %v912 = vsel %vm387, %v909, %v911
        %v913 = vrot.slane %v845, 4
        %v914 = vsel %vm387, %v911, %v913
        %v915 = vrot.slane %v846, 4
        %v916 = vsel %vm387, %v913, %v915
        %v917 = vrot.slane %v847, 4
        %v918 = vsel %vm387, %v915, %v917
        %v919 = vrot.slane %v848, 4
        %v920 = vsel %vm387, %v917, %v919
        %v921 = vrot.slane %v849, 4
        %v922 = vsel %vm387, %v919, %v921
        %v923 = vrot.slane %v850, 4
        %v924 = vsel %vm387, %v921, %v923
        %v925 = vrot.slane %v851, 4
        %v926 = vsel %vm387, %v923, %v925
        %v927 = vrot.slane %v852, 4
        %v928 = vsel %vm387, %v925, %v927
        %v929 = vrot.slane %v853, 4
        %v930 = vsel %vm387, %v927, %v929
        %v931 = vrot.slane %v854, 4
        %v932 = vsel %vm387, %v929, %v931
        %v933 = vrot.slane %v855, 4
        %v934 = vsel %vm387, %v931, %v933
        %v935 = vrot.slane %v856, 4
        %v936 = vsel %vm387, %v933, %v935
        %937 = vrot.lane.b32.xlu0 %v884, 16
        %v938 = vpop.permute.xlu0 %937
        %939 = vrot.lane.b32.xlu0 %v886, 16
        %v940 = vpop.permute.xlu0 %939
        %941 = vrot.lane.b32.xlu0 %v888, 16
        %v942 = vpop.permute.xlu0 %941
        %943 = vrot.lane.b32.xlu0 %v890, 16
        %v944 = vpop.permute.xlu0 %943
        %945 = vrot.lane.b32.xlu0 %v892, 16
        %v946 = vpop.permute.xlu0 %945
        %947 = vrot.lane.b32.xlu0 %v894, 16
        %v948 = vpop.permute.xlu0 %947
        %949 = vrot.lane.b32.xlu0 %v896, 16
        %v950 = vpop.permute.xlu0 %949
        %951 = vrot.lane.b32.xlu0 %v898, 16
        %v952 = vpop.permute.xlu0 %951
        %953 = vrot.lane.b32.xlu0 %v900, 16
        %v954 = vpop.permute.xlu0 %953
        %955 = vrot.lane.b32.xlu0 %v902, 16
        %v956 = vpop.permute.xlu0 %955
        %957 = vrot.lane.b32.xlu0 %v904, 16
        %v958 = vpop.permute.xlu0 %957
        %959 = vrot.lane.b32.xlu0 %v906, 16
        %v960 = vpop.permute.xlu0 %959
        %961 = vrot.lane.b32.xlu0 %v908, 16
        %v962 = vpop.permute.xlu0 %961
        %963 = vrot.lane.b32.xlu0 %v910, 16
        %v964 = vpop.permute.xlu0 %963
        %965 = vrot.lane.b32.xlu0 %v912, 16
        %v966 = vpop.permute.xlu0 %965
        %967 = vrot.lane.b32.xlu0 %v914, 16
        %v968 = vpop.permute.xlu0 %967
        %969 = vrot.lane.b32.xlu0 %v916, 16
        %v970 = vpop.permute.xlu0 %969
        %971 = vrot.lane.b32.xlu0 %v918, 16
        %v972 = vpop.permute.xlu0 %971
        %973 = vrot.lane.b32.xlu0 %v920, 16
        %v974 = vpop.permute.xlu0 %973
        %975 = vrot.lane.b32.xlu0 %v922, 16
        %v976 = vpop.permute.xlu0 %975
        %977 = vrot.lane.b32.xlu0 %v924, 16
        %v978 = vpop.permute.xlu0 %977
        %979 = vrot.lane.b32.xlu0 %v926, 16
        %v980 = vpop.permute.xlu0 %979
        %981 = vrot.lane.b32.xlu0 %v928, 16
        %v982 = vpop.permute.xlu0 %981
        %983 = vrot.lane.b32.xlu0 %v930, 16
        %v984 = vpop.permute.xlu0 %983
        %985 = vrot.lane.b32.xlu0 %v932, 16
        %v986 = vpop.permute.xlu0 %985
        %987 = vrot.lane.b32.xlu0 %v934, 16
        %v988 = vpop.permute.xlu0 %987
        %989 = vrot.lane.b32.xlu0 %v936, 16
        %v990 = vpop.permute.xlu0 %989
        %991 = vrot.lane.b32.xlu0 %v935, 16
        %v992 = vpop.permute.xlu0 %991
        %vm1021 = vcmask 195716
        %1022 = vst.msk [vmem:[#allocation3] sm:$0xf0] %vm1021, %v938
        %vm1023 = vcmask 195712
        %1024 = vst.msk [vmem:[#allocation3 + $0x8] sm:$0xff] %vm1023, %v940
        %1025 = vst.msk [vmem:[#allocation3 + $0x10] sm:$0xff] %vm1023, %v942
        %1026 = vst.msk [vmem:[#allocation3 + $0x18] sm:$0xff] %vm1023, %v944
        %1027 = vst.msk [vmem:[#allocation3 + $0x20] sm:$0xff] %vm1023, %v946
        %1028 = vst.msk [vmem:[#allocation3 + $0x28] sm:$0xff] %vm1023, %v948
        %1029 = vst.msk [vmem:[#allocation3 + $0x30] sm:$0xff] %vm1023, %v950
        %1030 = vst.msk [vmem:[#allocation3 + $0x38] sm:$0xff] %vm1023, %v952
        %1031 = vst.msk [vmem:[#allocation3 + $0x40] sm:$0xff] %vm1023, %v954
        %1032 = vst.msk [vmem:[#allocation3 + $0x48] sm:$0xff] %vm1023, %v956
        %1033 = vst.msk [vmem:[#allocation3 + $0x50] sm:$0xff] %vm1023, %v958
        %1034 = vst.msk [vmem:[#allocation3 + $0x58] sm:$0xff] %vm1023, %v960
        %1035 = vst.msk [vmem:[#allocation3 + $0x60] sm:$0xff] %vm1023, %v962
        %1036 = vst.msk [vmem:[#allocation3 + $0x68] sm:$0xff] %vm1023, %v964
        %1037 = vst.msk [vmem:[#allocation3 + $0x70] sm:$0xff] %vm1023, %v966
        %1038 = vst.msk [vmem:[#allocation3 + $0x78] sm:$0xff] %vm1023, %v968
        %1039 = vst.msk [vmem:[#allocation3 + $0x80] sm:$0xff] %vm1023, %v970
        %1040 = vst.msk [vmem:[#allocation3 + $0x88] sm:$0xff] %vm1023, %v972
        %1041 = vst.msk [vmem:[#allocation3 + $0x90] sm:$0xff] %vm1023, %v974
        %1042 = vst.msk [vmem:[#allocation3 + $0x98] sm:$0xff] %vm1023, %v976
        %1043 = vst.msk [vmem:[#allocation3 + $0xa0] sm:$0xff] %vm1023, %v978
        %1044 = vst.msk [vmem:[#allocation3 + $0xa8] sm:$0xff] %vm1023, %v980
        %1045 = vst.msk [vmem:[#allocation3 + $0xb0] sm:$0xff] %vm1023, %v982
        %1046 = vst.msk [vmem:[#allocation3 + $0xb8] sm:$0xff] %vm1023, %v984
        %1047 = vst.msk [vmem:[#allocation3 + $0xc0] sm:$0xff] %vm1023, %v986
        %1048 = vst.msk [vmem:[#allocation3 + $0xc8] sm:$0xff] %vm1023, %v988
        %1049 = vst.msk [vmem:[#allocation3 + $0xd0] sm:$0xff] %vm1023, %v990
        %vm1050 = vcmask 191616
        %1051 = vst.msk [vmem:[#allocation3 + $0xd8] sm:$0xf] %vm1050, %v992
        %v1052 = vld [vmem:[#allocation3] sm:$0xf8]
        %v1053 = vld [vmem:[#allocation3 + $0x8] sm:$0xff]
        %v1054 = vld [vmem:[#allocation3 + $0x10] sm:$0xff]
        %v1055 = vld [vmem:[#allocation3 + $0x18] sm:$0xff]
        %v1056 = vld [vmem:[#allocation3 + $0x20] sm:$0xff]
        %v1057 = vld [vmem:[#allocation3 + $0x28] sm:$0xff]
        %v1058 = vld [vmem:[#allocation3 + $0x30] sm:$0xff]
        %v1059 = vld [vmem:[#allocation3 + $0x38] sm:$0xff]
        %v1060 = vld [vmem:[#allocation3 + $0x40] sm:$0xff]
        %v1061 = vld [vmem:[#allocation3 + $0x48] sm:$0xff]
        %v1062 = vld [vmem:[#allocation3 + $0x50] sm:$0xff]
        %v1063 = vld [vmem:[#allocation3 + $0x58] sm:$0xff]
        %v1064 = vld [vmem:[#allocation3 + $0x60] sm:$0xff]
        %v1065 = vld [vmem:[#allocation3 + $0x68] sm:$0xff]
        %v1066 = vld [vmem:[#allocation3 + $0x70] sm:$0xff]
        %v1067 = vld [vmem:[#allocation3 + $0x78] sm:$0xff]
        %v1068 = vld [vmem:[#allocation3 + $0x80] sm:$0xff]
        %v1069 = vld [vmem:[#allocation3 + $0x88] sm:$0xff]
        %v1070 = vld [vmem:[#allocation3 + $0x90] sm:$0xff]
        %v1071 = vld [vmem:[#allocation3 + $0x98] sm:$0xff]
        %v1072 = vld [vmem:[#allocation3 + $0xa0] sm:$0xff]
        %v1073 = vld [vmem:[#allocation3 + $0xa8] sm:$0xff]
        %v1074 = vld [vmem:[#allocation3 + $0xb0] sm:$0xff]
        %v1075 = vld [vmem:[#allocation3 + $0xb8] sm:$0xff]
        %v1076 = vld [vmem:[#allocation3 + $0xc0] sm:$0xff]
        %v1077 = vld [vmem:[#allocation3 + $0xc8] sm:$0xff]
        %v1078 = vld [vmem:[#allocation3 + $0xd0] sm:$0xff]
        %v1079 = vld [vmem:[#allocation3 + $0xd8] sm:$0xf]
        %v1080 = vld [vmem:[%s2] sm:$0xf]
        %v1081 = vld [vmem:[%s2 + $0x4] sm:$0xf]
        %v1082 = vld [vmem:[%s2 + $0x8] sm:$0xf]
        %v1083 = vld [vmem:[#allocation3] sm:$0xf0]
        %s1084 = scalar_lea.vmem %s2, 12
        %v1085 = vld [vmem:[%s1084] sm:$0xf]
        %v1086 = vld [vmem:[%s1084 + $0x4] sm:$0xf]
        %v1087 = vld [vmem:[%s1084 + $0x8] sm:$0xf]
        %v1116 = vrot.slane %v1083, 4
        %v1117 = vrot.slane %v1053, 4
        %v1118 = vsel %vm387, %v1116, %v1117
        %v1119 = vrot.slane %v1054, 4
        %v1120 = vsel %vm387, %v1117, %v1119
        %v1121 = vrot.slane %v1055, 4
        %v1122 = vsel %vm387, %v1119, %v1121
        %v1123 = vrot.slane %v1056, 4
        %v1124 = vsel %vm387, %v1121, %v1123
        %v1125 = vrot.slane %v1057, 4
        %v1126 = vsel %vm387, %v1123, %v1125
        %v1127 = vrot.slane %v1058, 4
        %v1128 = vsel %vm387, %v1125, %v1127
        %v1129 = vrot.slane %v1059, 4
        %v1130 = vsel %vm387, %v1127, %v1129
        %v1131 = vrot.slane %v1060, 4
        %v1132 = vsel %vm387, %v1129, %v1131
        %v1133 = vrot.slane %v1061, 4
        %v1134 = vsel %vm387, %v1131, %v1133
        %v1135 = vrot.slane %v1062, 4
        %v1136 = vsel %vm387, %v1133, %v1135
        %v1137 = vrot.slane %v1063, 4
        %v1138 = vsel %vm387, %v1135, %v1137
        %v1139 = vrot.slane %v1064, 4
        %v1140 = vsel %vm387, %v1137, %v1139
        %v1141 = vrot.slane %v1065, 4
        %v1142 = vsel %vm387, %v1139, %v1141
        %v1143 = vrot.slane %v1066, 4
        %v1144 = vsel %vm387, %v1141, %v1143
        %v1145 = vrot.slane %v1067, 4
        %v1146 = vsel %vm387, %v1143, %v1145
        %v1147 = vrot.slane %v1068, 4
        %v1148 = vsel %vm387, %v1145, %v1147
        %v1149 = vrot.slane %v1069, 4
        %v1150 = vsel %vm387, %v1147, %v1149
        %v1151 = vrot.slane %v1070, 4
        %v1152 = vsel %vm387, %v1149, %v1151
        %v1153 = vrot.slane %v1071, 4
        %v1154 = vsel %vm387, %v1151, %v1153
        %v1155 = vrot.slane %v1072, 4
        %v1156 = vsel %vm387, %v1153, %v1155
        %v1157 = vrot.slane %v1073, 4
        %v1158 = vsel %vm387, %v1155, %v1157
        %v1159 = vrot.slane %v1074, 4
        %v1160 = vsel %vm387, %v1157, %v1159
        %v1161 = vrot.slane %v1075, 4
        %v1162 = vsel %vm387, %v1159, %v1161
        %v1163 = vrot.slane %v1076, 4
        %v1164 = vsel %vm387, %v1161, %v1163
        %v1165 = vrot.slane %v1077, 4
        %v1166 = vsel %vm387, %v1163, %v1165
        %v1167 = vrot.slane %v1078, 4
        %v1168 = vsel %vm387, %v1165, %v1167
        %v1169 = vrot.slane %v1079, 4
        %v1170 = vsel %vm387, %v1167, %v1169
        %v1174 = vunpack.c.l.b16 %v1085
        %v1175 = vunpack.c.l.b16 %v1086
        %v1176 = vunpack.c.l.b16 %v1087
        %v1177 = vpack.c.b16 %v1175, %v1174
        %v1178 = vpack.c.b16 %v1176, %v1176
        %vm1180 = vcmask 195584
        %v1182 = vsel %vm1180, %v1118, 0
        %v1185 = vsel %vm1180, %v1120, 0
        %v1188 = vsel %vm1180, %v1122, 0
        %v1191 = vsel %vm1180, %v1124, 0
        %v1194 = vsel %vm1180, %v1126, 0
        %v1197 = vsel %vm1180, %v1128, 0
        %v1200 = vsel %vm1180, %v1130, 0
        %v1203 = vsel %vm1180, %v1132, 0
        %v1206 = vsel %vm1180, %v1134, 0
        %v1209 = vsel %vm1180, %v1136, 0
        %v1212 = vsel %vm1180, %v1138, 0
        %v1215 = vsel %vm1180, %v1140, 0
        %v1218 = vsel %vm1180, %v1142, 0
        %v1221 = vsel %vm1180, %v1144, 0
        %v1224 = vsel %vm1180, %v1146, 0
        %v1227 = vsel %vm1180, %v1148, 0
        %v1230 = vsel %vm1180, %v1150, 0
        %v1233 = vsel %vm1180, %v1152, 0
        %v1236 = vsel %vm1180, %v1154, 0
        %v1239 = vsel %vm1180, %v1156, 0
        %v1242 = vsel %vm1180, %v1158, 0
        %v1245 = vsel %vm1180, %v1160, 0
        %v1248 = vsel %vm1180, %v1162, 0
        %v1251 = vsel %vm1180, %v1164, 0
        %v1254 = vsel %vm1180, %v1166, 0
        %v1257 = vsel %vm1180, %v1168, 0
        %v1260 = vsel %vm1180, %v1170, 0
        %vm1262 = vcmask 1043456
        %v1264 = vsel %vm1262, %v1178, 0
        %1266 = vmatprep.subr.bf16.mxu0 0
        %1267 = vmatpush1.bf16.msra.mxu0 %v1177
        %1268 = vmatprep.subr.bf16.mxu0 0
        %1269 = vmatpush1.bf16.msra.mxu0 %v1264
        %1270 = vmatprep.subr.bf16.mxu0 0
        %1271 = vmatpush1.bf16.msra.mxu0 0
        %1272 = vmatprep.subr.bf16.mxu0 0
        %1273 = vmatpush1.bf16.msra.mxu0 0
        %1274 = vmatprep.subr.bf16.mxu0 0
        %1275 = vmatpush1.bf16.msra.mxu0 0
        %1276 = vmatprep.subr.bf16.mxu0 0
        %1277 = vmatpush1.bf16.msra.mxu0 0
        %1278 = vmatprep.subr.bf16.mxu0 0
        %1279 = vmatpush1.bf16.msra.mxu0 0
        %1280 = vmatprep.subr.bf16.mxu0 0
        %1281 = vmatpush1.bf16.msra.mxu0 0
        %1282 = vmatprep.subr.bf16.mxu0 0
        %1283 = vmatpush1.bf16.msra.mxu0 0
        %1284 = vmatprep.subr.bf16.mxu0 0
        %1285 = vmatpush1.bf16.msra.mxu0 0
        %1286 = vmatprep.subr.bf16.mxu0 0
        %1287 = vmatpush1.bf16.msra.mxu0 0
        %1288 = vmatprep.subr.bf16.mxu0 0
        %1289 = vmatpush1.bf16.msra.mxu0 0
        %1290 = vmatprep.subr.bf16.mxu0 0
        %1291 = vmatpush1.bf16.msra.mxu0 0
        %1292 = vmatprep.subr.bf16.mxu0 0
        %1293 = vmatpush1.bf16.msra.mxu0 0
        %1294 = vmatprep.subr.bf16.mxu0 0
        %1295 = vmatpush1.bf16.msra.mxu0 0
        %1296 = vmatprep.subr.bf16.mxu0 0
        %1297 = vmatpush1.bf16.msra.mxu0 0
        %1298 = vmatprep.mubr.bf16.mxu0 0
        %1299 = vmatmul.mubr.bf16.gmra.mrb[0].mxu0 %v1182
        %v1300 = vpop.f32.mrb[0].mxu0
        %v1301 = vadd.f32 0.0, %v1300
        %v1302 = vpop.f32.mrb[0].mxu0
        %v1303 = vpop.f32.mrb[0].mxu0
        %v1304 = vadd.f32 0.0, %v1303
        %v1305 = vpop.f32.mrb[0].mxu0
        %1306 = vmatprep.mubr.bf16.mxu0 0
        %1307 = vmatmul.mubr.bf16.gmra.mrb[0].mxu0 %v1185
        %v1308 = vpop.f32.mrb[0].mxu0
        %v1309 = vadd.f32 0.0, %v1308
        %v1310 = vpop.f32.mrb[0].mxu0
        %v1311 = vpop.f32.mrb[0].mxu0
        %v1312 = vadd.f32 0.0, %v1311
        %v1313 = vpop.f32.mrb[0].mxu0
        %1314 = vmatprep.mubr.bf16.mxu0 0
        %1315 = vmatmul.mubr.bf16.gmra.mrb[0].mxu0 %v1188
        %v1316 = vpop.f32.mrb[0].mxu0
        %v1317 = vadd.f32 0.0, %v1316
        %v1318 = vpop.f32.mrb[0].mxu0
        %v1319 = vpop.f32.mrb[0].mxu0
        %v1320 = vadd.f32 0.0, %v1319
        %v1321 = vpop.f32.mrb[0].mxu0
        %1322 = vmatprep.mubr.bf16.mxu0 0
        %1323 = vmatmul.mubr.bf16.gmra.mrb[0].mxu0 %v1191
        %v1324 = vpop.f32.mrb[0].mxu0
        %v1325 = vadd.f32 0.0, %v1324
        %v1326 = vpop.f32.mrb[0].mxu0
        %v1327 = vpop.f32.mrb[0].mxu0
        %v1328 = vadd.f32 0.0, %v1327
        %v1329 = vpop.f32.mrb[0].mxu0
        %1330 = vmatprep.mubr.bf16.mxu0 0
        %1331 = vmatmul.mubr.bf16.gmra.mrb[0].mxu0 %v1194
        %v1332 = vpop.f32.mrb[0].mxu0
        %v1333 = vadd.f32 0.0, %v1332
        %v1334 = vpop.f32.mrb[0].mxu0
        %v1335 = vpop.f32.mrb[0].mxu0
        %v1336 = vadd.f32 0.0, %v1335
        %v1337 = vpop.f32.mrb[0].mxu0
        %1338 = vmatprep.mubr.bf16.mxu0 0
        %1339 = vmatmul.mubr.bf16.gmra.mrb[0].mxu0 %v1197
        %v1340 = vpop.f32.mrb[0].mxu0
        %v1341 = vadd.f32 0.0, %v1340
        %v1342 = vpop.f32.mrb[0].mxu0
        %v1343 = vpop.f32.mrb[0].mxu0
        %v1344 = vadd.f32 0.0, %v1343
        %v1345 = vpop.f32.mrb[0].mxu0
        %1346 = vmatprep.mubr.bf16.mxu0 0
        %1347 = vmatmul.mubr.bf16.gmra.mrb[0].mxu0 %v1200
        %v1348 = vpop.f32.mrb[0].mxu0
        %v1349 = vadd.f32 0.0, %v1348
        %v1350 = vpop.f32.mrb[0].mxu0
        %v1351 = vpop.f32.mrb[0].mxu0
        %v1352 = vadd.f32 0.0, %v1351
        %v1353 = vpop.f32.mrb[0].mxu0
        %1354 = vmatprep.mubr.bf16.mxu0 0
        %1355 = vmatmul.mubr.bf16.gmra.mrb[0].mxu0 %v1203
        %v1356 = vpop.f32.mrb[0].mxu0
        %v1357 = vadd.f32 0.0, %v1356
        %v1358 = vpop.f32.mrb[0].mxu0
        %v1359 = vpop.f32.mrb[0].mxu0
        %v1360 = vadd.f32 0.0, %v1359
        %v1361 = vpop.f32.mrb[0].mxu0
        %1362 = vmatprep.mubr.bf16.mxu0 0
        %1363 = vmatmul.mubr.bf16.gmra.mrb[0].mxu0 %v1206
        %v1364 = vpop.f32.mrb[0].mxu0
        %v1365 = vadd.f32 0.0, %v1364
        %v1366 = vpop.f32.mrb[0].mxu0
        %v1367 = vpop.f32.mrb[0].mxu0
        %v1368 = vadd.f32 0.0, %v1367
        %v1369 = vpop.f32.mrb[0].mxu0
        %1370 = vmatprep.mubr.bf16.mxu0 0
        %1371 = vmatmul.mubr.bf16.gmra.mrb[0].mxu0 %v1209
        %v1372 = vpop.f32.mrb[0].mxu0
        %v1373 = vadd.f32 0.0, %v1372
        %v1374 = vpop.f32.mrb[0].mxu0
        %v1375 = vpop.f32.mrb[0].mxu0
        %v1376 = vadd.f32 0.0, %v1375
        %v1377 = vpop.f32.mrb[0].mxu0
        %1378 = vmatprep.mubr.bf16.mxu0 0
        %1379 = vmatmul.mubr.bf16.gmra.mrb[0].mxu0 %v1212
        %v1380 = vpop.f32.mrb[0].mxu0
        %v1381 = vadd.f32 0.0, %v1380
        %v1382 = vpop.f32.mrb[0].mxu0
        %v1383 = vpop.f32.mrb[0].mxu0
        %v1384 = vadd.f32 0.0, %v1383
        %v1385 = vpop.f32.mrb[0].mxu0
        %1386 = vmatprep.mubr.bf16.mxu0 0
        %1387 = vmatmul.mubr.bf16.gmra.mrb[0].mxu0 %v1215
        %v1388 = vpop.f32.mrb[0].mxu0
        %v1389 = vadd.f32 0.0, %v1388
        %v1390 = vpop.f32.mrb[0].mxu0
        %v1391 = vpop.f32.mrb[0].mxu0
        %v1392 = vadd.f32 0.0, %v1391
        %v1393 = vpop.f32.mrb[0].mxu0
        %1394 = vmatprep.mubr.bf16.mxu0 0
        %1395 = vmatmul.mubr.bf16.gmra.mrb[0].mxu0 %v1218
        %v1396 = vpop.f32.mrb[0].mxu0
        %v1397 = vadd.f32 0.0, %v1396
        %v1398 = vpop.f32.mrb[0].mxu0
        %v1399 = vpop.f32.mrb[0].mxu0
        %v1400 = vadd.f32 0.0, %v1399
        %v1401 = vpop.f32.mrb[0].mxu0
        %1402 = vmatprep.mubr.bf16.mxu0 0
        %1403 = vmatmul.mubr.bf16.gmra.mrb[0].mxu0 %v1221
        %v1404 = vpop.f32.mrb[0].mxu0
        %v1405 = vadd.f32 0.0, %v1404
        %v1406 = vpop.f32.mrb[0].mxu0
        %v1407 = vpop.f32.mrb[0].mxu0
        %v1408 = vadd.f32 0.0, %v1407
        %v1409 = vpop.f32.mrb[0].mxu0
        %1410 = vmatprep.mubr.bf16.mxu0 0
        %1411 = vmatmul.mubr.bf16.gmra.mrb[0].mxu0 %v1224
        %v1412 = vpop.f32.mrb[0].mxu0
        %v1413 = vadd.f32 0.0, %v1412
        %v1414 = vpop.f32.mrb[0].mxu0
        %v1415 = vpop.f32.mrb[0].mxu0
        %v1416 = vadd.f32 0.0, %v1415
        %v1417 = vpop.f32.mrb[0].mxu0
        %1418 = vmatprep.mubr.bf16.mxu0 0
        %1419 = vmatmul.mubr.bf16.gmra.mrb[0].mxu0 %v1227
        %v1420 = vpop.f32.mrb[0].mxu0
        %v1421 = vadd.f32 0.0, %v1420
        %v1422 = vpop.f32.mrb[0].mxu0
        %v1423 = vpop.f32.mrb[0].mxu0
        %v1424 = vadd.f32 0.0, %v1423
        %v1425 = vpop.f32.mrb[0].mxu0
        %1426 = vmatprep.mubr.bf16.mxu0 0
        %1427 = vmatmul.mubr.bf16.gmra.mrb[0].mxu0 %v1230
        %v1428 = vpop.f32.mrb[0].mxu0
        %v1429 = vadd.f32 0.0, %v1428
        %v1430 = vpop.f32.mrb[0].mxu0
        %v1431 = vpop.f32.mrb[0].mxu0
        %v1432 = vadd.f32 0.0, %v1431
        %v1433 = vpop.f32.mrb[0].mxu0
        %1434 = vmatprep.mubr.bf16.mxu0 0
        %1435 = vmatmul.mubr.bf16.gmra.mrb[0].mxu0 %v1233
        %v1436 = vpop.f32.mrb[0].mxu0
        %v1437 = vadd.f32 0.0, %v1436
        %v1438 = vpop.f32.mrb[0].mxu0
        %v1439 = vpop.f32.mrb[0].mxu0
        %v1440 = vadd.f32 0.0, %v1439
        %v1441 = vpop.f32.mrb[0].mxu0
        %1442 = vmatprep.mubr.bf16.mxu0 0
        %1443 = vmatmul.mubr.bf16.gmra.mrb[0].mxu0 %v1236
        %v1444 = vpop.f32.mrb[0].mxu0
        %v1445 = vadd.f32 0.0, %v1444
        %v1446 = vpop.f32.mrb[0].mxu0
        %v1447 = vpop.f32.mrb[0].mxu0
        %v1448 = vadd.f32 0.0, %v1447
        %v1449 = vpop.f32.mrb[0].mxu0
        %1450 = vmatprep.mubr.bf16.mxu0 0
        %1451 = vmatmul.mubr.bf16.gmra.mrb[0].mxu0 %v1239
        %v1452 = vpop.f32.mrb[0].mxu0
        %v1453 = vadd.f32 0.0, %v1452
        %v1454 = vpop.f32.mrb[0].mxu0
        %v1455 = vpop.f32.mrb[0].mxu0
        %v1456 = vadd.f32 0.0, %v1455
        %v1457 = vpop.f32.mrb[0].mxu0
        %1458 = vmatprep.mubr.bf16.mxu0 0
        %1459 = vmatmul.mubr.bf16.gmra.mrb[0].mxu0 %v1242
        %v1460 = vpop.f32.mrb[0].mxu0
        %v1461 = vadd.f32 0.0, %v1460
        %v1462 = vpop.f32.mrb[0].mxu0
        %v1463 = vpop.f32.mrb[0].mxu0
        %v1464 = vadd.f32 0.0, %v1463
        %v1465 = vpop.f32.mrb[0].mxu0
        %1466 = vmatprep.mubr.bf16.mxu0 0
        %1467 = vmatmul.mubr.bf16.gmra.mrb[0].mxu0 %v1245
        %v1468 = vpop.f32.mrb[0].mxu0
        %v1469 = vadd.f32 0.0, %v1468
        %v1470 = vpop.f32.mrb[0].mxu0
        %v1471 = vpop.f32.mrb[0].mxu0
        %v1472 = vadd.f32 0.0, %v1471
        %v1473 = vpop.f32.mrb[0].mxu0
        %1474 = vmatprep.mubr.bf16.mxu0 0
        %1475 = vmatmul.mubr.bf16.gmra.mrb[0].mxu0 %v1248
        %v1476 = vpop.f32.mrb[0].mxu0
        %v1477 = vadd.f32 0.0, %v1476
        %v1478 = vpop.f32.mrb[0].mxu0
        %v1479 = vpop.f32.mrb[0].mxu0
        %v1480 = vadd.f32 0.0, %v1479
        %v1481 = vpop.f32.mrb[0].mxu0
        %1482 = vmatprep.mubr.bf16.mxu0 0
        %1483 = vmatmul.mubr.bf16.gmra.mrb[0].mxu0 %v1251
        %v1484 = vpop.f32.mrb[0].mxu0
        %v1485 = vadd.f32 0.0, %v1484
        %v1486 = vpop.f32.mrb[0].mxu0
        %v1487 = vpop.f32.mrb[0].mxu0
        %v1488 = vadd.f32 0.0, %v1487
        %v1489 = vpop.f32.mrb[0].mxu0
        %1490 = vmatprep.mubr.bf16.mxu0 0
        %1491 = vmatmul.mubr.bf16.gmra.mrb[0].mxu0 %v1254
        %v1492 = vpop.f32.mrb[0].mxu0
        %v1493 = vadd.f32 0.0, %v1492
        %v1494 = vpop.f32.mrb[0].mxu0
        %v1495 = vpop.f32.mrb[0].mxu0
        %v1496 = vadd.f32 0.0, %v1495
        %v1497 = vpop.f32.mrb[0].mxu0
        %1498 = vmatprep.mubr.bf16.mxu0 0
        %1499 = vmatmul.mubr.bf16.gmra.mrb[0].mxu0 %v1257
        %v1500 = vpop.f32.mrb[0].mxu0
        %v1501 = vadd.f32 0.0, %v1500
        %v1502 = vpop.f32.mrb[0].mxu0
        %v1503 = vpop.f32.mrb[0].mxu0
        %v1504 = vadd.f32 0.0, %v1503
        %v1505 = vpop.f32.mrb[0].mxu0
        %1506 = vmatprep.mubr.bf16.mxu0 0
        %1507 = vmatmul.mubr.bf16.gmra.mrb[0].mxu0 %v1260
        %v1508 = vpop.f32.mrb[0].mxu0
        %v1509 = vadd.f32 0.0, %v1508
        %v1510 = vpop.f32.mrb[0].mxu0
        %v1511 = vpop.f32.mrb[0].mxu0
        %v1512 = vadd.f32 0.0, %v1511
        %v1513 = vpop.f32.mrb[0].mxu0
        %1514 = vdwg.mxu0
        %vm1515 = vsmask.f32 4352
        %v1517 = vshrl.u32 %v1052, 16
        %v1519 = vrot.slane %v1517, 3
        %v1520 = vshll.u32 %v1052, 16
        %v1522 = vrot.slane %v1520, 4
        %v1523 = vor.u32 %v1519, %v1522
        %v1525 = vshrl.u32 %v1053, 16
        %v1527 = vrot.slane %v1525, 3
        %v1528 = vshll.u32 %v1053, 16
        %v1530 = vrot.slane %v1528, 4
        %v1531 = vor.u32 %v1527, %v1530
        %v1532 = vsel %vm1515, %v1523, %v1531
        %v1534 = vshrl.u32 %v1054, 16
        %v1536 = vrot.slane %v1534, 3
        %v1537 = vshll.u32 %v1054, 16
        %v1539 = vrot.slane %v1537, 4
        %v1540 = vor.u32 %v1536, %v1539
        %v1541 = vsel %vm1515, %v1531, %v1540
        %v1543 = vshrl.u32 %v1055, 16
        %v1545 = vrot.slane %v1543, 3
        %v1546 = vshll.u32 %v1055, 16
        %v1548 = vrot.slane %v1546, 4
        %v1549 = vor.u32 %v1545, %v1548
        %v1550 = vsel %vm1515, %v1540, %v1549
        %v1552 = vshrl.u32 %v1056, 16
        %v1554 = vrot.slane %v1552, 3
        %v1555 = vshll.u32 %v1056, 16
        %v1557 = vrot.slane %v1555, 4
        %v1558 = vor.u32 %v1554, %v1557
        %v1559 = vsel %vm1515, %v1549, %v1558
        %v1561 = vshrl.u32 %v1057, 16
        %v1563 = vrot.slane %v1561, 3
        %v1564 = vshll.u32 %v1057, 16
        %v1566 = vrot.slane %v1564, 4
        %v1567 = vor.u32 %v1563, %v1566
        %v1568 = vsel %vm1515, %v1558, %v1567
        %v1570 = vshrl.u32 %v1058, 16
        %v1572 = vrot.slane %v1570, 3
        %v1573 = vshll.u32 %v1058, 16
        %v1575 = vrot.slane %v1573, 4
        %v1576 = vor.u32 %v1572, %v1575
        %v1577 = vsel %vm1515, %v1567, %v1576
        %v1579 = vshrl.u32 %v1059, 16
        %v1581 = vrot.slane %v1579, 3
        %v1582 = vshll.u32 %v1059, 16
        %v1584 = vrot.slane %v1582, 4
        %v1585 = vor.u32 %v1581, %v1584
        %v1586 = vsel %vm1515, %v1576, %v1585
        %v1588 = vshrl.u32 %v1060, 16
        %v1590 = vrot.slane %v1588, 3
        %v1591 = vshll.u32 %v1060, 16
        %v1593 = vrot.slane %v1591, 4
        %v1594 = vor.u32 %v1590, %v1593
        %v1595 = vsel %vm1515, %v1585, %v1594
        %v1597 = vshrl.u32 %v1061, 16
        %v1599 = vrot.slane %v1597, 3
        %v1600 = vshll.u32 %v1061, 16
        %v1602 = vrot.slane %v1600, 4
        %v1603 = vor.u32 %v1599, %v1602
        %v1604 = vsel %vm1515, %v1594, %v1603
        %v1606 = vshrl.u32 %v1062, 16
        %v1608 = vrot.slane %v1606, 3
        %v1609 = vshll.u32 %v1062, 16
        %v1611 = vrot.slane %v1609, 4
        %v1612 = vor.u32 %v1608, %v1611
        %v1613 = vsel %vm1515, %v1603, %v1612
        %v1615 = vshrl.u32 %v1063, 16
        %v1617 = vrot.slane %v1615, 3
        %v1618 = vshll.u32 %v1063, 16
        %v1620 = vrot.slane %v1618, 4
        %v1621 = vor.u32 %v1617, %v1620
        %v1622 = vsel %vm1515, %v1612, %v1621
        %v1624 = vshrl.u32 %v1064, 16
        %v1626 = vrot.slane %v1624, 3
        %v1627 = vshll.u32 %v1064, 16
        %v1629 = vrot.slane %v1627, 4
        %v1630 = vor.u32 %v1626, %v1629
        %v1631 = vsel %vm1515, %v1621, %v1630
        %v1633 = vshrl.u32 %v1065, 16
        %v1635 = vrot.slane %v1633, 3
        %v1636 = vshll.u32 %v1065, 16
        %v1638 = vrot.slane %v1636, 4
        %v1639 = vor.u32 %v1635, %v1638
        %v1640 = vsel %vm1515, %v1630, %v1639
        %v1642 = vshrl.u32 %v1066, 16
        %v1644 = vrot.slane %v1642, 3
        %v1645 = vshll.u32 %v1066, 16
        %v1647 = vrot.slane %v1645, 4
        %v1648 = vor.u32 %v1644, %v1647
        %v1649 = vsel %vm1515, %v1639, %v1648
        %v1651 = vshrl.u32 %v1067, 16
        %v1653 = vrot.slane %v1651, 3
        %v1654 = vshll.u32 %v1067, 16
        %v1656 = vrot.slane %v1654, 4
        %v1657 = vor.u32 %v1653, %v1656
        %v1658 = vsel %vm1515, %v1648, %v1657
        %v1660 = vshrl.u32 %v1068, 16
        %v1662 = vrot.slane %v1660, 3
        %v1663 = vshll.u32 %v1068, 16
        %v1665 = vrot.slane %v1663, 4
        %v1666 = vor.u32 %v1662, %v1665
        %v1667 = vsel %vm1515, %v1657, %v1666
        %v1669 = vshrl.u32 %v1069, 16
        %v1671 = vrot.slane %v1669, 3
        %v1672 = vshll.u32 %v1069, 16
        %v1674 = vrot.slane %v1672, 4
        %v1675 = vor.u32 %v1671, %v1674
        %v1676 = vsel %vm1515, %v1666, %v1675
        %v1678 = vshrl.u32 %v1070, 16
        %v1680 = vrot.slane %v1678, 3
        %v1681 = vshll.u32 %v1070, 16
        %v1683 = vrot.slane %v1681, 4
        %v1684 = vor.u32 %v1680, %v1683
        %v1685 = vsel %vm1515, %v1675, %v1684
        %v1687 = vshrl.u32 %v1071, 16
        %v1689 = vrot.slane %v1687, 3
        %v1690 = vshll.u32 %v1071, 16
        %v1692 = vrot.slane %v1690, 4
        %v1693 = vor.u32 %v1689, %v1692
        %v1694 = vsel %vm1515, %v1684, %v1693
        %v1696 = vshrl.u32 %v1072, 16
        %v1698 = vrot.slane %v1696, 3
        %v1699 = vshll.u32 %v1072, 16
        %v1701 = vrot.slane %v1699, 4
        %v1702 = vor.u32 %v1698, %v1701
        %v1703 = vsel %vm1515, %v1693, %v1702
        %v1705 = vshrl.u32 %v1073, 16
        %v1707 = vrot.slane %v1705, 3
        %v1708 = vshll.u32 %v1073, 16
        %v1710 = vrot.slane %v1708, 4
        %v1711 = vor.u32 %v1707, %v1710
        %v1712 = vsel %vm1515, %v1702, %v1711
        %v1714 = vshrl.u32 %v1074, 16
        %v1716 = vrot.slane %v1714, 3
        %v1717 = vshll.u32 %v1074, 16
        %v1719 = vrot.slane %v1717, 4
        %v1720 = vor.u32 %v1716, %v1719
        %v1721 = vsel %vm1515, %v1711, %v1720
        %v1723 = vshrl.u32 %v1075, 16
        %v1725 = vrot.slane %v1723, 3
        %v1726 = vshll.u32 %v1075, 16
        %v1728 = vrot.slane %v1726, 4
        %v1729 = vor.u32 %v1725, %v1728
        %v1730 = vsel %vm1515, %v1720, %v1729
        %v1732 = vshrl.u32 %v1076, 16
        %v1734 = vrot.slane %v1732, 3
        %v1735 = vshll.u32 %v1076, 16
        %v1737 = vrot.slane %v1735, 4
        %v1738 = vor.u32 %v1734, %v1737
        %v1739 = vsel %vm1515, %v1729, %v1738
        %v1741 = vshrl.u32 %v1077, 16
        %v1743 = vrot.slane %v1741, 3
        %v1744 = vshll.u32 %v1077, 16
        %v1746 = vrot.slane %v1744, 4
        %v1747 = vor.u32 %v1743, %v1746
        %v1748 = vsel %vm1515, %v1738, %v1747
        %v1750 = vshrl.u32 %v1078, 16
        %v1752 = vrot.slane %v1750, 3
        %v1753 = vshll.u32 %v1078, 16
        %v1755 = vrot.slane %v1753, 4
        %v1756 = vor.u32 %v1752, %v1755
        %v1757 = vsel %vm1515, %v1747, %v1756
        %v1759 = vshrl.u32 %v1079, 16
        %v1761 = vrot.slane %v1759, 3
        %v1762 = vshll.u32 %v1079, 16
        %v1764 = vrot.slane %v1762, 4
        %v1765 = vor.u32 %v1761, %v1764
        %v1766 = vsel %vm1515, %v1756, %v1765
        %v1770 = vunpack.c.l.b16 %v1080
        %v1771 = vunpack.c.l.b16 %v1081
        %v1772 = vunpack.c.l.b16 %v1082
        %v1773 = vpack.c.b16 %v1771, %v1770
        %v1774 = vpack.c.b16 %v1772, %v1772
        %v1777 = vsel %vm1180, %v1532, 0
        %v1780 = vsel %vm1180, %v1541, 0
        %v1783 = vsel %vm1180, %v1550, 0
        %v1786 = vsel %vm1180, %v1559, 0
        %v1789 = vsel %vm1180, %v1568, 0
        %v1792 = vsel %vm1180, %v1577, 0
        %v1795 = vsel %vm1180, %v1586, 0
        %v1798 = vsel %vm1180, %v1595, 0
        %v1801 = vsel %vm1180, %v1604, 0
        %v1804 = vsel %vm1180, %v1613, 0
        %v1807 = vsel %vm1180, %v1622, 0
        %v1810 = vsel %vm1180, %v1631, 0
        %v1813 = vsel %vm1180, %v1640, 0
        %v1816 = vsel %vm1180, %v1649, 0
        %v1819 = vsel %vm1180, %v1658, 0
        %v1822 = vsel %vm1180, %v1667, 0
        %v1825 = vsel %vm1180, %v1676, 0
        %v1828 = vsel %vm1180, %v1685, 0
        %v1831 = vsel %vm1180, %v1694, 0
        %v1834 = vsel %vm1180, %v1703, 0
        %v1837 = vsel %vm1180, %v1712, 0
        %v1840 = vsel %vm1180, %v1721, 0
        %v1843 = vsel %vm1180, %v1730, 0
        %v1846 = vsel %vm1180, %v1739, 0
        %v1849 = vsel %vm1180, %v1748, 0
        %v1852 = vsel %vm1180, %v1757, 0
        %v1855 = vsel %vm1180, %v1766, 0
        %v1858 = vsel %vm1262, %v1774, 0
        %1860 = vmatprep.subr.bf16.mxu0 0
        %1861 = vmatpush1.bf16.msra.mxu0 %v1773
        %1862 = vmatprep.subr.bf16.mxu0 0
        %1863 = vmatpush1.bf16.msra.mxu0 %v1858
        %1864 = vmatprep.subr.bf16.mxu0 0
        %1865 = vmatpush1.bf16.msra.mxu0 0
        %1866 = vmatprep.subr.bf16.mxu0 0
        %1867 = vmatpush1.bf16.msra.mxu0 0
        %1868 = vmatprep.subr.bf16.mxu0 0
        %1869 = vmatpush1.bf16.msra.mxu0 0
        %1870 = vmatprep.subr.bf16.mxu0 0
        %1871 = vmatpush1.bf16.msra.mxu0 0
        %1872 = vmatprep.subr.bf16.mxu0 0
        %1873 = vmatpush1.bf16.msra.mxu0 0
        %1874 = vmatprep.subr.bf16.mxu0 0
        %1875 = vmatpush1.bf16.msra.mxu0 0
        %1876 = vmatprep.subr.bf16.mxu0 0
        %1877 = vmatpush1.bf16.msra.mxu0 0
        %1878 = vmatprep.subr.bf16.mxu0 0
        %1879 = vmatpush1.bf16.msra.mxu0 0
        %1880 = vmatprep.subr.bf16.mxu0 0
        %1881 = vmatpush1.bf16.msra.mxu0 0
        %1882 = vmatprep.subr.bf16.mxu0 0
        %1883 = vmatpush1.bf16.msra.mxu0 0
        %1884 = vmatprep.subr.bf16.mxu0 0
        %1885 = vmatpush1.bf16.msra.mxu0 0
        %1886 = vmatprep.subr.bf16.mxu0 0
        %1887 = vmatpush1.bf16.msra.mxu0 0
        %1888 = vmatprep.subr.bf16.mxu0 0
        %1889 = vmatpush1.bf16.msra.mxu0 0
        %1890 = vmatprep.subr.bf16.mxu0 0
        %1891 = vmatpush1.bf16.msra.mxu0 0
        %1892 = vmatprep.mubr.bf16.mxu0 0
        %1893 = vmatmul.mubr.bf16.gmra.mrb[0].mxu0 %v1777
        %v1894 = vpop.f32.mrb[0].mxu0
        %v1895 = vadd.f32 %v1301, %v1894
        %v1896 = vpop.f32.mrb[0].mxu0
        %v1897 = vpop.f32.mrb[0].mxu0
        %v1898 = vadd.f32 %v1304, %v1897
        %v1899 = vpop.f32.mrb[0].mxu0
        %1900 = vmatprep.mubr.bf16.mxu0 0
        %1901 = vmatmul.mubr.bf16.gmra.mrb[0].mxu0 %v1780
        %v1902 = vpop.f32.mrb[0].mxu0
        %v1903 = vadd.f32 %v1309, %v1902
        %v1904 = vpop.f32.mrb[0].mxu0
        %v1905 = vpop.f32.mrb[0].mxu0
        %v1906 = vadd.f32 %v1312, %v1905
        %v1907 = vpop.f32.mrb[0].mxu0
        %1908 = vmatprep.mubr.bf16.mxu0 0
        %1909 = vmatmul.mubr.bf16.gmra.mrb[0].mxu0 %v1783
        %v1910 = vpop.f32.mrb[0].mxu0
        %v1911 = vadd.f32 %v1317, %v1910
        %v1912 = vpop.f32.mrb[0].mxu0
        %v1913 = vpop.f32.mrb[0].mxu0
        %v1914 = vadd.f32 %v1320, %v1913
        %v1915 = vpop.f32.mrb[0].mxu0
        %1916 = vmatprep.mubr.bf16.mxu0 0
        %1917 = vmatmul.mubr.bf16.gmra.mrb[0].mxu0 %v1786
        %v1918 = vpop.f32.mrb[0].mxu0
        %v1919 = vadd.f32 %v1325, %v1918
        %v1920 = vpop.f32.mrb[0].mxu0
        %v1921 = vpop.f32.mrb[0].mxu0
        %v1922 = vadd.f32 %v1328, %v1921
        %v1923 = vpop.f32.mrb[0].mxu0
        %1924 = vmatprep.mubr.bf16.mxu0 0
        %1925 = vmatmul.mubr.bf16.gmra.mrb[0].mxu0 %v1789
        %v1926 = vpop.f32.mrb[0].mxu0
        %v1927 = vadd.f32 %v1333, %v1926
        %v1928 = vpop.f32.mrb[0].mxu0
        %v1929 = vpop.f32.mrb[0].mxu0
        %v1930 = vadd.f32 %v1336, %v1929
        %v1931 = vpop.f32.mrb[0].mxu0
        %1932 = vmatprep.mubr.bf16.mxu0 0
        %1933 = vmatmul.mubr.bf16.gmra.mrb[0].mxu0 %v1792
        %v1934 = vpop.f32.mrb[0].mxu0
        %v1935 = vadd.f32 %v1341, %v1934
        %v1936 = vpop.f32.mrb[0].mxu0
        %v1937 = vpop.f32.mrb[0].mxu0
        %v1938 = vadd.f32 %v1344, %v1937
        %v1939 = vpop.f32.mrb[0].mxu0
        %1940 = vmatprep.mubr.bf16.mxu0 0
        %1941 = vmatmul.mubr.bf16.gmra.mrb[0].mxu0 %v1795
        %v1942 = vpop.f32.mrb[0].mxu0
        %v1943 = vadd.f32 %v1349, %v1942
        %v1944 = vpop.f32.mrb[0].mxu0
        %v1945 = vpop.f32.mrb[0].mxu0
        %v1946 = vadd.f32 %v1352, %v1945
        %v1947 = vpop.f32.mrb[0].mxu0
        %1948 = vmatprep.mubr.bf16.mxu0 0
        %1949 = vmatmul.mubr.bf16.gmra.mrb[0].mxu0 %v1798
        %v1950 = vpop.f32.mrb[0].mxu0
        %v1951 = vadd.f32 %v1357, %v1950
        %v1952 = vpop.f32.mrb[0].mxu0
        %v1953 = vpop.f32.mrb[0].mxu0
        %v1954 = vadd.f32 %v1360, %v1953
        %v1955 = vpop.f32.mrb[0].mxu0
        %1956 = vmatprep.mubr.bf16.mxu0 0
        %1957 = vmatmul.mubr.bf16.gmra.mrb[0].mxu0 %v1801
        %v1958 = vpop.f32.mrb[0].mxu0
        %v1959 = vadd.f32 %v1365, %v1958
        %v1960 = vpop.f32.mrb[0].mxu0
        %v1961 = vpop.f32.mrb[0].mxu0
        %v1962 = vadd.f32 %v1368, %v1961
        %v1963 = vpop.f32.mrb[0].mxu0
        %1964 = vmatprep.mubr.bf16.mxu0 0
        %1965 = vmatmul.mubr.bf16.gmra.mrb[0].mxu0 %v1804
        %v1966 = vpop.f32.mrb[0].mxu0
        %v1967 = vadd.f32 %v1373, %v1966
        %v1968 = vpop.f32.mrb[0].mxu0
        %v1969 = vpop.f32.mrb[0].mxu0
        %v1970 = vadd.f32 %v1376, %v1969
        %v1971 = vpop.f32.mrb[0].mxu0
        %1972 = vmatprep.mubr.bf16.mxu0 0
        %1973 = vmatmul.mubr.bf16.gmra.mrb[0].mxu0 %v1807
        %v1974 = vpop.f32.mrb[0].mxu0
        %v1975 = vadd.f32 %v1381, %v1974
        %v1976 = vpop.f32.mrb[0].mxu0
        %v1977 = vpop.f32.mrb[0].mxu0
        %v1978 = vadd.f32 %v1384, %v1977
        %v1979 = vpop.f32.mrb[0].mxu0
        %1980 = vmatprep.mubr.bf16.mxu0 0
        %1981 = vmatmul.mubr.bf16.gmra.mrb[0].mxu0 %v1810
        %v1982 = vpop.f32.mrb[0].mxu0
        %v1983 = vadd.f32 %v1389, %v1982
        %v1984 = vpop.f32.mrb[0].mxu0
        %v1985 = vpop.f32.mrb[0].mxu0
        %v1986 = vadd.f32 %v1392, %v1985
        %v1987 = vpop.f32.mrb[0].mxu0
        %1988 = vmatprep.mubr.bf16.mxu0 0
        %1989 = vmatmul.mubr.bf16.gmra.mrb[0].mxu0 %v1813
        %v1990 = vpop.f32.mrb[0].mxu0
        %v1991 = vadd.f32 %v1397, %v1990
        %v1992 = vpop.f32.mrb[0].mxu0
        %v1993 = vpop.f32.mrb[0].mxu0
        %v1994 = vadd.f32 %v1400, %v1993
        %v1995 = vpop.f32.mrb[0].mxu0
        %1996 = vmatprep.mubr.bf16.mxu0 0
        %1997 = vmatmul.mubr.bf16.gmra.mrb[0].mxu0 %v1816
        %v1998 = vpop.f32.mrb[0].mxu0
        %v1999 = vadd.f32 %v1405, %v1998
        %v2000 = vpop.f32.mrb[0].mxu0
        %v2001 = vpop.f32.mrb[0].mxu0
        %v2002 = vadd.f32 %v1408, %v2001
        %v2003 = vpop.f32.mrb[0].mxu0
        %2004 = vmatprep.mubr.bf16.mxu0 0
        %2005 = vmatmul.mubr.bf16.gmra.mrb[0].mxu0 %v1819
        %v2006 = vpop.f32.mrb[0].mxu0
        %v2007 = vadd.f32 %v1413, %v2006
        %v2008 = vpop.f32.mrb[0].mxu0
        %v2009 = vpop.f32.mrb[0].mxu0
        %v2010 = vadd.f32 %v1416, %v2009
        %v2011 = vpop.f32.mrb[0].mxu0
        %2012 = vmatprep.mubr.bf16.mxu0 0
        %2013 = vmatmul.mubr.bf16.gmra.mrb[0].mxu0 %v1822
        %v2014 = vpop.f32.mrb[0].mxu0
        %v2015 = vadd.f32 %v1421, %v2014
        %v2016 = vpop.f32.mrb[0].mxu0
        %v2017 = vpop.f32.mrb[0].mxu0
        %v2018 = vadd.f32 %v1424, %v2017
        %v2019 = vpop.f32.mrb[0].mxu0
        %2020 = vmatprep.mubr.bf16.mxu0 0
        %2021 = vmatmul.mubr.bf16.gmra.mrb[0].mxu0 %v1825
        %v2022 = vpop.f32.mrb[0].mxu0
        %v2023 = vadd.f32 %v1429, %v2022
        %v2024 = vpop.f32.mrb[0].mxu0
        %v2025 = vpop.f32.mrb[0].mxu0
        %v2026 = vadd.f32 %v1432, %v2025
        %v2027 = vpop.f32.mrb[0].mxu0
        %2028 = vmatprep.mubr.bf16.mxu0 0
        %2029 = vmatmul.mubr.bf16.gmra.mrb[0].mxu0 %v1828
        %v2030 = vpop.f32.mrb[0].mxu0
        %v2031 = vadd.f32 %v1437, %v2030
        %v2032 = vpop.f32.mrb[0].mxu0
        %v2033 = vpop.f32.mrb[0].mxu0
        %v2034 = vadd.f32 %v1440, %v2033
        %v2035 = vpop.f32.mrb[0].mxu0
        %2036 = vmatprep.mubr.bf16.mxu0 0
        %2037 = vmatmul.mubr.bf16.gmra.mrb[0].mxu0 %v1831
        %v2038 = vpop.f32.mrb[0].mxu0
        %v2039 = vadd.f32 %v1445, %v2038
        %v2040 = vpop.f32.mrb[0].mxu0
        %v2041 = vpop.f32.mrb[0].mxu0
        %v2042 = vadd.f32 %v1448, %v2041
        %v2043 = vpop.f32.mrb[0].mxu0
        %2044 = vmatprep.mubr.bf16.mxu0 0
        %2045 = vmatmul.mubr.bf16.gmra.mrb[0].mxu0 %v1834
        %v2046 = vpop.f32.mrb[0].mxu0
        %v2047 = vadd.f32 %v1453, %v2046
        %v2048 = vpop.f32.mrb[0].mxu0
        %v2049 = vpop.f32.mrb[0].mxu0
        %v2050 = vadd.f32 %v1456, %v2049
        %v2051 = vpop.f32.mrb[0].mxu0
        %2052 = vmatprep.mubr.bf16.mxu0 0
        %2053 = vmatmul.mubr.bf16.gmra.mrb[0].mxu0 %v1837
        %v2054 = vpop.f32.mrb[0].mxu0
        %v2055 = vadd.f32 %v1461, %v2054
        %v2056 = vpop.f32.mrb[0].mxu0
        %v2057 = vpop.f32.mrb[0].mxu0
        %v2058 = vadd.f32 %v1464, %v2057
        %v2059 = vpop.f32.mrb[0].mxu0
        %2060 = vmatprep.mubr.bf16.mxu0 0
        %2061 = vmatmul.mubr.bf16.gmra.mrb[0].mxu0 %v1840
        %v2062 = vpop.f32.mrb[0].mxu0
        %v2063 = vadd.f32 %v1469, %v2062
        %v2064 = vpop.f32.mrb[0].mxu0
        %v2065 = vpop.f32.mrb[0].mxu0
        %v2066 = vadd.f32 %v1472, %v2065
        %v2067 = vpop.f32.mrb[0].mxu0
        %2068 = vmatprep.mubr.bf16.mxu0 0
        %2069 = vmatmul.mubr.bf16.gmra.mrb[0].mxu0 %v1843
        %v2070 = vpop.f32.mrb[0].mxu0
        %v2071 = vadd.f32 %v1477, %v2070
        %v2072 = vpop.f32.mrb[0].mxu0
        %v2073 = vpop.f32.mrb[0].mxu0
        %v2074 = vadd.f32 %v1480, %v2073
        %v2075 = vpop.f32.mrb[0].mxu0
        %2076 = vmatprep.mubr.bf16.mxu0 0
        %2077 = vmatmul.mubr.bf16.gmra.mrb[0].mxu0 %v1846
        %v2078 = vpop.f32.mrb[0].mxu0
        %v2079 = vadd.f32 %v1485, %v2078
        %v2080 = vpop.f32.mrb[0].mxu0
        %v2081 = vpop.f32.mrb[0].mxu0
        %v2082 = vadd.f32 %v1488, %v2081
        %v2083 = vpop.f32.mrb[0].mxu0
        %2084 = vmatprep.mubr.bf16.mxu0 0
        %2085 = vmatmul.mubr.bf16.gmra.mrb[0].mxu0 %v1849
        %v2086 = vpop.f32.mrb[0].mxu0
        %v2087 = vadd.f32 %v1493, %v2086
        %v2088 = vpop.f32.mrb[0].mxu0
        %v2089 = vpop.f32.mrb[0].mxu0
        %v2090 = vadd.f32 %v1496, %v2089
        %v2091 = vpop.f32.mrb[0].mxu0
        %2092 = vmatprep.mubr.bf16.mxu0 0
        %2093 = vmatmul.mubr.bf16.gmra.mrb[0].mxu0 %v1852
        %v2094 = vpop.f32.mrb[0].mxu0
        %v2095 = vadd.f32 %v1501, %v2094
        %v2096 = vpop.f32.mrb[0].mxu0
        %v2097 = vpop.f32.mrb[0].mxu0
        %v2098 = vadd.f32 %v1504, %v2097
        %v2099 = vpop.f32.mrb[0].mxu0
        %2100 = vmatprep.mubr.bf16.mxu0 0
        %2101 = vmatmul.mubr.bf16.gmra.mrb[0].mxu0 %v1855
        %v2102 = vpop.f32.mrb[0].mxu0
        %v2103 = vadd.f32 %v1509, %v2102
        %v2104 = vpop.f32.mrb[0].mxu0
        %v2105 = vpop.f32.mrb[0].mxu0
        %v2106 = vadd.f32 %v1512, %v2105
        %v2107 = vpop.f32.mrb[0].mxu0
        %2108 = vdwg.mxu0
        %v2109 = vld [vmem:[#allocation3 + $0xd8] sm:$0x1f]
        %s2110 = scalar_lea.vmem %s2, 24
        %v2111 = vld [vmem:[%s2110] sm:$0xf]
        %v2112 = vld [vmem:[%s2110 + $0x4] sm:$0xf]
        %v2113 = vld [vmem:[%s2110 + $0x8] sm:$0xf]
        %vm2114 = vsmask.f32 3328
        %v2116 = vshrl.u32 %v1083, 16
        %v2118 = vrot.slane %v2116, 4
        %v2119 = vshll.u32 %v1083, 16
        %v2121 = vrot.slane %v2119, 5
        %v2122 = vor.u32 %v2118, %v2121
        %v2123 = vrot.slane %v1525, 4
        %v2124 = vrot.slane %v1528, 5
        %v2125 = vor.u32 %v2123, %v2124
        %v2126 = vsel %vm2114, %v2122, %v2125
        %v2127 = vrot.slane %v1534, 4
        %v2128 = vrot.slane %v1537, 5
        %v2129 = vor.u32 %v2127, %v2128
        %v2130 = vsel %vm2114, %v2125, %v2129
        %v2131 = vrot.slane %v1543, 4
        %v2132 = vrot.slane %v1546, 5
        %v2133 = vor.u32 %v2131, %v2132
        %v2134 = vsel %vm2114, %v2129, %v2133
        %v2135 = vrot.slane %v1552, 4
        %v2136 = vrot.slane %v1555, 5
        %v2137 = vor.u32 %v2135, %v2136
        %v2138 = vsel %vm2114, %v2133, %v2137
        %v2139 = vrot.slane %v1561, 4
        %v2140 = vrot.slane %v1564, 5
        %v2141 = vor.u32 %v2139, %v2140
        %v2142 = vsel %vm2114, %v2137, %v2141
        %v2143 = vrot.slane %v1570, 4
        %v2144 = vrot.slane %v1573, 5
        %v2145 = vor.u32 %v2143, %v2144
        %v2146 = vsel %vm2114, %v2141, %v2145
        %v2147 = vrot.slane %v1579, 4
        %v2148 = vrot.slane %v1582, 5
        %v2149 = vor.u32 %v2147, %v2148
        %v2150 = vsel %vm2114, %v2145, %v2149
        %v2151 = vrot.slane %v1588, 4
        %v2152 = vrot.slane %v1591, 5
        %v2153 = vor.u32 %v2151, %v2152
        %v2154 = vsel %vm2114, %v2149, %v2153
        %v2155 = vrot.slane %v1597, 4
        %v2156 = vrot.slane %v1600, 5
        %v2157 = vor.u32 %v2155, %v2156
        %v2158 = vsel %vm2114, %v2153, %v2157
        %v2159 = vrot.slane %v1606, 4
        %v2160 = vrot.slane %v1609, 5
        %v2161 = vor.u32 %v2159, %v2160
        %v2162 = vsel %vm2114, %v2157, %v2161
        %v2163 = vrot.slane %v1615, 4
        %v2164 = vrot.slane %v1618, 5
        %v2165 = vor.u32 %v2163, %v2164
        %v2166 = vsel %vm2114, %v2161, %v2165
        %v2167 = vrot.slane %v1624, 4
        %v2168 = vrot.slane %v1627, 5
        %v2169 = vor.u32 %v2167, %v2168
        %v2170 = vsel %vm2114, %v2165, %v2169
        %v2171 = vrot.slane %v1633, 4
        %v2172 = vrot.slane %v1636, 5
        %v2173 = vor.u32 %v2171, %v2172
        %v2174 = vsel %vm2114, %v2169, %v2173
        %v2175 = vrot.slane %v1642, 4
        %v2176 = vrot.slane %v1645, 5
        %v2177 = vor.u32 %v2175, %v2176
        %v2178 = vsel %vm2114, %v2173, %v2177
        %v2179 = vrot.slane %v1651, 4
        %v2180 = vrot.slane %v1654, 5
        %v2181 = vor.u32 %v2179, %v2180
        %v2182 = vsel %vm2114, %v2177, %v2181
        %v2183 = vrot.slane %v1660, 4
        %v2184 = vrot.slane %v1663, 5
        %v2185 = vor.u32 %v2183, %v2184
        %v2186 = vsel %vm2114, %v2181, %v2185
        %v2187 = vrot.slane %v1669, 4
        %v2188 = vrot.slane %v1672, 5
        %v2189 = vor.u32 %v2187, %v2188
        %v2190 = vsel %vm2114, %v2185, %v2189
        %v2191 = vrot.slane %v1678, 4
        %v2192 = vrot.slane %v1681, 5
        %v2193 = vor.u32 %v2191, %v2192
        %v2194 = vsel %vm2114, %v2189, %v2193
        %v2195 = vrot.slane %v1687, 4
        %v2196 = vrot.slane %v1690, 5
        %v2197 = vor.u32 %v2195, %v2196
        %v2198 = vsel %vm2114, %v2193, %v2197
        %v2199 = vrot.slane %v1696, 4
        %v2200 = vrot.slane %v1699, 5
        %v2201 = vor.u32 %v2199, %v2200
        %v2202 = vsel %vm2114, %v2197, %v2201
        %v2203 = vrot.slane %v1705, 4
        %v2204 = vrot.slane %v1708, 5
        %v2205 = vor.u32 %v2203, %v2204
        %v2206 = vsel %vm2114, %v2201, %v2205
        %v2207 = vrot.slane %v1714, 4
        %v2208 = vrot.slane %v1717, 5
        %v2209 = vor.u32 %v2207, %v2208
        %v2210 = vsel %vm2114, %v2205, %v2209
        %v2211 = vrot.slane %v1723, 4
        %v2212 = vrot.slane %v1726, 5
        %v2213 = vor.u32 %v2211, %v2212
        %v2214 = vsel %vm2114, %v2209, %v2213
        %v2215 = vrot.slane %v1732, 4
        %v2216 = vrot.slane %v1735, 5
        %v2217 = vor.u32 %v2215, %v2216
        %v2218 = vsel %vm2114, %v2213, %v2217
        %v2219 = vrot.slane %v1741, 4
        %v2220 = vrot.slane %v1744, 5
        %v2221 = vor.u32 %v2219, %v2220
        %v2222 = vsel %vm2114, %v2217, %v2221
        %v2223 = vrot.slane %v1750, 4
        %v2224 = vrot.slane %v1753, 5
        %v2225 = vor.u32 %v2223, %v2224
        %v2226 = vsel %vm2114, %v2221, %v2225
        %v2228 = vshrl.u32 %v2109, 16
        %v2230 = vrot.slane %v2228, 4
        %v2231 = vshll.u32 %v2109, 16
        %v2233 = vrot.slane %v2231, 5
        %v2234 = vor.u32 %v2230, %v2233
        %v2235 = vsel %vm2114, %v2225, %v2234
        %v2239 = vunpack.c.l.b16 %v2111
        %v2240 = vunpack.c.l.b16 %v2112
        %v2241 = vunpack.c.l.b16 %v2113
        %v2242 = vpack.c.b16 %v2240, %v2239
        %v2243 = vpack.c.b16 %v2241, %v2241
        %v2246 = vsel %vm1180, %v2126, 0
        %v2249 = vsel %vm1180, %v2130, 0
        %v2252 = vsel %vm1180, %v2134, 0
        %v2255 = vsel %vm1180, %v2138, 0
        %v2258 = vsel %vm1180, %v2142, 0
        %v2261 = vsel %vm1180, %v2146, 0
        %v2264 = vsel %vm1180, %v2150, 0
        %v2267 = vsel %vm1180, %v2154, 0
        %v2270 = vsel %vm1180, %v2158, 0
        %v2273 = vsel %vm1180, %v2162, 0
        %v2276 = vsel %vm1180, %v2166, 0
        %v2279 = vsel %vm1180, %v2170, 0
        %v2282 = vsel %vm1180, %v2174, 0
        %v2285 = vsel %vm1180, %v2178, 0
        %v2288 = vsel %vm1180, %v2182, 0
        %v2291 = vsel %vm1180, %v2186, 0
        %v2294 = vsel %vm1180, %v2190, 0
        %v2297 = vsel %vm1180, %v2194, 0
        %v2300 = vsel %vm1180, %v2198, 0
        %v2303 = vsel %vm1180, %v2202, 0
        %v2306 = vsel %vm1180, %v2206, 0
        %v2309 = vsel %vm1180, %v2210, 0
        %v2312 = vsel %vm1180, %v2214, 0
        %v2315 = vsel %vm1180, %v2218, 0
        %v2318 = vsel %vm1180, %v2222, 0
        %v2321 = vsel %vm1180, %v2226, 0
        %v2324 = vsel %vm1180, %v2235, 0
        %v2327 = vsel %vm1262, %v2243, 0
        %2329 = vmatprep.subr.bf16.mxu0 0
        %2330 = vmatpush1.bf16.msra.mxu0 %v2242
        %2331 = vmatprep.subr.bf16.mxu0 0
        %2332 = vmatpush1.bf16.msra.mxu0 %v2327
        %2333 = vmatprep.subr.bf16.mxu0 0
        %2334 = vmatpush1.bf16.msra.mxu0 0
        %2335 = vmatprep.subr.bf16.mxu0 0
        %2336 = vmatpush1.bf16.msra.mxu0 0
        %2337 = vmatprep.subr.bf16.mxu0 0
        %2338 = vmatpush1.bf16.msra.mxu0 0
        %2339 = vmatprep.subr.bf16.mxu0 0
        %2340 = vmatpush1.bf16.msra.mxu0 0
        %2341 = vmatprep.subr.bf16.mxu0 0
        %2342 = vmatpush1.bf16.msra.mxu0 0
        %2343 = vmatprep.subr.bf16.mxu0 0
        %2344 = vmatpush1.bf16.msra.mxu0 0
        %2345 = vmatprep.subr.bf16.mxu0 0
        %2346 = vmatpush1.bf16.msra.mxu0 0
        %2347 = vmatprep.subr.bf16.mxu0 0
        %2348 = vmatpush1.bf16.msra.mxu0 0
        %2349 = vmatprep.subr.bf16.mxu0 0
        %2350 = vmatpush1.bf16.msra.mxu0 0
        %2351 = vmatprep.subr.bf16.mxu0 0
        %2352 = vmatpush1.bf16.msra.mxu0 0
        %2353 = vmatprep.subr.bf16.mxu0 0
        %2354 = vmatpush1.bf16.msra.mxu0 0
        %2355 = vmatprep.subr.bf16.mxu0 0
        %2356 = vmatpush1.bf16.msra.mxu0 0
        %2357 = vmatprep.subr.bf16.mxu0 0
        %2358 = vmatpush1.bf16.msra.mxu0 0
        %2359 = vmatprep.subr.bf16.mxu0 0
        %2360 = vmatpush1.bf16.msra.mxu0 0
        %2361 = vmatprep.mubr.bf16.mxu0 0
        %2362 = vmatmul.mubr.bf16.gmra.mrb[0].mxu0 %v2246
        %v2363 = vpop.f32.mrb[0].mxu0
        %v2364 = vadd.f32 0.0, %v2363
        %v2365 = vpop.f32.mrb[0].mxu0
        %v2366 = vpop.f32.mrb[0].mxu0
        %v2367 = vadd.f32 0.0, %v2366
        %v2368 = vpop.f32.mrb[0].mxu0
        %2369 = vmatprep.mubr.bf16.mxu0 0
        %2370 = vmatmul.mubr.bf16.gmra.mrb[0].mxu0 %v2249
        %v2371 = vpop.f32.mrb[0].mxu0
        %v2372 = vadd.f32 0.0, %v2371
        %v2373 = vpop.f32.mrb[0].mxu0
        %v2374 = vpop.f32.mrb[0].mxu0
        %v2375 = vadd.f32 0.0, %v2374
        %v2376 = vpop.f32.mrb[0].mxu0
        %2377 = vmatprep.mubr.bf16.mxu0 0
        %2378 = vmatmul.mubr.bf16.gmra.mrb[0].mxu0 %v2252
        %v2379 = vpop.f32.mrb[0].mxu0
        %v2380 = vadd.f32 0.0, %v2379
        %v2381 = vpop.f32.mrb[0].mxu0
        %v2382 = vpop.f32.mrb[0].mxu0
        %v2383 = vadd.f32 0.0, %v2382
        %v2384 = vpop.f32.mrb[0].mxu0
        %2385 = vmatprep.mubr.bf16.mxu0 0
        %2386 = vmatmul.mubr.bf16.gmra.mrb[0].mxu0 %v2255
        %v2387 = vpop.f32.mrb[0].mxu0
        %v2388 = vadd.f32 0.0, %v2387
        %v2389 = vpop.f32.mrb[0].mxu0
        %v2390 = vpop.f32.mrb[0].mxu0
        %v2391 = vadd.f32 0.0, %v2390
        %v2392 = vpop.f32.mrb[0].mxu0
        %2393 = vmatprep.mubr.bf16.mxu0 0
        %2394 = vmatmul.mubr.bf16.gmra.mrb[0].mxu0 %v2258
        %v2395 = vpop.f32.mrb[0].mxu0
        %v2396 = vadd.f32 0.0, %v2395
        %v2397 = vpop.f32.mrb[0].mxu0
        %v2398 = vpop.f32.mrb[0].mxu0
        %v2399 = vadd.f32 0.0, %v2398
        %v2400 = vpop.f32.mrb[0].mxu0
        %2401 = vmatprep.mubr.bf16.mxu0 0
        %2402 = vmatmul.mubr.bf16.gmra.mrb[0].mxu0 %v2261
        %v2403 = vpop.f32.mrb[0].mxu0
        %v2404 = vadd.f32 0.0, %v2403
        %v2405 = vpop.f32.mrb[0].mxu0
        %v2406 = vpop.f32.mrb[0].mxu0
        %v2407 = vadd.f32 0.0, %v2406
        %v2408 = vpop.f32.mrb[0].mxu0
        %2409 = vmatprep.mubr.bf16.mxu0 0
        %2410 = vmatmul.mubr.bf16.gmra.mrb[0].mxu0 %v2264
        %v2411 = vpop.f32.mrb[0].mxu0
        %v2412 = vadd.f32 0.0, %v2411
        %v2413 = vpop.f32.mrb[0].mxu0
        %v2414 = vpop.f32.mrb[0].mxu0
        %v2415 = vadd.f32 0.0, %v2414
        %v2416 = vpop.f32.mrb[0].mxu0
        %2417 = vmatprep.mubr.bf16.mxu0 0
        %2418 = vmatmul.mubr.bf16.gmra.mrb[0].mxu0 %v2267
        %v2419 = vpop.f32.mrb[0].mxu0
        %v2420 = vadd.f32 0.0, %v2419
        %v2421 = vpop.f32.mrb[0].mxu0
        %v2422 = vpop.f32.mrb[0].mxu0
        %v2423 = vadd.f32 0.0, %v2422
        %v2424 = vpop.f32.mrb[0].mxu0
        %2425 = vmatprep.mubr.bf16.mxu0 0
        %2426 = vmatmul.mubr.bf16.gmra.mrb[0].mxu0 %v2270
        %v2427 = vpop.f32.mrb[0].mxu0
        %v2428 = vadd.f32 0.0, %v2427
        %v2429 = vpop.f32.mrb[0].mxu0
        %v2430 = vpop.f32.mrb[0].mxu0
        %v2431 = vadd.f32 0.0, %v2430
        %v2432 = vpop.f32.mrb[0].mxu0
        %2433 = vmatprep.mubr.bf16.mxu0 0
        %2434 = vmatmul.mubr.bf16.gmra.mrb[0].mxu0 %v2273
        %v2435 = vpop.f32.mrb[0].mxu0
        %v2436 = vadd.f32 0.0, %v2435
        %v2437 = vpop.f32.mrb[0].mxu0
        %v2438 = vpop.f32.mrb[0].mxu0
        %v2439 = vadd.f32 0.0, %v2438
        %v2440 = vpop.f32.mrb[0].mxu0
        %2441 = vmatprep.mubr.bf16.mxu0 0
        %2442 = vmatmul.mubr.bf16.gmra.mrb[0].mxu0 %v2276
        %v2443 = vpop.f32.mrb[0].mxu0
        %v2444 = vadd.f32 0.0, %v2443
        %v2445 = vpop.f32.mrb[0].mxu0
        %v2446 = vpop.f32.mrb[0].mxu0
        %v2447 = vadd.f32 0.0, %v2446
        %v2448 = vpop.f32.mrb[0].mxu0
        %2449 = vmatprep.mubr.bf16.mxu0 0
        %2450 = vmatmul.mubr.bf16.gmra.mrb[0].mxu0 %v2279
        %v2451 = vpop.f32.mrb[0].mxu0
        %v2452 = vadd.f32 0.0, %v2451
        %v2453 = vpop.f32.mrb[0].mxu0
        %v2454 = vpop.f32.mrb[0].mxu0
        %v2455 = vadd.f32 0.0, %v2454
        %v2456 = vpop.f32.mrb[0].mxu0
        %2457 = vmatprep.mubr.bf16.mxu0 0
        %2458 = vmatmul.mubr.bf16.gmra.mrb[0].mxu0 %v2282
        %v2459 = vpop.f32.mrb[0].mxu0
        %v2460 = vadd.f32 0.0, %v2459
        %v2461 = vpop.f32.mrb[0].mxu0
        %v2462 = vpop.f32.mrb[0].mxu0
        %v2463 = vadd.f32 0.0, %v2462
        %v2464 = vpop.f32.mrb[0].mxu0
        %2465 = vmatprep.mubr.bf16.mxu0 0
        %2466 = vmatmul.mubr.bf16.gmra.mrb[0].mxu0 %v2285
        %v2467 = vpop.f32.mrb[0].mxu0
        %v2468 = vadd.f32 0.0, %v2467
        %v2469 = vpop.f32.mrb[0].mxu0
        %v2470 = vpop.f32.mrb[0].mxu0
        %v2471 = vadd.f32 0.0, %v2470
        %v2472 = vpop.f32.mrb[0].mxu0
        %2473 = vmatprep.mubr.bf16.mxu0 0
        %2474 = vmatmul.mubr.bf16.gmra.mrb[0].mxu0 %v2288
        %v2475 = vpop.f32.mrb[0].mxu0
        %v2476 = vadd.f32 0.0, %v2475
        %v2477 = vpop.f32.mrb[0].mxu0
        %v2478 = vpop.f32.mrb[0].mxu0
        %v2479 = vadd.f32 0.0, %v2478
        %v2480 = vpop.f32.mrb[0].mxu0
        %2481 = vmatprep.mubr.bf16.mxu0 0
        %2482 = vmatmul.mubr.bf16.gmra.mrb[0].mxu0 %v2291
        %v2483 = vpop.f32.mrb[0].mxu0
        %v2484 = vadd.f32 0.0, %v2483
        %v2485 = vpop.f32.mrb[0].mxu0
        %v2486 = vpop.f32.mrb[0].mxu0
        %v2487 = vadd.f32 0.0, %v2486
        %v2488 = vpop.f32.mrb[0].mxu0
        %2489 = vmatprep.mubr.bf16.mxu0 0
        %2490 = vmatmul.mubr.bf16.gmra.mrb[0].mxu0 %v2294
        %v2491 = vpop.f32.mrb[0].mxu0
        %v2492 = vadd.f32 0.0, %v2491
        %v2493 = vpop.f32.mrb[0].mxu0
        %v2494 = vpop.f32.mrb[0].mxu0
        %v2495 = vadd.f32 0.0, %v2494
        %v2496 = vpop.f32.mrb[0].mxu0
        %2497 = vmatprep.mubr.bf16.mxu0 0
        %2498 = vmatmul.mubr.bf16.gmra.mrb[0].mxu0 %v2297
        %v2499 = vpop.f32.mrb[0].mxu0
        %v2500 = vadd.f32 0.0, %v2499
        %v2501 = vpop.f32.mrb[0].mxu0
        %v2502 = vpop.f32.mrb[0].mxu0
        %v2503 = vadd.f32 0.0, %v2502
        %v2504 = vpop.f32.mrb[0].mxu0
        %2505 = vmatprep.mubr.bf16.mxu0 0
        %2506 = vmatmul.mubr.bf16.gmra.mrb[0].mxu0 %v2300
        %v2507 = vpop.f32.mrb[0].mxu0
        %v2508 = vadd.f32 0.0, %v2507
        %v2509 = vpop.f32.mrb[0].mxu0
        %v2510 = vpop.f32.mrb[0].mxu0
        %v2511 = vadd.f32 0.0, %v2510
        %v2512 = vpop.f32.mrb[0].mxu0
        %2513 = vmatprep.mubr.bf16.mxu0 0
        %2514 = vmatmul.mubr.bf16.gmra.mrb[0].mxu0 %v2303
        %v2515 = vpop.f32.mrb[0].mxu0
        %v2516 = vadd.f32 0.0, %v2515
        %v2517 = vpop.f32.mrb[0].mxu0
        %v2518 = vpop.f32.mrb[0].mxu0
        %v2519 = vadd.f32 0.0, %v2518
        %v2520 = vpop.f32.mrb[0].mxu0
        %2521 = vmatprep.mubr.bf16.mxu0 0
        %2522 = vmatmul.mubr.bf16.gmra.mrb[0].mxu0 %v2306
        %v2523 = vpop.f32.mrb[0].mxu0
        %v2524 = vadd.f32 0.0, %v2523
        %v2525 = vpop.f32.mrb[0].mxu0
        %v2526 = vpop.f32.mrb[0].mxu0
        %v2527 = vadd.f32 0.0, %v2526
        %v2528 = vpop.f32.mrb[0].mxu0
        %2529 = vmatprep.mubr.bf16.mxu0 0
        %2530 = vmatmul.mubr.bf16.gmra.mrb[0].mxu0 %v2309
        %v2531 = vpop.f32.mrb[0].mxu0
        %v2532 = vadd.f32 0.0, %v2531
        %v2533 = vpop.f32.mrb[0].mxu0
        %v2534 = vpop.f32.mrb[0].mxu0
        %v2535 = vadd.f32 0.0, %v2534
        %v2536 = vpop.f32.mrb[0].mxu0
        %2537 = vmatprep.mubr.bf16.mxu0 0
        %2538 = vmatmul.mubr.bf16.gmra.mrb[0].mxu0 %v2312
        %v2539 = vpop.f32.mrb[0].mxu0
        %v2540 = vadd.f32 0.0, %v2539
        %v2541 = vpop.f32.mrb[0].mxu0
        %v2542 = vpop.f32.mrb[0].mxu0
        %v2543 = vadd.f32 0.0, %v2542
        %v2544 = vpop.f32.mrb[0].mxu0
        %2545 = vmatprep.mubr.bf16.mxu0 0
        %2546 = vmatmul.mubr.bf16.gmra.mrb[0].mxu0 %v2315
        %v2547 = vpop.f32.mrb[0].mxu0
        %v2548 = vadd.f32 0.0, %v2547
        %v2549 = vpop.f32.mrb[0].mxu0
        %v2550 = vpop.f32.mrb[0].mxu0
        %v2551 = vadd.f32 0.0, %v2550
        %v2552 = vpop.f32.mrb[0].mxu0
        %2553 = vmatprep.mubr.bf16.mxu0 0
        %2554 = vmatmul.mubr.bf16.gmra.mrb[0].mxu0 %v2318
        %v2555 = vpop.f32.mrb[0].mxu0
        %v2556 = vadd.f32 0.0, %v2555
        %v2557 = vpop.f32.mrb[0].mxu0
        %v2558 = vpop.f32.mrb[0].mxu0
        %v2559 = vadd.f32 0.0, %v2558
        %v2560 = vpop.f32.mrb[0].mxu0
        %2561 = vmatprep.mubr.bf16.mxu0 0
        %2562 = vmatmul.mubr.bf16.gmra.mrb[0].mxu0 %v2321
        %v2563 = vpop.f32.mrb[0].mxu0
        %v2564 = vadd.f32 0.0, %v2563
        %v2565 = vpop.f32.mrb[0].mxu0
        %v2566 = vpop.f32.mrb[0].mxu0
        %v2567 = vadd.f32 0.0, %v2566
        %v2568 = vpop.f32.mrb[0].mxu0
        %2569 = vmatprep.mubr.bf16.mxu0 0
        %2570 = vmatmul.mubr.bf16.gmra.mrb[0].mxu0 %v2324
        %v2571 = vpop.f32.mrb[0].mxu0
        %v2572 = vadd.f32 0.0, %v2571
        %v2573 = vpop.f32.mrb[0].mxu0
        %v2574 = vpop.f32.mrb[0].mxu0
        %v2575 = vadd.f32 0.0, %v2574
        %v2576 = vpop.f32.mrb[0].mxu0
        %2577 = vdwg.mxu0
        %v2578 = vadd.f32 %v1895, %v2364
        %v2579 = vadd.f32 %v1898, %v2367
        %v2580 = vadd.f32 %v1903, %v2372
        %v2581 = vadd.f32 %v1906, %v2375
        %v2582 = vadd.f32 %v1911, %v2380
        %v2583 = vadd.f32 %v1914, %v2383
        %v2584 = vadd.f32 %v1919, %v2388
        %v2585 = vadd.f32 %v1922, %v2391
        %v2586 = vadd.f32 %v1927, %v2396
        %v2587 = vadd.f32 %v1930, %v2399
        %v2588 = vadd.f32 %v1935, %v2404
        %v2589 = vadd.f32 %v1938, %v2407
        %v2590 = vadd.f32 %v1943, %v2412
        %v2591 = vadd.f32 %v1946, %v2415
        %v2592 = vadd.f32 %v1951, %v2420
        %v2593 = vadd.f32 %v1954, %v2423
        %v2594 = vadd.f32 %v1959, %v2428
        %v2595 = vadd.f32 %v1962, %v2431
        %v2596 = vadd.f32 %v1967, %v2436
        %v2597 = vadd.f32 %v1970, %v2439
        %v2598 = vadd.f32 %v1975, %v2444
        %v2599 = vadd.f32 %v1978, %v2447
        %v2600 = vadd.f32 %v1983, %v2452
        %v2601 = vadd.f32 %v1986, %v2455
        %v2602 = vadd.f32 %v1991, %v2460
        %v2603 = vadd.f32 %v1994, %v2463
        %v2604 = vadd.f32 %v1999, %v2468
        %v2605 = vadd.f32 %v2002, %v2471
        %v2606 = vadd.f32 %v2007, %v2476
        %v2607 = vadd.f32 %v2010, %v2479
        %v2608 = vadd.f32 %v2015, %v2484
        %v2609 = vadd.f32 %v2018, %v2487
        %v2610 = vadd.f32 %v2023, %v2492
        %v2611 = vadd.f32 %v2026, %v2495
        %v2612 = vadd.f32 %v2031, %v2500
        %v2613 = vadd.f32 %v2034, %v2503
        %v2614 = vadd.f32 %v2039, %v2508
        %v2615 = vadd.f32 %v2042, %v2511
        %v2616 = vadd.f32 %v2047, %v2516
        %v2617 = vadd.f32 %v2050, %v2519
        %v2618 = vadd.f32 %v2055, %v2524
        %v2619 = vadd.f32 %v2058, %v2527
        %v2620 = vadd.f32 %v2063, %v2532
        %v2621 = vadd.f32 %v2066, %v2535
        %v2622 = vadd.f32 %v2071, %v2540
        %v2623 = vadd.f32 %v2074, %v2543
        %v2624 = vadd.f32 %v2079, %v2548
        %v2625 = vadd.f32 %v2082, %v2551
        %v2626 = vadd.f32 %v2087, %v2556
        %v2627 = vadd.f32 %v2090, %v2559
        %v2628 = vadd.f32 %v2095, %v2564
        %v2629 = vadd.f32 %v2098, %v2567
        %v2630 = vadd.f32 %v2103, %v2572
        %v2631 = vadd.f32 %v2106, %v2575
        %v2632 = vstv %s278
        %v2633 = vadd.f32 %v2578, %v2632
        %v2634 = vadd.f32 %v2579, %v2632
        %v2635 = vadd.f32 %v2580, %v2632
        %v2636 = vadd.f32 %v2581, %v2632
        %v2637 = vadd.f32 %v2582, %v2632
        %v2638 = vadd.f32 %v2583, %v2632
        %v2639 = vadd.f32 %v2584, %v2632
        %v2640 = vadd.f32 %v2585, %v2632
        %v2641 = vadd.f32 %v2586, %v2632
        %v2642 = vadd.f32 %v2587, %v2632
        %v2643 = vadd.f32 %v2588, %v2632
        %v2644 = vadd.f32 %v2589, %v2632
        %v2645 = vadd.f32 %v2590, %v2632
        %v2646 = vadd.f32 %v2591, %v2632
        %v2647 = vadd.f32 %v2592, %v2632
        %v2648 = vadd.f32 %v2593, %v2632
        %v2649 = vadd.f32 %v2594, %v2632
        %v2650 = vadd.f32 %v2595, %v2632
        %v2651 = vadd.f32 %v2596, %v2632
        %v2652 = vadd.f32 %v2597, %v2632
        %v2653 = vadd.f32 %v2598, %v2632
        %v2654 = vadd.f32 %v2599, %v2632
        %v2655 = vadd.f32 %v2600, %v2632
        %v2656 = vadd.f32 %v2601, %v2632
        %v2657 = vadd.f32 %v2602, %v2632
        %v2658 = vadd.f32 %v2603, %v2632
        %v2659 = vadd.f32 %v2604, %v2632
        %v2660 = vadd.f32 %v2605, %v2632
        %v2661 = vadd.f32 %v2606, %v2632
        %v2662 = vadd.f32 %v2607, %v2632
        %v2663 = vadd.f32 %v2608, %v2632
        %v2664 = vadd.f32 %v2609, %v2632
        %v2665 = vadd.f32 %v2610, %v2632
        %v2666 = vadd.f32 %v2611, %v2632
        %v2667 = vadd.f32 %v2612, %v2632
        %v2668 = vadd.f32 %v2613, %v2632
        %v2669 = vadd.f32 %v2614, %v2632
        %v2670 = vadd.f32 %v2615, %v2632
        %v2671 = vadd.f32 %v2616, %v2632
        %v2672 = vadd.f32 %v2617, %v2632
        %v2673 = vadd.f32 %v2618, %v2632
        %v2674 = vadd.f32 %v2619, %v2632
        %v2675 = vadd.f32 %v2620, %v2632
        %v2676 = vadd.f32 %v2621, %v2632
        %v2677 = vadd.f32 %v2622, %v2632
        %v2678 = vadd.f32 %v2623, %v2632
        %v2679 = vadd.f32 %v2624, %v2632
        %v2680 = vadd.f32 %v2625, %v2632
        %v2681 = vadd.f32 %v2626, %v2632
        %v2682 = vadd.f32 %v2627, %v2632
        %v2683 = vadd.f32 %v2628, %v2632
        %v2684 = vadd.f32 %v2629, %v2632
        %v2685 = vadd.f32 %v2630, %v2632
        %v2686 = vadd.f32 %v2631, %v2632
        %v2687 = vmax.f32 %v2633, 0.0
        %v2688 = vmax.f32 %v2634, 0.0
        %v2689 = vmax.f32 %v2635, 0.0
        %v2690 = vmax.f32 %v2636, 0.0
        %v2691 = vmax.f32 %v2637, 0.0
        %v2692 = vmax.f32 %v2638, 0.0
        %v2693 = vmax.f32 %v2639, 0.0
        %v2694 = vmax.f32 %v2640, 0.0
        %v2695 = vmax.f32 %v2641, 0.0
        %v2696 = vmax.f32 %v2642, 0.0
        %v2697 = vmax.f32 %v2643, 0.0
        %v2698 = vmax.f32 %v2644, 0.0
        %v2699 = vmax.f32 %v2645, 0.0
        %v2700 = vmax.f32 %v2646, 0.0
        %v2701 = vmax.f32 %v2647, 0.0
        %v2702 = vmax.f32 %v2648, 0.0
        %v2703 = vmax.f32 %v2649, 0.0
        %v2704 = vmax.f32 %v2650, 0.0
        %v2705 = vmax.f32 %v2651, 0.0
        %v2706 = vmax.f32 %v2652, 0.0
        %v2707 = vmax.f32 %v2653, 0.0
        %v2708 = vmax.f32 %v2654, 0.0
        %v2709 = vmax.f32 %v2655, 0.0
        %v2710 = vmax.f32 %v2656, 0.0
        %v2711 = vmax.f32 %v2657, 0.0
        %v2712 = vmax.f32 %v2658, 0.0
        %v2713 = vmax.f32 %v2659, 0.0
        %v2714 = vmax.f32 %v2660, 0.0
        %v2715 = vmax.f32 %v2661, 0.0
        %v2716 = vmax.f32 %v2662, 0.0
        %v2717 = vmax.f32 %v2663, 0.0
        %v2718 = vmax.f32 %v2664, 0.0
        %v2719 = vmax.f32 %v2665, 0.0
        %v2720 = vmax.f32 %v2666, 0.0
        %v2721 = vmax.f32 %v2667, 0.0
        %v2722 = vmax.f32 %v2668, 0.0
        %v2723 = vmax.f32 %v2669, 0.0
        %v2724 = vmax.f32 %v2670, 0.0
        %v2725 = vmax.f32 %v2671, 0.0
        %v2726 = vmax.f32 %v2672, 0.0
        %v2727 = vmax.f32 %v2673, 0.0
        %v2728 = vmax.f32 %v2674, 0.0
        %v2729 = vmax.f32 %v2675, 0.0
        %v2730 = vmax.f32 %v2676, 0.0
        %v2731 = vmax.f32 %v2677, 0.0
        %v2732 = vmax.f32 %v2678, 0.0
        %v2733 = vmax.f32 %v2679, 0.0
        %v2734 = vmax.f32 %v2680, 0.0
        %v2735 = vmax.f32 %v2681, 0.0
        %v2736 = vmax.f32 %v2682, 0.0
        %v2737 = vmax.f32 %v2683, 0.0
        %v2738 = vmax.f32 %v2684, 0.0
        %v2739 = vmax.f32 %v2685, 0.0
        %v2740 = vmax.f32 %v2686, 0.0
        %v2741 = vld [vmem:[%s1] sm:$0xff]
        %v2742 = vld [vmem:[%s1 + $0x8] sm:$0xff]
        %v2743 = vld [vmem:[%s1 + $0x10] sm:$0xff]
        %v2744 = vld [vmem:[%s1 + $0x18] sm:$0xff]
        %v2745 = vld [vmem:[%s1 + $0x20] sm:$0xff]
        %v2746 = vld [vmem:[%s1 + $0x28] sm:$0xff]
        %v2747 = vld [vmem:[%s1 + $0x30] sm:$0xff]
        %v2748 = vld [vmem:[%s1 + $0x38] sm:$0xff]
        %v2749 = vld [vmem:[%s1 + $0x40] sm:$0xff]
        %v2750 = vld [vmem:[%s1 + $0x48] sm:$0xff]
        %v2751 = vld [vmem:[%s1 + $0x50] sm:$0xff]
        %v2752 = vld [vmem:[%s1 + $0x58] sm:$0xff]
        %v2753 = vld [vmem:[%s1 + $0x60] sm:$0xff]
        %v2754 = vld [vmem:[%s1 + $0x68] sm:$0xff]
        %v2755 = vld [vmem:[%s1 + $0x70] sm:$0xff]
        %v2756 = vld [vmem:[%s1 + $0x78] sm:$0xff]
        %v2757 = vld [vmem:[%s1 + $0x80] sm:$0xff]
        %v2758 = vld [vmem:[%s1 + $0x88] sm:$0xff]
        %v2759 = vld [vmem:[%s1 + $0x90] sm:$0xff]
        %v2760 = vld [vmem:[%s1 + $0x98] sm:$0xff]
        %v2761 = vld [vmem:[%s1 + $0xa0] sm:$0xff]
        %v2762 = vld [vmem:[%s1 + $0xa8] sm:$0xff]
        %v2763 = vld [vmem:[%s1 + $0xb0] sm:$0xff]
        %v2764 = vld [vmem:[%s1 + $0xb8] sm:$0xff]
        %v2765 = vld [vmem:[%s1 + $0xc0] sm:$0xff]
        %v2766 = vld [vmem:[%s1 + $0xc8] sm:$0xff]
        %v2767 = vld [vmem:[%s1 + $0xd0] sm:$0xff]
        %v2768 = vld [vmem:[%s1 + $0xd8] sm:$0xff]
        %v2769 = vld [vmem:[%s1 + $0xe0] sm:$0xff]
        %v2770 = vld [vmem:[%s1 + $0xe8] sm:$0xff]
        %v2771 = vld [vmem:[%s1 + $0xf0] sm:$0xff]
        %v2772 = vld [vmem:[%s1 + $0xf8] sm:$0xff]
        %v2773 = vld [vmem:[%s1 + $0x100] sm:$0xff]
        %v2774 = vld [vmem:[%s1 + $0x108] sm:$0xff]
        %v2775 = vld [vmem:[%s1 + $0x110] sm:$0xff]
        %v2776 = vld [vmem:[%s1 + $0x118] sm:$0xff]
        %v2777 = vld [vmem:[%s1 + $0x120] sm:$0xff]
        %v2778 = vld [vmem:[%s1 + $0x128] sm:$0xff]
        %v2779 = vld [vmem:[%s1 + $0x130] sm:$0xff]
        %v2780 = vld [vmem:[%s1 + $0x138] sm:$0xff]
        %v2781 = vld [vmem:[%s1 + $0x140] sm:$0xff]
        %v2782 = vld [vmem:[%s1 + $0x148] sm:$0xff]
        %v2783 = vld [vmem:[%s1 + $0x150] sm:$0xff]
        %v2784 = vld [vmem:[%s1 + $0x158] sm:$0xff]
        %v2785 = vld [vmem:[%s1 + $0x160] sm:$0xff]
        %v2786 = vld [vmem:[%s1 + $0x168] sm:$0xff]
        %v2787 = vld [vmem:[%s1 + $0x170] sm:$0xff]
        %v2788 = vld [vmem:[%s1 + $0x178] sm:$0xff]
        %v2789 = vld [vmem:[%s1 + $0x180] sm:$0xff]
        %v2790 = vld [vmem:[%s1 + $0x188] sm:$0xff]
        %v2791 = vld [vmem:[%s1 + $0x190] sm:$0xff]
        %v2792 = vld [vmem:[%s1 + $0x198] sm:$0xff]
        %v2793 = vld [vmem:[%s1 + $0x1a0] sm:$0xff]
        %v2794 = vld [vmem:[%s1 + $0x1a8] sm:$0xff]
        %v2795 = vmul.f32 %v2687, %v2741
        %v2796 = vmul.f32 %v2688, %v2742
        %v2797 = vmul.f32 %v2689, %v2743
        %v2798 = vmul.f32 %v2690, %v2744
        %v2799 = vmul.f32 %v2691, %v2745
        %v2800 = vmul.f32 %v2692, %v2746
        %v2801 = vmul.f32 %v2693, %v2747
        %v2802 = vmul.f32 %v2694, %v2748
        %v2803 = vmul.f32 %v2695, %v2749
        %v2804 = vmul.f32 %v2696, %v2750
        %v2805 = vmul.f32 %v2697, %v2751
        %v2806 = vmul.f32 %v2698, %v2752
        %v2807 = vmul.f32 %v2699, %v2753
        %v2808 = vmul.f32 %v2700, %v2754
        %v2809 = vmul.f32 %v2701, %v2755
        %v2810 = vmul.f32 %v2702, %v2756
        %v2811 = vmul.f32 %v2703, %v2757
        %v2812 = vmul.f32 %v2704, %v2758
        %v2813 = vmul.f32 %v2705, %v2759
        %v2814 = vmul.f32 %v2706, %v2760
        %v2815 = vmul.f32 %v2707, %v2761
        %v2816 = vmul.f32 %v2708, %v2762
        %v2817 = vmul.f32 %v2709, %v2763
        %v2818 = vmul.f32 %v2710, %v2764
        %v2819 = vmul.f32 %v2711, %v2765
        %v2820 = vmul.f32 %v2712, %v2766
        %v2821 = vmul.f32 %v2713, %v2767
        %v2822 = vmul.f32 %v2714, %v2768
        %v2823 = vmul.f32 %v2715, %v2769
        %v2824 = vmul.f32 %v2716, %v2770
        %v2825 = vmul.f32 %v2717, %v2771
        %v2826 = vmul.f32 %v2718, %v2772
        %v2827 = vmul.f32 %v2719, %v2773
        %v2828 = vmul.f32 %v2720, %v2774
        %v2829 = vmul.f32 %v2721, %v2775
        %v2830 = vmul.f32 %v2722, %v2776
        %v2831 = vmul.f32 %v2723, %v2777
        %v2832 = vmul.f32 %v2724, %v2778
        %v2833 = vmul.f32 %v2725, %v2779
        %v2834 = vmul.f32 %v2726, %v2780
        %v2835 = vmul.f32 %v2727, %v2781
        %v2836 = vmul.f32 %v2728, %v2782
        %v2837 = vmul.f32 %v2729, %v2783
        %v2838 = vmul.f32 %v2730, %v2784
        %v2839 = vmul.f32 %v2731, %v2785
        %v2840 = vmul.f32 %v2732, %v2786
        %v2841 = vmul.f32 %v2733, %v2787
        %v2842 = vmul.f32 %v2734, %v2788
        %v2843 = vmul.f32 %v2735, %v2789
        %v2844 = vmul.f32 %v2736, %v2790
        %v2845 = vmul.f32 %v2737, %v2791
        %v2846 = vmul.f32 %v2738, %v2792
        %v2847 = vmul.f32 %v2739, %v2793
        %v2848 = vmul.f32 %v2740, %v2794
        %v2849 = vpack.c.bf16 %v2796, %v2795
        %v2850 = vpack.c.bf16 %v2798, %v2797
        %v2851 = vpack.c.bf16 %v2800, %v2799
        %v2852 = vpack.c.bf16 %v2802, %v2801
        %v2853 = vpack.c.bf16 %v2804, %v2803
        %v2854 = vpack.c.bf16 %v2806, %v2805
        %v2855 = vpack.c.bf16 %v2808, %v2807
        %v2856 = vpack.c.bf16 %v2810, %v2809
        %v2857 = vpack.c.bf16 %v2812, %v2811
        %v2858 = vpack.c.bf16 %v2814, %v2813
        %v2859 = vpack.c.bf16 %v2816, %v2815
        %v2860 = vpack.c.bf16 %v2818, %v2817
        %v2861 = vpack.c.bf16 %v2820, %v2819
        %v2862 = vpack.c.bf16 %v2822, %v2821
        %v2863 = vpack.c.bf16 %v2824, %v2823
        %v2864 = vpack.c.bf16 %v2826, %v2825
        %v2865 = vpack.c.bf16 %v2828, %v2827
        %v2866 = vpack.c.bf16 %v2830, %v2829
        %v2867 = vpack.c.bf16 %v2832, %v2831
        %v2868 = vpack.c.bf16 %v2834, %v2833
        %v2869 = vpack.c.bf16 %v2836, %v2835
        %v2870 = vpack.c.bf16 %v2838, %v2837
        %v2871 = vpack.c.bf16 %v2840, %v2839
        %v2872 = vpack.c.bf16 %v2842, %v2841
        %v2873 = vpack.c.bf16 %v2844, %v2843
        %v2874 = vpack.c.bf16 %v2846, %v2845
        %v2875 = vpack.c.bf16 %v2848, %v2847
        %v2903 = vrot.slane %v2849, 4
        %v2904 = vrot.slane %v2850, 4
        %v2905 = vsel %vm387, %v2903, %v2904
        %v2906 = vrot.slane %v2851, 4
        %v2907 = vsel %vm387, %v2904, %v2906
        %v2908 = vrot.slane %v2852, 4
        %v2909 = vsel %vm387, %v2906, %v2908
        %v2910 = vrot.slane %v2853, 4
        %v2911 = vsel %vm387, %v2908, %v2910
        %v2912 = vrot.slane %v2854, 4
        %v2913 = vsel %vm387, %v2910, %v2912
        %v2914 = vrot.slane %v2855, 4
        %v2915 = vsel %vm387, %v2912, %v2914
        %v2916 = vrot.slane %v2856, 4
        %v2917 = vsel %vm387, %v2914, %v2916
        %v2918 = vrot.slane %v2857, 4
        %v2919 = vsel %vm387, %v2916, %v2918
        %v2920 = vrot.slane %v2858, 4
        %v2921 = vsel %vm387, %v2918, %v2920
        %v2922 = vrot.slane %v2859, 4
        %v2923 = vsel %vm387, %v2920, %v2922
        %v2924 = vrot.slane %v2860, 4
        %v2925 = vsel %vm387, %v2922, %v2924
        %v2926 = vrot.slane %v2861, 4
        %v2927 = vsel %vm387, %v2924, %v2926
        %v2928 = vrot.slane %v2862, 4
        %v2929 = vsel %vm387, %v2926, %v2928
        %v2930 = vrot.slane %v2863, 4
        %v2931 = vsel %vm387, %v2928, %v2930
        %v2932 = vrot.slane %v2864, 4
        %v2933 = vsel %vm387, %v2930, %v2932
        %v2934 = vrot.slane %v2865, 4
        %v2935 = vsel %vm387, %v2932, %v2934
        %v2936 = vrot.slane %v2866, 4
        %v2937 = vsel %vm387, %v2934, %v2936
        %v2938 = vrot.slane %v2867, 4
        %v2939 = vsel %vm387, %v2936, %v2938
        %v2940 = vrot.slane %v2868, 4
        %v2941 = vsel %vm387, %v2938, %v2940
        %v2942 = vrot.slane %v2869, 4
        %v2943 = vsel %vm387, %v2940, %v2942
        %v2944 = vrot.slane %v2870, 4
        %v2945 = vsel %vm387, %v2942, %v2944
        %v2946 = vrot.slane %v2871, 4
        %v2947 = vsel %vm387, %v2944, %v2946
        %v2948 = vrot.slane %v2872, 4
        %v2949 = vsel %vm387, %v2946, %v2948
        %v2950 = vrot.slane %v2873, 4
        %v2951 = vsel %vm387, %v2948, %v2950
        %v2952 = vrot.slane %v2874, 4
        %v2953 = vsel %vm387, %v2950, %v2952
        %v2954 = vrot.slane %v2875, 4
        %v2955 = vsel %vm387, %v2952, %v2954
        %2984 = vst.msk [vmem:[#allocation2 + $0x8] sm:$0xf0] %vm271, %v2903
        %2985 = vst.msk [vmem:[#allocation2 + $0x10] sm:$0xff] %vm267, %v2905
        %2986 = vst.msk [vmem:[#allocation2 + $0x18] sm:$0xff] %vm267, %v2907
        %2987 = vst.msk [vmem:[#allocation2 + $0x20] sm:$0xff] %vm267, %v2909
        %2988 = vst.msk [vmem:[#allocation2 + $0x28] sm:$0xff] %vm267, %v2911
        %2989 = vst.msk [vmem:[#allocation2 + $0x30] sm:$0xff] %vm267, %v2913
        %2990 = vst.msk [vmem:[#allocation2 + $0x38] sm:$0xff] %vm267, %v2915
        %2991 = vst.msk [vmem:[#allocation2 + $0x40] sm:$0xff] %vm267, %v2917
        %2992 = vst.msk [vmem:[#allocation2 + $0x48] sm:$0xff] %vm267, %v2919
        %2993 = vst.msk [vmem:[#allocation2 + $0x50] sm:$0xff] %vm267, %v2921
        %2994 = vst.msk [vmem:[#allocation2 + $0x58] sm:$0xff] %vm267, %v2923
        %2995 = vst.msk [vmem:[#allocation2 + $0x60] sm:$0xff] %vm267, %v2925
        %2996 = vst.msk [vmem:[#allocation2 + $0x68] sm:$0xff] %vm267, %v2927
        %2997 = vst.msk [vmem:[#allocation2 + $0x70] sm:$0xff] %vm267, %v2929
        %2998 = vst.msk [vmem:[#allocation2 + $0x78] sm:$0xff] %vm267, %v2931
        %2999 = vst.msk [vmem:[#allocation2 + $0x80] sm:$0xff] %vm267, %v2933
        %3000 = vst.msk [vmem:[#allocation2 + $0x88] sm:$0xff] %vm267, %v2935
        %3001 = vst.msk [vmem:[#allocation2 + $0x90] sm:$0xff] %vm267, %v2937
        %3002 = vst.msk [vmem:[#allocation2 + $0x98] sm:$0xff] %vm267, %v2939
        %3003 = vst.msk [vmem:[#allocation2 + $0xa0] sm:$0xff] %vm267, %v2941
        %3004 = vst.msk [vmem:[#allocation2 + $0xa8] sm:$0xff] %vm267, %v2943
        %3005 = vst.msk [vmem:[#allocation2 + $0xb0] sm:$0xff] %vm267, %v2945
        %3006 = vst.msk [vmem:[#allocation2 + $0xb8] sm:$0xff] %vm267, %v2947
        %3007 = vst.msk [vmem:[#allocation2 + $0xc0] sm:$0xff] %vm267, %v2949
        %3008 = vst.msk [vmem:[#allocation2 + $0xc8] sm:$0xff] %vm267, %v2951
        %3009 = vst.msk [vmem:[#allocation2 + $0xd0] sm:$0xff] %vm267, %v2953
        %3010 = vst.msk [vmem:[#allocation2 + $0xd8] sm:$0xff] %vm267, %v2955
        %3011 = vst.msk [vmem:[#allocation2 + $0xe0] sm:$0xf] %vm269, %v2954
        loop: start=0, step=1, limit=3
        $region49: #{dncnn_sn_forward.1} parent=43 // loop_pre_header
          _
        $region50: #{dncnn_sn_forward.1} parent=43 // loop_header
          %s3013 = sphi 0, %s3017
          %p3014 = scmp.ge.s32.totalorder %s3013, 3
        $region51: #{dncnn_sn_forward.1} parent=43 // loop_header_branch
          %3016 = sbr.rel (%p3014) target = $region55
        $region52: #{dncnn_sn_forward.1} parent=43 // loop_body
          %s3018 = sadd.s32 %s3013, 1
          %s3019 = sld [smem:[#allocation4 + %s3018]]
          %v3020 = vld [vmem:[#allocation2] sm:$0xff]
          %v3021 = vld [vmem:[#allocation2 + $0x8] sm:$0xff]
          %v3022 = vld [vmem:[#allocation2 + $0x10] sm:$0xff]
          %v3023 = vld [vmem:[#allocation2 + $0x18] sm:$0xff]
          %v3024 = vld [vmem:[#allocation2 + $0x20] sm:$0xff]
          %v3025 = vld [vmem:[#allocation2 + $0x28] sm:$0xff]
          %v3026 = vld [vmem:[#allocation2 + $0x30] sm:$0xff]
          %v3027 = vld [vmem:[#allocation2 + $0x38] sm:$0xff]
          %v3028 = vld [vmem:[#allocation2 + $0x40] sm:$0xff]
          %v3029 = vld [vmem:[#allocation2 + $0x48] sm:$0xff]
          %v3030 = vld [vmem:[#allocation2 + $0x50] sm:$0xff]
          %v3031 = vld [vmem:[#allocation2 + $0x58] sm:$0xff]
          %v3032 = vld [vmem:[#allocation2 + $0x60] sm:$0xff]
          %v3033 = vld [vmem:[#allocation2 + $0x68] sm:$0xff]
          %v3034 = vld [vmem:[#allocation2 + $0x70] sm:$0xff]
          %v3035 = vld [vmem:[#allocation2 + $0x78] sm:$0xff]
          %v3036 = vld [vmem:[#allocation2 + $0x80] sm:$0xff]
          %v3037 = vld [vmem:[#allocation2 + $0x88] sm:$0xff]
          %v3038 = vld [vmem:[#allocation2 + $0x90] sm:$0xff]
          %v3039 = vld [vmem:[#allocation2 + $0x98] sm:$0xff]
          %v3040 = vld [vmem:[#allocation2 + $0xa0] sm:$0xff]
          %v3041 = vld [vmem:[#allocation2 + $0xa8] sm:$0xff]
          %v3042 = vld [vmem:[#allocation2 + $0xb0] sm:$0xff]
          %v3043 = vld [vmem:[#allocation2 + $0xb8] sm:$0xff]
          %v3044 = vld [vmem:[#allocation2 + $0xc0] sm:$0xff]
          %v3045 = vld [vmem:[#allocation2 + $0xc8] sm:$0xff]
          %v3046 = vld [vmem:[#allocation2 + $0xd0] sm:$0xff]
          %v3074 = vrot.slane %v3020, 4
          %v3075 = vrot.slane %v3021, 4
          %v3076 = vsel %vm387, %v3074, %v3075
          %v3077 = vrot.slane %v3022, 4
          %v3078 = vsel %vm387, %v3075, %v3077
          %v3079 = vrot.slane %v3023, 4
          %v3080 = vsel %vm387, %v3077, %v3079
          %v3081 = vrot.slane %v3024, 4
          %v3082 = vsel %vm387, %v3079, %v3081
          %v3083 = vrot.slane %v3025, 4
          %v3084 = vsel %vm387, %v3081, %v3083
          %v3085 = vrot.slane %v3026, 4
          %v3086 = vsel %vm387, %v3083, %v3085
          %v3087 = vrot.slane %v3027, 4
          %v3088 = vsel %vm387, %v3085, %v3087
          %v3089 = vrot.slane %v3028, 4
          %v3090 = vsel %vm387, %v3087, %v3089
          %v3091 = vrot.slane %v3029, 4
          %v3092 = vsel %vm387, %v3089, %v3091
          %v3093 = vrot.slane %v3030, 4
          %v3094 = vsel %vm387, %v3091, %v3093
          %v3095 = vrot.slane %v3031, 4
          %v3096 = vsel %vm387, %v3093, %v3095
          %v3097 = vrot.slane %v3032, 4
          %v3098 = vsel %vm387, %v3095, %v3097
          %v3099 = vrot.slane %v3033, 4
          %v3100 = vsel %vm387, %v3097, %v3099
          %v3101 = vrot.slane %v3034, 4
          %v3102 = vsel %vm387, %v3099, %v3101
          %v3103 = vrot.slane %v3035, 4
          %v3104 = vsel %vm387, %v3101, %v3103
          %v3105 = vrot.slane %v3036, 4
          %v3106 = vsel %vm387, %v3103, %v3105
          %v3107 = vrot.slane %v3037, 4
          %v3108 = vsel %vm387, %v3105, %v3107
          %v3109 = vrot.slane %v3038, 4
          %v3110 = vsel %vm387, %v3107, %v3109
          %v3111 = vrot.slane %v3039, 4
          %v3112 = vsel %vm387, %v3109, %v3111
          %v3113 = vrot.slane %v3040, 4
          %v3114 = vsel %vm387, %v3111, %v3113
          %v3115 = vrot.slane %v3041, 4
          %v3116 = vsel %vm387, %v3113, %v3115
          %v3117 = vrot.slane %v3042, 4
          %v3118 = vsel %vm387, %v3115, %v3117
          %v3119 = vrot.slane %v3043, 4
          %v3120 = vsel %vm387, %v3117, %v3119
          %v3121 = vrot.slane %v3044, 4
          %v3122 = vsel %vm387, %v3119, %v3121
          %v3123 = vrot.slane %v3045, 4
          %v3124 = vsel %vm387, %v3121, %v3123
          %v3125 = vrot.slane %v3046, 4
          %v3126 = vsel %vm387, %v3123, %v3125
          %3155 = vst.msk [vmem:[#allocation3] sm:$0xf0] %vm271, %v3074
          %3156 = vst.msk [vmem:[#allocation3 + $0x8] sm:$0xff] %vm267, %v3076
          %3157 = vst.msk [vmem:[#allocation3 + $0x10] sm:$0xff] %vm267, %v3078
          %3158 = vst.msk [vmem:[#allocation3 + $0x18] sm:$0xff] %vm267, %v3080
          %3159 = vst.msk [vmem:[#allocation3 + $0x20] sm:$0xff] %vm267, %v3082
          %3160 = vst.msk [vmem:[#allocation3 + $0x28] sm:$0xff] %vm267, %v3084
          %3161 = vst.msk [vmem:[#allocation3 + $0x30] sm:$0xff] %vm267, %v3086
          %3162 = vst.msk [vmem:[#allocation3 + $0x38] sm:$0xff] %vm267, %v3088
          %3163 = vst.msk [vmem:[#allocation3 + $0x40] sm:$0xff] %vm267, %v3090
          %3164 = vst.msk [vmem:[#allocation3 + $0x48] sm:$0xff] %vm267, %v3092
          %3165 = vst.msk [vmem:[#allocation3 + $0x50] sm:$0xff] %vm267, %v3094
          %3166 = vst.msk [vmem:[#allocation3 + $0x58] sm:$0xff] %vm267, %v3096
          %3167 = vst.msk [vmem:[#allocation3 + $0x60] sm:$0xff] %vm267, %v3098
          %3168 = vst.msk [vmem:[#allocation3 + $0x68] sm:$0xff] %vm267, %v3100
          %3169 = vst.msk [vmem:[#allocation3 + $0x70] sm:$0xff] %vm267, %v3102
          %3170 = vst.msk [vmem:[#allocation3 + $0x78] sm:$0xff] %vm267, %v3104
          %3171 = vst.msk [vmem:[#allocation3 + $0x80] sm:$0xff] %vm267, %v3106
          %3172 = vst.msk [vmem:[#allocation3 + $0x88] sm:$0xff] %vm267, %v3108
          %3173 = vst.msk [vmem:[#allocation3 + $0x90] sm:$0xff] %vm267, %v3110
          %3174 = vst.msk [vmem:[#allocation3 + $0x98] sm:$0xff] %vm267, %v3112
          %3175 = vst.msk [vmem:[#allocation3 + $0xa0] sm:$0xff] %vm267, %v3114
          %3176 = vst.msk [vmem:[#allocation3 + $0xa8] sm:$0xff] %vm267, %v3116
          %3177 = vst.msk [vmem:[#allocation3 + $0xb0] sm:$0xff] %vm267, %v3118
          %3178 = vst.msk [vmem:[#allocation3 + $0xb8] sm:$0xff] %vm267, %v3120
          %3179 = vst.msk [vmem:[#allocation3 + $0xc0] sm:$0xff] %vm267, %v3122
          %3180 = vst.msk [vmem:[#allocation3 + $0xc8] sm:$0xff] %vm267, %v3124
          %3181 = vst.msk [vmem:[#allocation3 + $0xd0] sm:$0xff] %vm267, %v3126
          %3182 = vst.msk [vmem:[#allocation3 + $0xd8] sm:$0xf] %vm269, %v3125
          %v3183 = vld [vmem:[#allocation2 + $0x8] sm:$0xf0]
          %v3184 = vld [vmem:[#allocation2 + $0x10] sm:$0xff]
          %v3185 = vld [vmem:[#allocation2 + $0x18] sm:$0xff]
          %v3186 = vld [vmem:[#allocation2 + $0x20] sm:$0xff]
          %v3187 = vld [vmem:[#allocation2 + $0x28] sm:$0xff]
          %v3188 = vld [vmem:[#allocation2 + $0x30] sm:$0xff]
          %v3189 = vld [vmem:[#allocation2 + $0x38] sm:$0xff]
          %v3190 = vld [vmem:[#allocation2 + $0x40] sm:$0xff]
          %v3191 = vld [vmem:[#allocation2 + $0x48] sm:$0xff]
          %v3192 = vld [vmem:[#allocation2 + $0x50] sm:$0xff]
          %v3193 = vld [vmem:[#allocation2 + $0x58] sm:$0xff]
          %v3194 = vld [vmem:[#allocation2 + $0x60] sm:$0xff]
          %v3195 = vld [vmem:[#allocation2 + $0x68] sm:$0xff]
          %v3196 = vld [vmem:[#allocation2 + $0x70] sm:$0xff]
          %v3197 = vld [vmem:[#allocation2 + $0x78] sm:$0xff]
          %v3198 = vld [vmem:[#allocation2 + $0x80] sm:$0xff]
          %v3199 = vld [vmem:[#allocation2 + $0x88] sm:$0xff]
          %v3200 = vld [vmem:[#allocation2 + $0x90] sm:$0xff]
          %v3201 = vld [vmem:[#allocation2 + $0x98] sm:$0xff]
          %v3202 = vld [vmem:[#allocation2 + $0xa0] sm:$0xff]
          %v3203 = vld [vmem:[#allocation2 + $0xa8] sm:$0xff]
          %v3204 = vld [vmem:[#allocation2 + $0xb0] sm:$0xff]
          %v3205 = vld [vmem:[#allocation2 + $0xb8] sm:$0xff]
          %v3206 = vld [vmem:[#allocation2 + $0xc0] sm:$0xff]
          %v3207 = vld [vmem:[#allocation2 + $0xc8] sm:$0xff]
          %v3208 = vld [vmem:[#allocation2 + $0xd0] sm:$0xff]
          %v3209 = vld [vmem:[#allocation2 + $0xd8] sm:$0xff]
          %v3210 = vld [vmem:[#allocation2 + $0xe0] sm:$0xf]
          %3239 = vrot.lane.b32.xlu0 %v3183, 32
          %v3240 = vpop.permute.xlu0 %3239
          %3241 = vrot.lane.b32.xlu0 %v3184, 32
          %v3242 = vpop.permute.xlu0 %3241
          %3243 = vrot.lane.b32.xlu0 %v3185, 32
          %v3244 = vpop.permute.xlu0 %3243
          %3245 = vrot.lane.b32.xlu0 %v3186, 32
          %v3246 = vpop.permute.xlu0 %3245
          %3247 = vrot.lane.b32.xlu0 %v3187, 32
          %v3248 = vpop.permute.xlu0 %3247
          %3249 = vrot.lane.b32.xlu0 %v3188, 32
          %v3250 = vpop.permute.xlu0 %3249
          %3251 = vrot.lane.b32.xlu0 %v3189, 32
          %v3252 = vpop.permute.xlu0 %3251
          %3253 = vrot.lane.b32.xlu0 %v3190, 32
          %v3254 = vpop.permute.xlu0 %3253
          %3255 = vrot.lane.b32.xlu0 %v3191, 32
          %v3256 = vpop.permute.xlu0 %3255
          %3257 = vrot.lane.b32.xlu0 %v3192, 32
          %v3258 = vpop.permute.xlu0 %3257
          %3259 = vrot.lane.b32.xlu0 %v3193, 32
          %v3260 = vpop.permute.xlu0 %3259
          %3261 = vrot.lane.b32.xlu0 %v3194, 32
          %v3262 = vpop.permute.xlu0 %3261
          %3263 = vrot.lane.b32.xlu0 %v3195, 32
          %v3264 = vpop.permute.xlu0 %3263
          %3265 = vrot.lane.b32.xlu0 %v3196, 32
          %v3266 = vpop.permute.xlu0 %3265
          %3267 = vrot.lane.b32.xlu0 %v3197, 32
          %v3268 = vpop.permute.xlu0 %3267
          %3269 = vrot.lane.b32.xlu0 %v3198, 32
          %v3270 = vpop.permute.xlu0 %3269
          %3271 = vrot.lane.b32.xlu0 %v3199, 32
          %v3272 = vpop.permute.xlu0 %3271
          %3273 = vrot.lane.b32.xlu0 %v3200, 32
          %v3274 = vpop.permute.xlu0 %3273
          %3275 = vrot.lane.b32.xlu0 %v3201, 32
          %v3276 = vpop.permute.xlu0 %3275
          %3277 = vrot.lane.b32.xlu0 %v3202, 32
          %v3278 = vpop.permute.xlu0 %3277
          %3279 = vrot.lane.b32.xlu0 %v3203, 32
          %v3280 = vpop.permute.xlu0 %3279
          %3281 = vrot.lane.b32.xlu0 %v3204, 32
          %v3282 = vpop.permute.xlu0 %3281
          %3283 = vrot.lane.b32.xlu0 %v3205, 32
          %v3284 = vpop.permute.xlu0 %3283
          %3285 = vrot.lane.b32.xlu0 %v3206, 32
          %v3286 = vpop.permute.xlu0 %3285
          %3287 = vrot.lane.b32.xlu0 %v3207, 32
          %v3288 = vpop.permute.xlu0 %3287
          %3289 = vrot.lane.b32.xlu0 %v3208, 32
          %v3290 = vpop.permute.xlu0 %3289
          %3291 = vrot.lane.b32.xlu0 %v3209, 32
          %v3292 = vpop.permute.xlu0 %3291
          %3293 = vrot.lane.b32.xlu0 %v3210, 32
          %v3294 = vpop.permute.xlu0 %3293
          %vm3323 = vcmask 523524
          %3324 = vst.msk [vmem:[#allocation3] sm:$0xf0] %vm3323, %v3240
          %vm3325 = vcmask 523520
          %3326 = vst.msk [vmem:[#allocation3 + $0x8] sm:$0xff] %vm3325, %v3242
          %3327 = vst.msk [vmem:[#allocation3 + $0x10] sm:$0xff] %vm3325, %v3244
          %3328 = vst.msk [vmem:[#allocation3 + $0x18] sm:$0xff] %vm3325, %v3246
          %3329 = vst.msk [vmem:[#allocation3 + $0x20] sm:$0xff] %vm3325, %v3248
          %3330 = vst.msk [vmem:[#allocation3 + $0x28] sm:$0xff] %vm3325, %v3250
          %3331 = vst.msk [vmem:[#allocation3 + $0x30] sm:$0xff] %vm3325, %v3252
          %3332 = vst.msk [vmem:[#allocation3 + $0x38] sm:$0xff] %vm3325, %v3254
          %3333 = vst.msk [vmem:[#allocation3 + $0x40] sm:$0xff] %vm3325, %v3256
          %3334 = vst.msk [vmem:[#allocation3 + $0x48] sm:$0xff] %vm3325, %v3258
          %3335 = vst.msk [vmem:[#allocation3 + $0x50] sm:$0xff] %vm3325, %v3260
          %3336 = vst.msk [vmem:[#allocation3 + $0x58] sm:$0xff] %vm3325, %v3262
          %3337 = vst.msk [vmem:[#allocation3 + $0x60] sm:$0xff] %vm3325, %v3264
          %3338 = vst.msk [vmem:[#allocation3 + $0x68] sm:$0xff] %vm3325, %v3266
          %3339 = vst.msk [vmem:[#allocation3 + $0x70] sm:$0xff] %vm3325, %v3268
          %3340 = vst.msk [vmem:[#allocation3 + $0x78] sm:$0xff] %vm3325, %v3270
          %3341 = vst.msk [vmem:[#allocation3 + $0x80] sm:$0xff] %vm3325, %v3272
          %3342 = vst.msk [vmem:[#allocation3 + $0x88] sm:$0xff] %vm3325, %v3274
          %3343 = vst.msk [vmem:[#allocation3 + $0x90] sm:$0xff] %vm3325, %v3276
          %3344 = vst.msk [vmem:[#allocation3 + $0x98] sm:$0xff] %vm3325, %v3278
          %3345 = vst.msk [vmem:[#allocation3 + $0xa0] sm:$0xff] %vm3325, %v3280
          %3346 = vst.msk [vmem:[#allocation3 + $0xa8] sm:$0xff] %vm3325, %v3282
          %3347 = vst.msk [vmem:[#allocation3 + $0xb0] sm:$0xff] %vm3325, %v3284
          %3348 = vst.msk [vmem:[#allocation3 + $0xb8] sm:$0xff] %vm3325, %v3286
          %3349 = vst.msk [vmem:[#allocation3 + $0xc0] sm:$0xff] %vm3325, %v3288
          %3350 = vst.msk [vmem:[#allocation3 + $0xc8] sm:$0xff] %vm3325, %v3290
          %3351 = vst.msk [vmem:[#allocation3 + $0xd0] sm:$0xff] %vm3325, %v3292
          %vm3352 = vcmask 519424
          %3353 = vst.msk [vmem:[#allocation3 + $0xd8] sm:$0xf] %vm3352, %v3294
          %v3354 = vld [vmem:[#allocation2 + $0x18] sm:$0xff]
          %v3355 = vld [vmem:[#allocation2 + $0x20] sm:$0xff]
          %v3356 = vld [vmem:[#allocation2 + $0x28] sm:$0xff]
          %v3357 = vld [vmem:[#allocation2 + $0x30] sm:$0xff]
          %v3358 = vld [vmem:[#allocation2 + $0x38] sm:$0xff]
          %v3359 = vld [vmem:[#allocation2 + $0x40] sm:$0xff]
          %v3360 = vld [vmem:[#allocation2 + $0x48] sm:$0xff]
          %v3361 = vld [vmem:[#allocation2 + $0x50] sm:$0xff]
          %v3362 = vld [vmem:[#allocation2 + $0x58] sm:$0xff]
          %v3363 = vld [vmem:[#allocation2 + $0x60] sm:$0xff]
          %v3364 = vld [vmem:[#allocation2 + $0x68] sm:$0xff]
          %v3365 = vld [vmem:[#allocation2 + $0x70] sm:$0xff]
          %v3366 = vld [vmem:[#allocation2 + $0x78] sm:$0xff]
          %v3367 = vld [vmem:[#allocation2 + $0x80] sm:$0xff]
          %v3368 = vld [vmem:[#allocation2 + $0x88] sm:$0xff]
          %v3369 = vld [vmem:[#allocation2 + $0x90] sm:$0xff]
          %v3370 = vld [vmem:[#allocation2 + $0x98] sm:$0xff]
          %v3371 = vld [vmem:[#allocation2 + $0xa0] sm:$0xff]
          %v3372 = vld [vmem:[#allocation2 + $0xa8] sm:$0xff]
          %v3373 = vld [vmem:[#allocation2 + $0xb0] sm:$0xff]
          %v3374 = vld [vmem:[#allocation2 + $0xb8] sm:$0xff]
          %v3375 = vld [vmem:[#allocation2 + $0xc0] sm:$0xff]
          %v3376 = vld [vmem:[#allocation2 + $0xc8] sm:$0xff]
          %v3377 = vld [vmem:[#allocation2 + $0xd0] sm:$0xff]
          %v3378 = vld [vmem:[#allocation2 + $0xd8] sm:$0xff]
          %v3379 = vld [vmem:[#allocation2 + $0xe0] sm:$0xff]
          %v3380 = vld [vmem:[#allocation2 + $0xe8] sm:$0xff]
          %v3408 = vrot.slane %v3354, 4
          %v3409 = vrot.slane %v3355, 4
          %v3410 = vsel %vm387, %v3408, %v3409
          %v3411 = vrot.slane %v3356, 4
          %v3412 = vsel %vm387, %v3409, %v3411
          %v3413 = vrot.slane %v3357, 4
          %v3414 = vsel %vm387, %v3411, %v3413
          %v3415 = vrot.slane %v3358, 4
          %v3416 = vsel %vm387, %v3413, %v3415
          %v3417 = vrot.slane %v3359, 4
          %v3418 = vsel %vm387, %v3415, %v3417
          %v3419 = vrot.slane %v3360, 4
          %v3420 = vsel %vm387, %v3417, %v3419
          %v3421 = vrot.slane %v3361, 4
          %v3422 = vsel %vm387, %v3419, %v3421
          %v3423 = vrot.slane %v3362, 4
          %v3424 = vsel %vm387, %v3421, %v3423
          %v3425 = vrot.slane %v3363, 4
          %v3426 = vsel %vm387, %v3423, %v3425
          %v3427 = vrot.slane %v3364, 4
          %v3428 = vsel %vm387, %v3425, %v3427
          %v3429 = vrot.slane %v3365, 4
          %v3430 = vsel %vm387, %v3427, %v3429
          %v3431 = vrot.slane %v3366, 4
          %v3432 = vsel %vm387, %v3429, %v3431
          %v3433 = vrot.slane %v3367, 4
          %v3434 = vsel %vm387, %v3431, %v3433
          %v3435 = vrot.slane %v3368, 4
          %v3436 = vsel %vm387, %v3433, %v3435
          %v3437 = vrot.slane %v3369, 4
          %v3438 = vsel %vm387, %v3435, %v3437
          %v3439 = vrot.slane %v3370, 4
          %v3440 = vsel %vm387, %v3437, %v3439
          %v3441 = vrot.slane %v3371, 4
          %v3442 = vsel %vm387, %v3439, %v3441
          %v3443 = vrot.slane %v3372, 4
          %v3444 = vsel %vm387, %v3441, %v3443
          %v3445 = vrot.slane %v3373, 4
          %v3446 = vsel %vm387, %v3443, %v3445
          %v3447 = vrot.slane %v3374, 4
          %v3448 = vsel %vm387, %v3445, %v3447
          %v3449 = vrot.slane %v3375, 4
          %v3450 = vsel %vm387, %v3447, %v3449
          %v3451 = vrot.slane %v3376, 4
          %v3452 = vsel %vm387, %v3449, %v3451
          %v3453 = vrot.slane %v3377, 4
          %v3454 = vsel %vm387, %v3451, %v3453
          %v3455 = vrot.slane %v3378, 4
          %v3456 = vsel %vm387, %v3453, %v3455
          %v3457 = vrot.slane %v3379, 4
          %v3458 = vsel %vm387, %v3455, %v3457
          %v3459 = vrot.slane %v3380, 4
          %v3460 = vsel %vm387, %v3457, %v3459
          %3461 = vrot.lane.b32.xlu0 %v3408, 64
          %v3462 = vpop.permute.xlu0 %3461
          %3463 = vrot.lane.b32.xlu0 %v3410, 64
          %v3464 = vpop.permute.xlu0 %3463
          %3465 = vrot.lane.b32.xlu0 %v3412, 64
          %v3466 = vpop.permute.xlu0 %3465
          %3467 = vrot.lane.b32.xlu0 %v3414, 64
          %v3468 = vpop.permute.xlu0 %3467
          %3469 = vrot.lane.b32.xlu0 %v3416, 64
          %v3470 = vpop.permute.xlu0 %3469
          %3471 = vrot.lane.b32.xlu0 %v3418, 64
          %v3472 = vpop.permute.xlu0 %3471
          %3473 = vrot.lane.b32.xlu0 %v3420, 64
          %v3474 = vpop.permute.xlu0 %3473
          %3475 = vrot.lane.b32.xlu0 %v3422, 64
          %v3476 = vpop.permute.xlu0 %3475
          %3477 = vrot.lane.b32.xlu0 %v3424, 64
          %v3478 = vpop.permute.xlu0 %3477
          %3479 = vrot.lane.b32.xlu0 %v3426, 64
          %v3480 = vpop.permute.xlu0 %3479
          %3481 = vrot.lane.b32.xlu0 %v3428, 64
          %v3482 = vpop.permute.xlu0 %3481
          %3483 = vrot.lane.b32.xlu0 %v3430, 64
          %v3484 = vpop.permute.xlu0 %3483
          %3485 = vrot.lane.b32.xlu0 %v3432, 64
          %v3486 = vpop.permute.xlu0 %3485
          %3487 = vrot.lane.b32.xlu0 %v3434, 64
          %v3488 = vpop.permute.xlu0 %3487
          %3489 = vrot.lane.b32.xlu0 %v3436, 64
          %v3490 = vpop.permute.xlu0 %3489
          %3491 = vrot.lane.b32.xlu0 %v3438, 64
          %v3492 = vpop.permute.xlu0 %3491
          %3493 = vrot.lane.b32.xlu0 %v3440, 64
          %v3494 = vpop.permute.xlu0 %3493
          %3495 = vrot.lane.b32.xlu0 %v3442, 64
          %v3496 = vpop.permute.xlu0 %3495
          %3497 = vrot.lane.b32.xlu0 %v3444, 64
          %v3498 = vpop.permute.xlu0 %3497
          %3499 = vrot.lane.b32.xlu0 %v3446, 64
          %v3500 = vpop.permute.xlu0 %3499
          %3501 = vrot.lane.b32.xlu0 %v3448, 64
          %v3502 = vpop.permute.xlu0 %3501
          %3503 = vrot.lane.b32.xlu0 %v3450, 64
          %v3504 = vpop.permute.xlu0 %3503
          %3505 = vrot.lane.b32.xlu0 %v3452, 64
          %v3506 = vpop.permute.xlu0 %3505
          %3507 = vrot.lane.b32.xlu0 %v3454, 64
          %v3508 = vpop.permute.xlu0 %3507
          %3509 = vrot.lane.b32.xlu0 %v3456, 64
          %v3510 = vpop.permute.xlu0 %3509
          %3511 = vrot.lane.b32.xlu0 %v3458, 64
          %v3512 = vpop.permute.xlu0 %3511
          %3513 = vrot.lane.b32.xlu0 %v3460, 64
          %v3514 = vpop.permute.xlu0 %3513
          %3515 = vrot.lane.b32.xlu0 %v3459, 64
          %v3516 = vpop.permute.xlu0 %3515
          %vm3545 = vcmask 785924
          %3546 = vst.msk [vmem:[#allocation3] sm:$0xf0] %vm3545, %v3462
          %vm3547 = vcmask 785920
          %3548 = vst.msk [vmem:[#allocation3 + $0x8] sm:$0xff] %vm3547, %v3464
          %3549 = vst.msk [vmem:[#allocation3 + $0x10] sm:$0xff] %vm3547, %v3466
          %3550 = vst.msk [vmem:[#allocation3 + $0x18] sm:$0xff] %vm3547, %v3468
          %3551 = vst.msk [vmem:[#allocation3 + $0x20] sm:$0xff] %vm3547, %v3470
          %3552 = vst.msk [vmem:[#allocation3 + $0x28] sm:$0xff] %vm3547, %v3472
          %3553 = vst.msk [vmem:[#allocation3 + $0x30] sm:$0xff] %vm3547, %v3474
          %3554 = vst.msk [vmem:[#allocation3 + $0x38] sm:$0xff] %vm3547, %v3476
          %3555 = vst.msk [vmem:[#allocation3 + $0x40] sm:$0xff] %vm3547, %v3478
          %3556 = vst.msk [vmem:[#allocation3 + $0x48] sm:$0xff] %vm3547, %v3480
          %3557 = vst.msk [vmem:[#allocation3 + $0x50] sm:$0xff] %vm3547, %v3482
          %3558 = vst.msk [vmem:[#allocation3 + $0x58] sm:$0xff] %vm3547, %v3484
          %3559 = vst.msk [vmem:[#allocation3 + $0x60] sm:$0xff] %vm3547, %v3486
          %3560 = vst.msk [vmem:[#allocation3 + $0x68] sm:$0xff] %vm3547, %v3488
          %3561 = vst.msk [vmem:[#allocation3 + $0x70] sm:$0xff] %vm3547, %v3490
          %3562 = vst.msk [vmem:[#allocation3 + $0x78] sm:$0xff] %vm3547, %v3492
          %3563 = vst.msk [vmem:[#allocation3 + $0x80] sm:$0xff] %vm3547, %v3494
          %3564 = vst.msk [vmem:[#allocation3 + $0x88] sm:$0xff] %vm3547, %v3496
          %3565 = vst.msk [vmem:[#allocation3 + $0x90] sm:$0xff] %vm3547, %v3498
          %3566 = vst.msk [vmem:[#allocation3 + $0x98] sm:$0xff] %vm3547, %v3500
          %3567 = vst.msk [vmem:[#allocation3 + $0xa0] sm:$0xff] %vm3547, %v3502
          %3568 = vst.msk [vmem:[#allocation3 + $0xa8] sm:$0xff] %vm3547, %v3504
          %3569 = vst.msk [vmem:[#allocation3 + $0xb0] sm:$0xff] %vm3547, %v3506
          %3570 = vst.msk [vmem:[#allocation3 + $0xb8] sm:$0xff] %vm3547, %v3508
          %3571 = vst.msk [vmem:[#allocation3 + $0xc0] sm:$0xff] %vm3547, %v3510
          %3572 = vst.msk [vmem:[#allocation3 + $0xc8] sm:$0xff] %vm3547, %v3512
          %3573 = vst.msk [vmem:[#allocation3 + $0xd0] sm:$0xff] %vm3547, %v3514
          %vm3574 = vcmask 781824
          %3575 = vst.msk [vmem:[#allocation3 + $0xd8] sm:$0xf] %vm3574, %v3516
          %v3576 = vld [vmem:[#allocation3] sm:$0xf8]
          %v3577 = vld [vmem:[#allocation3 + $0x8] sm:$0xff]
          %v3578 = vld [vmem:[#allocation3 + $0x10] sm:$0xff]
          %v3579 = vld [vmem:[#allocation3 + $0x18] sm:$0xff]
          %v3580 = vld [vmem:[#allocation3 + $0x20] sm:$0xff]
          %v3581 = vld [vmem:[#allocation3 + $0x28] sm:$0xff]
          %v3582 = vld [vmem:[#allocation3 + $0x30] sm:$0xff]
          %v3583 = vld [vmem:[#allocation3 + $0x38] sm:$0xff]
          %v3584 = vld [vmem:[#allocation3 + $0x40] sm:$0xff]
          %v3585 = vld [vmem:[#allocation3 + $0x48] sm:$0xff]
          %v3586 = vld [vmem:[#allocation3 + $0x50] sm:$0xff]
          %v3587 = vld [vmem:[#allocation3 + $0x58] sm:$0xff]
          %v3588 = vld [vmem:[#allocation3 + $0x60] sm:$0xff]
          %v3589 = vld [vmem:[#allocation3 + $0x68] sm:$0xff]
          %v3590 = vld [vmem:[#allocation3 + $0x70] sm:$0xff]
          %v3591 = vld [vmem:[#allocation3 + $0x78] sm:$0xff]
          %v3592 = vld [vmem:[#allocation3 + $0x80] sm:$0xff]
          %v3593 = vld [vmem:[#allocation3 + $0x88] sm:$0xff]
          %v3594 = vld [vmem:[#allocation3 + $0x90] sm:$0xff]
          %v3595 = vld [vmem:[#allocation3 + $0x98] sm:$0xff]
          %v3596 = vld [vmem:[#allocation3 + $0xa0] sm:$0xff]
          %v3597 = vld [vmem:[#allocation3 + $0xa8] sm:$0xff]
          %v3598 = vld [vmem:[#allocation3 + $0xb0] sm:$0xff]
          %v3599 = vld [vmem:[#allocation3 + $0xb8] sm:$0xff]
          %v3600 = vld [vmem:[#allocation3 + $0xc0] sm:$0xff]
          %v3601 = vld [vmem:[#allocation3 + $0xc8] sm:$0xff]
          %v3602 = vld [vmem:[#allocation3 + $0xd0] sm:$0xff]
          %v3603 = vld [vmem:[#allocation3 + $0xd8] sm:$0xf]
          %s3604 = smul.u32 %s3013, 3
          %s3605 = smul.u32 %s3604, 12
          %s3606 = smul.addr %s3605, 4
          %s3607 = scalar_lea.vmem %s3, %s3606
          %v3608 = vld [vmem:[%s3607] sm:$0xf]
          %v3609 = vld [vmem:[%s3607 + $0x4] sm:$0xf]
          %v3610 = vld [vmem:[%s3607 + $0x8] sm:$0xf]
          %v3611 = vld [vmem:[%s3607 + $0xc] sm:$0xf]
          %v3612 = vld [vmem:[%s3607 + $0x10] sm:$0xf]
          %v3613 = vld [vmem:[%s3607 + $0x14] sm:$0xf]
          %v3614 = vld [vmem:[%s3607 + $0x18] sm:$0xf]
          %v3615 = vld [vmem:[%s3607 + $0x1c] sm:$0xf]
          %v3616 = vld [vmem:[%s3607 + $0x20] sm:$0xf]
          %v3617 = vld [vmem:[%s3607 + $0x24] sm:$0xf]
          %v3618 = vld [vmem:[%s3607 + $0x28] sm:$0xf]
          %v3619 = vld [vmem:[%s3607 + $0x2c] sm:$0xf]
          %v3620 = vld [vmem:[#allocation3] sm:$0xf0]
          %s3621 = sadd.s32 %s3604, 1
          %s3622 = smul.u32 %s3621, 12
          %s3623 = smul.addr %s3622, 4
          %s3624 = scalar_lea.vmem %s3, %s3623
          %v3625 = vld [vmem:[%s3624] sm:$0xf]
          %v3626 = vld [vmem:[%s3624 + $0x4] sm:$0xf]
          %v3627 = vld [vmem:[%s3624 + $0x8] sm:$0xf]
          %v3628 = vld [vmem:[%s3624 + $0xc] sm:$0xf]
          %v3629 = vld [vmem:[%s3624 + $0x10] sm:$0xf]
          %v3630 = vld [vmem:[%s3624 + $0x14] sm:$0xf]
          %v3631 = vld [vmem:[%s3624 + $0x18] sm:$0xf]
          %v3632 = vld [vmem:[%s3624 + $0x1c] sm:$0xf]
          %v3633 = vld [vmem:[%s3624 + $0x20] sm:$0xf]
          %v3634 = vld [vmem:[%s3624 + $0x24] sm:$0xf]
          %v3635 = vld [vmem:[%s3624 + $0x28] sm:$0xf]
          %v3636 = vld [vmem:[%s3624 + $0x2c] sm:$0xf]
          %v3665 = vrot.slane %v3620, 4
          %v3666 = vrot.slane %v3577, 4
          %v3667 = vsel %vm387, %v3665, %v3666
          %v3668 = vrot.slane %v3578, 4
          %v3669 = vsel %vm387, %v3666, %v3668
          %v3670 = vrot.slane %v3579, 4
          %v3671 = vsel %vm387, %v3668, %v3670
          %v3672 = vrot.slane %v3580, 4
          %v3673 = vsel %vm387, %v3670, %v3672
          %v3674 = vrot.slane %v3581, 4
          %v3675 = vsel %vm387, %v3672, %v3674
          %v3676 = vrot.slane %v3582, 4
          %v3677 = vsel %vm387, %v3674, %v3676
          %v3678 = vrot.slane %v3583, 4
          %v3679 = vsel %vm387, %v3676, %v3678
          %v3680 = vrot.slane %v3584, 4
          %v3681 = vsel %vm387, %v3678, %v3680
          %v3682 = vrot.slane %v3585, 4
          %v3683 = vsel %vm387, %v3680, %v3682
          %v3684 = vrot.slane %v3586, 4
          %v3685 = vsel %vm387, %v3682, %v3684
          %v3686 = vrot.slane %v3587, 4
          %v3687 = vsel %vm387, %v3684, %v3686
          %v3688 = vrot.slane %v3588, 4
          %v3689 = vsel %vm387, %v3686, %v3688
          %v3690 = vrot.slane %v3589, 4
          %v3691 = vsel %vm387, %v3688, %v3690
          %v3692 = vrot.slane %v3590, 4
          %v3693 = vsel %vm387, %v3690, %v3692
          %v3694 = vrot.slane %v3591, 4
          %v3695 = vsel %vm387, %v3692, %v3694
          %v3696 = vrot.slane %v3592, 4
          %v3697 = vsel %vm387, %v3694, %v3696
          %v3698 = vrot.slane %v3593, 4
          %v3699 = vsel %vm387, %v3696, %v3698
          %v3700 = vrot.slane %v3594, 4
          %v3701 = vsel %vm387, %v3698, %v3700
          %v3702 = vrot.slane %v3595, 4
          %v3703 = vsel %vm387, %v3700, %v3702
          %v3704 = vrot.slane %v3596, 4
          %v3705 = vsel %vm387, %v3702, %v3704
          %v3706 = vrot.slane %v3597, 4
          %v3707 = vsel %vm387, %v3704, %v3706
          %v3708 = vrot.slane %v3598, 4
          %v3709 = vsel %vm387, %v3706, %v3708
          %v3710 = vrot.slane %v3599, 4
          %v3711 = vsel %vm387, %v3708, %v3710
          %v3712 = vrot.slane %v3600, 4
          %v3713 = vsel %vm387, %v3710, %v3712
          %v3714 = vrot.slane %v3601, 4
          %v3715 = vsel %vm387, %v3712, %v3714
          %v3716 = vrot.slane %v3602, 4
          %v3717 = vsel %vm387, %v3714, %v3716
          %v3718 = vrot.slane %v3603, 4
          %v3719 = vsel %vm387, %v3716, %v3718
          %v3732 = vunpack.c.l.b16 %v3625
          %v3733 = vunpack.c.l.b16 %v3626
          %v3734 = vunpack.c.l.b16 %v3627
          %v3735 = vunpack.c.l.b16 %v3628
          %v3736 = vunpack.c.l.b16 %v3629
          %v3737 = vunpack.c.l.b16 %v3630
          %v3738 = vunpack.c.l.b16 %v3631
          %v3739 = vunpack.c.l.b16 %v3632
          %v3740 = vunpack.c.l.b16 %v3633
          %v3741 = vunpack.c.l.b16 %v3634
          %v3742 = vunpack.c.l.b16 %v3635
          %v3743 = vunpack.c.l.b16 %v3636
          %v3744 = vpack.c.b16 %v3733, %v3732
          %v3745 = vpack.c.b16 %v3735, %v3734
          %v3746 = vpack.c.b16 %v3737, %v3736
          %v3747 = vpack.c.b16 %v3739, %v3738
          %v3748 = vpack.c.b16 %v3741, %v3740
          %v3749 = vpack.c.b16 %v3743, %v3742
          %vm3756 = vcmask 785408
          %v3758 = vsel %vm3756, %v3667, 0
          %v3761 = vsel %vm3756, %v3669, 0
          %v3764 = vsel %vm3756, %v3671, 0
          %v3767 = vsel %vm3756, %v3673, 0
          %v3770 = vsel %vm3756, %v3675, 0
          %v3773 = vsel %vm3756, %v3677, 0
          %v3776 = vsel %vm3756, %v3679, 0
          %v3779 = vsel %vm3756, %v3681, 0
          %v3782 = vsel %vm3756, %v3683, 0
          %v3785 = vsel %vm3756, %v3685, 0
          %v3788 = vsel %vm3756, %v3687, 0
          %v3791 = vsel %vm3756, %v3689, 0
          %v3794 = vsel %vm3756, %v3691, 0
          %v3797 = vsel %vm3756, %v3693, 0
          %v3800 = vsel %vm3756, %v3695, 0
          %v3803 = vsel %vm3756, %v3697, 0
          %v3806 = vsel %vm3756, %v3699, 0
          %v3809 = vsel %vm3756, %v3701, 0
          %v3812 = vsel %vm3756, %v3703, 0
          %v3815 = vsel %vm3756, %v3705, 0
          %v3818 = vsel %vm3756, %v3707, 0
          %v3821 = vsel %vm3756, %v3709, 0
          %v3824 = vsel %vm3756, %v3711, 0
          %v3827 = vsel %vm3756, %v3713, 0
          %v3830 = vsel %vm3756, %v3715, 0
          %v3833 = vsel %vm3756, %v3717, 0
          %v3836 = vsel %vm3756, %v3719, 0
          %3838 = vmatprep.subr.bf16.mxu0 0
          %3839 = vmatpush1.bf16.msra.mxu0 %v3744
          %3840 = vmatprep.subr.bf16.mxu0 0
          %3841 = vmatpush1.bf16.msra.mxu0 %v3745
          %3842 = vmatprep.subr.bf16.mxu0 0
          %3843 = vmatpush1.bf16.msra.mxu0 %v3746
          %3844 = vmatprep.subr.bf16.mxu0 0
          %3845 = vmatpush1.bf16.msra.mxu0 %v3747
          %3846 = vmatprep.subr.bf16.mxu0 0
          %3847 = vmatpush1.bf16.msra.mxu0 %v3748
          %3848 = vmatprep.subr.bf16.mxu0 0
          %3849 = vmatpush1.bf16.msra.mxu0 %v3749
          %3850 = vmatprep.subr.bf16.mxu0 0
          %3851 = vmatpush1.bf16.msra.mxu0 0
          %3852 = vmatprep.subr.bf16.mxu0 0
          %3853 = vmatpush1.bf16.msra.mxu0 0
          %3854 = vmatprep.subr.bf16.mxu0 0
          %3855 = vmatpush1.bf16.msra.mxu0 0
          %3856 = vmatprep.subr.bf16.mxu0 0
          %3857 = vmatpush1.bf16.msra.mxu0 0
          %3858 = vmatprep.subr.bf16.mxu0 0
          %3859 = vmatpush1.bf16.msra.mxu0 0
          %3860 = vmatprep.subr.bf16.mxu0 0
          %3861 = vmatpush1.bf16.msra.mxu0 0
          %3862 = vmatprep.subr.bf16.mxu0 0
          %3863 = vmatpush1.bf16.msra.mxu0 0
          %3864 = vmatprep.subr.bf16.mxu0 0
          %3865 = vmatpush1.bf16.msra.mxu0 0
          %3866 = vmatprep.subr.bf16.mxu0 0
          %3867 = vmatpush1.bf16.msra.mxu0 0
          %3868 = vmatprep.subr.bf16.mxu0 0
          %3869 = vmatpush1.bf16.msra.mxu0 0
          %3870 = vmatprep.mubr.bf16.mxu0 0
          %3871 = vmatmul.mubr.bf16.gmra.mrb[0].mxu0 %v3758
          %v3872 = vpop.f32.mrb[0].mxu0
          %v3873 = vadd.f32 0.0, %v3872
          %v3874 = vpop.f32.mrb[0].mxu0
          %v3875 = vpop.f32.mrb[0].mxu0
          %v3876 = vadd.f32 0.0, %v3875
          %v3877 = vpop.f32.mrb[0].mxu0
          %3878 = vmatprep.mubr.bf16.mxu0 0
          %3879 = vmatmul.mubr.bf16.gmra.mrb[0].mxu0 %v3761
          %v3880 = vpop.f32.mrb[0].mxu0
          %v3881 = vadd.f32 0.0, %v3880
          %v3882 = vpop.f32.mrb[0].mxu0
          %v3883 = vpop.f32.mrb[0].mxu0
          %v3884 = vadd.f32 0.0, %v3883
          %v3885 = vpop.f32.mrb[0].mxu0
          %3886 = vmatprep.mubr.bf16.mxu0 0
          %3887 = vmatmul.mubr.bf16.gmra.mrb[0].mxu0 %v3764
          %v3888 = vpop.f32.mrb[0].mxu0
          %v3889 = vadd.f32 0.0, %v3888
          %v3890 = vpop.f32.mrb[0].mxu0
          %v3891 = vpop.f32.mrb[0].mxu0
          %v3892 = vadd.f32 0.0, %v3891
          %v3893 = vpop.f32.mrb[0].mxu0
          %3894 = vmatprep.mubr.bf16.mxu0 0
          %3895 = vmatmul.mubr.bf16.gmra.mrb[0].mxu0 %v3767
          %v3896 = vpop.f32.mrb[0].mxu0
          %v3897 = vadd.f32 0.0, %v3896
          %v3898 = vpop.f32.mrb[0].mxu0
          %v3899 = vpop.f32.mrb[0].mxu0
          %v3900 = vadd.f32 0.0, %v3899
          %v3901 = vpop.f32.mrb[0].mxu0
          %3902 = vmatprep.mubr.bf16.mxu0 0
          %3903 = vmatmul.mubr.bf16.gmra.mrb[0].mxu0 %v3770
          %v3904 = vpop.f32.mrb[0].mxu0
          %v3905 = vadd.f32 0.0, %v3904
          %v3906 = vpop.f32.mrb[0].mxu0
          %v3907 = vpop.f32.mrb[0].mxu0
          %v3908 = vadd.f32 0.0, %v3907
          %v3909 = vpop.f32.mrb[0].mxu0
          %3910 = vmatprep.mubr.bf16.mxu0 0
          %3911 = vmatmul.mubr.bf16.gmra.mrb[0].mxu0 %v3773
          %v3912 = vpop.f32.mrb[0].mxu0
          %v3913 = vadd.f32 0.0, %v3912
          %v3914 = vpop.f32.mrb[0].mxu0
          %v3915 = vpop.f32.mrb[0].mxu0
          %v3916 = vadd.f32 0.0, %v3915
          %v3917 = vpop.f32.mrb[0].mxu0
          %3918 = vmatprep.mubr.bf16.mxu0 0
          %3919 = vmatmul.mubr.bf16.gmra.mrb[0].mxu0 %v3776
          %v3920 = vpop.f32.mrb[0].mxu0
          %v3921 = vadd.f32 0.0, %v3920
          %v3922 = vpop.f32.mrb[0].mxu0
          %v3923 = vpop.f32.mrb[0].mxu0
          %v3924 = vadd.f32 0.0, %v3923
          %v3925 = vpop.f32.mrb[0].mxu0
          %3926 = vmatprep.mubr.bf16.mxu0 0
          %3927 = vmatmul.mubr.bf16.gmra.mrb[0].mxu0 %v3779
          %v3928 = vpop.f32.mrb[0].mxu0
          %v3929 = vadd.f32 0.0, %v3928
          %v3930 = vpop.f32.mrb[0].mxu0
          %v3931 = vpop.f32.mrb[0].mxu0
          %v3932 = vadd.f32 0.0, %v3931
          %v3933 = vpop.f32.mrb[0].mxu0
          %3934 = vmatprep.mubr.bf16.mxu0 0
          %3935 = vmatmul.mubr.bf16.gmra.mrb[0].mxu0 %v3782
          %v3936 = vpop.f32.mrb[0].mxu0
          %v3937 = vadd.f32 0.0, %v3936
          %v3938 = vpop.f32.mrb[0].mxu0
          %v3939 = vpop.f32.mrb[0].mxu0
          %v3940 = vadd.f32 0.0, %v3939
          %v3941 = vpop.f32.mrb[0].mxu0
          %3942 = vmatprep.mubr.bf16.mxu0 0
          %3943 = vmatmul.mubr.bf16.gmra.mrb[0].mxu0 %v3785
          %v3944 = vpop.f32.mrb[0].mxu0
          %v3945 = vadd.f32 0.0, %v3944
          %v3946 = vpop.f32.mrb[0].mxu0
          %v3947 = vpop.f32.mrb[0].mxu0
          %v3948 = vadd.f32 0.0, %v3947
          %v3949 = vpop.f32.mrb[0].mxu0
          %3950 = vmatprep.mubr.bf16.mxu0 0
          %3951 = vmatmul.mubr.bf16.gmra.mrb[0].mxu0 %v3788
          %v3952 = vpop.f32.mrb[0].mxu0
          %v3953 = vadd.f32 0.0, %v3952
          %v3954 = vpop.f32.mrb[0].mxu0
          %v3955 = vpop.f32.mrb[0].mxu0
          %v3956 = vadd.f32 0.0, %v3955
          %v3957 = vpop.f32.mrb[0].mxu0
          %3958 = vmatprep.mubr.bf16.mxu0 0
          %3959 = vmatmul.mubr.bf16.gmra.mrb[0].mxu0 %v3791
          %v3960 = vpop.f32.mrb[0].mxu0
          %v3961 = vadd.f32 0.0, %v3960
          %v3962 = vpop.f32.mrb[0].mxu0
          %v3963 = vpop.f32.mrb[0].mxu0
          %v3964 = vadd.f32 0.0, %v3963
          %v3965 = vpop.f32.mrb[0].mxu0
          %3966 = vmatprep.mubr.bf16.mxu0 0
          %3967 = vmatmul.mubr.bf16.gmra.mrb[0].mxu0 %v3794
          %v3968 = vpop.f32.mrb[0].mxu0
          %v3969 = vadd.f32 0.0, %v3968
          %v3970 = vpop.f32.mrb[0].mxu0
          %v3971 = vpop.f32.mrb[0].mxu0
          %v3972 = vadd.f32 0.0, %v3971
          %v3973 = vpop.f32.mrb[0].mxu0
          %3974 = vmatprep.mubr.bf16.mxu0 0
          %3975 = vmatmul.mubr.bf16.gmra.mrb[0].mxu0 %v3797
          %v3976 = vpop.f32.mrb[0].mxu0
          %v3977 = vadd.f32 0.0, %v3976
          %v3978 = vpop.f32.mrb[0].mxu0
          %v3979 = vpop.f32.mrb[0].mxu0
          %v3980 = vadd.f32 0.0, %v3979
          %v3981 = vpop.f32.mrb[0].mxu0
          %3982 = vmatprep.mubr.bf16.mxu0 0
          %3983 = vmatmul.mubr.bf16.gmra.mrb[0].mxu0 %v3800
          %v3984 = vpop.f32.mrb[0].mxu0
          %v3985 = vadd.f32 0.0, %v3984
          %v3986 = vpop.f32.mrb[0].mxu0
          %v3987 = vpop.f32.mrb[0].mxu0
          %v3988 = vadd.f32 0.0, %v3987
          %v3989 = vpop.f32.mrb[0].mxu0
          %3990 = vmatprep.mubr.bf16.mxu0 0
          %3991 = vmatmul.mubr.bf16.gmra.mrb[0].mxu0 %v3803
          %v3992 = vpop.f32.mrb[0].mxu0
          %v3993 = vadd.f32 0.0, %v3992
          %v3994 = vpop.f32.mrb[0].mxu0
          %v3995 = vpop.f32.mrb[0].mxu0
          %v3996 = vadd.f32 0.0, %v3995
          %v3997 = vpop.f32.mrb[0].mxu0
          %3998 = vmatprep.mubr.bf16.mxu0 0
          %3999 = vmatmul.mubr.bf16.gmra.mrb[0].mxu0 %v3806
          %v4000 = vpop.f32.mrb[0].mxu0
          %v4001 = vadd.f32 0.0, %v4000
          %v4002 = vpop.f32.mrb[0].mxu0
          %v4003 = vpop.f32.mrb[0].mxu0
          %v4004 = vadd.f32 0.0, %v4003
          %v4005 = vpop.f32.mrb[0].mxu0
          %4006 = vmatprep.mubr.bf16.mxu0 0
          %4007 = vmatmul.mubr.bf16.gmra.mrb[0].mxu0 %v3809
          %v4008 = vpop.f32.mrb[0].mxu0
          %v4009 = vadd.f32 0.0, %v4008
          %v4010 = vpop.f32.mrb[0].mxu0
          %v4011 = vpop.f32.mrb[0].mxu0
          %v4012 = vadd.f32 0.0, %v4011
          %v4013 = vpop.f32.mrb[0].mxu0
          %4014 = vmatprep.mubr.bf16.mxu0 0
          %4015 = vmatmul.mubr.bf16.gmra.mrb[0].mxu0 %v3812
          %v4016 = vpop.f32.mrb[0].mxu0
          %v4017 = vadd.f32 0.0, %v4016
          %v4018 = vpop.f32.mrb[0].mxu0
          %v4019 = vpop.f32.mrb[0].mxu0
          %v4020 = vadd.f32 0.0, %v4019
          %v4021 = vpop.f32.mrb[0].mxu0
          %4022 = vmatprep.mubr.bf16.mxu0 0
          %4023 = vmatmul.mubr.bf16.gmra.mrb[0].mxu0 %v3815
          %v4024 = vpop.f32.mrb[0].mxu0
          %v4025 = vadd.f32 0.0, %v4024
          %v4026 = vpop.f32.mrb[0].mxu0
          %v4027 = vpop.f32.mrb[0].mxu0
          %v4028 = vadd.f32 0.0, %v4027
          %v4029 = vpop.f32.mrb[0].mxu0
          %4030 = vmatprep.mubr.bf16.mxu0 0
          %4031 = vmatmul.mubr.bf16.gmra.mrb[0].mxu0 %v3818
          %v4032 = vpop.f32.mrb[0].mxu0
          %v4033 = vadd.f32 0.0, %v4032
          %v4034 = vpop.f32.mrb[0].mxu0
          %v4035 = vpop.f32.mrb[0].mxu0
          %v4036 = vadd.f32 0.0, %v4035
          %v4037 = vpop.f32.mrb[0].mxu0
          %4038 = vmatprep.mubr.bf16.mxu0 0
          %4039 = vmatmul.mubr.bf16.gmra.mrb[0].mxu0 %v3821
          %v4040 = vpop.f32.mrb[0].mxu0
          %v4041 = vadd.f32 0.0, %v4040
          %v4042 = vpop.f32.mrb[0].mxu0
          %v4043 = vpop.f32.mrb[0].mxu0
          %v4044 = vadd.f32 0.0, %v4043
          %v4045 = vpop.f32.mrb[0].mxu0
          %4046 = vmatprep.mubr.bf16.mxu0 0
          %4047 = vmatmul.mubr.bf16.gmra.mrb[0].mxu0 %v3824
          %v4048 = vpop.f32.mrb[0].mxu0
          %v4049 = vadd.f32 0.0, %v4048
          %v4050 = vpop.f32.mrb[0].mxu0
          %v4051 = vpop.f32.mrb[0].mxu0
          %v4052 = vadd.f32 0.0, %v4051
          %v4053 = vpop.f32.mrb[0].mxu0
          %4054 = vmatprep.mubr.bf16.mxu0 0
          %4055 = vmatmul.mubr.bf16.gmra.mrb[0].mxu0 %v3827
          %v4056 = vpop.f32.mrb[0].mxu0
          %v4057 = vadd.f32 0.0, %v4056
          %v4058 = vpop.f32.mrb[0].mxu0
          %v4059 = vpop.f32.mrb[0].mxu0
          %v4060 = vadd.f32 0.0, %v4059
          %v4061 = vpop.f32.mrb[0].mxu0
          %4062 = vmatprep.mubr.bf16.mxu0 0
          %4063 = vmatmul.mubr.bf16.gmra.mrb[0].mxu0 %v3830
          %v4064 = vpop.f32.mrb[0].mxu0
          %v4065 = vadd.f32 0.0, %v4064
          %v4066 = vpop.f32.mrb[0].mxu0
          %v4067 = vpop.f32.mrb[0].mxu0
          %v4068 = vadd.f32 0.0, %v4067
          %v4069 = vpop.f32.mrb[0].mxu0
          %4070 = vmatprep.mubr.bf16.mxu0 0
          %4071 = vmatmul.mubr.bf16.gmra.mrb[0].mxu0 %v3833
          %v4072 = vpop.f32.mrb[0].mxu0
          %v4073 = vadd.f32 0.0, %v4072
          %v4074 = vpop.f32.mrb[0].mxu0
          %v4075 = vpop.f32.mrb[0].mxu0
          %v4076 = vadd.f32 0.0, %v4075
          %v4077 = vpop.f32.mrb[0].mxu0
          %4078 = vmatprep.mubr.bf16.mxu0 0
          %4079 = vmatmul.mubr.bf16.gmra.mrb[0].mxu0 %v3836
          %v4080 = vpop.f32.mrb[0].mxu0
          %v4081 = vadd.f32 0.0, %v4080
          %v4082 = vpop.f32.mrb[0].mxu0
          %v4083 = vpop.f32.mrb[0].mxu0
          %v4084 = vadd.f32 0.0, %v4083
          %v4085 = vpop.f32.mrb[0].mxu0
          %4086 = vdwg.mxu0
          %v4088 = vshrl.u32 %v3576, 16
          %v4090 = vrot.slane %v4088, 3
          %v4091 = vshll.u32 %v3576, 16
          %v4093 = vrot.slane %v4091, 4
          %v4094 = vor.u32 %v4090, %v4093
          %v4096 = vshrl.u32 %v3577, 16
          %v4098 = vrot.slane %v4096, 3
          %v4099 = vshll.u32 %v3577, 16
          %v4101 = vrot.slane %v4099, 4
          %v4102 = vor.u32 %v4098, %v4101
          %v4103 = vsel %vm1515, %v4094, %v4102
          %v4105 = vshrl.u32 %v3578, 16
          %v4107 = vrot.slane %v4105, 3
          %v4108 = vshll.u32 %v3578, 16
          %v4110 = vrot.slane %v4108, 4
          %v4111 = vor.u32 %v4107, %v4110
          %v4112 = vsel %vm1515, %v4102, %v4111
          %v4114 = vshrl.u32 %v3579, 16
          %v4116 = vrot.slane %v4114, 3
          %v4117 = vshll.u32 %v3579, 16
          %v4119 = vrot.slane %v4117, 4
          %v4120 = vor.u32 %v4116, %v4119
          %v4121 = vsel %vm1515, %v4111, %v4120
          %v4123 = vshrl.u32 %v3580, 16
          %v4125 = vrot.slane %v4123, 3
          %v4126 = vshll.u32 %v3580, 16
          %v4128 = vrot.slane %v4126, 4
          %v4129 = vor.u32 %v4125, %v4128
          %v4130 = vsel %vm1515, %v4120, %v4129
          %v4132 = vshrl.u32 %v3581, 16
          %v4134 = vrot.slane %v4132, 3
          %v4135 = vshll.u32 %v3581, 16
          %v4137 = vrot.slane %v4135, 4
          %v4138 = vor.u32 %v4134, %v4137
          %v4139 = vsel %vm1515, %v4129, %v4138
          %v4141 = vshrl.u32 %v3582, 16
          %v4143 = vrot.slane %v4141, 3
          %v4144 = vshll.u32 %v3582, 16
          %v4146 = vrot.slane %v4144, 4
          %v4147 = vor.u32 %v4143, %v4146
          %v4148 = vsel %vm1515, %v4138, %v4147
          %v4150 = vshrl.u32 %v3583, 16
          %v4152 = vrot.slane %v4150, 3
          %v4153 = vshll.u32 %v3583, 16
          %v4155 = vrot.slane %v4153, 4
          %v4156 = vor.u32 %v4152, %v4155
          %v4157 = vsel %vm1515, %v4147, %v4156
          %v4159 = vshrl.u32 %v3584, 16
          %v4161 = vrot.slane %v4159, 3
          %v4162 = vshll.u32 %v3584, 16
          %v4164 = vrot.slane %v4162, 4
          %v4165 = vor.u32 %v4161, %v4164
          %v4166 = vsel %vm1515, %v4156, %v4165
          %v4168 = vshrl.u32 %v3585, 16
          %v4170 = vrot.slane %v4168, 3
          %v4171 = vshll.u32 %v3585, 16
          %v4173 = vrot.slane %v4171, 4
          %v4174 = vor.u32 %v4170, %v4173
          %v4175 = vsel %vm1515, %v4165, %v4174
          %v4177 = vshrl.u32 %v3586, 16
          %v4179 = vrot.slane %v4177, 3
          %v4180 = vshll.u32 %v3586, 16
          %v4182 = vrot.slane %v4180, 4
          %v4183 = vor.u32 %v4179, %v4182
          %v4184 = vsel %vm1515, %v4174, %v4183
          %v4186 = vshrl.u32 %v3587, 16
          %v4188 = vrot.slane %v4186, 3
          %v4189 = vshll.u32 %v3587, 16
          %v4191 = vrot.slane %v4189, 4
          %v4192 = vor.u32 %v4188, %v4191
          %v4193 = vsel %vm1515, %v4183, %v4192
          %v4195 = vshrl.u32 %v3588, 16
          %v4197 = vrot.slane %v4195, 3
          %v4198 = vshll.u32 %v3588, 16
          %v4200 = vrot.slane %v4198, 4
          %v4201 = vor.u32 %v4197, %v4200
          %v4202 = vsel %vm1515, %v4192, %v4201
          %v4204 = vshrl.u32 %v3589, 16
          %v4206 = vrot.slane %v4204, 3
          %v4207 = vshll.u32 %v3589, 16
          %v4209 = vrot.slane %v4207, 4
          %v4210 = vor.u32 %v4206, %v4209
          %v4211 = vsel %vm1515, %v4201, %v4210
          %v4213 = vshrl.u32 %v3590, 16
          %v4215 = vrot.slane %v4213, 3
          %v4216 = vshll.u32 %v3590, 16
          %v4218 = vrot.slane %v4216, 4
          %v4219 = vor.u32 %v4215, %v4218
          %v4220 = vsel %vm1515, %v4210, %v4219
          %v4222 = vshrl.u32 %v3591, 16
          %v4224 = vrot.slane %v4222, 3
          %v4225 = vshll.u32 %v3591, 16
          %v4227 = vrot.slane %v4225, 4
          %v4228 = vor.u32 %v4224, %v4227
          %v4229 = vsel %vm1515, %v4219, %v4228
          %v4231 = vshrl.u32 %v3592, 16
          %v4233 = vrot.slane %v4231, 3
          %v4234 = vshll.u32 %v3592, 16
          %v4236 = vrot.slane %v4234, 4
          %v4237 = vor.u32 %v4233, %v4236
          %v4238 = vsel %vm1515, %v4228, %v4237
          %v4240 = vshrl.u32 %v3593, 16
          %v4242 = vrot.slane %v4240, 3
          %v4243 = vshll.u32 %v3593, 16
          %v4245 = vrot.slane %v4243, 4
          %v4246 = vor.u32 %v4242, %v4245
          %v4247 = vsel %vm1515, %v4237, %v4246
          %v4249 = vshrl.u32 %v3594, 16
          %v4251 = vrot.slane %v4249, 3
          %v4252 = vshll.u32 %v3594, 16
          %v4254 = vrot.slane %v4252, 4
          %v4255 = vor.u32 %v4251, %v4254
          %v4256 = vsel %vm1515, %v4246, %v4255
          %v4258 = vshrl.u32 %v3595, 16
          %v4260 = vrot.slane %v4258, 3
          %v4261 = vshll.u32 %v3595, 16
          %v4263 = vrot.slane %v4261, 4
          %v4264 = vor.u32 %v4260, %v4263
          %v4265 = vsel %vm1515, %v4255, %v4264
          %v4267 = vshrl.u32 %v3596, 16
          %v4269 = vrot.slane %v4267, 3
          %v4270 = vshll.u32 %v3596, 16
          %v4272 = vrot.slane %v4270, 4
          %v4273 = vor.u32 %v4269, %v4272
          %v4274 = vsel %vm1515, %v4264, %v4273
          %v4276 = vshrl.u32 %v3597, 16
          %v4278 = vrot.slane %v4276, 3
          %v4279 = vshll.u32 %v3597, 16
          %v4281 = vrot.slane %v4279, 4
          %v4282 = vor.u32 %v4278, %v4281
          %v4283 = vsel %vm1515, %v4273, %v4282
          %v4285 = vshrl.u32 %v3598, 16
          %v4287 = vrot.slane %v4285, 3
          %v4288 = vshll.u32 %v3598, 16
          %v4290 = vrot.slane %v4288, 4
          %v4291 = vor.u32 %v4287, %v4290
          %v4292 = vsel %vm1515, %v4282, %v4291
          %v4294 = vshrl.u32 %v3599, 16
          %v4296 = vrot.slane %v4294, 3
          %v4297 = vshll.u32 %v3599, 16
          %v4299 = vrot.slane %v4297, 4
          %v4300 = vor.u32 %v4296, %v4299
          %v4301 = vsel %vm1515, %v4291, %v4300
          %v4303 = vshrl.u32 %v3600, 16
          %v4305 = vrot.slane %v4303, 3
          %v4306 = vshll.u32 %v3600, 16
          %v4308 = vrot.slane %v4306, 4
          %v4309 = vor.u32 %v4305, %v4308
          %v4310 = vsel %vm1515, %v4300, %v4309
          %v4312 = vshrl.u32 %v3601, 16
          %v4314 = vrot.slane %v4312, 3
          %v4315 = vshll.u32 %v3601, 16
          %v4317 = vrot.slane %v4315, 4
          %v4318 = vor.u32 %v4314, %v4317
          %v4319 = vsel %vm1515, %v4309, %v4318
          %v4321 = vshrl.u32 %v3602, 16
          %v4323 = vrot.slane %v4321, 3
          %v4324 = vshll.u32 %v3602, 16
          %v4326 = vrot.slane %v4324, 4
          %v4327 = vor.u32 %v4323, %v4326
          %v4328 = vsel %vm1515, %v4318, %v4327
          %v4330 = vshrl.u32 %v3603, 16
          %v4332 = vrot.slane %v4330, 3
          %v4333 = vshll.u32 %v3603, 16
          %v4335 = vrot.slane %v4333, 4
          %v4336 = vor.u32 %v4332, %v4335
          %v4337 = vsel %vm1515, %v4327, %v4336
          %v4350 = vunpack.c.l.b16 %v3608
          %v4351 = vunpack.c.l.b16 %v3609
          %v4352 = vunpack.c.l.b16 %v3610
          %v4353 = vunpack.c.l.b16 %v3611
          %v4354 = vunpack.c.l.b16 %v3612
          %v4355 = vunpack.c.l.b16 %v3613
          %v4356 = vunpack.c.l.b16 %v3614
          %v4357 = vunpack.c.l.b16 %v3615
          %v4358 = vunpack.c.l.b16 %v3616
          %v4359 = vunpack.c.l.b16 %v3617
          %v4360 = vunpack.c.l.b16 %v3618
          %v4361 = vunpack.c.l.b16 %v3619
          %v4362 = vpack.c.b16 %v4351, %v4350
          %v4363 = vpack.c.b16 %v4353, %v4352
          %v4364 = vpack.c.b16 %v4355, %v4354
          %v4365 = vpack.c.b16 %v4357, %v4356
          %v4366 = vpack.c.b16 %v4359, %v4358
          %v4367 = vpack.c.b16 %v4361, %v4360
          %v4375 = vsel %vm3756, %v4103, 0
          %v4378 = vsel %vm3756, %v4112, 0
          %v4381 = vsel %vm3756, %v4121, 0
          %v4384 = vsel %vm3756, %v4130, 0
          %v4387 = vsel %vm3756, %v4139, 0
          %v4390 = vsel %vm3756, %v4148, 0
          %v4393 = vsel %vm3756, %v4157, 0
          %v4396 = vsel %vm3756, %v4166, 0
          %v4399 = vsel %vm3756, %v4175, 0
          %v4402 = vsel %vm3756, %v4184, 0
          %v4405 = vsel %vm3756, %v4193, 0
          %v4408 = vsel %vm3756, %v4202, 0
          %v4411 = vsel %vm3756, %v4211, 0
          %v4414 = vsel %vm3756, %v4220, 0
          %v4417 = vsel %vm3756, %v4229, 0
          %v4420 = vsel %vm3756, %v4238, 0
          %v4423 = vsel %vm3756, %v4247, 0
          %v4426 = vsel %vm3756, %v4256, 0
          %v4429 = vsel %vm3756, %v4265, 0
          %v4432 = vsel %vm3756, %v4274, 0
          %v4435 = vsel %vm3756, %v4283, 0
          %v4438 = vsel %vm3756, %v4292, 0
          %v4441 = vsel %vm3756, %v4301, 0
          %v4444 = vsel %vm3756, %v4310, 0
          %v4447 = vsel %vm3756, %v4319, 0
          %v4450 = vsel %vm3756, %v4328, 0
          %v4453 = vsel %vm3756, %v4337, 0
          %4455 = vmatprep.subr.bf16.mxu0 0
          %4456 = vmatpush1.bf16.msra.mxu0 %v4362
          %4457 = vmatprep.subr.bf16.mxu0 0
          %4458 = vmatpush1.bf16.msra.mxu0 %v4363
          %4459 = vmatprep.subr.bf16.mxu0 0
          %4460 = vmatpush1.bf16.msra.mxu0 %v4364
          %4461 = vmatprep.subr.bf16.mxu0 0
          %4462 = vmatpush1.bf16.msra.mxu0 %v4365
          %4463 = vmatprep.subr.bf16.mxu0 0
          %4464 = vmatpush1.bf16.msra.mxu0 %v4366
          %4465 = vmatprep.subr.bf16.mxu0 0
          %4466 = vmatpush1.bf16.msra.mxu0 %v4367
          %4467 = vmatprep.subr.bf16.mxu0 0
          %4468 = vmatpush1.bf16.msra.mxu0 0
          %4469 = vmatprep.subr.bf16.mxu0 0
          %4470 = vmatpush1.bf16.msra.mxu0 0
          %4471 = vmatprep.subr.bf16.mxu0 0
          %4472 = vmatpush1.bf16.msra.mxu0 0
          %4473 = vmatprep.subr.bf16.mxu0 0
          %4474 = vmatpush1.bf16.msra.mxu0 0
          %4475 = vmatprep.subr.bf16.mxu0 0
          %4476 = vmatpush1.bf16.msra.mxu0 0
          %4477 = vmatprep.subr.bf16.mxu0 0
          %4478 = vmatpush1.bf16.msra.mxu0 0
          %4479 = vmatprep.subr.bf16.mxu0 0
          %4480 = vmatpush1.bf16.msra.mxu0 0
          %4481 = vmatprep.subr.bf16.mxu0 0
          %4482 = vmatpush1.bf16.msra.mxu0 0
          %4483 = vmatprep.subr.bf16.mxu0 0
          %4484 = vmatpush1.bf16.msra.mxu0 0
          %4485 = vmatprep.subr.bf16.mxu0 0
          %4486 = vmatpush1.bf16.msra.mxu0 0
          %4487 = vmatprep.mubr.bf16.mxu0 0
          %4488 = vmatmul.mubr.bf16.gmra.mrb[0].mxu0 %v4375
          %v4489 = vpop.f32.mrb[0].mxu0
          %v4490 = vadd.f32 %v3873, %v4489
          %v4491 = vpop.f32.mrb[0].mxu0
          %v4492 = vpop.f32.mrb[0].mxu0
          %v4493 = vadd.f32 %v3876, %v4492
          %v4494 = vpop.f32.mrb[0].mxu0
          %4495 = vmatprep.mubr.bf16.mxu0 0
          %4496 = vmatmul.mubr.bf16.gmra.mrb[0].mxu0 %v4378
          %v4497 = vpop.f32.mrb[0].mxu0
          %v4498 = vadd.f32 %v3881, %v4497
          %v4499 = vpop.f32.mrb[0].mxu0
          %v4500 = vpop.f32.mrb[0].mxu0
          %v4501 = vadd.f32 %v3884, %v4500
          %v4502 = vpop.f32.mrb[0].mxu0
          %4503 = vmatprep.mubr.bf16.mxu0 0
          %4504 = vmatmul.mubr.bf16.gmra.mrb[0].mxu0 %v4381
          %v4505 = vpop.f32.mrb[0].mxu0
          %v4506 = vadd.f32 %v3889, %v4505
          %v4507 = vpop.f32.mrb[0].mxu0
          %v4508 = vpop.f32.mrb[0].mxu0
          %v4509 = vadd.f32 %v3892, %v4508
          %v4510 = vpop.f32.mrb[0].mxu0
          %4511 = vmatprep.mubr.bf16.mxu0 0
          %4512 = vmatmul.mubr.bf16.gmra.mrb[0].mxu0 %v4384
          %v4513 = vpop.f32.mrb[0].mxu0
          %v4514 = vadd.f32 %v3897, %v4513
          %v4515 = vpop.f32.mrb[0].mxu0
          %v4516 = vpop.f32.mrb[0].mxu0
          %v4517 = vadd.f32 %v3900, %v4516
          %v4518 = vpop.f32.mrb[0].mxu0
          %4519 = vmatprep.mubr.bf16.mxu0 0
          %4520 = vmatmul.mubr.bf16.gmra.mrb[0].mxu0 %v4387
          %v4521 = vpop.f32.mrb[0].mxu0
          %v4522 = vadd.f32 %v3905, %v4521
          %v4523 = vpop.f32.mrb[0].mxu0
          %v4524 = vpop.f32.mrb[0].mxu0
          %v4525 = vadd.f32 %v3908, %v4524
          %v4526 = vpop.f32.mrb[0].mxu0
          %4527 = vmatprep.mubr.bf16.mxu0 0
          %4528 = vmatmul.mubr.bf16.gmra.mrb[0].mxu0 %v4390
          %v4529 = vpop.f32.mrb[0].mxu0
          %v4530 = vadd.f32 %v3913, %v4529
          %v4531 = vpop.f32.mrb[0].mxu0
          %v4532 = vpop.f32.mrb[0].mxu0
          %v4533 = vadd.f32 %v3916, %v4532
          %v4534 = vpop.f32.mrb[0].mxu0
          %4535 = vmatprep.mubr.bf16.mxu0 0
          %4536 = vmatmul.mubr.bf16.gmra.mrb[0].mxu0 %v4393
          %v4537 = vpop.f32.mrb[0].mxu0
          %v4538 = vadd.f32 %v3921, %v4537
          %v4539 = vpop.f32.mrb[0].mxu0
          %v4540 = vpop.f32.mrb[0].mxu0
          %v4541 = vadd.f32 %v3924, %v4540
          %v4542 = vpop.f32.mrb[0].mxu0
          %4543 = vmatprep.mubr.bf16.mxu0 0
          %4544 = vmatmul.mubr.bf16.gmra.mrb[0].mxu0 %v4396
          %v4545 = vpop.f32.mrb[0].mxu0
          %v4546 = vadd.f32 %v3929, %v4545
          %v4547 = vpop.f32.mrb[0].mxu0
          %v4548 = vpop.f32.mrb[0].mxu0
          %v4549 = vadd.f32 %v3932, %v4548
          %v4550 = vpop.f32.mrb[0].mxu0
          %4551 = vmatprep.mubr.bf16.mxu0 0
          %4552 = vmatmul.mubr.bf16.gmra.mrb[0].mxu0 %v4399
          %v4553 = vpop.f32.mrb[0].mxu0
          %v4554 = vadd.f32 %v3937, %v4553
          %v4555 = vpop.f32.mrb[0].mxu0
          %v4556 = vpop.f32.mrb[0].mxu0
          %v4557 = vadd.f32 %v3940, %v4556
          %v4558 = vpop.f32.mrb[0].mxu0
          %4559 = vmatprep.mubr.bf16.mxu0 0
          %4560 = vmatmul.mubr.bf16.gmra.mrb[0].mxu0 %v4402
          %v4561 = vpop.f32.mrb[0].mxu0
          %v4562 = vadd.f32 %v3945, %v4561
          %v4563 = vpop.f32.mrb[0].mxu0
          %v4564 = vpop.f32.mrb[0].mxu0
          %v4565 = vadd.f32 %v3948, %v4564
          %v4566 = vpop.f32.mrb[0].mxu0
          %4567 = vmatprep.mubr.bf16.mxu0 0
          %4568 = vmatmul.mubr.bf16.gmra.mrb[0].mxu0 %v4405
          %v4569 = vpop.f32.mrb[0].mxu0
          %v4570 = vadd.f32 %v3953, %v4569
          %v4571 = vpop.f32.mrb[0].mxu0
          %v4572 = vpop.f32.mrb[0].mxu0
          %v4573 = vadd.f32 %v3956, %v4572
          %v4574 = vpop.f32.mrb[0].mxu0
          %4575 = vmatprep.mubr.bf16.mxu0 0
          %4576 = vmatmul.mubr.bf16.gmra.mrb[0].mxu0 %v4408
          %v4577 = vpop.f32.mrb[0].mxu0
          %v4578 = vadd.f32 %v3961, %v4577
          %v4579 = vpop.f32.mrb[0].mxu0
          %v4580 = vpop.f32.mrb[0].mxu0
          %v4581 = vadd.f32 %v3964, %v4580
          %v4582 = vpop.f32.mrb[0].mxu0
          %4583 = vmatprep.mubr.bf16.mxu0 0
          %4584 = vmatmul.mubr.bf16.gmra.mrb[0].mxu0 %v4411
          %v4585 = vpop.f32.mrb[0].mxu0
          %v4586 = vadd.f32 %v3969, %v4585
          %v4587 = vpop.f32.mrb[0].mxu0
          %v4588 = vpop.f32.mrb[0].mxu0
          %v4589 = vadd.f32 %v3972, %v4588
          %v4590 = vpop.f32.mrb[0].mxu0
          %4591 = vmatprep.mubr.bf16.mxu0 0
          %4592 = vmatmul.mubr.bf16.gmra.mrb[0].mxu0 %v4414
          %v4593 = vpop.f32.mrb[0].mxu0
          %v4594 = vadd.f32 %v3977, %v4593
          %v4595 = vpop.f32.mrb[0].mxu0
          %v4596 = vpop.f32.mrb[0].mxu0
          %v4597 = vadd.f32 %v3980, %v4596
          %v4598 = vpop.f32.mrb[0].mxu0
          %4599 = vmatprep.mubr.bf16.mxu0 0
          %4600 = vmatmul.mubr.bf16.gmra.mrb[0].mxu0 %v4417
          %v4601 = vpop.f32.mrb[0].mxu0
          %v4602 = vadd.f32 %v3985, %v4601
          %v4603 = vpop.f32.mrb[0].mxu0
          %v4604 = vpop.f32.mrb[0].mxu0
          %v4605 = vadd.f32 %v3988, %v4604
          %v4606 = vpop.f32.mrb[0].mxu0
          %4607 = vmatprep.mubr.bf16.mxu0 0
          %4608 = vmatmul.mubr.bf16.gmra.mrb[0].mxu0 %v4420
          %v4609 = vpop.f32.mrb[0].mxu0
          %v4610 = vadd.f32 %v3993, %v4609
          %v4611 = vpop.f32.mrb[0].mxu0
          %v4612 = vpop.f32.mrb[0].mxu0
          %v4613 = vadd.f32 %v3996, %v4612
          %v4614 = vpop.f32.mrb[0].mxu0
          %4615 = vmatprep.mubr.bf16.mxu0 0
          %4616 = vmatmul.mubr.bf16.gmra.mrb[0].mxu0 %v4423
          %v4617 = vpop.f32.mrb[0].mxu0
          %v4618 = vadd.f32 %v4001, %v4617
          %v4619 = vpop.f32.mrb[0].mxu0
          %v4620 = vpop.f32.mrb[0].mxu0
          %v4621 = vadd.f32 %v4004, %v4620
          %v4622 = vpop.f32.mrb[0].mxu0
          %4623 = vmatprep.mubr.bf16.mxu0 0
          %4624 = vmatmul.mubr.bf16.gmra.mrb[0].mxu0 %v4426
          %v4625 = vpop.f32.mrb[0].mxu0
          %v4626 = vadd.f32 %v4009, %v4625
          %v4627 = vpop.f32.mrb[0].mxu0
          %v4628 = vpop.f32.mrb[0].mxu0
          %v4629 = vadd.f32 %v4012, %v4628
          %v4630 = vpop.f32.mrb[0].mxu0
          %4631 = vmatprep.mubr.bf16.mxu0 0
          %4632 = vmatmul.mubr.bf16.gmra.mrb[0].mxu0 %v4429
          %v4633 = vpop.f32.mrb[0].mxu0
          %v4634 = vadd.f32 %v4017, %v4633
          %v4635 = vpop.f32.mrb[0].mxu0
          %v4636 = vpop.f32.mrb[0].mxu0
          %v4637 = vadd.f32 %v4020, %v4636
          %v4638 = vpop.f32.mrb[0].mxu0
          %4639 = vmatprep.mubr.bf16.mxu0 0
          %4640 = vmatmul.mubr.bf16.gmra.mrb[0].mxu0 %v4432
          %v4641 = vpop.f32.mrb[0].mxu0
          %v4642 = vadd.f32 %v4025, %v4641
          %v4643 = vpop.f32.mrb[0].mxu0
          %v4644 = vpop.f32.mrb[0].mxu0
          %v4645 = vadd.f32 %v4028, %v4644
          %v4646 = vpop.f32.mrb[0].mxu0
          %4647 = vmatprep.mubr.bf16.mxu0 0
          %4648 = vmatmul.mubr.bf16.gmra.mrb[0].mxu0 %v4435
          %v4649 = vpop.f32.mrb[0].mxu0
          %v4650 = vadd.f32 %v4033, %v4649
          %v4651 = vpop.f32.mrb[0].mxu0
          %v4652 = vpop.f32.mrb[0].mxu0
          %v4653 = vadd.f32 %v4036, %v4652
          %v4654 = vpop.f32.mrb[0].mxu0
          %4655 = vmatprep.mubr.bf16.mxu0 0
          %4656 = vmatmul.mubr.bf16.gmra.mrb[0].mxu0 %v4438
          %v4657 = vpop.f32.mrb[0].mxu0
          %v4658 = vadd.f32 %v4041, %v4657
          %v4659 = vpop.f32.mrb[0].mxu0
          %v4660 = vpop.f32.mrb[0].mxu0
          %v4661 = vadd.f32 %v4044, %v4660
          %v4662 = vpop.f32.mrb[0].mxu0
          %4663 = vmatprep.mubr.bf16.mxu0 0
          %4664 = vmatmul.mubr.bf16.gmra.mrb[0].mxu0 %v4441
          %v4665 = vpop.f32.mrb[0].mxu0
          %v4666 = vadd.f32 %v4049, %v4665
          %v4667 = vpop.f32.mrb[0].mxu0
          %v4668 = vpop.f32.mrb[0].mxu0
          %v4669 = vadd.f32 %v4052, %v4668
          %v4670 = vpop.f32.mrb[0].mxu0
          %4671 = vmatprep.mubr.bf16.mxu0 0
          %4672 = vmatmul.mubr.bf16.gmra.mrb[0].mxu0 %v4444
          %v4673 = vpop.f32.mrb[0].mxu0
          %v4674 = vadd.f32 %v4057, %v4673
          %v4675 = vpop.f32.mrb[0].mxu0
          %v4676 = vpop.f32.mrb[0].mxu0
          %v4677 = vadd.f32 %v4060, %v4676
          %v4678 = vpop.f32.mrb[0].mxu0
          %4679 = vmatprep.mubr.bf16.mxu0 0
          %4680 = vmatmul.mubr.bf16.gmra.mrb[0].mxu0 %v4447
          %v4681 = vpop.f32.mrb[0].mxu0
          %v4682 = vadd.f32 %v4065, %v4681
          %v4683 = vpop.f32.mrb[0].mxu0
          %v4684 = vpop.f32.mrb[0].mxu0
          %v4685 = vadd.f32 %v4068, %v4684
          %v4686 = vpop.f32.mrb[0].mxu0
          %4687 = vmatprep.mubr.bf16.mxu0 0
          %4688 = vmatmul.mubr.bf16.gmra.mrb[0].mxu0 %v4450
          %v4689 = vpop.f32.mrb[0].mxu0
          %v4690 = vadd.f32 %v4073, %v4689
          %v4691 = vpop.f32.mrb[0].mxu0
          %v4692 = vpop.f32.mrb[0].mxu0
          %v4693 = vadd.f32 %v4076, %v4692
          %v4694 = vpop.f32.mrb[0].mxu0
          %4695 = vmatprep.mubr.bf16.mxu0 0
          %4696 = vmatmul.mubr.bf16.gmra.mrb[0].mxu0 %v4453
          %v4697 = vpop.f32.mrb[0].mxu0
          %v4698 = vadd.f32 %v4081, %v4697
          %v4699 = vpop.f32.mrb[0].mxu0
          %v4700 = vpop.f32.mrb[0].mxu0
          %v4701 = vadd.f32 %v4084, %v4700
          %v4702 = vpop.f32.mrb[0].mxu0
          %4703 = vdwg.mxu0
          %v4704 = vld [vmem:[#allocation3 + $0xd8] sm:$0x1f]
          %s4705 = sadd.s32 %s3604, 2
          %s4706 = smul.u32 %s4705, 12
          %s4707 = smul.addr %s4706, 4
          %s4708 = scalar_lea.vmem %s3, %s4707
          %v4709 = vld [vmem:[%s4708] sm:$0xf]
          %v4710 = vld [vmem:[%s4708 + $0x4] sm:$0xf]
          %v4711 = vld [vmem:[%s4708 + $0x8] sm:$0xf]
          %v4712 = vld [vmem:[%s4708 + $0xc] sm:$0xf]
          %v4713 = vld [vmem:[%s4708 + $0x10] sm:$0xf]
          %v4714 = vld [vmem:[%s4708 + $0x14] sm:$0xf]
          %v4715 = vld [vmem:[%s4708 + $0x18] sm:$0xf]
          %v4716 = vld [vmem:[%s4708 + $0x1c] sm:$0xf]
          %v4717 = vld [vmem:[%s4708 + $0x20] sm:$0xf]
          %v4718 = vld [vmem:[%s4708 + $0x24] sm:$0xf]
          %v4719 = vld [vmem:[%s4708 + $0x28] sm:$0xf]
          %v4720 = vld [vmem:[%s4708 + $0x2c] sm:$0xf]
          %v4722 = vshrl.u32 %v3620, 16
          %v4724 = vrot.slane %v4722, 4
          %v4725 = vshll.u32 %v3620, 16
          %v4727 = vrot.slane %v4725, 5
          %v4728 = vor.u32 %v4724, %v4727
          %v4729 = vrot.slane %v4096, 4
          %v4730 = vrot.slane %v4099, 5
          %v4731 = vor.u32 %v4729, %v4730
          %v4732 = vsel %vm2114, %v4728, %v4731
          %v4733 = vrot.slane %v4105, 4
          %v4734 = vrot.slane %v4108, 5
          %v4735 = vor.u32 %v4733, %v4734
          %v4736 = vsel %vm2114, %v4731, %v4735
          %v4737 = vrot.slane %v4114, 4
          %v4738 = vrot.slane %v4117, 5
          %v4739 = vor.u32 %v4737, %v4738
          %v4740 = vsel %vm2114, %v4735, %v4739
          %v4741 = vrot.slane %v4123, 4
          %v4742 = vrot.slane %v4126, 5
          %v4743 = vor.u32 %v4741, %v4742
          %v4744 = vsel %vm2114, %v4739, %v4743
          %v4745 = vrot.slane %v4132, 4
          %v4746 = vrot.slane %v4135, 5
          %v4747 = vor.u32 %v4745, %v4746
          %v4748 = vsel %vm2114, %v4743, %v4747
          %v4749 = vrot.slane %v4141, 4
          %v4750 = vrot.slane %v4144, 5
          %v4751 = vor.u32 %v4749, %v4750
          %v4752 = vsel %vm2114, %v4747, %v4751
          %v4753 = vrot.slane %v4150, 4
          %v4754 = vrot.slane %v4153, 5
          %v4755 = vor.u32 %v4753, %v4754
          %v4756 = vsel %vm2114, %v4751, %v4755
          %v4757 = vrot.slane %v4159, 4
          %v4758 = vrot.slane %v4162, 5
          %v4759 = vor.u32 %v4757, %v4758
          %v4760 = vsel %vm2114, %v4755, %v4759
          %v4761 = vrot.slane %v4168, 4
          %v4762 = vrot.slane %v4171, 5
          %v4763 = vor.u32 %v4761, %v4762
          %v4764 = vsel %vm2114, %v4759, %v4763
          %v4765 = vrot.slane %v4177, 4
          %v4766 = vrot.slane %v4180, 5
          %v4767 = vor.u32 %v4765, %v4766
          %v4768 = vsel %vm2114, %v4763, %v4767
          %v4769 = vrot.slane %v4186, 4
          %v4770 = vrot.slane %v4189, 5
          %v4771 = vor.u32 %v4769, %v4770
          %v4772 = vsel %vm2114, %v4767, %v4771
          %v4773 = vrot.slane %v4195, 4
          %v4774 = vrot.slane %v4198, 5
          %v4775 = vor.u32 %v4773, %v4774
          %v4776 = vsel %vm2114, %v4771, %v4775
          %v4777 = vrot.slane %v4204, 4
          %v4778 = vrot.slane %v4207, 5
          %v4779 = vor.u32 %v4777, %v4778
          %v4780 = vsel %vm2114, %v4775, %v4779
          %v4781 = vrot.slane %v4213, 4
          %v4782 = vrot.slane %v4216, 5
          %v4783 = vor.u32 %v4781, %v4782
          %v4784 = vsel %vm2114, %v4779, %v4783
          %v4785 = vrot.slane %v4222, 4
          %v4786 = vrot.slane %v4225, 5
          %v4787 = vor.u32 %v4785, %v4786
          %v4788 = vsel %vm2114, %v4783, %v4787
          %v4789 = vrot.slane %v4231, 4
          %v4790 = vrot.slane %v4234, 5
          %v4791 = vor.u32 %v4789, %v4790
          %v4792 = vsel %vm2114, %v4787, %v4791
          %v4793 = vrot.slane %v4240, 4
          %v4794 = vrot.slane %v4243, 5
          %v4795 = vor.u32 %v4793, %v4794
          %v4796 = vsel %vm2114, %v4791, %v4795
          %v4797 = vrot.slane %v4249, 4
          %v4798 = vrot.slane %v4252, 5
          %v4799 = vor.u32 %v4797, %v4798
          %v4800 = vsel %vm2114, %v4795, %v4799
          %v4801 = vrot.slane %v4258, 4
          %v4802 = vrot.slane %v4261, 5
          %v4803 = vor.u32 %v4801, %v4802
          %v4804 = vsel %vm2114, %v4799, %v4803
          %v4805 = vrot.slane %v4267, 4
          %v4806 = vrot.slane %v4270, 5
          %v4807 = vor.u32 %v4805, %v4806
          %v4808 = vsel %vm2114, %v4803, %v4807
          %v4809 = vrot.slane %v4276, 4
          %v4810 = vrot.slane %v4279, 5
          %v4811 = vor.u32 %v4809, %v4810
          %v4812 = vsel %vm2114, %v4807, %v4811
          %v4813 = vrot.slane %v4285, 4
          %v4814 = vrot.slane %v4288, 5
          %v4815 = vor.u32 %v4813, %v4814
          %v4816 = vsel %vm2114, %v4811, %v4815
          %v4817 = vrot.slane %v4294, 4
          %v4818 = vrot.slane %v4297, 5
          %v4819 = vor.u32 %v4817, %v4818
          %v4820 = vsel %vm2114, %v4815, %v4819
          %v4821 = vrot.slane %v4303, 4
          %v4822 = vrot.slane %v4306, 5
          %v4823 = vor.u32 %v4821, %v4822
          %v4824 = vsel %vm2114, %v4819, %v4823
          %v4825 = vrot.slane %v4312, 4
          %v4826 = vrot.slane %v4315, 5
          %v4827 = vor.u32 %v4825, %v4826
          %v4828 = vsel %vm2114, %v4823, %v4827
          %v4829 = vrot.slane %v4321, 4
          %v4830 = vrot.slane %v4324, 5
          %v4831 = vor.u32 %v4829, %v4830
          %v4832 = vsel %vm2114, %v4827, %v4831
          %v4834 = vshrl.u32 %v4704, 16
          %v4836 = vrot.slane %v4834, 4
          %v4837 = vshll.u32 %v4704, 16
          %v4839 = vrot.slane %v4837, 5
          %v4840 = vor.u32 %v4836, %v4839
          %v4841 = vsel %vm2114, %v4831, %v4840
          %v4854 = vunpack.c.l.b16 %v4709
          %v4855 = vunpack.c.l.b16 %v4710
          %v4856 = vunpack.c.l.b16 %v4711
          %v4857 = vunpack.c.l.b16 %v4712
          %v4858 = vunpack.c.l.b16 %v4713
          %v4859 = vunpack.c.l.b16 %v4714
          %v4860 = vunpack.c.l.b16 %v4715
          %v4861 = vunpack.c.l.b16 %v4716
          %v4862 = vunpack.c.l.b16 %v4717
          %v4863 = vunpack.c.l.b16 %v4718
          %v4864 = vunpack.c.l.b16 %v4719
          %v4865 = vunpack.c.l.b16 %v4720
          %v4866 = vpack.c.b16 %v4855, %v4854
          %v4867 = vpack.c.b16 %v4857, %v4856
          %v4868 = vpack.c.b16 %v4859, %v4858
          %v4869 = vpack.c.b16 %v4861, %v4860
          %v4870 = vpack.c.b16 %v4863, %v4862
          %v4871 = vpack.c.b16 %v4865, %v4864
          %v4879 = vsel %vm3756, %v4732, 0
          %v4882 = vsel %vm3756, %v4736, 0
          %v4885 = vsel %vm3756, %v4740, 0
          %v4888 = vsel %vm3756, %v4744, 0
          %v4891 = vsel %vm3756, %v4748, 0
          %v4894 = vsel %vm3756, %v4752, 0
          %v4897 = vsel %vm3756, %v4756, 0
          %v4900 = vsel %vm3756, %v4760, 0
          %v4903 = vsel %vm3756, %v4764, 0
          %v4906 = vsel %vm3756, %v4768, 0
          %v4909 = vsel %vm3756, %v4772, 0
          %v4912 = vsel %vm3756, %v4776, 0
          %v4915 = vsel %vm3756, %v4780, 0
          %v4918 = vsel %vm3756, %v4784, 0
          %v4921 = vsel %vm3756, %v4788, 0
          %v4924 = vsel %vm3756, %v4792, 0
          %v4927 = vsel %vm3756, %v4796, 0
          %v4930 = vsel %vm3756, %v4800, 0
          %v4933 = vsel %vm3756, %v4804, 0
          %v4936 = vsel %vm3756, %v4808, 0
          %v4939 = vsel %vm3756, %v4812, 0
          %v4942 = vsel %vm3756, %v4816, 0
          %v4945 = vsel %vm3756, %v4820, 0
          %v4948 = vsel %vm3756, %v4824, 0
          %v4951 = vsel %vm3756, %v4828, 0
          %v4954 = vsel %vm3756, %v4832, 0
          %v4957 = vsel %vm3756, %v4841, 0
          %4959 = vmatprep.subr.bf16.mxu0 0
          %4960 = vmatpush1.bf16.msra.mxu0 %v4866
          %4961 = vmatprep.subr.bf16.mxu0 0
          %4962 = vmatpush1.bf16.msra.mxu0 %v4867
          %4963 = vmatprep.subr.bf16.mxu0 0
          %4964 = vmatpush1.bf16.msra.mxu0 %v4868
          %4965 = vmatprep.subr.bf16.mxu0 0
          %4966 = vmatpush1.bf16.msra.mxu0 %v4869
          %4967 = vmatprep.subr.bf16.mxu0 0
          %4968 = vmatpush1.bf16.msra.mxu0 %v4870
          %4969 = vmatprep.subr.bf16.mxu0 0
          %4970 = vmatpush1.bf16.msra.mxu0 %v4871
          %4971 = vmatprep.subr.bf16.mxu0 0
          %4972 = vmatpush1.bf16.msra.mxu0 0
          %4973 = vmatprep.subr.bf16.mxu0 0
          %4974 = vmatpush1.bf16.msra.mxu0 0
          %4975 = vmatprep.subr.bf16.mxu0 0
          %4976 = vmatpush1.bf16.msra.mxu0 0
          %4977 = vmatprep.subr.bf16.mxu0 0
          %4978 = vmatpush1.bf16.msra.mxu0 0
          %4979 = vmatprep.subr.bf16.mxu0 0
          %4980 = vmatpush1.bf16.msra.mxu0 0
          %4981 = vmatprep.subr.bf16.mxu0 0
          %4982 = vmatpush1.bf16.msra.mxu0 0
          %4983 = vmatprep.subr.bf16.mxu0 0
          %4984 = vmatpush1.bf16.msra.mxu0 0
          %4985 = vmatprep.subr.bf16.mxu0 0
          %4986 = vmatpush1.bf16.msra.mxu0 0
          %4987 = vmatprep.subr.bf16.mxu0 0
          %4988 = vmatpush1.bf16.msra.mxu0 0
          %4989 = vmatprep.subr.bf16.mxu0 0
          %4990 = vmatpush1.bf16.msra.mxu0 0
          %4991 = vmatprep.mubr.bf16.mxu0 0
          %4992 = vmatmul.mubr.bf16.gmra.mrb[0].mxu0 %v4879
          %v4993 = vpop.f32.mrb[0].mxu0
          %v4994 = vadd.f32 0.0, %v4993
          %v4995 = vpop.f32.mrb[0].mxu0
          %v4996 = vpop.f32.mrb[0].mxu0
          %v4997 = vadd.f32 0.0, %v4996
          %v4998 = vpop.f32.mrb[0].mxu0
          %4999 = vmatprep.mubr.bf16.mxu0 0
          %5000 = vmatmul.mubr.bf16.gmra.mrb[0].mxu0 %v4882
          %v5001 = vpop.f32.mrb[0].mxu0
          %v5002 = vadd.f32 0.0, %v5001
          %v5003 = vpop.f32.mrb[0].mxu0
          %v5004 = vpop.f32.mrb[0].mxu0
          %v5005 = vadd.f32 0.0, %v5004
          %v5006 = vpop.f32.mrb[0].mxu0
          %5007 = vmatprep.mubr.bf16.mxu0 0
          %5008 = vmatmul.mubr.bf16.gmra.mrb[0].mxu0 %v4885
          %v5009 = vpop.f32.mrb[0].mxu0
          %v5010 = vadd.f32 0.0, %v5009
          %v5011 = vpop.f32.mrb[0].mxu0
          %v5012 = vpop.f32.mrb[0].mxu0
          %v5013 = vadd.f32 0.0, %v5012
          %v5014 = vpop.f32.mrb[0].mxu0
          %5015 = vmatprep.mubr.bf16.mxu0 0
          %5016 = vmatmul.mubr.bf16.gmra.mrb[0].mxu0 %v4888
          %v5017 = vpop.f32.mrb[0].mxu0
          %v5018 = vadd.f32 0.0, %v5017
          %v5019 = vpop.f32.mrb[0].mxu0
          %v5020 = vpop.f32.mrb[0].mxu0
          %v5021 = vadd.f32 0.0, %v5020
          %v5022 = vpop.f32.mrb[0].mxu0
          %5023 = vmatprep.mubr.bf16.mxu0 0
          %5024 = vmatmul.mubr.bf16.gmra.mrb[0].mxu0 %v4891
          %v5025 = vpop.f32.mrb[0].mxu0
          %v5026 = vadd.f32 0.0, %v5025
          %v5027 = vpop.f32.mrb[0].mxu0
          %v5028 = vpop.f32.mrb[0].mxu0
          %v5029 = vadd.f32 0.0, %v5028
          %v5030 = vpop.f32.mrb[0].mxu0
          %5031 = vmatprep.mubr.bf16.mxu0 0
          %5032 = vmatmul.mubr.bf16.gmra.mrb[0].mxu0 %v4894
          %v5033 = vpop.f32.mrb[0].mxu0
          %v5034 = vadd.f32 0.0, %v5033
          %v5035 = vpop.f32.mrb[0].mxu0
          %v5036 = vpop.f32.mrb[0].mxu0
          %v5037 = vadd.f32 0.0, %v5036
          %v5038 = vpop.f32.mrb[0].mxu0
          %5039 = vmatprep.mubr.bf16.mxu0 0
          %5040 = vmatmul.mubr.bf16.gmra.mrb[0].mxu0 %v4897
          %v5041 = vpop.f32.mrb[0].mxu0
          %v5042 = vadd.f32 0.0, %v5041
          %v5043 = vpop.f32.mrb[0].mxu0
          %v5044 = vpop.f32.mrb[0].mxu0
          %v5045 = vadd.f32 0.0, %v5044
          %v5046 = vpop.f32.mrb[0].mxu0
          %5047 = vmatprep.mubr.bf16.mxu0 0
          %5048 = vmatmul.mubr.bf16.gmra.mrb[0].mxu0 %v4900
          %v5049 = vpop.f32.mrb[0].mxu0
          %v5050 = vadd.f32 0.0, %v5049
          %v5051 = vpop.f32.mrb[0].mxu0
          %v5052 = vpop.f32.mrb[0].mxu0
          %v5053 = vadd.f32 0.0, %v5052
          %v5054 = vpop.f32.mrb[0].mxu0
          %5055 = vmatprep.mubr.bf16.mxu0 0
          %5056 = vmatmul.mubr.bf16.gmra.mrb[0].mxu0 %v4903
          %v5057 = vpop.f32.mrb[0].mxu0
          %v5058 = vadd.f32 0.0, %v5057
          %v5059 = vpop.f32.mrb[0].mxu0
          %v5060 = vpop.f32.mrb[0].mxu0
          %v5061 = vadd.f32 0.0, %v5060
          %v5062 = vpop.f32.mrb[0].mxu0
          %5063 = vmatprep.mubr.bf16.mxu0 0
          %5064 = vmatmul.mubr.bf16.gmra.mrb[0].mxu0 %v4906
          %v5065 = vpop.f32.mrb[0].mxu0
          %v5066 = vadd.f32 0.0, %v5065
          %v5067 = vpop.f32.mrb[0].mxu0
          %v5068 = vpop.f32.mrb[0].mxu0
          %v5069 = vadd.f32 0.0, %v5068
          %v5070 = vpop.f32.mrb[0].mxu0
          %5071 = vmatprep.mubr.bf16.mxu0 0
          %5072 = vmatmul.mubr.bf16.gmra.mrb[0].mxu0 %v4909
          %v5073 = vpop.f32.mrb[0].mxu0
          %v5074 = vadd.f32 0.0, %v5073
          %v5075 = vpop.f32.mrb[0].mxu0
          %v5076 = vpop.f32.mrb[0].mxu0
          %v5077 = vadd.f32 0.0, %v5076
          %v5078 = vpop.f32.mrb[0].mxu0
          %5079 = vmatprep.mubr.bf16.mxu0 0
          %5080 = vmatmul.mubr.bf16.gmra.mrb[0].mxu0 %v4912
          %v5081 = vpop.f32.mrb[0].mxu0
          %v5082 = vadd.f32 0.0, %v5081
          %v5083 = vpop.f32.mrb[0].mxu0
          %v5084 = vpop.f32.mrb[0].mxu0
          %v5085 = vadd.f32 0.0, %v5084
          %v5086 = vpop.f32.mrb[0].mxu0
          %5087 = vmatprep.mubr.bf16.mxu0 0
          %5088 = vmatmul.mubr.bf16.gmra.mrb[0].mxu0 %v4915
          %v5089 = vpop.f32.mrb[0].mxu0
          %v5090 = vadd.f32 0.0, %v5089
          %v5091 = vpop.f32.mrb[0].mxu0
          %v5092 = vpop.f32.mrb[0].mxu0
          %v5093 = vadd.f32 0.0, %v5092
          %v5094 = vpop.f32.mrb[0].mxu0
          %5095 = vmatprep.mubr.bf16.mxu0 0
          %5096 = vmatmul.mubr.bf16.gmra.mrb[0].mxu0 %v4918
          %v5097 = vpop.f32.mrb[0].mxu0
          %v5098 = vadd.f32 0.0, %v5097
          %v5099 = vpop.f32.mrb[0].mxu0
          %v5100 = vpop.f32.mrb[0].mxu0
          %v5101 = vadd.f32 0.0, %v5100
          %v5102 = vpop.f32.mrb[0].mxu0
          %5103 = vmatprep.mubr.bf16.mxu0 0
          %5104 = vmatmul.mubr.bf16.gmra.mrb[0].mxu0 %v4921
          %v5105 = vpop.f32.mrb[0].mxu0
          %v5106 = vadd.f32 0.0, %v5105
          %v5107 = vpop.f32.mrb[0].mxu0
          %v5108 = vpop.f32.mrb[0].mxu0
          %v5109 = vadd.f32 0.0, %v5108
          %v5110 = vpop.f32.mrb[0].mxu0
          %5111 = vmatprep.mubr.bf16.mxu0 0
          %5112 = vmatmul.mubr.bf16.gmra.mrb[0].mxu0 %v4924
          %v5113 = vpop.f32.mrb[0].mxu0
          %v5114 = vadd.f32 0.0, %v5113
          %v5115 = vpop.f32.mrb[0].mxu0
          %v5116 = vpop.f32.mrb[0].mxu0
          %v5117 = vadd.f32 0.0, %v5116
          %v5118 = vpop.f32.mrb[0].mxu0
          %5119 = vmatprep.mubr.bf16.mxu0 0
          %5120 = vmatmul.mubr.bf16.gmra.mrb[0].mxu0 %v4927
          %v5121 = vpop.f32.mrb[0].mxu0
          %v5122 = vadd.f32 0.0, %v5121
          %v5123 = vpop.f32.mrb[0].mxu0
          %v5124 = vpop.f32.mrb[0].mxu0
          %v5125 = vadd.f32 0.0, %v5124
          %v5126 = vpop.f32.mrb[0].mxu0
          %5127 = vmatprep.mubr.bf16.mxu0 0
          %5128 = vmatmul.mubr.bf16.gmra.mrb[0].mxu0 %v4930
          %v5129 = vpop.f32.mrb[0].mxu0
          %v5130 = vadd.f32 0.0, %v5129
          %v5131 = vpop.f32.mrb[0].mxu0
          %v5132 = vpop.f32.mrb[0].mxu0
          %v5133 = vadd.f32 0.0, %v5132
          %v5134 = vpop.f32.mrb[0].mxu0
          %5135 = vmatprep.mubr.bf16.mxu0 0
          %5136 = vmatmul.mubr.bf16.gmra.mrb[0].mxu0 %v4933
          %v5137 = vpop.f32.mrb[0].mxu0
          %v5138 = vadd.f32 0.0, %v5137
          %v5139 = vpop.f32.mrb[0].mxu0
          %v5140 = vpop.f32.mrb[0].mxu0
          %v5141 = vadd.f32 0.0, %v5140
          %v5142 = vpop.f32.mrb[0].mxu0
          %5143 = vmatprep.mubr.bf16.mxu0 0
          %5144 = vmatmul.mubr.bf16.gmra.mrb[0].mxu0 %v4936
          %v5145 = vpop.f32.mrb[0].mxu0
          %v5146 = vadd.f32 0.0, %v5145
          %v5147 = vpop.f32.mrb[0].mxu0
          %v5148 = vpop.f32.mrb[0].mxu0
          %v5149 = vadd.f32 0.0, %v5148
          %v5150 = vpop.f32.mrb[0].mxu0
          %5151 = vmatprep.mubr.bf16.mxu0 0
          %5152 = vmatmul.mubr.bf16.gmra.mrb[0].mxu0 %v4939
          %v5153 = vpop.f32.mrb[0].mxu0
          %v5154 = vadd.f32 0.0, %v5153
          %v5155 = vpop.f32.mrb[0].mxu0
          %v5156 = vpop.f32.mrb[0].mxu0
          %v5157 = vadd.f32 0.0, %v5156
          %v5158 = vpop.f32.mrb[0].mxu0
          %5159 = vmatprep.mubr.bf16.mxu0 0
          %5160 = vmatmul.mubr.bf16.gmra.mrb[0].mxu0 %v4942
          %v5161 = vpop.f32.mrb[0].mxu0
          %v5162 = vadd.f32 0.0, %v5161
          %v5163 = vpop.f32.mrb[0].mxu0
          %v5164 = vpop.f32.mrb[0].mxu0
          %v5165 = vadd.f32 0.0, %v5164
          %v5166 = vpop.f32.mrb[0].mxu0
          %5167 = vmatprep.mubr.bf16.mxu0 0
          %5168 = vmatmul.mubr.bf16.gmra.mrb[0].mxu0 %v4945
          %v5169 = vpop.f32.mrb[0].mxu0
          %v5170 = vadd.f32 0.0, %v5169
          %v5171 = vpop.f32.mrb[0].mxu0
          %v5172 = vpop.f32.mrb[0].mxu0
          %v5173 = vadd.f32 0.0, %v5172
          %v5174 = vpop.f32.mrb[0].mxu0
          %5175 = vmatprep.mubr.bf16.mxu0 0
          %5176 = vmatmul.mubr.bf16.gmra.mrb[0].mxu0 %v4948
          %v5177 = vpop.f32.mrb[0].mxu0
          %v5178 = vadd.f32 0.0, %v5177
          %v5179 = vpop.f32.mrb[0].mxu0
          %v5180 = vpop.f32.mrb[0].mxu0
          %v5181 = vadd.f32 0.0, %v5180
          %v5182 = vpop.f32.mrb[0].mxu0
          %5183 = vmatprep.mubr.bf16.mxu0 0
          %5184 = vmatmul.mubr.bf16.gmra.mrb[0].mxu0 %v4951
          %v5185 = vpop.f32.mrb[0].mxu0
          %v5186 = vadd.f32 0.0, %v5185
          %v5187 = vpop.f32.mrb[0].mxu0
          %v5188 = vpop.f32.mrb[0].mxu0
          %v5189 = vadd.f32 0.0, %v5188
          %v5190 = vpop.f32.mrb[0].mxu0
          %5191 = vmatprep.mubr.bf16.mxu0 0
          %5192 = vmatmul.mubr.bf16.gmra.mrb[0].mxu0 %v4954
          %v5193 = vpop.f32.mrb[0].mxu0
          %v5194 = vadd.f32 0.0, %v5193
          %v5195 = vpop.f32.mrb[0].mxu0
          %v5196 = vpop.f32.mrb[0].mxu0
          %v5197 = vadd.f32 0.0, %v5196
          %v5198 = vpop.f32.mrb[0].mxu0
          %5199 = vmatprep.mubr.bf16.mxu0 0
          %5200 = vmatmul.mubr.bf16.gmra.mrb[0].mxu0 %v4957
          %v5201 = vpop.f32.mrb[0].mxu0
          %v5202 = vadd.f32 0.0, %v5201
          %v5203 = vpop.f32.mrb[0].mxu0
          %v5204 = vpop.f32.mrb[0].mxu0
          %v5205 = vadd.f32 0.0, %v5204
          %v5206 = vpop.f32.mrb[0].mxu0
          %5207 = vdwg.mxu0
          %v5208 = vadd.f32 %v4490, %v4994
          %v5209 = vadd.f32 %v4493, %v4997
          %v5210 = vadd.f32 %v4498, %v5002
          %v5211 = vadd.f32 %v4501, %v5005
          %v5212 = vadd.f32 %v4506, %v5010
          %v5213 = vadd.f32 %v4509, %v5013
          %v5214 = vadd.f32 %v4514, %v5018
          %v5215 = vadd.f32 %v4517, %v5021
          %v5216 = vadd.f32 %v4522, %v5026
          %v5217 = vadd.f32 %v4525, %v5029
          %v5218 = vadd.f32 %v4530, %v5034
          %v5219 = vadd.f32 %v4533, %v5037
          %v5220 = vadd.f32 %v4538, %v5042
          %v5221 = vadd.f32 %v4541, %v5045
          %v5222 = vadd.f32 %v4546, %v5050
          %v5223 = vadd.f32 %v4549, %v5053
          %v5224 = vadd.f32 %v4554, %v5058
          %v5225 = vadd.f32 %v4557, %v5061
          %v5226 = vadd.f32 %v4562, %v5066
          %v5227 = vadd.f32 %v4565, %v5069
          %v5228 = vadd.f32 %v4570, %v5074
          %v5229 = vadd.f32 %v4573, %v5077
          %v5230 = vadd.f32 %v4578, %v5082
          %v5231 = vadd.f32 %v4581, %v5085
          %v5232 = vadd.f32 %v4586, %v5090
          %v5233 = vadd.f32 %v4589, %v5093
          %v5234 = vadd.f32 %v4594, %v5098
          %v5235 = vadd.f32 %v4597, %v5101
          %v5236 = vadd.f32 %v4602, %v5106
          %v5237 = vadd.f32 %v4605, %v5109
          %v5238 = vadd.f32 %v4610, %v5114
          %v5239 = vadd.f32 %v4613, %v5117
          %v5240 = vadd.f32 %v4618, %v5122
          %v5241 = vadd.f32 %v4621, %v5125
          %v5242 = vadd.f32 %v4626, %v5130
          %v5243 = vadd.f32 %v4629, %v5133
          %v5244 = vadd.f32 %v4634, %v5138
          %v5245 = vadd.f32 %v4637, %v5141
          %v5246 = vadd.f32 %v4642, %v5146
          %v5247 = vadd.f32 %v4645, %v5149
          %v5248 = vadd.f32 %v4650, %v5154
          %v5249 = vadd.f32 %v4653, %v5157
          %v5250 = vadd.f32 %v4658, %v5162
          %v5251 = vadd.f32 %v4661, %v5165
          %v5252 = vadd.f32 %v4666, %v5170
          %v5253 = vadd.f32 %v4669, %v5173
          %v5254 = vadd.f32 %v4674, %v5178
          %v5255 = vadd.f32 %v4677, %v5181
          %v5256 = vadd.f32 %v4682, %v5186
          %v5257 = vadd.f32 %v4685, %v5189
          %v5258 = vadd.f32 %v4690, %v5194
          %v5259 = vadd.f32 %v4693, %v5197
          %v5260 = vadd.f32 %v4698, %v5202
          %v5261 = vadd.f32 %v4701, %v5205
          %v5262 = vstv %s3019
          %v5263 = vadd.f32 %v5208, %v5262
          %v5264 = vadd.f32 %v5209, %v5262
          %v5265 = vadd.f32 %v5210, %v5262
          %v5266 = vadd.f32 %v5211, %v5262
          %v5267 = vadd.f32 %v5212, %v5262
          %v5268 = vadd.f32 %v5213, %v5262
          %v5269 = vadd.f32 %v5214, %v5262
          %v5270 = vadd.f32 %v5215, %v5262
          %v5271 = vadd.f32 %v5216, %v5262
          %v5272 = vadd.f32 %v5217, %v5262
          %v5273 = vadd.f32 %v5218, %v5262
          %v5274 = vadd.f32 %v5219, %v5262
          %v5275 = vadd.f32 %v5220, %v5262
          %v5276 = vadd.f32 %v5221, %v5262
          %v5277 = vadd.f32 %v5222, %v5262
          %v5278 = vadd.f32 %v5223, %v5262
          %v5279 = vadd.f32 %v5224, %v5262
          %v5280 = vadd.f32 %v5225, %v5262
          %v5281 = vadd.f32 %v5226, %v5262
          %v5282 = vadd.f32 %v5227, %v5262
          %v5283 = vadd.f32 %v5228, %v5262
          %v5284 = vadd.f32 %v5229, %v5262
          %v5285 = vadd.f32 %v5230, %v5262
          %v5286 = vadd.f32 %v5231, %v5262
          %v5287 = vadd.f32 %v5232, %v5262
          %v5288 = vadd.f32 %v5233, %v5262
          %v5289 = vadd.f32 %v5234, %v5262
          %v5290 = vadd.f32 %v5235, %v5262
          %v5291 = vadd.f32 %v5236, %v5262
          %v5292 = vadd.f32 %v5237, %v5262
          %v5293 = vadd.f32 %v5238, %v5262
          %v5294 = vadd.f32 %v5239, %v5262
          %v5295 = vadd.f32 %v5240, %v5262
          %v5296 = vadd.f32 %v5241, %v5262
          %v5297 = vadd.f32 %v5242, %v5262
          %v5298 = vadd.f32 %v5243, %v5262
          %v5299 = vadd.f32 %v5244, %v5262
          %v5300 = vadd.f32 %v5245, %v5262
          %v5301 = vadd.f32 %v5246, %v5262
          %v5302 = vadd.f32 %v5247, %v5262
          %v5303 = vadd.f32 %v5248, %v5262
          %v5304 = vadd.f32 %v5249, %v5262
          %v5305 = vadd.f32 %v5250, %v5262
          %v5306 = vadd.f32 %v5251, %v5262
          %v5307 = vadd.f32 %v5252, %v5262
          %v5308 = vadd.f32 %v5253, %v5262
          %v5309 = vadd.f32 %v5254, %v5262
          %v5310 = vadd.f32 %v5255, %v5262
          %v5311 = vadd.f32 %v5256, %v5262
          %v5312 = vadd.f32 %v5257, %v5262
          %v5313 = vadd.f32 %v5258, %v5262
          %v5314 = vadd.f32 %v5259, %v5262
          %v5315 = vadd.f32 %v5260, %v5262
          %v5316 = vadd.f32 %v5261, %v5262
          %v5317 = vmax.f32 %v5263, 0.0
          %v5318 = vmax.f32 %v5264, 0.0
          %v5319 = vmax.f32 %v5265, 0.0
          %v5320 = vmax.f32 %v5266, 0.0
          %v5321 = vmax.f32 %v5267, 0.0
          %v5322 = vmax.f32 %v5268, 0.0
          %v5323 = vmax.f32 %v5269, 0.0
          %v5324 = vmax.f32 %v5270, 0.0
          %v5325 = vmax.f32 %v5271, 0.0
          %v5326 = vmax.f32 %v5272, 0.0
          %v5327 = vmax.f32 %v5273, 0.0
          %v5328 = vmax.f32 %v5274, 0.0
          %v5329 = vmax.f32 %v5275, 0.0
          %v5330 = vmax.f32 %v5276, 0.0
          %v5331 = vmax.f32 %v5277, 0.0
          %v5332 = vmax.f32 %v5278, 0.0
          %v5333 = vmax.f32 %v5279, 0.0
          %v5334 = vmax.f32 %v5280, 0.0
          %v5335 = vmax.f32 %v5281, 0.0
          %v5336 = vmax.f32 %v5282, 0.0
          %v5337 = vmax.f32 %v5283, 0.0
          %v5338 = vmax.f32 %v5284, 0.0
          %v5339 = vmax.f32 %v5285, 0.0
          %v5340 = vmax.f32 %v5286, 0.0
          %v5341 = vmax.f32 %v5287, 0.0
          %v5342 = vmax.f32 %v5288, 0.0
          %v5343 = vmax.f32 %v5289, 0.0
          %v5344 = vmax.f32 %v5290, 0.0
          %v5345 = vmax.f32 %v5291, 0.0
          %v5346 = vmax.f32 %v5292, 0.0
          %v5347 = vmax.f32 %v5293, 0.0
          %v5348 = vmax.f32 %v5294, 0.0
          %v5349 = vmax.f32 %v5295, 0.0
          %v5350 = vmax.f32 %v5296, 0.0
          %v5351 = vmax.f32 %v5297, 0.0
          %v5352 = vmax.f32 %v5298, 0.0
          %v5353 = vmax.f32 %v5299, 0.0
          %v5354 = vmax.f32 %v5300, 0.0
          %v5355 = vmax.f32 %v5301, 0.0
          %v5356 = vmax.f32 %v5302, 0.0
          %v5357 = vmax.f32 %v5303, 0.0
          %v5358 = vmax.f32 %v5304, 0.0
          %v5359 = vmax.f32 %v5305, 0.0
          %v5360 = vmax.f32 %v5306, 0.0
          %v5361 = vmax.f32 %v5307, 0.0
          %v5362 = vmax.f32 %v5308, 0.0
          %v5363 = vmax.f32 %v5309, 0.0
          %v5364 = vmax.f32 %v5310, 0.0
          %v5365 = vmax.f32 %v5311, 0.0
          %v5366 = vmax.f32 %v5312, 0.0
          %v5367 = vmax.f32 %v5313, 0.0
          %v5368 = vmax.f32 %v5314, 0.0
          %v5369 = vmax.f32 %v5315, 0.0
          %v5370 = vmax.f32 %v5316, 0.0
          %v5371 = vld [vmem:[%s1] sm:$0xff]
          %v5372 = vld [vmem:[%s1 + $0x8] sm:$0xff]
          %v5373 = vld [vmem:[%s1 + $0x10] sm:$0xff]
          %v5374 = vld [vmem:[%s1 + $0x18] sm:$0xff]
          %v5375 = vld [vmem:[%s1 + $0x20] sm:$0xff]
          %v5376 = vld [vmem:[%s1 + $0x28] sm:$0xff]
          %v5377 = vld [vmem:[%s1 + $0x30] sm:$0xff]
          %v5378 = vld [vmem:[%s1 + $0x38] sm:$0xff]
          %v5379 = vld [vmem:[%s1 + $0x40] sm:$0xff]
          %v5380 = vld [vmem:[%s1 + $0x48] sm:$0xff]
          %v5381 = vld [vmem:[%s1 + $0x50] sm:$0xff]
          %v5382 = vld [vmem:[%s1 + $0x58] sm:$0xff]
          %v5383 = vld [vmem:[%s1 + $0x60] sm:$0xff]
          %v5384 = vld [vmem:[%s1 + $0x68] sm:$0xff]
          %v5385 = vld [vmem:[%s1 + $0x70] sm:$0xff]
          %v5386 = vld [vmem:[%s1 + $0x78] sm:$0xff]
          %v5387 = vld [vmem:[%s1 + $0x80] sm:$0xff]
          %v5388 = vld [vmem:[%s1 + $0x88] sm:$0xff]
          %v5389 = vld [vmem:[%s1 + $0x90] sm:$0xff]
          %v5390 = vld [vmem:[%s1 + $0x98] sm:$0xff]
          %v5391 = vld [vmem:[%s1 + $0xa0] sm:$0xff]
          %v5392 = vld [vmem:[%s1 + $0xa8] sm:$0xff]
          %v5393 = vld [vmem:[%s1 + $0xb0] sm:$0xff]
          %v5394 = vld [vmem:[%s1 + $0xb8] sm:$0xff]
          %v5395 = vld [vmem:[%s1 + $0xc0] sm:$0xff]
          %v5396 = vld [vmem:[%s1 + $0xc8] sm:$0xff]
          %v5397 = vld [vmem:[%s1 + $0xd0] sm:$0xff]
          %v5398 = vld [vmem:[%s1 + $0xd8] sm:$0xff]
          %v5399 = vld [vmem:[%s1 + $0xe0] sm:$0xff]
          %v5400 = vld [vmem:[%s1 + $0xe8] sm:$0xff]
          %v5401 = vld [vmem:[%s1 + $0xf0] sm:$0xff]
          %v5402 = vld [vmem:[%s1 + $0xf8] sm:$0xff]
          %v5403 = vld [vmem:[%s1 + $0x100] sm:$0xff]
          %v5404 = vld [vmem:[%s1 + $0x108] sm:$0xff]
          %v5405 = vld [vmem:[%s1 + $0x110] sm:$0xff]
          %v5406 = vld [vmem:[%s1 + $0x118] sm:$0xff]
          %v5407 = vld [vmem:[%s1 + $0x120] sm:$0xff]
          %v5408 = vld [vmem:[%s1 + $0x128] sm:$0xff]
          %v5409 = vld [vmem:[%s1 + $0x130] sm:$0xff]
          %v5410 = vld [vmem:[%s1 + $0x138] sm:$0xff]
          %v5411 = vld [vmem:[%s1 + $0x140] sm:$0xff]
          %v5412 = vld [vmem:[%s1 + $0x148] sm:$0xff]
          %v5413 = vld [vmem:[%s1 + $0x150] sm:$0xff]
          %v5414 = vld [vmem:[%s1 + $0x158] sm:$0xff]
          %v5415 = vld [vmem:[%s1 + $0x160] sm:$0xff]
          %v5416 = vld [vmem:[%s1 + $0x168] sm:$0xff]
          %v5417 = vld [vmem:[%s1 + $0x170] sm:$0xff]
          %v5418 = vld [vmem:[%s1 + $0x178] sm:$0xff]
          %v5419 = vld [vmem:[%s1 + $0x180] sm:$0xff]
          %v5420 = vld [vmem:[%s1 + $0x188] sm:$0xff]
          %v5421 = vld [vmem:[%s1 + $0x190] sm:$0xff]
          %v5422 = vld [vmem:[%s1 + $0x198] sm:$0xff]
          %v5423 = vld [vmem:[%s1 + $0x1a0] sm:$0xff]
          %v5424 = vld [vmem:[%s1 + $0x1a8] sm:$0xff]
          %v5425 = vmul.f32 %v5317, %v5371
          %v5426 = vmul.f32 %v5318, %v5372
          %v5427 = vmul.f32 %v5319, %v5373
          %v5428 = vmul.f32 %v5320, %v5374
          %v5429 = vmul.f32 %v5321, %v5375
          %v5430 = vmul.f32 %v5322, %v5376
          %v5431 = vmul.f32 %v5323, %v5377
          %v5432 = vmul.f32 %v5324, %v5378
          %v5433 = vmul.f32 %v5325, %v5379
          %v5434 = vmul.f32 %v5326, %v5380
          %v5435 = vmul.f32 %v5327, %v5381
          %v5436 = vmul.f32 %v5328, %v5382
          %v5437 = vmul.f32 %v5329, %v5383
          %v5438 = vmul.f32 %v5330, %v5384
          %v5439 = vmul.f32 %v5331, %v5385
          %v5440 = vmul.f32 %v5332, %v5386
          %v5441 = vmul.f32 %v5333, %v5387
          %v5442 = vmul.f32 %v5334, %v5388
          %v5443 = vmul.f32 %v5335, %v5389
          %v5444 = vmul.f32 %v5336, %v5390
          %v5445 = vmul.f32 %v5337, %v5391
          %v5446 = vmul.f32 %v5338, %v5392
          %v5447 = vmul.f32 %v5339, %v5393
          %v5448 = vmul.f32 %v5340, %v5394
          %v5449 = vmul.f32 %v5341, %v5395
          %v5450 = vmul.f32 %v5342, %v5396
          %v5451 = vmul.f32 %v5343, %v5397
          %v5452 = vmul.f32 %v5344, %v5398
          %v5453 = vmul.f32 %v5345, %v5399
          %v5454 = vmul.f32 %v5346, %v5400
          %v5455 = vmul.f32 %v5347, %v5401
          %v5456 = vmul.f32 %v5348, %v5402
          %v5457 = vmul.f32 %v5349, %v5403
          %v5458 = vmul.f32 %v5350, %v5404
          %v5459 = vmul.f32 %v5351, %v5405
          %v5460 = vmul.f32 %v5352, %v5406
          %v5461 = vmul.f32 %v5353, %v5407
          %v5462 = vmul.f32 %v5354, %v5408
          %v5463 = vmul.f32 %v5355, %v5409
          %v5464 = vmul.f32 %v5356, %v5410
          %v5465 = vmul.f32 %v5357, %v5411
          %v5466 = vmul.f32 %v5358, %v5412
          %v5467 = vmul.f32 %v5359, %v5413
          %v5468 = vmul.f32 %v5360, %v5414
          %v5469 = vmul.f32 %v5361, %v5415
          %v5470 = vmul.f32 %v5362, %v5416
          %v5471 = vmul.f32 %v5363, %v5417
          %v5472 = vmul.f32 %v5364, %v5418
          %v5473 = vmul.f32 %v5365, %v5419
          %v5474 = vmul.f32 %v5366, %v5420
          %v5475 = vmul.f32 %v5367, %v5421
          %v5476 = vmul.f32 %v5368, %v5422
          %v5477 = vmul.f32 %v5369, %v5423
          %v5478 = vmul.f32 %v5370, %v5424
          %v5479 = vpack.c.bf16 %v5426, %v5425
          %v5480 = vpack.c.bf16 %v5428, %v5427
          %v5481 = vpack.c.bf16 %v5430, %v5429
          %v5482 = vpack.c.bf16 %v5432, %v5431
          %v5483 = vpack.c.bf16 %v5434, %v5433
          %v5484 = vpack.c.bf16 %v5436, %v5435
          %v5485 = vpack.c.bf16 %v5438, %v5437
          %v5486 = vpack.c.bf16 %v5440, %v5439
          %v5487 = vpack.c.bf16 %v5442, %v5441
          %v5488 = vpack.c.bf16 %v5444, %v5443
          %v5489 = vpack.c.bf16 %v5446, %v5445
          %v5490 = vpack.c.bf16 %v5448, %v5447
          %v5491 = vpack.c.bf16 %v5450, %v5449
          %v5492 = vpack.c.bf16 %v5452, %v5451
          %v5493 = vpack.c.bf16 %v5454, %v5453
          %v5494 = vpack.c.bf16 %v5456, %v5455
          %v5495 = vpack.c.bf16 %v5458, %v5457
          %v5496 = vpack.c.bf16 %v5460, %v5459
          %v5497 = vpack.c.bf16 %v5462, %v5461
          %v5498 = vpack.c.bf16 %v5464, %v5463
          %v5499 = vpack.c.bf16 %v5466, %v5465
          %v5500 = vpack.c.bf16 %v5468, %v5467
          %v5501 = vpack.c.bf16 %v5470, %v5469
          %v5502 = vpack.c.bf16 %v5472, %v5471
          %v5503 = vpack.c.bf16 %v5474, %v5473
          %v5504 = vpack.c.bf16 %v5476, %v5475
          %v5505 = vpack.c.bf16 %v5478, %v5477
          %v5533 = vrot.slane %v5479, 4
          %v5534 = vrot.slane %v5480, 4
          %v5535 = vsel %vm387, %v5533, %v5534
          %v5536 = vrot.slane %v5481, 4
          %v5537 = vsel %vm387, %v5534, %v5536
          %v5538 = vrot.slane %v5482, 4
          %v5539 = vsel %vm387, %v5536, %v5538
          %v5540 = vrot.slane %v5483, 4
          %v5541 = vsel %vm387, %v5538, %v5540
          %v5542 = vrot.slane %v5484, 4
          %v5543 = vsel %vm387, %v5540, %v5542
          %v5544 = vrot.slane %v5485, 4
          %v5545 = vsel %vm387, %v5542, %v5544
          %v5546 = vrot.slane %v5486, 4
          %v5547 = vsel %vm387, %v5544, %v5546
          %v5548 = vrot.slane %v5487, 4
          %v5549 = vsel %vm387, %v5546, %v5548
          %v5550 = vrot.slane %v5488, 4
          %v5551 = vsel %vm387, %v5548, %v5550
          %v5552 = vrot.slane %v5489, 4
          %v5553 = vsel %vm387, %v5550, %v5552
          %v5554 = vrot.slane %v5490, 4
          %v5555 = vsel %vm387, %v5552, %v5554
          %v5556 = vrot.slane %v5491, 4
          %v5557 = vsel %vm387, %v5554, %v5556
          %v5558 = vrot.slane %v5492, 4
          %v5559 = vsel %vm387, %v5556, %v5558
          %v5560 = vrot.slane %v5493, 4
          %v5561 = vsel %vm387, %v5558, %v5560
          %v5562 = vrot.slane %v5494, 4
          %v5563 = vsel %vm387, %v5560, %v5562
          %v5564 = vrot.slane %v5495, 4
          %v5565 = vsel %vm387, %v5562, %v5564
          %v5566 = vrot.slane %v5496, 4
          %v5567 = vsel %vm387, %v5564, %v5566
          %v5568 = vrot.slane %v5497, 4
          %v5569 = vsel %vm387, %v5566, %v5568
          %v5570 = vrot.slane %v5498, 4
          %v5571 = vsel %vm387, %v5568, %v5570
          %v5572 = vrot.slane %v5499, 4
          %v5573 = vsel %vm387, %v5570, %v5572
          %v5574 = vrot.slane %v5500, 4
          %v5575 = vsel %vm387, %v5572, %v5574
          %v5576 = vrot.slane %v5501, 4
          %v5577 = vsel %vm387, %v5574, %v5576
          %v5578 = vrot.slane %v5502, 4
          %v5579 = vsel %vm387, %v5576, %v5578
          %v5580 = vrot.slane %v5503, 4
          %v5581 = vsel %vm387, %v5578, %v5580
          %v5582 = vrot.slane %v5504, 4
          %v5583 = vsel %vm387, %v5580, %v5582
          %v5584 = vrot.slane %v5505, 4
          %v5585 = vsel %vm387, %v5582, %v5584
          %5614 = vst.msk [vmem:[#allocation2 + $0x8] sm:$0xf0] %vm271, %v5533
          %5615 = vst.msk [vmem:[#allocation2 + $0x10] sm:$0xff] %vm267, %v5535
          %5616 = vst.msk [vmem:[#allocation2 + $0x18] sm:$0xff] %vm267, %v5537
          %5617 = vst.msk [vmem:[#allocation2 + $0x20] sm:$0xff] %vm267, %v5539
          %5618 = vst.msk [vmem:[#allocation2 + $0x28] sm:$0xff] %vm267, %v5541
          %5619 = vst.msk [vmem:[#allocation2 + $0x30] sm:$0xff] %vm267, %v5543
          %5620 = vst.msk [vmem:[#allocation2 + $0x38] sm:$0xff] %vm267, %v5545
          %5621 = vst.msk [vmem:[#allocation2 + $0x40] sm:$0xff] %vm267, %v5547
          %5622 = vst.msk [vmem:[#allocation2 + $0x48] sm:$0xff] %vm267, %v5549
          %5623 = vst.msk [vmem:[#allocation2 + $0x50] sm:$0xff] %vm267, %v5551
          %5624 = vst.msk [vmem:[#allocation2 + $0x58] sm:$0xff] %vm267, %v5553
          %5625 = vst.msk [vmem:[#allocation2 + $0x60] sm:$0xff] %vm267, %v5555
          %5626 = vst.msk [vmem:[#allocation2 + $0x68] sm:$0xff] %vm267, %v5557
          %5627 = vst.msk [vmem:[#allocation2 + $0x70] sm:$0xff] %vm267, %v5559
          %5628 = vst.msk [vmem:[#allocation2 + $0x78] sm:$0xff] %vm267, %v5561
          %5629 = vst.msk [vmem:[#allocation2 + $0x80] sm:$0xff] %vm267, %v5563
          %5630 = vst.msk [vmem:[#allocation2 + $0x88] sm:$0xff] %vm267, %v5565
          %5631 = vst.msk [vmem:[#allocation2 + $0x90] sm:$0xff] %vm267, %v5567
          %5632 = vst.msk [vmem:[#allocation2 + $0x98] sm:$0xff] %vm267, %v5569
          %5633 = vst.msk [vmem:[#allocation2 + $0xa0] sm:$0xff] %vm267, %v5571
          %5634 = vst.msk [vmem:[#allocation2 + $0xa8] sm:$0xff] %vm267, %v5573
          %5635 = vst.msk [vmem:[#allocation2 + $0xb0] sm:$0xff] %vm267, %v5575
          %5636 = vst.msk [vmem:[#allocation2 + $0xb8] sm:$0xff] %vm267, %v5577
          %5637 = vst.msk [vmem:[#allocation2 + $0xc0] sm:$0xff] %vm267, %v5579
          %5638 = vst.msk [vmem:[#allocation2 + $0xc8] sm:$0xff] %vm267, %v5581
          %5639 = vst.msk [vmem:[#allocation2 + $0xd0] sm:$0xff] %vm267, %v5583
          %5640 = vst.msk [vmem:[#allocation2 + $0xd8] sm:$0xff] %vm267, %v5585
          %5641 = vst.msk [vmem:[#allocation2 + $0xe0] sm:$0xf] %vm269, %v5584
        $region53: #{dncnn_sn_forward.1} parent=43 // loop_footer
          %s3017 = sadd.s32 1, %s3013
        $region54: #{dncnn_sn_forward.1} parent=43 // loop_footer_branch
          %3012 = sbr.rel target = $region50
        $region55: #{dncnn_sn_forward.1} parent=43 // loop_exit
          _
        %s5642 = sld [smem:[#allocation4 + $0x4]]
        %v5643 = vld [vmem:[#allocation2] sm:$0xff]
        %v5644 = vld [vmem:[#allocation2 + $0x8] sm:$0xff]
        %v5645 = vld [vmem:[#allocation2 + $0x10] sm:$0xff]
        %v5646 = vld [vmem:[#allocation2 + $0x18] sm:$0xff]
        %v5647 = vld [vmem:[#allocation2 + $0x20] sm:$0xff]
        %v5648 = vld [vmem:[#allocation2 + $0x28] sm:$0xff]
        %v5649 = vld [vmem:[#allocation2 + $0x30] sm:$0xff]
        %v5650 = vld [vmem:[#allocation2 + $0x38] sm:$0xff]
        %v5651 = vld [vmem:[#allocation2 + $0x40] sm:$0xff]
        %v5652 = vld [vmem:[#allocation2 + $0x48] sm:$0xff]
        %v5653 = vld [vmem:[#allocation2 + $0x50] sm:$0xff]
        %v5654 = vld [vmem:[#allocation2 + $0x58] sm:$0xff]
        %v5655 = vld [vmem:[#allocation2 + $0x60] sm:$0xff]
        %v5656 = vld [vmem:[#allocation2 + $0x68] sm:$0xff]
        %v5657 = vld [vmem:[#allocation2 + $0x70] sm:$0xff]
        %v5658 = vld [vmem:[#allocation2 + $0x78] sm:$0xff]
        %v5659 = vld [vmem:[#allocation2 + $0x80] sm:$0xff]
        %v5660 = vld [vmem:[#allocation2 + $0x88] sm:$0xff]
        %v5661 = vld [vmem:[#allocation2 + $0x90] sm:$0xff]
        %v5662 = vld [vmem:[#allocation2 + $0x98] sm:$0xff]
        %v5663 = vld [vmem:[#allocation2 + $0xa0] sm:$0xff]
        %v5664 = vld [vmem:[#allocation2 + $0xa8] sm:$0xff]
        %v5665 = vld [vmem:[#allocation2 + $0xb0] sm:$0xff]
        %v5666 = vld [vmem:[#allocation2 + $0xb8] sm:$0xff]
        %v5667 = vld [vmem:[#allocation2 + $0xc0] sm:$0xff]
        %v5668 = vld [vmem:[#allocation2 + $0xc8] sm:$0xff]
        %v5669 = vld [vmem:[#allocation2 + $0xd0] sm:$0xff]
        %v5697 = vrot.slane %v5643, 4
        %v5698 = vrot.slane %v5644, 4
        %v5699 = vsel %vm387, %v5697, %v5698
        %v5700 = vrot.slane %v5645, 4
        %v5701 = vsel %vm387, %v5698, %v5700
        %v5702 = vrot.slane %v5646, 4
        %v5703 = vsel %vm387, %v5700, %v5702
        %v5704 = vrot.slane %v5647, 4
        %v5705 = vsel %vm387, %v5702, %v5704
        %v5706 = vrot.slane %v5648, 4
        %v5707 = vsel %vm387, %v5704, %v5706
        %v5708 = vrot.slane %v5649, 4
        %v5709 = vsel %vm387, %v5706, %v5708
        %v5710 = vrot.slane %v5650, 4
        %v5711 = vsel %vm387, %v5708, %v5710
        %v5712 = vrot.slane %v5651, 4
        %v5713 = vsel %vm387, %v5710, %v5712
        %v5714 = vrot.slane %v5652, 4
        %v5715 = vsel %vm387, %v5712, %v5714
        %v5716 = vrot.slane %v5653, 4
        %v5717 = vsel %vm387, %v5714, %v5716
        %v5718 = vrot.slane %v5654, 4
        %v5719 = vsel %vm387, %v5716, %v5718
        %v5720 = vrot.slane %v5655, 4
        %v5721 = vsel %vm387, %v5718, %v5720
        %v5722 = vrot.slane %v5656, 4
        %v5723 = vsel %vm387, %v5720, %v5722
        %v5724 = vrot.slane %v5657, 4
        %v5725 = vsel %vm387, %v5722, %v5724
        %v5726 = vrot.slane %v5658, 4
        %v5727 = vsel %vm387, %v5724, %v5726
        %v5728 = vrot.slane %v5659, 4
        %v5729 = vsel %vm387, %v5726, %v5728
        %v5730 = vrot.slane %v5660, 4
        %v5731 = vsel %vm387, %v5728, %v5730
        %v5732 = vrot.slane %v5661, 4
        %v5733 = vsel %vm387, %v5730, %v5732
        %v5734 = vrot.slane %v5662, 4
        %v5735 = vsel %vm387, %v5732, %v5734
        %v5736 = vrot.slane %v5663, 4
        %v5737 = vsel %vm387, %v5734, %v5736
        %v5738 = vrot.slane %v5664, 4
        %v5739 = vsel %vm387, %v5736, %v5738
        %v5740 = vrot.slane %v5665, 4
        %v5741 = vsel %vm387, %v5738, %v5740
        %v5742 = vrot.slane %v5666, 4
        %v5743 = vsel %vm387, %v5740, %v5742
        %v5744 = vrot.slane %v5667, 4
        %v5745 = vsel %vm387, %v5742, %v5744
        %v5746 = vrot.slane %v5668, 4
        %v5747 = vsel %vm387, %v5744, %v5746
        %v5748 = vrot.slane %v5669, 4
        %v5749 = vsel %vm387, %v5746, %v5748
        %5778 = vst.msk [vmem:[#allocation3] sm:$0xf0] %vm271, %v5697
        %5779 = vst.msk [vmem:[#allocation3 + $0x8] sm:$0xff] %vm267, %v5699
        %5780 = vst.msk [vmem:[#allocation3 + $0x10] sm:$0xff] %vm267, %v5701
        %5781 = vst.msk [vmem:[#allocation3 + $0x18] sm:$0xff] %vm267, %v5703
        %5782 = vst.msk [vmem:[#allocation3 + $0x20] sm:$0xff] %vm267, %v5705
        %5783 = vst.msk [vmem:[#allocation3 + $0x28] sm:$0xff] %vm267, %v5707
        %5784 = vst.msk [vmem:[#allocation3 + $0x30] sm:$0xff] %vm267, %v5709
        %5785 = vst.msk [vmem:[#allocation3 + $0x38] sm:$0xff] %vm267, %v5711
        %5786 = vst.msk [vmem:[#allocation3 + $0x40] sm:$0xff] %vm267, %v5713
        %5787 = vst.msk [vmem:[#allocation3 + $0x48] sm:$0xff] %vm267, %v5715
        %5788 = vst.msk [vmem:[#allocation3 + $0x50] sm:$0xff] %vm267, %v5717
        %5789 = vst.msk [vmem:[#allocation3 + $0x58] sm:$0xff] %vm267, %v5719
        %5790 = vst.msk [vmem:[#allocation3 + $0x60] sm:$0xff] %vm267, %v5721
        %5791 = vst.msk [vmem:[#allocation3 + $0x68] sm:$0xff] %vm267, %v5723
        %5792 = vst.msk [vmem:[#allocation3 + $0x70] sm:$0xff] %vm267, %v5725
        %5793 = vst.msk [vmem:[#allocation3 + $0x78] sm:$0xff] %vm267, %v5727
        %5794 = vst.msk [vmem:[#allocation3 + $0x80] sm:$0xff] %vm267, %v5729
        %5795 = vst.msk [vmem:[#allocation3 + $0x88] sm:$0xff] %vm267, %v5731
        %5796 = vst.msk [vmem:[#allocation3 + $0x90] sm:$0xff] %vm267, %v5733
        %5797 = vst.msk [vmem:[#allocation3 + $0x98] sm:$0xff] %vm267, %v5735
        %5798 = vst.msk [vmem:[#allocation3 + $0xa0] sm:$0xff] %vm267, %v5737
        %5799 = vst.msk [vmem:[#allocation3 + $0xa8] sm:$0xff] %vm267, %v5739
        %5800 = vst.msk [vmem:[#allocation3 + $0xb0] sm:$0xff] %vm267, %v5741
        %5801 = vst.msk [vmem:[#allocation3 + $0xb8] sm:$0xff] %vm267, %v5743
        %5802 = vst.msk [vmem:[#allocation3 + $0xc0] sm:$0xff] %vm267, %v5745
        %5803 = vst.msk [vmem:[#allocation3 + $0xc8] sm:$0xff] %vm267, %v5747
        %5804 = vst.msk [vmem:[#allocation3 + $0xd0] sm:$0xff] %vm267, %v5749
        %5805 = vst.msk [vmem:[#allocation3 + $0xd8] sm:$0xf] %vm269, %v5748
        %v5806 = vld [vmem:[#allocation2 + $0x8] sm:$0xf0]
        %v5807 = vld [vmem:[#allocation2 + $0x10] sm:$0xff]
        %v5808 = vld [vmem:[#allocation2 + $0x18] sm:$0xff]
        %v5809 = vld [vmem:[#allocation2 + $0x20] sm:$0xff]
        %v5810 = vld [vmem:[#allocation2 + $0x28] sm:$0xff]
        %v5811 = vld [vmem:[#allocation2 + $0x30] sm:$0xff]
        %v5812 = vld [vmem:[#allocation2 + $0x38] sm:$0xff]
        %v5813 = vld [vmem:[#allocation2 + $0x40] sm:$0xff]
        %v5814 = vld [vmem:[#allocation2 + $0x48] sm:$0xff]
        %v5815 = vld [vmem:[#allocation2 + $0x50] sm:$0xff]
        %v5816 = vld [vmem:[#allocation2 + $0x58] sm:$0xff]
        %v5817 = vld [vmem:[#allocation2 + $0x60] sm:$0xff]
        %v5818 = vld [vmem:[#allocation2 + $0x68] sm:$0xff]
        %v5819 = vld [vmem:[#allocation2 + $0x70] sm:$0xff]
        %v5820 = vld [vmem:[#allocation2 + $0x78] sm:$0xff]
        %v5821 = vld [vmem:[#allocation2 + $0x80] sm:$0xff]
        %v5822 = vld [vmem:[#allocation2 + $0x88] sm:$0xff]
        %v5823 = vld [vmem:[#allocation2 + $0x90] sm:$0xff]
        %v5824 = vld [vmem:[#allocation2 + $0x98] sm:$0xff]
        %v5825 = vld [vmem:[#allocation2 + $0xa0] sm:$0xff]
        %v5826 = vld [vmem:[#allocation2 + $0xa8] sm:$0xff]
        %v5827 = vld [vmem:[#allocation2 + $0xb0] sm:$0xff]
        %v5828 = vld [vmem:[#allocation2 + $0xb8] sm:$0xff]
        %v5829 = vld [vmem:[#allocation2 + $0xc0] sm:$0xff]
        %v5830 = vld [vmem:[#allocation2 + $0xc8] sm:$0xff]
        %v5831 = vld [vmem:[#allocation2 + $0xd0] sm:$0xff]
        %v5832 = vld [vmem:[#allocation2 + $0xd8] sm:$0xff]
        %v5833 = vld [vmem:[#allocation2 + $0xe0] sm:$0xf]
        %5862 = vrot.lane.b32.xlu0 %v5806, 32
        %v5863 = vpop.permute.xlu0 %5862
        %5864 = vrot.lane.b32.xlu0 %v5807, 32
        %v5865 = vpop.permute.xlu0 %5864
        %5866 = vrot.lane.b32.xlu0 %v5808, 32
        %v5867 = vpop.permute.xlu0 %5866
        %5868 = vrot.lane.b32.xlu0 %v5809, 32
        %v5869 = vpop.permute.xlu0 %5868
        %5870 = vrot.lane.b32.xlu0 %v5810, 32
        %v5871 = vpop.permute.xlu0 %5870
        %5872 = vrot.lane.b32.xlu0 %v5811, 32
        %v5873 = vpop.permute.xlu0 %5872
        %5874 = vrot.lane.b32.xlu0 %v5812, 32
        %v5875 = vpop.permute.xlu0 %5874
        %5876 = vrot.lane.b32.xlu0 %v5813, 32
        %v5877 = vpop.permute.xlu0 %5876
        %5878 = vrot.lane.b32.xlu0 %v5814, 32
        %v5879 = vpop.permute.xlu0 %5878
        %5880 = vrot.lane.b32.xlu0 %v5815, 32
        %v5881 = vpop.permute.xlu0 %5880
        %5882 = vrot.lane.b32.xlu0 %v5816, 32
        %v5883 = vpop.permute.xlu0 %5882
        %5884 = vrot.lane.b32.xlu0 %v5817, 32
        %v5885 = vpop.permute.xlu0 %5884
        %5886 = vrot.lane.b32.xlu0 %v5818, 32
        %v5887 = vpop.permute.xlu0 %5886
        %5888 = vrot.lane.b32.xlu0 %v5819, 32
        %v5889 = vpop.permute.xlu0 %5888
        %5890 = vrot.lane.b32.xlu0 %v5820, 32
        %v5891 = vpop.permute.xlu0 %5890
        %5892 = vrot.lane.b32.xlu0 %v5821, 32
        %v5893 = vpop.permute.xlu0 %5892
        %5894 = vrot.lane.b32.xlu0 %v5822, 32
        %v5895 = vpop.permute.xlu0 %5894
        %5896 = vrot.lane.b32.xlu0 %v5823, 32
        %v5897 = vpop.permute.xlu0 %5896
        %5898 = vrot.lane.b32.xlu0 %v5824, 32
        %v5899 = vpop.permute.xlu0 %5898
        %5900 = vrot.lane.b32.xlu0 %v5825, 32
        %v5901 = vpop.permute.xlu0 %5900
        %5902 = vrot.lane.b32.xlu0 %v5826, 32
        %v5903 = vpop.permute.xlu0 %5902
        %5904 = vrot.lane.b32.xlu0 %v5827, 32
        %v5905 = vpop.permute.xlu0 %5904
        %5906 = vrot.lane.b32.xlu0 %v5828, 32
        %v5907 = vpop.permute.xlu0 %5906
        %5908 = vrot.lane.b32.xlu0 %v5829, 32
        %v5909 = vpop.permute.xlu0 %5908
        %5910 = vrot.lane.b32.xlu0 %v5830, 32
        %v5911 = vpop.permute.xlu0 %5910
        %5912 = vrot.lane.b32.xlu0 %v5831, 32
        %v5913 = vpop.permute.xlu0 %5912
        %5914 = vrot.lane.b32.xlu0 %v5832, 32
        %v5915 = vpop.permute.xlu0 %5914
        %5916 = vrot.lane.b32.xlu0 %v5833, 32
        %v5917 = vpop.permute.xlu0 %5916
        %vm5946 = vcmask 523524
        %5947 = vst.msk [vmem:[#allocation3] sm:$0xf0] %vm5946, %v5863
        %vm5948 = vcmask 523520
        %5949 = vst.msk [vmem:[#allocation3 + $0x8] sm:$0xff] %vm5948, %v5865
        %5950 = vst.msk [vmem:[#allocation3 + $0x10] sm:$0xff] %vm5948, %v5867
        %5951 = vst.msk [vmem:[#allocation3 + $0x18] sm:$0xff] %vm5948, %v5869
        %5952 = vst.msk [vmem:[#allocation3 + $0x20] sm:$0xff] %vm5948, %v5871
        %5953 = vst.msk [vmem:[#allocation3 + $0x28] sm:$0xff] %vm5948, %v5873
        %5954 = vst.msk [vmem:[#allocation3 + $0x30] sm:$0xff] %vm5948, %v5875
        %5955 = vst.msk [vmem:[#allocation3 + $0x38] sm:$0xff] %vm5948, %v5877
        %5956 = vst.msk [vmem:[#allocation3 + $0x40] sm:$0xff] %vm5948, %v5879
        %5957 = vst.msk [vmem:[#allocation3 + $0x48] sm:$0xff] %vm5948, %v5881
        %5958 = vst.msk [vmem:[#allocation3 + $0x50] sm:$0xff] %vm5948, %v5883
        %5959 = vst.msk [vmem:[#allocation3 + $0x58] sm:$0xff] %vm5948, %v5885
        %5960 = vst.msk [vmem:[#allocation3 + $0x60] sm:$0xff] %vm5948, %v5887
        %5961 = vst.msk [vmem:[#allocation3 + $0x68] sm:$0xff] %vm5948, %v5889
        %5962 = vst.msk [vmem:[#allocation3 + $0x70] sm:$0xff] %vm5948, %v5891
        %5963 = vst.msk [vmem:[#allocation3 + $0x78] sm:$0xff] %vm5948, %v5893
        %5964 = vst.msk [vmem:[#allocation3 + $0x80] sm:$0xff] %vm5948, %v5895
        %5965 = vst.msk [vmem:[#allocation3 + $0x88] sm:$0xff] %vm5948, %v5897
        %5966 = vst.msk [vmem:[#allocation3 + $0x90] sm:$0xff] %vm5948, %v5899
        %5967 = vst.msk [vmem:[#allocation3 + $0x98] sm:$0xff] %vm5948, %v5901
        %5968 = vst.msk [vmem:[#allocation3 + $0xa0] sm:$0xff] %vm5948, %v5903
        %5969 = vst.msk [vmem:[#allocation3 + $0xa8] sm:$0xff] %vm5948, %v5905
        %5970 = vst.msk [vmem:[#allocation3 + $0xb0] sm:$0xff] %vm5948, %v5907
        %5971 = vst.msk [vmem:[#allocation3 + $0xb8] sm:$0xff] %vm5948, %v5909
        %5972 = vst.msk [vmem:[#allocation3 + $0xc0] sm:$0xff] %vm5948, %v5911
        %5973 = vst.msk [vmem:[#allocation3 + $0xc8] sm:$0xff] %vm5948, %v5913
        %5974 = vst.msk [vmem:[#allocation3 + $0xd0] sm:$0xff] %vm5948, %v5915
        %vm5975 = vcmask 519424
        %5976 = vst.msk [vmem:[#allocation3 + $0xd8] sm:$0xf] %vm5975, %v5917
        %v5977 = vld [vmem:[#allocation2 + $0x18] sm:$0xff]
        %v5978 = vld [vmem:[#allocation2 + $0x20] sm:$0xff]
        %v5979 = vld [vmem:[#allocation2 + $0x28] sm:$0xff]
        %v5980 = vld [vmem:[#allocation2 + $0x30] sm:$0xff]
        %v5981 = vld [vmem:[#allocation2 + $0x38] sm:$0xff]
        %v5982 = vld [vmem:[#allocation2 + $0x40] sm:$0xff]
        %v5983 = vld [vmem:[#allocation2 + $0x48] sm:$0xff]
        %v5984 = vld [vmem:[#allocation2 + $0x50] sm:$0xff]
        %v5985 = vld [vmem:[#allocation2 + $0x58] sm:$0xff]
        %v5986 = vld [vmem:[#allocation2 + $0x60] sm:$0xff]
        %v5987 = vld [vmem:[#allocation2 + $0x68] sm:$0xff]
        %v5988 = vld [vmem:[#allocation2 + $0x70] sm:$0xff]
        %v5989 = vld [vmem:[#allocation2 + $0x78] sm:$0xff]
        %v5990 = vld [vmem:[#allocation2 + $0x80] sm:$0xff]
        %v5991 = vld [vmem:[#allocation2 + $0x88] sm:$0xff]
        %v5992 = vld [vmem:[#allocation2 + $0x90] sm:$0xff]
        %v5993 = vld [vmem:[#allocation2 + $0x98] sm:$0xff]
        %v5994 = vld [vmem:[#allocation2 + $0xa0] sm:$0xff]
        %v5995 = vld [vmem:[#allocation2 + $0xa8] sm:$0xff]
        %v5996 = vld [vmem:[#allocation2 + $0xb0] sm:$0xff]
        %v5997 = vld [vmem:[#allocation2 + $0xb8] sm:$0xff]
        %v5998 = vld [vmem:[#allocation2 + $0xc0] sm:$0xff]
        %v5999 = vld [vmem:[#allocation2 + $0xc8] sm:$0xff]
        %v6000 = vld [vmem:[#allocation2 + $0xd0] sm:$0xff]
        %v6001 = vld [vmem:[#allocation2 + $0xd8] sm:$0xff]
        %v6002 = vld [vmem:[#allocation2 + $0xe0] sm:$0xff]
        %v6003 = vld [vmem:[#allocation2 + $0xe8] sm:$0xff]
        %v6031 = vrot.slane %v5977, 4
        %v6032 = vrot.slane %v5978, 4
        %v6033 = vsel %vm387, %v6031, %v6032
        %v6034 = vrot.slane %v5979, 4
        %v6035 = vsel %vm387, %v6032, %v6034
        %v6036 = vrot.slane %v5980, 4
        %v6037 = vsel %vm387, %v6034, %v6036
        %v6038 = vrot.slane %v5981, 4
        %v6039 = vsel %vm387, %v6036, %v6038
        %v6040 = vrot.slane %v5982, 4
        %v6041 = vsel %vm387, %v6038, %v6040
        %v6042 = vrot.slane %v5983, 4
        %v6043 = vsel %vm387, %v6040, %v6042
        %v6044 = vrot.slane %v5984, 4
        %v6045 = vsel %vm387, %v6042, %v6044
        %v6046 = vrot.slane %v5985, 4
        %v6047 = vsel %vm387, %v6044, %v6046
        %v6048 = vrot.slane %v5986, 4
        %v6049 = vsel %vm387, %v6046, %v6048
        %v6050 = vrot.slane %v5987, 4
        %v6051 = vsel %vm387, %v6048, %v6050
        %v6052 = vrot.slane %v5988, 4
        %v6053 = vsel %vm387, %v6050, %v6052
        %v6054 = vrot.slane %v5989, 4
        %v6055 = vsel %vm387, %v6052, %v6054
        %v6056 = vrot.slane %v5990, 4
        %v6057 = vsel %vm387, %v6054, %v6056
        %v6058 = vrot.slane %v5991, 4
        %v6059 = vsel %vm387, %v6056, %v6058
        %v6060 = vrot.slane %v5992, 4
        %v6061 = vsel %vm387, %v6058, %v6060
        %v6062 = vrot.slane %v5993, 4
        %v6063 = vsel %vm387, %v6060, %v6062
        %v6064 = vrot.slane %v5994, 4
        %v6065 = vsel %vm387, %v6062, %v6064
        %v6066 = vrot.slane %v5995, 4
        %v6067 = vsel %vm387, %v6064, %v6066
        %v6068 = vrot.slane %v5996, 4
        %v6069 = vsel %vm387, %v6066, %v6068
        %v6070 = vrot.slane %v5997, 4
        %v6071 = vsel %vm387, %v6068, %v6070
        %v6072 = vrot.slane %v5998, 4
        %v6073 = vsel %vm387, %v6070, %v6072
        %v6074 = vrot.slane %v5999, 4
        %v6075 = vsel %vm387, %v6072, %v6074
        %v6076 = vrot.slane %v6000, 4
        %v6077 = vsel %vm387, %v6074, %v6076
        %v6078 = vrot.slane %v6001, 4
        %v6079 = vsel %vm387, %v6076, %v6078
        %v6080 = vrot.slane %v6002, 4
        %v6081 = vsel %vm387, %v6078, %v6080
        %v6082 = vrot.slane %v6003, 4
        %v6083 = vsel %vm387, %v6080, %v6082
        %6084 = vrot.lane.b32.xlu0 %v6031, 64
        %v6085 = vpop.permute.xlu0 %6084
        %6086 = vrot.lane.b32.xlu0 %v6033, 64
        %v6087 = vpop.permute.xlu0 %6086
        %6088 = vrot.lane.b32.xlu0 %v6035, 64
        %v6089 = vpop.permute.xlu0 %6088
        %6090 = vrot.lane.b32.xlu0 %v6037, 64
        %v6091 = vpop.permute.xlu0 %6090
        %6092 = vrot.lane.b32.xlu0 %v6039, 64
        %v6093 = vpop.permute.xlu0 %6092
        %6094 = vrot.lane.b32.xlu0 %v6041, 64
        %v6095 = vpop.permute.xlu0 %6094
        %6096 = vrot.lane.b32.xlu0 %v6043, 64
        %v6097 = vpop.permute.xlu0 %6096
        %6098 = vrot.lane.b32.xlu0 %v6045, 64
        %v6099 = vpop.permute.xlu0 %6098
        %6100 = vrot.lane.b32.xlu0 %v6047, 64
        %v6101 = vpop.permute.xlu0 %6100
        %6102 = vrot.lane.b32.xlu0 %v6049, 64
        %v6103 = vpop.permute.xlu0 %6102
        %6104 = vrot.lane.b32.xlu0 %v6051, 64
        %v6105 = vpop.permute.xlu0 %6104
        %6106 = vrot.lane.b32.xlu0 %v6053, 64
        %v6107 = vpop.permute.xlu0 %6106
        %6108 = vrot.lane.b32.xlu0 %v6055, 64
        %v6109 = vpop.permute.xlu0 %6108
        %6110 = vrot.lane.b32.xlu0 %v6057, 64
        %v6111 = vpop.permute.xlu0 %6110
        %6112 = vrot.lane.b32.xlu0 %v6059, 64
        %v6113 = vpop.permute.xlu0 %6112
        %6114 = vrot.lane.b32.xlu0 %v6061, 64
        %v6115 = vpop.permute.xlu0 %6114
        %6116 = vrot.lane.b32.xlu0 %v6063, 64
        %v6117 = vpop.permute.xlu0 %6116
        %6118 = vrot.lane.b32.xlu0 %v6065, 64
        %v6119 = vpop.permute.xlu0 %6118
        %6120 = vrot.lane.b32.xlu0 %v6067, 64
        %v6121 = vpop.permute.xlu0 %6120
        %6122 = vrot.lane.b32.xlu0 %v6069, 64
        %v6123 = vpop.permute.xlu0 %6122
        %6124 = vrot.lane.b32.xlu0 %v6071, 64
        %v6125 = vpop.permute.xlu0 %6124
        %6126 = vrot.lane.b32.xlu0 %v6073, 64
        %v6127 = vpop.permute.xlu0 %6126
        %6128 = vrot.lane.b32.xlu0 %v6075, 64
        %v6129 = vpop.permute.xlu0 %6128
        %6130 = vrot.lane.b32.xlu0 %v6077, 64
        %v6131 = vpop.permute.xlu0 %6130
        %6132 = vrot.lane.b32.xlu0 %v6079, 64
        %v6133 = vpop.permute.xlu0 %6132
        %6134 = vrot.lane.b32.xlu0 %v6081, 64
        %v6135 = vpop.permute.xlu0 %6134
        %6136 = vrot.lane.b32.xlu0 %v6083, 64
        %v6137 = vpop.permute.xlu0 %6136
        %6138 = vrot.lane.b32.xlu0 %v6082, 64
        %v6139 = vpop.permute.xlu0 %6138
        %vm6168 = vcmask 785924
        %6169 = vst.msk [vmem:[#allocation3] sm:$0xf0] %vm6168, %v6085
        %vm6170 = vcmask 785920
        %6171 = vst.msk [vmem:[#allocation3 + $0x8] sm:$0xff] %vm6170, %v6087
        %6172 = vst.msk [vmem:[#allocation3 + $0x10] sm:$0xff] %vm6170, %v6089
        %6173 = vst.msk [vmem:[#allocation3 + $0x18] sm:$0xff] %vm6170, %v6091
        %6174 = vst.msk [vmem:[#allocation3 + $0x20] sm:$0xff] %vm6170, %v6093
        %6175 = vst.msk [vmem:[#allocation3 + $0x28] sm:$0xff] %vm6170, %v6095
        %6176 = vst.msk [vmem:[#allocation3 + $0x30] sm:$0xff] %vm6170, %v6097
        %6177 = vst.msk [vmem:[#allocation3 + $0x38] sm:$0xff] %vm6170, %v6099
        %6178 = vst.msk [vmem:[#allocation3 + $0x40] sm:$0xff] %vm6170, %v6101
        %6179 = vst.msk [vmem:[#allocation3 + $0x48] sm:$0xff] %vm6170, %v6103
        %6180 = vst.msk [vmem:[#allocation3 + $0x50] sm:$0xff] %vm6170, %v6105
        %6181 = vst.msk [vmem:[#allocation3 + $0x58] sm:$0xff] %vm6170, %v6107
        %6182 = vst.msk [vmem:[#allocation3 + $0x60] sm:$0xff] %vm6170, %v6109
        %6183 = vst.msk [vmem:[#allocation3 + $0x68] sm:$0xff] %vm6170, %v6111
        %6184 = vst.msk [vmem:[#allocation3 + $0x70] sm:$0xff] %vm6170, %v6113
        %6185 = vst.msk [vmem:[#allocation3 + $0x78] sm:$0xff] %vm6170, %v6115
        %6186 = vst.msk [vmem:[#allocation3 + $0x80] sm:$0xff] %vm6170, %v6117
        %6187 = vst.msk [vmem:[#allocation3 + $0x88] sm:$0xff] %vm6170, %v6119
        %6188 = vst.msk [vmem:[#allocation3 + $0x90] sm:$0xff] %vm6170, %v6121
        %6189 = vst.msk [vmem:[#allocation3 + $0x98] sm:$0xff] %vm6170, %v6123
        %6190 = vst.msk [vmem:[#allocation3 + $0xa0] sm:$0xff] %vm6170, %v6125
        %6191 = vst.msk [vmem:[#allocation3 + $0xa8] sm:$0xff] %vm6170, %v6127
        %6192 = vst.msk [vmem:[#allocation3 + $0xb0] sm:$0xff] %vm6170, %v6129
        %6193 = vst.msk [vmem:[#allocation3 + $0xb8] sm:$0xff] %vm6170, %v6131
        %6194 = vst.msk [vmem:[#allocation3 + $0xc0] sm:$0xff] %vm6170, %v6133
        %6195 = vst.msk [vmem:[#allocation3 + $0xc8] sm:$0xff] %vm6170, %v6135
        %6196 = vst.msk [vmem:[#allocation3 + $0xd0] sm:$0xff] %vm6170, %v6137
        %vm6197 = vcmask 781824
        %6198 = vst.msk [vmem:[#allocation3 + $0xd8] sm:$0xf] %vm6197, %v6139
        %v6199 = vld [vmem:[#allocation3] sm:$0xf8]
        %v6200 = vld [vmem:[#allocation3 + $0x8] sm:$0xff]
        %v6201 = vld [vmem:[#allocation3 + $0x10] sm:$0xff]
        %v6202 = vld [vmem:[#allocation3 + $0x18] sm:$0xff]
        %v6203 = vld [vmem:[#allocation3 + $0x20] sm:$0xff]
        %v6204 = vld [vmem:[#allocation3 + $0x28] sm:$0xff]
        %v6205 = vld [vmem:[#allocation3 + $0x30] sm:$0xff]
        %v6206 = vld [vmem:[#allocation3 + $0x38] sm:$0xff]
        %v6207 = vld [vmem:[#allocation3 + $0x40] sm:$0xff]
        %v6208 = vld [vmem:[#allocation3 + $0x48] sm:$0xff]
        %v6209 = vld [vmem:[#allocation3 + $0x50] sm:$0xff]
        %v6210 = vld [vmem:[#allocation3 + $0x58] sm:$0xff]
        %v6211 = vld [vmem:[#allocation3 + $0x60] sm:$0xff]
        %v6212 = vld [vmem:[#allocation3 + $0x68] sm:$0xff]
        %v6213 = vld [vmem:[#allocation3 + $0x70] sm:$0xff]
        %v6214 = vld [vmem:[#allocation3 + $0x78] sm:$0xff]
        %v6215 = vld [vmem:[#allocation3 + $0x80] sm:$0xff]
        %v6216 = vld [vmem:[#allocation3 + $0x88] sm:$0xff]
        %v6217 = vld [vmem:[#allocation3 + $0x90] sm:$0xff]
        %v6218 = vld [vmem:[#allocation3 + $0x98] sm:$0xff]
        %v6219 = vld [vmem:[#allocation3 + $0xa0] sm:$0xff]
        %v6220 = vld [vmem:[#allocation3 + $0xa8] sm:$0xff]
        %v6221 = vld [vmem:[#allocation3 + $0xb0] sm:$0xff]
        %v6222 = vld [vmem:[#allocation3 + $0xb8] sm:$0xff]
        %v6223 = vld [vmem:[#allocation3 + $0xc0] sm:$0xff]
        %v6224 = vld [vmem:[#allocation3 + $0xc8] sm:$0xff]
        %v6225 = vld [vmem:[#allocation3 + $0xd0] sm:$0xff]
        %v6226 = vld [vmem:[#allocation3 + $0xd8] sm:$0xf]
        %v6227 = vld [vmem:[%s4] sm:$0xf]
        %v6228 = vld [vmem:[%s4 + $0x4] sm:$0xf]
        %v6229 = vld [vmem:[%s4 + $0x8] sm:$0xf]
        %v6230 = vld [vmem:[%s4 + $0xc] sm:$0xf]
        %v6231 = vld [vmem:[%s4 + $0x10] sm:$0xf]
        %v6232 = vld [vmem:[%s4 + $0x14] sm:$0xf]
        %v6233 = vld [vmem:[%s4 + $0x18] sm:$0xf]
        %v6234 = vld [vmem:[%s4 + $0x1c] sm:$0xf]
        %v6235 = vld [vmem:[%s4 + $0x20] sm:$0xf]
        %v6236 = vld [vmem:[%s4 + $0x24] sm:$0xf]
        %v6237 = vld [vmem:[%s4 + $0x28] sm:$0xf]
        %v6238 = vld [vmem:[%s4 + $0x2c] sm:$0xf]
        %v6239 = vld [vmem:[#allocation3] sm:$0xf0]
        %s6240 = scalar_lea.vmem %s4, 48
        %v6241 = vld [vmem:[%s6240] sm:$0xf]
        %v6242 = vld [vmem:[%s6240 + $0x4] sm:$0xf]
        %v6243 = vld [vmem:[%s6240 + $0x8] sm:$0xf]
        %v6244 = vld [vmem:[%s6240 + $0xc] sm:$0xf]
        %v6245 = vld [vmem:[%s6240 + $0x10] sm:$0xf]
        %v6246 = vld [vmem:[%s6240 + $0x14] sm:$0xf]
        %v6247 = vld [vmem:[%s6240 + $0x18] sm:$0xf]
        %v6248 = vld [vmem:[%s6240 + $0x1c] sm:$0xf]
        %v6249 = vld [vmem:[%s6240 + $0x20] sm:$0xf]
        %v6250 = vld [vmem:[%s6240 + $0x24] sm:$0xf]
        %v6251 = vld [vmem:[%s6240 + $0x28] sm:$0xf]
        %v6252 = vld [vmem:[%s6240 + $0x2c] sm:$0xf]
        %v6281 = vrot.slane %v6239, 4
        %v6282 = vrot.slane %v6200, 4
        %v6283 = vsel %vm387, %v6281, %v6282
        %v6284 = vrot.slane %v6201, 4
        %v6285 = vsel %vm387, %v6282, %v6284
        %v6286 = vrot.slane %v6202, 4
        %v6287 = vsel %vm387, %v6284, %v6286
        %v6288 = vrot.slane %v6203, 4
        %v6289 = vsel %vm387, %v6286, %v6288
        %v6290 = vrot.slane %v6204, 4
        %v6291 = vsel %vm387, %v6288, %v6290
        %v6292 = vrot.slane %v6205, 4
        %v6293 = vsel %vm387, %v6290, %v6292
        %v6294 = vrot.slane %v6206, 4
        %v6295 = vsel %vm387, %v6292, %v6294
        %v6296 = vrot.slane %v6207, 4
        %v6297 = vsel %vm387, %v6294, %v6296
        %v6298 = vrot.slane %v6208, 4
        %v6299 = vsel %vm387, %v6296, %v6298
        %v6300 = vrot.slane %v6209, 4
        %v6301 = vsel %vm387, %v6298, %v6300
        %v6302 = vrot.slane %v6210, 4
        %v6303 = vsel %vm387, %v6300, %v6302
        %v6304 = vrot.slane %v6211, 4
        %v6305 = vsel %vm387, %v6302, %v6304
        %v6306 = vrot.slane %v6212, 4
        %v6307 = vsel %vm387, %v6304, %v6306
        %v6308 = vrot.slane %v6213, 4
        %v6309 = vsel %vm387, %v6306, %v6308
        %v6310 = vrot.slane %v6214, 4
        %v6311 = vsel %vm387, %v6308, %v6310
        %v6312 = vrot.slane %v6215, 4
        %v6313 = vsel %vm387, %v6310, %v6312
        %v6314 = vrot.slane %v6216, 4
        %v6315 = vsel %vm387, %v6312, %v6314
        %v6316 = vrot.slane %v6217, 4
        %v6317 = vsel %vm387, %v6314, %v6316
        %v6318 = vrot.slane %v6218, 4
        %v6319 = vsel %vm387, %v6316, %v6318
        %v6320 = vrot.slane %v6219, 4
        %v6321 = vsel %vm387, %v6318, %v6320
        %v6322 = vrot.slane %v6220, 4
        %v6323 = vsel %vm387, %v6320, %v6322
        %v6324 = vrot.slane %v6221, 4
        %v6325 = vsel %vm387, %v6322, %v6324
        %v6326 = vrot.slane %v6222, 4
        %v6327 = vsel %vm387, %v6324, %v6326
        %v6328 = vrot.slane %v6223, 4
        %v6329 = vsel %vm387, %v6326, %v6328
        %v6330 = vrot.slane %v6224, 4
        %v6331 = vsel %vm387, %v6328, %v6330
        %v6332 = vrot.slane %v6225, 4
        %v6333 = vsel %vm387, %v6330, %v6332
        %v6334 = vrot.slane %v6226, 4
        %v6335 = vsel %vm387, %v6332, %v6334
        %v6348 = vunpack.c.l.b16 %v6241
        %v6349 = vunpack.c.l.b16 %v6242
        %v6350 = vunpack.c.l.b16 %v6243
        %v6351 = vunpack.c.l.b16 %v6244
        %v6352 = vunpack.c.l.b16 %v6245
        %v6353 = vunpack.c.l.b16 %v6246
        %v6354 = vunpack.c.l.b16 %v6247
        %v6355 = vunpack.c.l.b16 %v6248
        %v6356 = vunpack.c.l.b16 %v6249
        %v6357 = vunpack.c.l.b16 %v6250
        %v6358 = vunpack.c.l.b16 %v6251
        %v6359 = vunpack.c.l.b16 %v6252
        %v6360 = vpack.c.b16 %v6349, %v6348
        %v6361 = vpack.c.b16 %v6351, %v6350
        %v6362 = vpack.c.b16 %v6353, %v6352
        %v6363 = vpack.c.b16 %v6355, %v6354
        %v6364 = vpack.c.b16 %v6357, %v6356
        %v6365 = vpack.c.b16 %v6359, %v6358
        %vm6372 = vcmask 785408
        %v6374 = vsel %vm6372, %v6283, 0
        %v6377 = vsel %vm6372, %v6285, 0
        %v6380 = vsel %vm6372, %v6287, 0
        %v6383 = vsel %vm6372, %v6289, 0
        %v6386 = vsel %vm6372, %v6291, 0
        %v6389 = vsel %vm6372, %v6293, 0
        %v6392 = vsel %vm6372, %v6295, 0
        %v6395 = vsel %vm6372, %v6297, 0
        %v6398 = vsel %vm6372, %v6299, 0
        %v6401 = vsel %vm6372, %v6301, 0
        %v6404 = vsel %vm6372, %v6303, 0
        %v6407 = vsel %vm6372, %v6305, 0
        %v6410 = vsel %vm6372, %v6307, 0
        %v6413 = vsel %vm6372, %v6309, 0
        %v6416 = vsel %vm6372, %v6311, 0
        %v6419 = vsel %vm6372, %v6313, 0
        %v6422 = vsel %vm6372, %v6315, 0
        %v6425 = vsel %vm6372, %v6317, 0
        %v6428 = vsel %vm6372, %v6319, 0
        %v6431 = vsel %vm6372, %v6321, 0
        %v6434 = vsel %vm6372, %v6323, 0
        %v6437 = vsel %vm6372, %v6325, 0
        %v6440 = vsel %vm6372, %v6327, 0
        %v6443 = vsel %vm6372, %v6329, 0
        %v6446 = vsel %vm6372, %v6331, 0
        %v6449 = vsel %vm6372, %v6333, 0
        %v6452 = vsel %vm6372, %v6335, 0
        %6454 = vmatprep.subr.bf16.mxu0 0
        %6455 = vmatpush1.bf16.msra.mxu0 %v6360
        %6456 = vmatprep.subr.bf16.mxu0 0
        %6457 = vmatpush1.bf16.msra.mxu0 %v6361
        %6458 = vmatprep.subr.bf16.mxu0 0
        %6459 = vmatpush1.bf16.msra.mxu0 %v6362
        %6460 = vmatprep.subr.bf16.mxu0 0
        %6461 = vmatpush1.bf16.msra.mxu0 %v6363
        %6462 = vmatprep.subr.bf16.mxu0 0
        %6463 = vmatpush1.bf16.msra.mxu0 %v6364
        %6464 = vmatprep.subr.bf16.mxu0 0
        %6465 = vmatpush1.bf16.msra.mxu0 %v6365
        %6466 = vmatprep.subr.bf16.mxu0 0
        %6467 = vmatpush1.bf16.msra.mxu0 0
        %6468 = vmatprep.subr.bf16.mxu0 0
        %6469 = vmatpush1.bf16.msra.mxu0 0
        %6470 = vmatprep.subr.bf16.mxu0 0
        %6471 = vmatpush1.bf16.msra.mxu0 0
        %6472 = vmatprep.subr.bf16.mxu0 0
        %6473 = vmatpush1.bf16.msra.mxu0 0
        %6474 = vmatprep.subr.bf16.mxu0 0
        %6475 = vmatpush1.bf16.msra.mxu0 0
        %6476 = vmatprep.subr.bf16.mxu0 0
        %6477 = vmatpush1.bf16.msra.mxu0 0
        %6478 = vmatprep.subr.bf16.mxu0 0
        %6479 = vmatpush1.bf16.msra.mxu0 0
        %6480 = vmatprep.subr.bf16.mxu0 0
        %6481 = vmatpush1.bf16.msra.mxu0 0
        %6482 = vmatprep.subr.bf16.mxu0 0
        %6483 = vmatpush1.bf16.msra.mxu0 0
        %6484 = vmatprep.subr.bf16.mxu0 0
        %6485 = vmatpush1.bf16.msra.mxu0 0
        %6486 = vmatprep.mubr.bf16.mxu0 0
        %6487 = vmatmul.mubr.bf16.gmra.mrb[0].mxu0 %v6374
        %v6488 = vpop.f32.mrb[0].mxu0
        %v6489 = vadd.f32 0.0, %v6488
        %v6490 = vpop.f32.mrb[0].mxu0
        %v6491 = vpop.f32.mrb[0].mxu0
        %v6492 = vadd.f32 0.0, %v6491
        %v6493 = vpop.f32.mrb[0].mxu0
        %6494 = vmatprep.mubr.bf16.mxu0 0
        %6495 = vmatmul.mubr.bf16.gmra.mrb[0].mxu0 %v6377
        %v6496 = vpop.f32.mrb[0].mxu0
        %v6497 = vadd.f32 0.0, %v6496
        %v6498 = vpop.f32.mrb[0].mxu0
        %v6499 = vpop.f32.mrb[0].mxu0
        %v6500 = vadd.f32 0.0, %v6499
        %v6501 = vpop.f32.mrb[0].mxu0
        %6502 = vmatprep.mubr.bf16.mxu0 0
        %6503 = vmatmul.mubr.bf16.gmra.mrb[0].mxu0 %v6380
        %v6504 = vpop.f32.mrb[0].mxu0
        %v6505 = vadd.f32 0.0, %v6504
        %v6506 = vpop.f32.mrb[0].mxu0
        %v6507 = vpop.f32.mrb[0].mxu0
        %v6508 = vadd.f32 0.0, %v6507
        %v6509 = vpop.f32.mrb[0].mxu0
        %6510 = vmatprep.mubr.bf16.mxu0 0
        %6511 = vmatmul.mubr.bf16.gmra.mrb[0].mxu0 %v6383
        %v6512 = vpop.f32.mrb[0].mxu0
        %v6513 = vadd.f32 0.0, %v6512
        %v6514 = vpop.f32.mrb[0].mxu0
        %v6515 = vpop.f32.mrb[0].mxu0
        %v6516 = vadd.f32 0.0, %v6515
        %v6517 = vpop.f32.mrb[0].mxu0
        %6518 = vmatprep.mubr.bf16.mxu0 0
        %6519 = vmatmul.mubr.bf16.gmra.mrb[0].mxu0 %v6386
        %v6520 = vpop.f32.mrb[0].mxu0
        %v6521 = vadd.f32 0.0, %v6520
        %v6522 = vpop.f32.mrb[0].mxu0
        %v6523 = vpop.f32.mrb[0].mxu0
        %v6524 = vadd.f32 0.0, %v6523
        %v6525 = vpop.f32.mrb[0].mxu0
        %6526 = vmatprep.mubr.bf16.mxu0 0
        %6527 = vmatmul.mubr.bf16.gmra.mrb[0].mxu0 %v6389
        %v6528 = vpop.f32.mrb[0].mxu0
        %v6529 = vadd.f32 0.0, %v6528
        %v6530 = vpop.f32.mrb[0].mxu0
        %v6531 = vpop.f32.mrb[0].mxu0
        %v6532 = vadd.f32 0.0, %v6531
        %v6533 = vpop.f32.mrb[0].mxu0
        %6534 = vmatprep.mubr.bf16.mxu0 0
        %6535 = vmatmul.mubr.bf16.gmra.mrb[0].mxu0 %v6392
        %v6536 = vpop.f32.mrb[0].mxu0
        %v6537 = vadd.f32 0.0, %v6536
        %v6538 = vpop.f32.mrb[0].mxu0
        %v6539 = vpop.f32.mrb[0].mxu0
        %v6540 = vadd.f32 0.0, %v6539
        %v6541 = vpop.f32.mrb[0].mxu0
        %6542 = vmatprep.mubr.bf16.mxu0 0
        %6543 = vmatmul.mubr.bf16.gmra.mrb[0].mxu0 %v6395
        %v6544 = vpop.f32.mrb[0].mxu0
        %v6545 = vadd.f32 0.0, %v6544
        %v6546 = vpop.f32.mrb[0].mxu0
        %v6547 = vpop.f32.mrb[0].mxu0
        %v6548 = vadd.f32 0.0, %v6547
        %v6549 = vpop.f32.mrb[0].mxu0
        %6550 = vmatprep.mubr.bf16.mxu0 0
        %6551 = vmatmul.mubr.bf16.gmra.mrb[0].mxu0 %v6398
        %v6552 = vpop.f32.mrb[0].mxu0
        %v6553 = vadd.f32 0.0, %v6552
        %v6554 = vpop.f32.mrb[0].mxu0
        %v6555 = vpop.f32.mrb[0].mxu0
        %v6556 = vadd.f32 0.0, %v6555
        %v6557 = vpop.f32.mrb[0].mxu0
        %6558 = vmatprep.mubr.bf16.mxu0 0
        %6559 = vmatmul.mubr.bf16.gmra.mrb[0].mxu0 %v6401
        %v6560 = vpop.f32.mrb[0].mxu0
        %v6561 = vadd.f32 0.0, %v6560
        %v6562 = vpop.f32.mrb[0].mxu0
        %v6563 = vpop.f32.mrb[0].mxu0
        %v6564 = vadd.f32 0.0, %v6563
        %v6565 = vpop.f32.mrb[0].mxu0
        %6566 = vmatprep.mubr.bf16.mxu0 0
        %6567 = vmatmul.mubr.bf16.gmra.mrb[0].mxu0 %v6404
        %v6568 = vpop.f32.mrb[0].mxu0
        %v6569 = vadd.f32 0.0, %v6568
        %v6570 = vpop.f32.mrb[0].mxu0
        %v6571 = vpop.f32.mrb[0].mxu0
        %v6572 = vadd.f32 0.0, %v6571
        %v6573 = vpop.f32.mrb[0].mxu0
        %6574 = vmatprep.mubr.bf16.mxu0 0
        %6575 = vmatmul.mubr.bf16.gmra.mrb[0].mxu0 %v6407
        %v6576 = vpop.f32.mrb[0].mxu0
        %v6577 = vadd.f32 0.0, %v6576
        %v6578 = vpop.f32.mrb[0].mxu0
        %v6579 = vpop.f32.mrb[0].mxu0
        %v6580 = vadd.f32 0.0, %v6579
        %v6581 = vpop.f32.mrb[0].mxu0
        %6582 = vmatprep.mubr.bf16.mxu0 0
        %6583 = vmatmul.mubr.bf16.gmra.mrb[0].mxu0 %v6410
        %v6584 = vpop.f32.mrb[0].mxu0
        %v6585 = vadd.f32 0.0, %v6584
        %v6586 = vpop.f32.mrb[0].mxu0
        %v6587 = vpop.f32.mrb[0].mxu0
        %v6588 = vadd.f32 0.0, %v6587
        %v6589 = vpop.f32.mrb[0].mxu0
        %6590 = vmatprep.mubr.bf16.mxu0 0
        %6591 = vmatmul.mubr.bf16.gmra.mrb[0].mxu0 %v6413
        %v6592 = vpop.f32.mrb[0].mxu0
        %v6593 = vadd.f32 0.0, %v6592
        %v6594 = vpop.f32.mrb[0].mxu0
        %v6595 = vpop.f32.mrb[0].mxu0
        %v6596 = vadd.f32 0.0, %v6595
        %v6597 = vpop.f32.mrb[0].mxu0
        %6598 = vmatprep.mubr.bf16.mxu0 0
        %6599 = vmatmul.mubr.bf16.gmra.mrb[0].mxu0 %v6416
        %v6600 = vpop.f32.mrb[0].mxu0
        %v6601 = vadd.f32 0.0, %v6600
        %v6602 = vpop.f32.mrb[0].mxu0
        %v6603 = vpop.f32.mrb[0].mxu0
        %v6604 = vadd.f32 0.0, %v6603
        %v6605 = vpop.f32.mrb[0].mxu0
        %6606 = vmatprep.mubr.bf16.mxu0 0
        %6607 = vmatmul.mubr.bf16.gmra.mrb[0].mxu0 %v6419
        %v6608 = vpop.f32.mrb[0].mxu0
        %v6609 = vadd.f32 0.0, %v6608
        %v6610 = vpop.f32.mrb[0].mxu0
        %v6611 = vpop.f32.mrb[0].mxu0
        %v6612 = vadd.f32 0.0, %v6611
        %v6613 = vpop.f32.mrb[0].mxu0
        %6614 = vmatprep.mubr.bf16.mxu0 0
        %6615 = vmatmul.mubr.bf16.gmra.mrb[0].mxu0 %v6422
        %v6616 = vpop.f32.mrb[0].mxu0
        %v6617 = vadd.f32 0.0, %v6616
        %v6618 = vpop.f32.mrb[0].mxu0
        %v6619 = vpop.f32.mrb[0].mxu0
        %v6620 = vadd.f32 0.0, %v6619
        %v6621 = vpop.f32.mrb[0].mxu0
        %6622 = vmatprep.mubr.bf16.mxu0 0
        %6623 = vmatmul.mubr.bf16.gmra.mrb[0].mxu0 %v6425
        %v6624 = vpop.f32.mrb[0].mxu0
        %v6625 = vadd.f32 0.0, %v6624
        %v6626 = vpop.f32.mrb[0].mxu0
        %v6627 = vpop.f32.mrb[0].mxu0
        %v6628 = vadd.f32 0.0, %v6627
        %v6629 = vpop.f32.mrb[0].mxu0
        %6630 = vmatprep.mubr.bf16.mxu0 0
        %6631 = vmatmul.mubr.bf16.gmra.mrb[0].mxu0 %v6428
        %v6632 = vpop.f32.mrb[0].mxu0
        %v6633 = vadd.f32 0.0, %v6632
        %v6634 = vpop.f32.mrb[0].mxu0
        %v6635 = vpop.f32.mrb[0].mxu0
        %v6636 = vadd.f32 0.0, %v6635
        %v6637 = vpop.f32.mrb[0].mxu0
        %6638 = vmatprep.mubr.bf16.mxu0 0
        %6639 = vmatmul.mubr.bf16.gmra.mrb[0].mxu0 %v6431
        %v6640 = vpop.f32.mrb[0].mxu0
        %v6641 = vadd.f32 0.0, %v6640
        %v6642 = vpop.f32.mrb[0].mxu0
        %v6643 = vpop.f32.mrb[0].mxu0
        %v6644 = vadd.f32 0.0, %v6643
        %v6645 = vpop.f32.mrb[0].mxu0
        %6646 = vmatprep.mubr.bf16.mxu0 0
        %6647 = vmatmul.mubr.bf16.gmra.mrb[0].mxu0 %v6434
        %v6648 = vpop.f32.mrb[0].mxu0
        %v6649 = vadd.f32 0.0, %v6648
        %v6650 = vpop.f32.mrb[0].mxu0
        %v6651 = vpop.f32.mrb[0].mxu0
        %v6652 = vadd.f32 0.0, %v6651
        %v6653 = vpop.f32.mrb[0].mxu0
        %6654 = vmatprep.mubr.bf16.mxu0 0
        %6655 = vmatmul.mubr.bf16.gmra.mrb[0].mxu0 %v6437
        %v6656 = vpop.f32.mrb[0].mxu0
        %v6657 = vadd.f32 0.0, %v6656
        %v6658 = vpop.f32.mrb[0].mxu0
        %v6659 = vpop.f32.mrb[0].mxu0
        %v6660 = vadd.f32 0.0, %v6659
        %v6661 = vpop.f32.mrb[0].mxu0
        %6662 = vmatprep.mubr.bf16.mxu0 0
        %6663 = vmatmul.mubr.bf16.gmra.mrb[0].mxu0 %v6440
        %v6664 = vpop.f32.mrb[0].mxu0
        %v6665 = vadd.f32 0.0, %v6664
        %v6666 = vpop.f32.mrb[0].mxu0
        %v6667 = vpop.f32.mrb[0].mxu0
        %v6668 = vadd.f32 0.0, %v6667
        %v6669 = vpop.f32.mrb[0].mxu0
        %6670 = vmatprep.mubr.bf16.mxu0 0
        %6671 = vmatmul.mubr.bf16.gmra.mrb[0].mxu0 %v6443
        %v6672 = vpop.f32.mrb[0].mxu0
        %v6673 = vadd.f32 0.0, %v6672
        %v6674 = vpop.f32.mrb[0].mxu0
        %v6675 = vpop.f32.mrb[0].mxu0
        %v6676 = vadd.f32 0.0, %v6675
        %v6677 = vpop.f32.mrb[0].mxu0
        %6678 = vmatprep.mubr.bf16.mxu0 0
        %6679 = vmatmul.mubr.bf16.gmra.mrb[0].mxu0 %v6446
        %v6680 = vpop.f32.mrb[0].mxu0
        %v6681 = vadd.f32 0.0, %v6680
        %v6682 = vpop.f32.mrb[0].mxu0
        %v6683 = vpop.f32.mrb[0].mxu0
        %v6684 = vadd.f32 0.0, %v6683
        %v6685 = vpop.f32.mrb[0].mxu0
        %6686 = vmatprep.mubr.bf16.mxu0 0
        %6687 = vmatmul.mubr.bf16.gmra.mrb[0].mxu0 %v6449
        %v6688 = vpop.f32.mrb[0].mxu0
        %v6689 = vadd.f32 0.0, %v6688
        %v6690 = vpop.f32.mrb[0].mxu0
        %v6691 = vpop.f32.mrb[0].mxu0
        %v6692 = vadd.f32 0.0, %v6691
        %v6693 = vpop.f32.mrb[0].mxu0
        %6694 = vmatprep.mubr.bf16.mxu0 0
        %6695 = vmatmul.mubr.bf16.gmra.mrb[0].mxu0 %v6452
        %v6696 = vpop.f32.mrb[0].mxu0
        %v6697 = vadd.f32 0.0, %v6696
        %v6698 = vpop.f32.mrb[0].mxu0
        %v6699 = vpop.f32.mrb[0].mxu0
        %v6700 = vadd.f32 0.0, %v6699
        %v6701 = vpop.f32.mrb[0].mxu0
        %6702 = vdwg.mxu0
        %v6704 = vshrl.u32 %v6199, 16
        %v6706 = vrot.slane %v6704, 3
        %v6707 = vshll.u32 %v6199, 16
        %v6709 = vrot.slane %v6707, 4
        %v6710 = vor.u32 %v6706, %v6709
        %v6712 = vshrl.u32 %v6200, 16
        %v6714 = vrot.slane %v6712, 3
        %v6715 = vshll.u32 %v6200, 16
        %v6717 = vrot.slane %v6715, 4
        %v6718 = vor.u32 %v6714, %v6717
        %v6719 = vsel %vm1515, %v6710, %v6718
        %v6721 = vshrl.u32 %v6201, 16
        %v6723 = vrot.slane %v6721, 3
        %v6724 = vshll.u32 %v6201, 16
        %v6726 = vrot.slane %v6724, 4
        %v6727 = vor.u32 %v6723, %v6726
        %v6728 = vsel %vm1515, %v6718, %v6727
        %v6730 = vshrl.u32 %v6202, 16
        %v6732 = vrot.slane %v6730, 3
        %v6733 = vshll.u32 %v6202, 16
        %v6735 = vrot.slane %v6733, 4
        %v6736 = vor.u32 %v6732, %v6735
        %v6737 = vsel %vm1515, %v6727, %v6736
        %v6739 = vshrl.u32 %v6203, 16
        %v6741 = vrot.slane %v6739, 3
        %v6742 = vshll.u32 %v6203, 16
        %v6744 = vrot.slane %v6742, 4
        %v6745 = vor.u32 %v6741, %v6744
        %v6746 = vsel %vm1515, %v6736, %v6745
        %v6748 = vshrl.u32 %v6204, 16
        %v6750 = vrot.slane %v6748, 3
        %v6751 = vshll.u32 %v6204, 16
        %v6753 = vrot.slane %v6751, 4
        %v6754 = vor.u32 %v6750, %v6753
        %v6755 = vsel %vm1515, %v6745, %v6754
        %v6757 = vshrl.u32 %v6205, 16
        %v6759 = vrot.slane %v6757, 3
        %v6760 = vshll.u32 %v6205, 16
        %v6762 = vrot.slane %v6760, 4
        %v6763 = vor.u32 %v6759, %v6762
        %v6764 = vsel %vm1515, %v6754, %v6763
        %v6766 = vshrl.u32 %v6206, 16
        %v6768 = vrot.slane %v6766, 3
        %v6769 = vshll.u32 %v6206, 16
        %v6771 = vrot.slane %v6769, 4
        %v6772 = vor.u32 %v6768, %v6771
        %v6773 = vsel %vm1515, %v6763, %v6772
        %v6775 = vshrl.u32 %v6207, 16
        %v6777 = vrot.slane %v6775, 3
        %v6778 = vshll.u32 %v6207, 16
        %v6780 = vrot.slane %v6778, 4
        %v6781 = vor.u32 %v6777, %v6780
        %v6782 = vsel %vm1515, %v6772, %v6781
        %v6784 = vshrl.u32 %v6208, 16
        %v6786 = vrot.slane %v6784, 3
        %v6787 = vshll.u32 %v6208, 16
        %v6789 = vrot.slane %v6787, 4
        %v6790 = vor.u32 %v6786, %v6789
        %v6791 = vsel %vm1515, %v6781, %v6790
        %v6793 = vshrl.u32 %v6209, 16
        %v6795 = vrot.slane %v6793, 3
        %v6796 = vshll.u32 %v6209, 16
        %v6798 = vrot.slane %v6796, 4
        %v6799 = vor.u32 %v6795, %v6798
        %v6800 = vsel %vm1515, %v6790, %v6799
        %v6802 = vshrl.u32 %v6210, 16
        %v6804 = vrot.slane %v6802, 3
        %v6805 = vshll.u32 %v6210, 16
        %v6807 = vrot.slane %v6805, 4
        %v6808 = vor.u32 %v6804, %v6807
        %v6809 = vsel %vm1515, %v6799, %v6808
        %v6811 = vshrl.u32 %v6211, 16
        %v6813 = vrot.slane %v6811, 3
        %v6814 = vshll.u32 %v6211, 16
        %v6816 = vrot.slane %v6814, 4
        %v6817 = vor.u32 %v6813, %v6816
        %v6818 = vsel %vm1515, %v6808, %v6817
        %v6820 = vshrl.u32 %v6212, 16
        %v6822 = vrot.slane %v6820, 3
        %v6823 = vshll.u32 %v6212, 16
        %v6825 = vrot.slane %v6823, 4
        %v6826 = vor.u32 %v6822, %v6825
        %v6827 = vsel %vm1515, %v6817, %v6826
        %v6829 = vshrl.u32 %v6213, 16
        %v6831 = vrot.slane %v6829, 3
        %v6832 = vshll.u32 %v6213, 16
        %v6834 = vrot.slane %v6832, 4
        %v6835 = vor.u32 %v6831, %v6834
        %v6836 = vsel %vm1515, %v6826, %v6835
        %v6838 = vshrl.u32 %v6214, 16
        %v6840 = vrot.slane %v6838, 3
        %v6841 = vshll.u32 %v6214, 16
        %v6843 = vrot.slane %v6841, 4
        %v6844 = vor.u32 %v6840, %v6843
        %v6845 = vsel %vm1515, %v6835, %v6844
        %v6847 = vshrl.u32 %v6215, 16
        %v6849 = vrot.slane %v6847, 3
        %v6850 = vshll.u32 %v6215, 16
        %v6852 = vrot.slane %v6850, 4
        %v6853 = vor.u32 %v6849, %v6852
        %v6854 = vsel %vm1515, %v6844, %v6853
        %v6856 = vshrl.u32 %v6216, 16
        %v6858 = vrot.slane %v6856, 3
        %v6859 = vshll.u32 %v6216, 16
        %v6861 = vrot.slane %v6859, 4
        %v6862 = vor.u32 %v6858, %v6861
        %v6863 = vsel %vm1515, %v6853, %v6862
        %v6865 = vshrl.u32 %v6217, 16
        %v6867 = vrot.slane %v6865, 3
        %v6868 = vshll.u32 %v6217, 16
        %v6870 = vrot.slane %v6868, 4
        %v6871 = vor.u32 %v6867, %v6870
        %v6872 = vsel %vm1515, %v6862, %v6871
        %v6874 = vshrl.u32 %v6218, 16
        %v6876 = vrot.slane %v6874, 3
        %v6877 = vshll.u32 %v6218, 16
        %v6879 = vrot.slane %v6877, 4
        %v6880 = vor.u32 %v6876, %v6879
        %v6881 = vsel %vm1515, %v6871, %v6880
        %v6883 = vshrl.u32 %v6219, 16
        %v6885 = vrot.slane %v6883, 3
        %v6886 = vshll.u32 %v6219, 16
        %v6888 = vrot.slane %v6886, 4
        %v6889 = vor.u32 %v6885, %v6888
        %v6890 = vsel %vm1515, %v6880, %v6889
        %v6892 = vshrl.u32 %v6220, 16
        %v6894 = vrot.slane %v6892, 3
        %v6895 = vshll.u32 %v6220, 16
        %v6897 = vrot.slane %v6895, 4
        %v6898 = vor.u32 %v6894, %v6897
        %v6899 = vsel %vm1515, %v6889, %v6898
        %v6901 = vshrl.u32 %v6221, 16
        %v6903 = vrot.slane %v6901, 3
        %v6904 = vshll.u32 %v6221, 16
        %v6906 = vrot.slane %v6904, 4
        %v6907 = vor.u32 %v6903, %v6906
        %v6908 = vsel %vm1515, %v6898, %v6907
        %v6910 = vshrl.u32 %v6222, 16
        %v6912 = vrot.slane %v6910, 3
        %v6913 = vshll.u32 %v6222, 16
        %v6915 = vrot.slane %v6913, 4
        %v6916 = vor.u32 %v6912, %v6915
        %v6917 = vsel %vm1515, %v6907, %v6916
        %v6919 = vshrl.u32 %v6223, 16
        %v6921 = vrot.slane %v6919, 3
        %v6922 = vshll.u32 %v6223, 16
        %v6924 = vrot.slane %v6922, 4
        %v6925 = vor.u32 %v6921, %v6924
        %v6926 = vsel %vm1515, %v6916, %v6925
        %v6928 = vshrl.u32 %v6224, 16
        %v6930 = vrot.slane %v6928, 3
        %v6931 = vshll.u32 %v6224, 16
        %v6933 = vrot.slane %v6931, 4
        %v6934 = vor.u32 %v6930, %v6933
        %v6935 = vsel %vm1515, %v6925, %v6934
        %v6937 = vshrl.u32 %v6225, 16
        %v6939 = vrot.slane %v6937, 3
        %v6940 = vshll.u32 %v6225, 16
        %v6942 = vrot.slane %v6940, 4
        %v6943 = vor.u32 %v6939, %v6942
        %v6944 = vsel %vm1515, %v6934, %v6943
        %v6946 = vshrl.u32 %v6226, 16
        %v6948 = vrot.slane %v6946, 3
        %v6949 = vshll.u32 %v6226, 16
        %v6951 = vrot.slane %v6949, 4
        %v6952 = vor.u32 %v6948, %v6951
        %v6953 = vsel %vm1515, %v6943, %v6952
        %v6966 = vunpack.c.l.b16 %v6227
        %v6967 = vunpack.c.l.b16 %v6228
        %v6968 = vunpack.c.l.b16 %v6229
        %v6969 = vunpack.c.l.b16 %v6230
        %v6970 = vunpack.c.l.b16 %v6231
        %v6971 = vunpack.c.l.b16 %v6232
        %v6972 = vunpack.c.l.b16 %v6233
        %v6973 = vunpack.c.l.b16 %v6234
        %v6974 = vunpack.c.l.b16 %v6235
        %v6975 = vunpack.c.l.b16 %v6236
        %v6976 = vunpack.c.l.b16 %v6237
        %v6977 = vunpack.c.l.b16 %v6238
        %v6978 = vpack.c.b16 %v6967, %v6966
        %v6979 = vpack.c.b16 %v6969, %v6968
        %v6980 = vpack.c.b16 %v6971, %v6970
        %v6981 = vpack.c.b16 %v6973, %v6972
        %v6982 = vpack.c.b16 %v6975, %v6974
        %v6983 = vpack.c.b16 %v6977, %v6976
        %v6991 = vsel %vm6372, %v6719, 0
        %v6994 = vsel %vm6372, %v6728, 0
        %v6997 = vsel %vm6372, %v6737, 0
        %v7000 = vsel %vm6372, %v6746, 0
        %v7003 = vsel %vm6372, %v6755, 0
        %v7006 = vsel %vm6372, %v6764, 0
        %v7009 = vsel %vm6372, %v6773, 0
        %v7012 = vsel %vm6372, %v6782, 0
        %v7015 = vsel %vm6372, %v6791, 0
        %v7018 = vsel %vm6372, %v6800, 0
        %v7021 = vsel %vm6372, %v6809, 0
        %v7024 = vsel %vm6372, %v6818, 0
        %v7027 = vsel %vm6372, %v6827, 0
        %v7030 = vsel %vm6372, %v6836, 0
        %v7033 = vsel %vm6372, %v6845, 0
        %v7036 = vsel %vm6372, %v6854, 0
        %v7039 = vsel %vm6372, %v6863, 0
        %v7042 = vsel %vm6372, %v6872, 0
        %v7045 = vsel %vm6372, %v6881, 0
        %v7048 = vsel %vm6372, %v6890, 0
        %v7051 = vsel %vm6372, %v6899, 0
        %v7054 = vsel %vm6372, %v6908, 0
        %v7057 = vsel %vm6372, %v6917, 0
        %v7060 = vsel %vm6372, %v6926, 0
        %v7063 = vsel %vm6372, %v6935, 0
        %v7066 = vsel %vm6372, %v6944, 0
        %v7069 = vsel %vm6372, %v6953, 0
        %7071 = vmatprep.subr.bf16.mxu0 0
        %7072 = vmatpush1.bf16.msra.mxu0 %v6978
        %7073 = vmatprep.subr.bf16.mxu0 0
        %7074 = vmatpush1.bf16.msra.mxu0 %v6979
        %7075 = vmatprep.subr.bf16.mxu0 0
        %7076 = vmatpush1.bf16.msra.mxu0 %v6980
        %7077 = vmatprep.subr.bf16.mxu0 0
        %7078 = vmatpush1.bf16.msra.mxu0 %v6981
        %7079 = vmatprep.subr.bf16.mxu0 0
        %7080 = vmatpush1.bf16.msra.mxu0 %v6982
        %7081 = vmatprep.subr.bf16.mxu0 0
        %7082 = vmatpush1.bf16.msra.mxu0 %v6983
        %7083 = vmatprep.subr.bf16.mxu0 0
        %7084 = vmatpush1.bf16.msra.mxu0 0
        %7085 = vmatprep.subr.bf16.mxu0 0
        %7086 = vmatpush1.bf16.msra.mxu0 0
        %7087 = vmatprep.subr.bf16.mxu0 0
        %7088 = vmatpush1.bf16.msra.mxu0 0
        %7089 = vmatprep.subr.bf16.mxu0 0
        %7090 = vmatpush1.bf16.msra.mxu0 0
        %7091 = vmatprep.subr.bf16.mxu0 0
        %7092 = vmatpush1.bf16.msra.mxu0 0
        %7093 = vmatprep.subr.bf16.mxu0 0
        %7094 = vmatpush1.bf16.msra.mxu0 0
        %7095 = vmatprep.subr.bf16.mxu0 0
        %7096 = vmatpush1.bf16.msra.mxu0 0
        %7097 = vmatprep.subr.bf16.mxu0 0
        %7098 = vmatpush1.bf16.msra.mxu0 0
        %7099 = vmatprep.subr.bf16.mxu0 0
        %7100 = vmatpush1.bf16.msra.mxu0 0
        %7101 = vmatprep.subr.bf16.mxu0 0
        %7102 = vmatpush1.bf16.msra.mxu0 0
        %7103 = vmatprep.mubr.bf16.mxu0 0
        %7104 = vmatmul.mubr.bf16.gmra.mrb[0].mxu0 %v6991
        %v7105 = vpop.f32.mrb[0].mxu0
        %v7106 = vadd.f32 %v6489, %v7105
        %v7107 = vpop.f32.mrb[0].mxu0
        %v7108 = vpop.f32.mrb[0].mxu0
        %v7109 = vadd.f32 %v6492, %v7108
        %v7110 = vpop.f32.mrb[0].mxu0
        %7111 = vmatprep.mubr.bf16.mxu0 0
        %7112 = vmatmul.mubr.bf16.gmra.mrb[0].mxu0 %v6994
        %v7113 = vpop.f32.mrb[0].mxu0
        %v7114 = vadd.f32 %v6497, %v7113
        %v7115 = vpop.f32.mrb[0].mxu0
        %v7116 = vpop.f32.mrb[0].mxu0
        %v7117 = vadd.f32 %v6500, %v7116
        %v7118 = vpop.f32.mrb[0].mxu0
        %7119 = vmatprep.mubr.bf16.mxu0 0
        %7120 = vmatmul.mubr.bf16.gmra.mrb[0].mxu0 %v6997
        %v7121 = vpop.f32.mrb[0].mxu0
        %v7122 = vadd.f32 %v6505, %v7121
        %v7123 = vpop.f32.mrb[0].mxu0
        %v7124 = vpop.f32.mrb[0].mxu0
        %v7125 = vadd.f32 %v6508, %v7124
        %v7126 = vpop.f32.mrb[0].mxu0
        %7127 = vmatprep.mubr.bf16.mxu0 0
        %7128 = vmatmul.mubr.bf16.gmra.mrb[0].mxu0 %v7000
        %v7129 = vpop.f32.mrb[0].mxu0
        %v7130 = vadd.f32 %v6513, %v7129
        %v7131 = vpop.f32.mrb[0].mxu0
        %v7132 = vpop.f32.mrb[0].mxu0
        %v7133 = vadd.f32 %v6516, %v7132
        %v7134 = vpop.f32.mrb[0].mxu0
        %7135 = vmatprep.mubr.bf16.mxu0 0
        %7136 = vmatmul.mubr.bf16.gmra.mrb[0].mxu0 %v7003
        %v7137 = vpop.f32.mrb[0].mxu0
        %v7138 = vadd.f32 %v6521, %v7137
        %v7139 = vpop.f32.mrb[0].mxu0
        %v7140 = vpop.f32.mrb[0].mxu0
        %v7141 = vadd.f32 %v6524, %v7140
        %v7142 = vpop.f32.mrb[0].mxu0
        %7143 = vmatprep.mubr.bf16.mxu0 0
        %7144 = vmatmul.mubr.bf16.gmra.mrb[0].mxu0 %v7006
        %v7145 = vpop.f32.mrb[0].mxu0
        %v7146 = vadd.f32 %v6529, %v7145
        %v7147 = vpop.f32.mrb[0].mxu0
        %v7148 = vpop.f32.mrb[0].mxu0
        %v7149 = vadd.f32 %v6532, %v7148
        %v7150 = vpop.f32.mrb[0].mxu0
        %7151 = vmatprep.mubr.bf16.mxu0 0
        %7152 = vmatmul.mubr.bf16.gmra.mrb[0].mxu0 %v7009
        %v7153 = vpop.f32.mrb[0].mxu0
        %v7154 = vadd.f32 %v6537, %v7153
        %v7155 = vpop.f32.mrb[0].mxu0
        %v7156 = vpop.f32.mrb[0].mxu0
        %v7157 = vadd.f32 %v6540, %v7156
        %v7158 = vpop.f32.mrb[0].mxu0
        %7159 = vmatprep.mubr.bf16.mxu0 0
        %7160 = vmatmul.mubr.bf16.gmra.mrb[0].mxu0 %v7012
        %v7161 = vpop.f32.mrb[0].mxu0
        %v7162 = vadd.f32 %v6545, %v7161
        %v7163 = vpop.f32.mrb[0].mxu0
        %v7164 = vpop.f32.mrb[0].mxu0
        %v7165 = vadd.f32 %v6548, %v7164
        %v7166 = vpop.f32.mrb[0].mxu0
        %7167 = vmatprep.mubr.bf16.mxu0 0
        %7168 = vmatmul.mubr.bf16.gmra.mrb[0].mxu0 %v7015
        %v7169 = vpop.f32.mrb[0].mxu0
        %v7170 = vadd.f32 %v6553, %v7169
        %v7171 = vpop.f32.mrb[0].mxu0
        %v7172 = vpop.f32.mrb[0].mxu0
        %v7173 = vadd.f32 %v6556, %v7172
        %v7174 = vpop.f32.mrb[0].mxu0
        %7175 = vmatprep.mubr.bf16.mxu0 0
        %7176 = vmatmul.mubr.bf16.gmra.mrb[0].mxu0 %v7018
        %v7177 = vpop.f32.mrb[0].mxu0
        %v7178 = vadd.f32 %v6561, %v7177
        %v7179 = vpop.f32.mrb[0].mxu0
        %v7180 = vpop.f32.mrb[0].mxu0
        %v7181 = vadd.f32 %v6564, %v7180
        %v7182 = vpop.f32.mrb[0].mxu0
        %7183 = vmatprep.mubr.bf16.mxu0 0
        %7184 = vmatmul.mubr.bf16.gmra.mrb[0].mxu0 %v7021
        %v7185 = vpop.f32.mrb[0].mxu0
        %v7186 = vadd.f32 %v6569, %v7185
        %v7187 = vpop.f32.mrb[0].mxu0
        %v7188 = vpop.f32.mrb[0].mxu0
        %v7189 = vadd.f32 %v6572, %v7188
        %v7190 = vpop.f32.mrb[0].mxu0
        %7191 = vmatprep.mubr.bf16.mxu0 0
        %7192 = vmatmul.mubr.bf16.gmra.mrb[0].mxu0 %v7024
        %v7193 = vpop.f32.mrb[0].mxu0
        %v7194 = vadd.f32 %v6577, %v7193
        %v7195 = vpop.f32.mrb[0].mxu0
        %v7196 = vpop.f32.mrb[0].mxu0
        %v7197 = vadd.f32 %v6580, %v7196
        %v7198 = vpop.f32.mrb[0].mxu0
        %7199 = vmatprep.mubr.bf16.mxu0 0
        %7200 = vmatmul.mubr.bf16.gmra.mrb[0].mxu0 %v7027
        %v7201 = vpop.f32.mrb[0].mxu0
        %v7202 = vadd.f32 %v6585, %v7201
        %v7203 = vpop.f32.mrb[0].mxu0
        %v7204 = vpop.f32.mrb[0].mxu0
        %v7205 = vadd.f32 %v6588, %v7204
        %v7206 = vpop.f32.mrb[0].mxu0
        %7207 = vmatprep.mubr.bf16.mxu0 0
        %7208 = vmatmul.mubr.bf16.gmra.mrb[0].mxu0 %v7030
        %v7209 = vpop.f32.mrb[0].mxu0
        %v7210 = vadd.f32 %v6593, %v7209
        %v7211 = vpop.f32.mrb[0].mxu0
        %v7212 = vpop.f32.mrb[0].mxu0
        %v7213 = vadd.f32 %v6596, %v7212
        %v7214 = vpop.f32.mrb[0].mxu0
        %7215 = vmatprep.mubr.bf16.mxu0 0
        %7216 = vmatmul.mubr.bf16.gmra.mrb[0].mxu0 %v7033
        %v7217 = vpop.f32.mrb[0].mxu0
        %v7218 = vadd.f32 %v6601, %v7217
        %v7219 = vpop.f32.mrb[0].mxu0
        %v7220 = vpop.f32.mrb[0].mxu0
        %v7221 = vadd.f32 %v6604, %v7220
        %v7222 = vpop.f32.mrb[0].mxu0
        %7223 = vmatprep.mubr.bf16.mxu0 0
        %7224 = vmatmul.mubr.bf16.gmra.mrb[0].mxu0 %v7036
        %v7225 = vpop.f32.mrb[0].mxu0
        %v7226 = vadd.f32 %v6609, %v7225
        %v7227 = vpop.f32.mrb[0].mxu0
        %v7228 = vpop.f32.mrb[0].mxu0
        %v7229 = vadd.f32 %v6612, %v7228
        %v7230 = vpop.f32.mrb[0].mxu0
        %7231 = vmatprep.mubr.bf16.mxu0 0
        %7232 = vmatmul.mubr.bf16.gmra.mrb[0].mxu0 %v7039
        %v7233 = vpop.f32.mrb[0].mxu0
        %v7234 = vadd.f32 %v6617, %v7233
        %v7235 = vpop.f32.mrb[0].mxu0
        %v7236 = vpop.f32.mrb[0].mxu0
        %v7237 = vadd.f32 %v6620, %v7236
        %v7238 = vpop.f32.mrb[0].mxu0
        %7239 = vmatprep.mubr.bf16.mxu0 0
        %7240 = vmatmul.mubr.bf16.gmra.mrb[0].mxu0 %v7042
        %v7241 = vpop.f32.mrb[0].mxu0
        %v7242 = vadd.f32 %v6625, %v7241
        %v7243 = vpop.f32.mrb[0].mxu0
        %v7244 = vpop.f32.mrb[0].mxu0
        %v7245 = vadd.f32 %v6628, %v7244
        %v7246 = vpop.f32.mrb[0].mxu0
        %7247 = vmatprep.mubr.bf16.mxu0 0
        %7248 = vmatmul.mubr.bf16.gmra.mrb[0].mxu0 %v7045
        %v7249 = vpop.f32.mrb[0].mxu0
        %v7250 = vadd.f32 %v6633, %v7249
        %v7251 = vpop.f32.mrb[0].mxu0
        %v7252 = vpop.f32.mrb[0].mxu0
        %v7253 = vadd.f32 %v6636, %v7252
        %v7254 = vpop.f32.mrb[0].mxu0
        %7255 = vmatprep.mubr.bf16.mxu0 0
        %7256 = vmatmul.mubr.bf16.gmra.mrb[0].mxu0 %v7048
        %v7257 = vpop.f32.mrb[0].mxu0
        %v7258 = vadd.f32 %v6641, %v7257
        %v7259 = vpop.f32.mrb[0].mxu0
        %v7260 = vpop.f32.mrb[0].mxu0
        %v7261 = vadd.f32 %v6644, %v7260
        %v7262 = vpop.f32.mrb[0].mxu0
        %7263 = vmatprep.mubr.bf16.mxu0 0
        %7264 = vmatmul.mubr.bf16.gmra.mrb[0].mxu0 %v7051
        %v7265 = vpop.f32.mrb[0].mxu0
        %v7266 = vadd.f32 %v6649, %v7265
        %v7267 = vpop.f32.mrb[0].mxu0
        %v7268 = vpop.f32.mrb[0].mxu0
        %v7269 = vadd.f32 %v6652, %v7268
        %v7270 = vpop.f32.mrb[0].mxu0
        %7271 = vmatprep.mubr.bf16.mxu0 0
        %7272 = vmatmul.mubr.bf16.gmra.mrb[0].mxu0 %v7054
        %v7273 = vpop.f32.mrb[0].mxu0
        %v7274 = vadd.f32 %v6657, %v7273
        %v7275 = vpop.f32.mrb[0].mxu0
        %v7276 = vpop.f32.mrb[0].mxu0
        %v7277 = vadd.f32 %v6660, %v7276
        %v7278 = vpop.f32.mrb[0].mxu0
        %7279 = vmatprep.mubr.bf16.mxu0 0
        %7280 = vmatmul.mubr.bf16.gmra.mrb[0].mxu0 %v7057
        %v7281 = vpop.f32.mrb[0].mxu0
        %v7282 = vadd.f32 %v6665, %v7281
        %v7283 = vpop.f32.mrb[0].mxu0
        %v7284 = vpop.f32.mrb[0].mxu0
        %v7285 = vadd.f32 %v6668, %v7284
        %v7286 = vpop.f32.mrb[0].mxu0
        %7287 = vmatprep.mubr.bf16.mxu0 0
        %7288 = vmatmul.mubr.bf16.gmra.mrb[0].mxu0 %v7060
        %v7289 = vpop.f32.mrb[0].mxu0
        %v7290 = vadd.f32 %v6673, %v7289
        %v7291 = vpop.f32.mrb[0].mxu0
        %v7292 = vpop.f32.mrb[0].mxu0
        %v7293 = vadd.f32 %v6676, %v7292
        %v7294 = vpop.f32.mrb[0].mxu0
        %7295 = vmatprep.mubr.bf16.mxu0 0
        %7296 = vmatmul.mubr.bf16.gmra.mrb[0].mxu0 %v7063
        %v7297 = vpop.f32.mrb[0].mxu0
        %v7298 = vadd.f32 %v6681, %v7297
        %v7299 = vpop.f32.mrb[0].mxu0
        %v7300 = vpop.f32.mrb[0].mxu0
        %v7301 = vadd.f32 %v6684, %v7300
        %v7302 = vpop.f32.mrb[0].mxu0
        %7303 = vmatprep.mubr.bf16.mxu0 0
        %7304 = vmatmul.mubr.bf16.gmra.mrb[0].mxu0 %v7066
        %v7305 = vpop.f32.mrb[0].mxu0
        %v7306 = vadd.f32 %v6689, %v7305
        %v7307 = vpop.f32.mrb[0].mxu0
        %v7308 = vpop.f32.mrb[0].mxu0
        %v7309 = vadd.f32 %v6692, %v7308
        %v7310 = vpop.f32.mrb[0].mxu0
        %7311 = vmatprep.mubr.bf16.mxu0 0
        %7312 = vmatmul.mubr.bf16.gmra.mrb[0].mxu0 %v7069
        %v7313 = vpop.f32.mrb[0].mxu0
        %v7314 = vadd.f32 %v6697, %v7313
        %v7315 = vpop.f32.mrb[0].mxu0
        %v7316 = vpop.f32.mrb[0].mxu0
        %v7317 = vadd.f32 %v6700, %v7316
        %v7318 = vpop.f32.mrb[0].mxu0
        %7319 = vdwg.mxu0
        %v7320 = vld [vmem:[#allocation3 + $0xd8] sm:$0x1f]
        %s7321 = scalar_lea.vmem %s4, 96
        %v7322 = vld [vmem:[%s7321] sm:$0xf]
        %v7323 = vld [vmem:[%s7321 + $0x4] sm:$0xf]
        %v7324 = vld [vmem:[%s7321 + $0x8] sm:$0xf]
        %v7325 = vld [vmem:[%s7321 + $0xc] sm:$0xf]
        %v7326 = vld [vmem:[%s7321 + $0x10] sm:$0xf]
        %v7327 = vld [vmem:[%s7321 + $0x14] sm:$0xf]
        %v7328 = vld [vmem:[%s7321 + $0x18] sm:$0xf]
        %v7329 = vld [vmem:[%s7321 + $0x1c] sm:$0xf]
        %v7330 = vld [vmem:[%s7321 + $0x20] sm:$0xf]
        %v7331 = vld [vmem:[%s7321 + $0x24] sm:$0xf]
        %v7332 = vld [vmem:[%s7321 + $0x28] sm:$0xf]
        %v7333 = vld [vmem:[%s7321 + $0x2c] sm:$0xf]
        %v7335 = vshrl.u32 %v6239, 16
        %v7337 = vrot.slane %v7335, 4
        %v7338 = vshll.u32 %v6239, 16
        %v7340 = vrot.slane %v7338, 5
        %v7341 = vor.u32 %v7337, %v7340
        %v7342 = vrot.slane %v6712, 4
        %v7343 = vrot.slane %v6715, 5
        %v7344 = vor.u32 %v7342, %v7343
        %v7345 = vsel %vm2114, %v7341, %v7344
        %v7346 = vrot.slane %v6721, 4
        %v7347 = vrot.slane %v6724, 5
        %v7348 = vor.u32 %v7346, %v7347
        %v7349 = vsel %vm2114, %v7344, %v7348
        %v7350 = vrot.slane %v6730, 4
        %v7351 = vrot.slane %v6733, 5
        %v7352 = vor.u32 %v7350, %v7351
        %v7353 = vsel %vm2114, %v7348, %v7352
        %v7354 = vrot.slane %v6739, 4
        %v7355 = vrot.slane %v6742, 5
        %v7356 = vor.u32 %v7354, %v7355
        %v7357 = vsel %vm2114, %v7352, %v7356
        %v7358 = vrot.slane %v6748, 4
        %v7359 = vrot.slane %v6751, 5
        %v7360 = vor.u32 %v7358, %v7359
        %v7361 = vsel %vm2114, %v7356, %v7360
        %v7362 = vrot.slane %v6757, 4
        %v7363 = vrot.slane %v6760, 5
        %v7364 = vor.u32 %v7362, %v7363
        %v7365 = vsel %vm2114, %v7360, %v7364
        %v7366 = vrot.slane %v6766, 4
        %v7367 = vrot.slane %v6769, 5
        %v7368 = vor.u32 %v7366, %v7367
        %v7369 = vsel %vm2114, %v7364, %v7368
        %v7370 = vrot.slane %v6775, 4
        %v7371 = vrot.slane %v6778, 5
        %v7372 = vor.u32 %v7370, %v7371
        %v7373 = vsel %vm2114, %v7368, %v7372
        %v7374 = vrot.slane %v6784, 4
        %v7375 = vrot.slane %v6787, 5
        %v7376 = vor.u32 %v7374, %v7375
        %v7377 = vsel %vm2114, %v7372, %v7376
        %v7378 = vrot.slane %v6793, 4
        %v7379 = vrot.slane %v6796, 5
        %v7380 = vor.u32 %v7378, %v7379
        %v7381 = vsel %vm2114, %v7376, %v7380
        %v7382 = vrot.slane %v6802, 4
        %v7383 = vrot.slane %v6805, 5
        %v7384 = vor.u32 %v7382, %v7383
        %v7385 = vsel %vm2114, %v7380, %v7384
        %v7386 = vrot.slane %v6811, 4
        %v7387 = vrot.slane %v6814, 5
        %v7388 = vor.u32 %v7386, %v7387
        %v7389 = vsel %vm2114, %v7384, %v7388
        %v7390 = vrot.slane %v6820, 4
        %v7391 = vrot.slane %v6823, 5
        %v7392 = vor.u32 %v7390, %v7391
        %v7393 = vsel %vm2114, %v7388, %v7392
        %v7394 = vrot.slane %v6829, 4
        %v7395 = vrot.slane %v6832, 5
        %v7396 = vor.u32 %v7394, %v7395
        %v7397 = vsel %vm2114, %v7392, %v7396
        %v7398 = vrot.slane %v6838, 4
        %v7399 = vrot.slane %v6841, 5
        %v7400 = vor.u32 %v7398, %v7399
        %v7401 = vsel %vm2114, %v7396, %v7400
        %v7402 = vrot.slane %v6847, 4
        %v7403 = vrot.slane %v6850, 5
        %v7404 = vor.u32 %v7402, %v7403
        %v7405 = vsel %vm2114, %v7400, %v7404
        %v7406 = vrot.slane %v6856, 4
        %v7407 = vrot.slane %v6859, 5
        %v7408 = vor.u32 %v7406, %v7407
        %v7409 = vsel %vm2114, %v7404, %v7408
        %v7410 = vrot.slane %v6865, 4
        %v7411 = vrot.slane %v6868, 5
        %v7412 = vor.u32 %v7410, %v7411
        %v7413 = vsel %vm2114, %v7408, %v7412
        %v7414 = vrot.slane %v6874, 4
        %v7415 = vrot.slane %v6877, 5
        %v7416 = vor.u32 %v7414, %v7415
        %v7417 = vsel %vm2114, %v7412, %v7416
        %v7418 = vrot.slane %v6883, 4
        %v7419 = vrot.slane %v6886, 5
        %v7420 = vor.u32 %v7418, %v7419
        %v7421 = vsel %vm2114, %v7416, %v7420
        %v7422 = vrot.slane %v6892, 4
        %v7423 = vrot.slane %v6895, 5
        %v7424 = vor.u32 %v7422, %v7423
        %v7425 = vsel %vm2114, %v7420, %v7424
        %v7426 = vrot.slane %v6901, 4
        %v7427 = vrot.slane %v6904, 5
        %v7428 = vor.u32 %v7426, %v7427
        %v7429 = vsel %vm2114, %v7424, %v7428
        %v7430 = vrot.slane %v6910, 4
        %v7431 = vrot.slane %v6913, 5
        %v7432 = vor.u32 %v7430, %v7431
        %v7433 = vsel %vm2114, %v7428, %v7432
        %v7434 = vrot.slane %v6919, 4
        %v7435 = vrot.slane %v6922, 5
        %v7436 = vor.u32 %v7434, %v7435
        %v7437 = vsel %vm2114, %v7432, %v7436
        %v7438 = vrot.slane %v6928, 4
        %v7439 = vrot.slane %v6931, 5
        %v7440 = vor.u32 %v7438, %v7439
        %v7441 = vsel %vm2114, %v7436, %v7440
        %v7442 = vrot.slane %v6937, 4
        %v7443 = vrot.slane %v6940, 5
        %v7444 = vor.u32 %v7442, %v7443
        %v7445 = vsel %vm2114, %v7440, %v7444
        %v7447 = vshrl.u32 %v7320, 16
        %v7449 = vrot.slane %v7447, 4
        %v7450 = vshll.u32 %v7320, 16
        %v7452 = vrot.slane %v7450, 5
        %v7453 = vor.u32 %v7449, %v7452
        %v7454 = vsel %vm2114, %v7444, %v7453
        %v7467 = vunpack.c.l.b16 %v7322
        %v7468 = vunpack.c.l.b16 %v7323
        %v7469 = vunpack.c.l.b16 %v7324
        %v7470 = vunpack.c.l.b16 %v7325
        %v7471 = vunpack.c.l.b16 %v7326
        %v7472 = vunpack.c.l.b16 %v7327
        %v7473 = vunpack.c.l.b16 %v7328
        %v7474 = vunpack.c.l.b16 %v7329
        %v7475 = vunpack.c.l.b16 %v7330
        %v7476 = vunpack.c.l.b16 %v7331
        %v7477 = vunpack.c.l.b16 %v7332
        %v7478 = vunpack.c.l.b16 %v7333
        %v7479 = vpack.c.b16 %v7468, %v7467
        %v7480 = vpack.c.b16 %v7470, %v7469
        %v7481 = vpack.c.b16 %v7472, %v7471
        %v7482 = vpack.c.b16 %v7474, %v7473
        %v7483 = vpack.c.b16 %v7476, %v7475
        %v7484 = vpack.c.b16 %v7478, %v7477
        %v7492 = vsel %vm6372, %v7345, 0
        %v7495 = vsel %vm6372, %v7349, 0
        %v7498 = vsel %vm6372, %v7353, 0
        %v7501 = vsel %vm6372, %v7357, 0
        %v7504 = vsel %vm6372, %v7361, 0
        %v7507 = vsel %vm6372, %v7365, 0
        %v7510 = vsel %vm6372, %v7369, 0
        %v7513 = vsel %vm6372, %v7373, 0
        %v7516 = vsel %vm6372, %v7377, 0
        %v7519 = vsel %vm6372, %v7381, 0
        %v7522 = vsel %vm6372, %v7385, 0
        %v7525 = vsel %vm6372, %v7389, 0
        %v7528 = vsel %vm6372, %v7393, 0
        %v7531 = vsel %vm6372, %v7397, 0
        %v7534 = vsel %vm6372, %v7401, 0
        %v7537 = vsel %vm6372, %v7405, 0
        %v7540 = vsel %vm6372, %v7409, 0
        %v7543 = vsel %vm6372, %v7413, 0
        %v7546 = vsel %vm6372, %v7417, 0
        %v7549 = vsel %vm6372, %v7421, 0
        %v7552 = vsel %vm6372, %v7425, 0
        %v7555 = vsel %vm6372, %v7429, 0
        %v7558 = vsel %vm6372, %v7433, 0
        %v7561 = vsel %vm6372, %v7437, 0
        %v7564 = vsel %vm6372, %v7441, 0
        %v7567 = vsel %vm6372, %v7445, 0
        %v7570 = vsel %vm6372, %v7454, 0
        %7572 = vmatprep.subr.bf16.mxu0 0
        %7573 = vmatpush1.bf16.msra.mxu0 %v7479
        %7574 = vmatprep.subr.bf16.mxu0 0
        %7575 = vmatpush1.bf16.msra.mxu0 %v7480
        %7576 = vmatprep.subr.bf16.mxu0 0
        %7577 = vmatpush1.bf16.msra.mxu0 %v7481
        %7578 = vmatprep.subr.bf16.mxu0 0
        %7579 = vmatpush1.bf16.msra.mxu0 %v7482
        %7580 = vmatprep.subr.bf16.mxu0 0
        %7581 = vmatpush1.bf16.msra.mxu0 %v7483
        %7582 = vmatprep.subr.bf16.mxu0 0
        %7583 = vmatpush1.bf16.msra.mxu0 %v7484
        %7584 = vmatprep.subr.bf16.mxu0 0
        %7585 = vmatpush1.bf16.msra.mxu0 0
        %7586 = vmatprep.subr.bf16.mxu0 0
        %7587 = vmatpush1.bf16.msra.mxu0 0
        %7588 = vmatprep.subr.bf16.mxu0 0
        %7589 = vmatpush1.bf16.msra.mxu0 0
        %7590 = vmatprep.subr.bf16.mxu0 0
        %7591 = vmatpush1.bf16.msra.mxu0 0
        %7592 = vmatprep.subr.bf16.mxu0 0
        %7593 = vmatpush1.bf16.msra.mxu0 0
        %7594 = vmatprep.subr.bf16.mxu0 0
        %7595 = vmatpush1.bf16.msra.mxu0 0
        %7596 = vmatprep.subr.bf16.mxu0 0
        %7597 = vmatpush1.bf16.msra.mxu0 0
        %7598 = vmatprep.subr.bf16.mxu0 0
        %7599 = vmatpush1.bf16.msra.mxu0 0
        %7600 = vmatprep.subr.bf16.mxu0 0
        %7601 = vmatpush1.bf16.msra.mxu0 0
        %7602 = vmatprep.subr.bf16.mxu0 0
        %7603 = vmatpush1.bf16.msra.mxu0 0
        %7604 = vmatprep.mubr.bf16.mxu0 0
        %7605 = vmatmul.mubr.bf16.gmra.mrb[0].mxu0 %v7492
        %v7606 = vpop.f32.mrb[0].mxu0
        %v7607 = vadd.f32 0.0, %v7606
        %v7608 = vpop.f32.mrb[0].mxu0
        %v7609 = vpop.f32.mrb[0].mxu0
        %v7610 = vadd.f32 0.0, %v7609
        %v7611 = vpop.f32.mrb[0].mxu0
        %7612 = vmatprep.mubr.bf16.mxu0 0
        %7613 = vmatmul.mubr.bf16.gmra.mrb[0].mxu0 %v7495
        %v7614 = vpop.f32.mrb[0].mxu0
        %v7615 = vadd.f32 0.0, %v7614
        %v7616 = vpop.f32.mrb[0].mxu0
        %v7617 = vpop.f32.mrb[0].mxu0
        %v7618 = vadd.f32 0.0, %v7617
        %v7619 = vpop.f32.mrb[0].mxu0
        %7620 = vmatprep.mubr.bf16.mxu0 0
        %7621 = vmatmul.mubr.bf16.gmra.mrb[0].mxu0 %v7498
        %v7622 = vpop.f32.mrb[0].mxu0
        %v7623 = vadd.f32 0.0, %v7622
        %v7624 = vpop.f32.mrb[0].mxu0
        %v7625 = vpop.f32.mrb[0].mxu0
        %v7626 = vadd.f32 0.0, %v7625
        %v7627 = vpop.f32.mrb[0].mxu0
        %7628 = vmatprep.mubr.bf16.mxu0 0
        %7629 = vmatmul.mubr.bf16.gmra.mrb[0].mxu0 %v7501
        %v7630 = vpop.f32.mrb[0].mxu0
        %v7631 = vadd.f32 0.0, %v7630
        %v7632 = vpop.f32.mrb[0].mxu0
        %v7633 = vpop.f32.mrb[0].mxu0
        %v7634 = vadd.f32 0.0, %v7633
        %v7635 = vpop.f32.mrb[0].mxu0
        %7636 = vmatprep.mubr.bf16.mxu0 0
        %7637 = vmatmul.mubr.bf16.gmra.mrb[0].mxu0 %v7504
        %v7638 = vpop.f32.mrb[0].mxu0
        %v7639 = vadd.f32 0.0, %v7638
        %v7640 = vpop.f32.mrb[0].mxu0
        %v7641 = vpop.f32.mrb[0].mxu0
        %v7642 = vadd.f32 0.0, %v7641
        %v7643 = vpop.f32.mrb[0].mxu0
        %7644 = vmatprep.mubr.bf16.mxu0 0
        %7645 = vmatmul.mubr.bf16.gmra.mrb[0].mxu0 %v7507
        %v7646 = vpop.f32.mrb[0].mxu0
        %v7647 = vadd.f32 0.0, %v7646
        %v7648 = vpop.f32.mrb[0].mxu0
        %v7649 = vpop.f32.mrb[0].mxu0
        %v7650 = vadd.f32 0.0, %v7649
        %v7651 = vpop.f32.mrb[0].mxu0
        %7652 = vmatprep.mubr.bf16.mxu0 0
        %7653 = vmatmul.mubr.bf16.gmra.mrb[0].mxu0 %v7510
        %v7654 = vpop.f32.mrb[0].mxu0
        %v7655 = vadd.f32 0.0, %v7654
        %v7656 = vpop.f32.mrb[0].mxu0
        %v7657 = vpop.f32.mrb[0].mxu0
        %v7658 = vadd.f32 0.0, %v7657
        %v7659 = vpop.f32.mrb[0].mxu0
        %7660 = vmatprep.mubr.bf16.mxu0 0
        %7661 = vmatmul.mubr.bf16.gmra.mrb[0].mxu0 %v7513
        %v7662 = vpop.f32.mrb[0].mxu0
        %v7663 = vadd.f32 0.0, %v7662
        %v7664 = vpop.f32.mrb[0].mxu0
        %v7665 = vpop.f32.mrb[0].mxu0
        %v7666 = vadd.f32 0.0, %v7665
        %v7667 = vpop.f32.mrb[0].mxu0
        %7668 = vmatprep.mubr.bf16.mxu0 0
        %7669 = vmatmul.mubr.bf16.gmra.mrb[0].mxu0 %v7516
        %v7670 = vpop.f32.mrb[0].mxu0
        %v7671 = vadd.f32 0.0, %v7670
        %v7672 = vpop.f32.mrb[0].mxu0
        %v7673 = vpop.f32.mrb[0].mxu0
        %v7674 = vadd.f32 0.0, %v7673
        %v7675 = vpop.f32.mrb[0].mxu0
        %7676 = vmatprep.mubr.bf16.mxu0 0
        %7677 = vmatmul.mubr.bf16.gmra.mrb[0].mxu0 %v7519
        %v7678 = vpop.f32.mrb[0].mxu0
        %v7679 = vadd.f32 0.0, %v7678
        %v7680 = vpop.f32.mrb[0].mxu0
        %v7681 = vpop.f32.mrb[0].mxu0
        %v7682 = vadd.f32 0.0, %v7681
        %v7683 = vpop.f32.mrb[0].mxu0
        %7684 = vmatprep.mubr.bf16.mxu0 0
        %7685 = vmatmul.mubr.bf16.gmra.mrb[0].mxu0 %v7522
        %v7686 = vpop.f32.mrb[0].mxu0
        %v7687 = vadd.f32 0.0, %v7686
        %v7688 = vpop.f32.mrb[0].mxu0
        %v7689 = vpop.f32.mrb[0].mxu0
        %v7690 = vadd.f32 0.0, %v7689
        %v7691 = vpop.f32.mrb[0].mxu0
        %7692 = vmatprep.mubr.bf16.mxu0 0
        %7693 = vmatmul.mubr.bf16.gmra.mrb[0].mxu0 %v7525
        %v7694 = vpop.f32.mrb[0].mxu0
        %v7695 = vadd.f32 0.0, %v7694
        %v7696 = vpop.f32.mrb[0].mxu0
        %v7697 = vpop.f32.mrb[0].mxu0
        %v7698 = vadd.f32 0.0, %v7697
        %v7699 = vpop.f32.mrb[0].mxu0
        %7700 = vmatprep.mubr.bf16.mxu0 0
        %7701 = vmatmul.mubr.bf16.gmra.mrb[0].mxu0 %v7528
        %v7702 = vpop.f32.mrb[0].mxu0
        %v7703 = vadd.f32 0.0, %v7702
        %v7704 = vpop.f32.mrb[0].mxu0
        %v7705 = vpop.f32.mrb[0].mxu0
        %v7706 = vadd.f32 0.0, %v7705
        %v7707 = vpop.f32.mrb[0].mxu0
        %7708 = vmatprep.mubr.bf16.mxu0 0
        %7709 = vmatmul.mubr.bf16.gmra.mrb[0].mxu0 %v7531
        %v7710 = vpop.f32.mrb[0].mxu0
        %v7711 = vadd.f32 0.0, %v7710
        %v7712 = vpop.f32.mrb[0].mxu0
        %v7713 = vpop.f32.mrb[0].mxu0
        %v7714 = vadd.f32 0.0, %v7713
        %v7715 = vpop.f32.mrb[0].mxu0
        %7716 = vmatprep.mubr.bf16.mxu0 0
        %7717 = vmatmul.mubr.bf16.gmra.mrb[0].mxu0 %v7534
        %v7718 = vpop.f32.mrb[0].mxu0
        %v7719 = vadd.f32 0.0, %v7718
        %v7720 = vpop.f32.mrb[0].mxu0
        %v7721 = vpop.f32.mrb[0].mxu0
        %v7722 = vadd.f32 0.0, %v7721
        %v7723 = vpop.f32.mrb[0].mxu0
        %7724 = vmatprep.mubr.bf16.mxu0 0
        %7725 = vmatmul.mubr.bf16.gmra.mrb[0].mxu0 %v7537
        %v7726 = vpop.f32.mrb[0].mxu0
        %v7727 = vadd.f32 0.0, %v7726
        %v7728 = vpop.f32.mrb[0].mxu0
        %v7729 = vpop.f32.mrb[0].mxu0
        %v7730 = vadd.f32 0.0, %v7729
        %v7731 = vpop.f32.mrb[0].mxu0
        %7732 = vmatprep.mubr.bf16.mxu0 0
        %7733 = vmatmul.mubr.bf16.gmra.mrb[0].mxu0 %v7540
        %v7734 = vpop.f32.mrb[0].mxu0
        %v7735 = vadd.f32 0.0, %v7734
        %v7736 = vpop.f32.mrb[0].mxu0
        %v7737 = vpop.f32.mrb[0].mxu0
        %v7738 = vadd.f32 0.0, %v7737
        %v7739 = vpop.f32.mrb[0].mxu0
        %7740 = vmatprep.mubr.bf16.mxu0 0
        %7741 = vmatmul.mubr.bf16.gmra.mrb[0].mxu0 %v7543
        %v7742 = vpop.f32.mrb[0].mxu0
        %v7743 = vadd.f32 0.0, %v7742
        %v7744 = vpop.f32.mrb[0].mxu0
        %v7745 = vpop.f32.mrb[0].mxu0
        %v7746 = vadd.f32 0.0, %v7745
        %v7747 = vpop.f32.mrb[0].mxu0
        %7748 = vmatprep.mubr.bf16.mxu0 0
        %7749 = vmatmul.mubr.bf16.gmra.mrb[0].mxu0 %v7546
        %v7750 = vpop.f32.mrb[0].mxu0
        %v7751 = vadd.f32 0.0, %v7750
        %v7752 = vpop.f32.mrb[0].mxu0
        %v7753 = vpop.f32.mrb[0].mxu0
        %v7754 = vadd.f32 0.0, %v7753
        %v7755 = vpop.f32.mrb[0].mxu0
        %7756 = vmatprep.mubr.bf16.mxu0 0
        %7757 = vmatmul.mubr.bf16.gmra.mrb[0].mxu0 %v7549
        %v7758 = vpop.f32.mrb[0].mxu0
        %v7759 = vadd.f32 0.0, %v7758
        %v7760 = vpop.f32.mrb[0].mxu0
        %v7761 = vpop.f32.mrb[0].mxu0
        %v7762 = vadd.f32 0.0, %v7761
        %v7763 = vpop.f32.mrb[0].mxu0
        %7764 = vmatprep.mubr.bf16.mxu0 0
        %7765 = vmatmul.mubr.bf16.gmra.mrb[0].mxu0 %v7552
        %v7766 = vpop.f32.mrb[0].mxu0
        %v7767 = vadd.f32 0.0, %v7766
        %v7768 = vpop.f32.mrb[0].mxu0
        %v7769 = vpop.f32.mrb[0].mxu0
        %v7770 = vadd.f32 0.0, %v7769
        %v7771 = vpop.f32.mrb[0].mxu0
        %7772 = vmatprep.mubr.bf16.mxu0 0
        %7773 = vmatmul.mubr.bf16.gmra.mrb[0].mxu0 %v7555
        %v7774 = vpop.f32.mrb[0].mxu0
        %v7775 = vadd.f32 0.0, %v7774
        %v7776 = vpop.f32.mrb[0].mxu0
        %v7777 = vpop.f32.mrb[0].mxu0
        %v7778 = vadd.f32 0.0, %v7777
        %v7779 = vpop.f32.mrb[0].mxu0
        %7780 = vmatprep.mubr.bf16.mxu0 0
        %7781 = vmatmul.mubr.bf16.gmra.mrb[0].mxu0 %v7558
        %v7782 = vpop.f32.mrb[0].mxu0
        %v7783 = vadd.f32 0.0, %v7782
        %v7784 = vpop.f32.mrb[0].mxu0
        %v7785 = vpop.f32.mrb[0].mxu0
        %v7786 = vadd.f32 0.0, %v7785
        %v7787 = vpop.f32.mrb[0].mxu0
        %7788 = vmatprep.mubr.bf16.mxu0 0
        %7789 = vmatmul.mubr.bf16.gmra.mrb[0].mxu0 %v7561
        %v7790 = vpop.f32.mrb[0].mxu0
        %v7791 = vadd.f32 0.0, %v7790
        %v7792 = vpop.f32.mrb[0].mxu0
        %v7793 = vpop.f32.mrb[0].mxu0
        %v7794 = vadd.f32 0.0, %v7793
        %v7795 = vpop.f32.mrb[0].mxu0
        %7796 = vmatprep.mubr.bf16.mxu0 0
        %7797 = vmatmul.mubr.bf16.gmra.mrb[0].mxu0 %v7564
        %v7798 = vpop.f32.mrb[0].mxu0
        %v7799 = vadd.f32 0.0, %v7798
        %v7800 = vpop.f32.mrb[0].mxu0
        %v7801 = vpop.f32.mrb[0].mxu0
        %v7802 = vadd.f32 0.0, %v7801
        %v7803 = vpop.f32.mrb[0].mxu0
        %7804 = vmatprep.mubr.bf16.mxu0 0
        %7805 = vmatmul.mubr.bf16.gmra.mrb[0].mxu0 %v7567
        %v7806 = vpop.f32.mrb[0].mxu0
        %v7807 = vadd.f32 0.0, %v7806
        %v7808 = vpop.f32.mrb[0].mxu0
        %v7809 = vpop.f32.mrb[0].mxu0
        %v7810 = vadd.f32 0.0, %v7809
        %v7811 = vpop.f32.mrb[0].mxu0
        %7812 = vmatprep.mubr.bf16.mxu0 0
        %7813 = vmatmul.mubr.bf16.gmra.mrb[0].mxu0 %v7570
        %v7814 = vpop.f32.mrb[0].mxu0
        %v7815 = vadd.f32 0.0, %v7814
        %v7816 = vpop.f32.mrb[0].mxu0
        %v7817 = vpop.f32.mrb[0].mxu0
        %v7818 = vadd.f32 0.0, %v7817
        %v7819 = vpop.f32.mrb[0].mxu0
        %7820 = vdwg.mxu0
        %v7821 = vadd.f32 %v7106, %v7607
        %v7822 = vadd.f32 %v7109, %v7610
        %v7823 = vadd.f32 %v7114, %v7615
        %v7824 = vadd.f32 %v7117, %v7618
        %v7825 = vadd.f32 %v7122, %v7623
        %v7826 = vadd.f32 %v7125, %v7626
        %v7827 = vadd.f32 %v7130, %v7631
        %v7828 = vadd.f32 %v7133, %v7634
        %v7829 = vadd.f32 %v7138, %v7639
        %v7830 = vadd.f32 %v7141, %v7642
        %v7831 = vadd.f32 %v7146, %v7647
        %v7832 = vadd.f32 %v7149, %v7650
        %v7833 = vadd.f32 %v7154, %v7655
        %v7834 = vadd.f32 %v7157, %v7658
        %v7835 = vadd.f32 %v7162, %v7663
        %v7836 = vadd.f32 %v7165, %v7666
        %v7837 = vadd.f32 %v7170, %v7671
        %v7838 = vadd.f32 %v7173, %v7674
        %v7839 = vadd.f32 %v7178, %v7679
        %v7840 = vadd.f32 %v7181, %v7682
        %v7841 = vadd.f32 %v7186, %v7687
        %v7842 = vadd.f32 %v7189, %v7690
        %v7843 = vadd.f32 %v7194, %v7695
        %v7844 = vadd.f32 %v7197, %v7698
        %v7845 = vadd.f32 %v7202, %v7703
        %v7846 = vadd.f32 %v7205, %v7706
        %v7847 = vadd.f32 %v7210, %v7711
        %v7848 = vadd.f32 %v7213, %v7714
        %v7849 = vadd.f32 %v7218, %v7719
        %v7850 = vadd.f32 %v7221, %v7722
        %v7851 = vadd.f32 %v7226, %v7727
        %v7852 = vadd.f32 %v7229, %v7730
        %v7853 = vadd.f32 %v7234, %v7735
        %v7854 = vadd.f32 %v7237, %v7738
        %v7855 = vadd.f32 %v7242, %v7743
        %v7856 = vadd.f32 %v7245, %v7746
        %v7857 = vadd.f32 %v7250, %v7751
        %v7858 = vadd.f32 %v7253, %v7754
        %v7859 = vadd.f32 %v7258, %v7759
        %v7860 = vadd.f32 %v7261, %v7762
        %v7861 = vadd.f32 %v7266, %v7767
        %v7862 = vadd.f32 %v7269, %v7770
        %v7863 = vadd.f32 %v7274, %v7775
        %v7864 = vadd.f32 %v7277, %v7778
        %v7865 = vadd.f32 %v7282, %v7783
        %v7866 = vadd.f32 %v7285, %v7786
        %v7867 = vadd.f32 %v7290, %v7791
        %v7868 = vadd.f32 %v7293, %v7794
        %v7869 = vadd.f32 %v7298, %v7799
        %v7870 = vadd.f32 %v7301, %v7802
        %v7871 = vadd.f32 %v7306, %v7807
        %v7872 = vadd.f32 %v7309, %v7810
        %v7873 = vadd.f32 %v7314, %v7815
        %v7874 = vadd.f32 %v7317, %v7818
        %v7875 = vstv %s5642
        %v7876 = vadd.f32 %v7821, %v7875
        %v7877 = vadd.f32 %v7822, %v7875
        %v7878 = vadd.f32 %v7823, %v7875
        %v7879 = vadd.f32 %v7824, %v7875
        %v7880 = vadd.f32 %v7825, %v7875
        %v7881 = vadd.f32 %v7826, %v7875
        %v7882 = vadd.f32 %v7827, %v7875
        %v7883 = vadd.f32 %v7828, %v7875
        %v7884 = vadd.f32 %v7829, %v7875
        %v7885 = vadd.f32 %v7830, %v7875
        %v7886 = vadd.f32 %v7831, %v7875
        %v7887 = vadd.f32 %v7832, %v7875
        %v7888 = vadd.f32 %v7833, %v7875
        %v7889 = vadd.f32 %v7834, %v7875
        %v7890 = vadd.f32 %v7835, %v7875
        %v7891 = vadd.f32 %v7836, %v7875
        %v7892 = vadd.f32 %v7837, %v7875
        %v7893 = vadd.f32 %v7838, %v7875
        %v7894 = vadd.f32 %v7839, %v7875
        %v7895 = vadd.f32 %v7840, %v7875
        %v7896 = vadd.f32 %v7841, %v7875
        %v7897 = vadd.f32 %v7842, %v7875
        %v7898 = vadd.f32 %v7843, %v7875
        %v7899 = vadd.f32 %v7844, %v7875
        %v7900 = vadd.f32 %v7845, %v7875
        %v7901 = vadd.f32 %v7846, %v7875
        %v7902 = vadd.f32 %v7847, %v7875
        %v7903 = vadd.f32 %v7848, %v7875
        %v7904 = vadd.f32 %v7849, %v7875
        %v7905 = vadd.f32 %v7850, %v7875
        %v7906 = vadd.f32 %v7851, %v7875
        %v7907 = vadd.f32 %v7852, %v7875
        %v7908 = vadd.f32 %v7853, %v7875
        %v7909 = vadd.f32 %v7854, %v7875
        %v7910 = vadd.f32 %v7855, %v7875
        %v7911 = vadd.f32 %v7856, %v7875
        %v7912 = vadd.f32 %v7857, %v7875
        %v7913 = vadd.f32 %v7858, %v7875
        %v7914 = vadd.f32 %v7859, %v7875
        %v7915 = vadd.f32 %v7860, %v7875
        %v7916 = vadd.f32 %v7861, %v7875
        %v7917 = vadd.f32 %v7862, %v7875
        %v7918 = vadd.f32 %v7863, %v7875
        %v7919 = vadd.f32 %v7864, %v7875
        %v7920 = vadd.f32 %v7865, %v7875
        %v7921 = vadd.f32 %v7866, %v7875
        %v7922 = vadd.f32 %v7867, %v7875
        %v7923 = vadd.f32 %v7868, %v7875
        %v7924 = vadd.f32 %v7869, %v7875
        %v7925 = vadd.f32 %v7870, %v7875
        %v7926 = vadd.f32 %v7871, %v7875
        %v7927 = vadd.f32 %v7872, %v7875
        %v7928 = vadd.f32 %v7873, %v7875
        %v7929 = vadd.f32 %v7874, %v7875
        %v7930 = vld [vmem:[%s260 + $0x18] sm:$0xff]
        %v7931 = vld [vmem:[%s260 + $0x20] sm:$0xff]
        %v7932 = vld [vmem:[%s260 + $0x28] sm:$0xff]
        %v7933 = vld [vmem:[%s260 + $0x30] sm:$0xff]
        %v7934 = vld [vmem:[%s260 + $0x38] sm:$0xff]
        %v7935 = vld [vmem:[%s260 + $0x40] sm:$0xff]
        %v7936 = vld [vmem:[%s260 + $0x48] sm:$0xff]
        %v7937 = vld [vmem:[%s260 + $0x50] sm:$0xff]
        %v7938 = vld [vmem:[%s260 + $0x58] sm:$0xff]
        %v7939 = vld [vmem:[%s260 + $0x60] sm:$0xff]
        %v7940 = vld [vmem:[%s260 + $0x68] sm:$0xff]
        %v7941 = vld [vmem:[%s260 + $0x70] sm:$0xff]
        %v7942 = vld [vmem:[%s260 + $0x78] sm:$0xff]
        %v7943 = vld [vmem:[%s260 + $0x80] sm:$0xff]
        %v7944 = vld [vmem:[%s260 + $0x88] sm:$0xff]
        %v7945 = vld [vmem:[%s260 + $0x90] sm:$0xff]
        %v7946 = vld [vmem:[%s260 + $0x98] sm:$0xff]
        %v7947 = vld [vmem:[%s260 + $0xa0] sm:$0xff]
        %v7948 = vld [vmem:[%s260 + $0xa8] sm:$0xff]
        %v7949 = vld [vmem:[%s260 + $0xb0] sm:$0xff]
        %v7950 = vld [vmem:[%s260 + $0xb8] sm:$0xff]
        %v7951 = vld [vmem:[%s260 + $0xc0] sm:$0xff]
        %v7952 = vld [vmem:[%s260 + $0xc8] sm:$0xff]
        %v7953 = vld [vmem:[%s260 + $0xd0] sm:$0xff]
        %v7954 = vld [vmem:[%s260 + $0xd8] sm:$0xff]
        %v7955 = vld [vmem:[%s260 + $0xe0] sm:$0xff]
        %v7956 = vld [vmem:[%s260 + $0xe8] sm:$0xff]
        %v7957 = vld [vmem:[%s260 + $0xf0] sm:$0xff]
        %v7958 = vld [vmem:[%s260 + $0xf8] sm:$0xff]
        %v7959 = vld [vmem:[%s260 + $0x100] sm:$0xff]
        %v7960 = vld [vmem:[%s260 + $0x108] sm:$0xff]
        %v7961 = vld [vmem:[%s260 + $0x110] sm:$0xff]
        %v7962 = vld [vmem:[%s260 + $0x118] sm:$0xff]
        %v7963 = vld [vmem:[%s260 + $0x120] sm:$0xff]
        %v7964 = vld [vmem:[%s260 + $0x128] sm:$0xff]
        %v7965 = vld [vmem:[%s260 + $0x130] sm:$0xff]
        %v7966 = vld [vmem:[%s260 + $0x138] sm:$0xff]
        %v7967 = vld [vmem:[%s260 + $0x140] sm:$0xff]
        %v7968 = vld [vmem:[%s260 + $0x148] sm:$0xff]
        %v7969 = vld [vmem:[%s260 + $0x150] sm:$0xff]
        %v7970 = vld [vmem:[%s260 + $0x158] sm:$0xff]
        %v7971 = vld [vmem:[%s260 + $0x160] sm:$0xff]
        %v7972 = vld [vmem:[%s260 + $0x168] sm:$0xff]
        %v7973 = vld [vmem:[%s260 + $0x170] sm:$0xff]
        %v7974 = vld [vmem:[%s260 + $0x178] sm:$0xff]
        %v7975 = vld [vmem:[%s260 + $0x180] sm:$0xff]
        %v7976 = vld [vmem:[%s260 + $0x188] sm:$0xff]
        %v7977 = vld [vmem:[%s260 + $0x190] sm:$0xff]
        %v7978 = vld [vmem:[%s260 + $0x198] sm:$0xff]
        %v7979 = vld [vmem:[%s260 + $0x1a0] sm:$0xff]
        %v7980 = vld [vmem:[%s260 + $0x1a8] sm:$0xff]
        %v7981 = vld [vmem:[%s260 + $0x1b0] sm:$0xff]
        %v7982 = vld [vmem:[%s260 + $0x1b8] sm:$0xff]
        %v7983 = vld [vmem:[%s260 + $0x1c0] sm:$0xff]
        %v7984 = vsub.f32 %v7930, %v7876
        %v7985 = vsub.f32 %v7931, %v7877
        %v7986 = vsub.f32 %v7932, %v7878
        %v7987 = vsub.f32 %v7933, %v7879
        %v7988 = vsub.f32 %v7934, %v7880
        %v7989 = vsub.f32 %v7935, %v7881
        %v7990 = vsub.f32 %v7936, %v7882
        %v7991 = vsub.f32 %v7937, %v7883
        %v7992 = vsub.f32 %v7938, %v7884
        %v7993 = vsub.f32 %v7939, %v7885
        %v7994 = vsub.f32 %v7940, %v7886
        %v7995 = vsub.f32 %v7941, %v7887
        %v7996 = vsub.f32 %v7942, %v7888
        %v7997 = vsub.f32 %v7943, %v7889
        %v7998 = vsub.f32 %v7944, %v7890
        %v7999 = vsub.f32 %v7945, %v7891
        %v8000 = vsub.f32 %v7946, %v7892
        %v8001 = vsub.f32 %v7947, %v7893
        %v8002 = vsub.f32 %v7948, %v7894
        %v8003 = vsub.f32 %v7949, %v7895
        %v8004 = vsub.f32 %v7950, %v7896
        %v8005 = vsub.f32 %v7951, %v7897
        %v8006 = vsub.f32 %v7952, %v7898
        %v8007 = vsub.f32 %v7953, %v7899
        %v8008 = vsub.f32 %v7954, %v7900
        %v8009 = vsub.f32 %v7955, %v7901
        %v8010 = vsub.f32 %v7956, %v7902
        %v8011 = vsub.f32 %v7957, %v7903
        %v8012 = vsub.f32 %v7958, %v7904
        %v8013 = vsub.f32 %v7959, %v7905
        %v8014 = vsub.f32 %v7960, %v7906
        %v8015 = vsub.f32 %v7961, %v7907
        %v8016 = vsub.f32 %v7962, %v7908
        %v8017 = vsub.f32 %v7963, %v7909
        %v8018 = vsub.f32 %v7964, %v7910
        %v8019 = vsub.f32 %v7965, %v7911
        %v8020 = vsub.f32 %v7966, %v7912
        %v8021 = vsub.f32 %v7967, %v7913
        %v8022 = vsub.f32 %v7968, %v7914
        %v8023 = vsub.f32 %v7969, %v7915
        %v8024 = vsub.f32 %v7970, %v7916
        %v8025 = vsub.f32 %v7971, %v7917
        %v8026 = vsub.f32 %v7972, %v7918
        %v8027 = vsub.f32 %v7973, %v7919
        %v8028 = vsub.f32 %v7974, %v7920
        %v8029 = vsub.f32 %v7975, %v7921
        %v8030 = vsub.f32 %v7976, %v7922
        %v8031 = vsub.f32 %v7977, %v7923
        %v8032 = vsub.f32 %v7978, %v7924
        %v8033 = vsub.f32 %v7979, %v7925
        %v8034 = vsub.f32 %v7980, %v7926
        %v8035 = vsub.f32 %v7981, %v7927
        %v8036 = vsub.f32 %v7982, %v7928
        %v8037 = vsub.f32 %v7983, %v7929
        %8038 = vst.msk [vmem:[%s265] sm:$0xff] %vm471, %v7984
        %8039 = vst.msk [vmem:[%s265 + $0x8] sm:$0xff] %vm471, %v7985
        %8040 = vst.msk [vmem:[%s265 + $0x10] sm:$0xff] %vm471, %v7986
        %8041 = vst.msk [vmem:[%s265 + $0x18] sm:$0xff] %vm471, %v7987
        %8042 = vst.msk [vmem:[%s265 + $0x20] sm:$0xff] %vm471, %v7988
        %8043 = vst.msk [vmem:[%s265 + $0x28] sm:$0xff] %vm471, %v7989
        %8044 = vst.msk [vmem:[%s265 + $0x30] sm:$0xff] %vm471, %v7990
        %8045 = vst.msk [vmem:[%s265 + $0x38] sm:$0xff] %vm471, %v7991
        %8046 = vst.msk [vmem:[%s265 + $0x40] sm:$0xff] %vm471, %v7992
        %8047 = vst.msk [vmem:[%s265 + $0x48] sm:$0xff] %vm471, %v7993
        %8048 = vst.msk [vmem:[%s265 + $0x50] sm:$0xff] %vm471, %v7994
        %8049 = vst.msk [vmem:[%s265 + $0x58] sm:$0xff] %vm471, %v7995
        %8050 = vst.msk [vmem:[%s265 + $0x60] sm:$0xff] %vm471, %v7996
        %8051 = vst.msk [vmem:[%s265 + $0x68] sm:$0xff] %vm471, %v7997
        %8052 = vst.msk [vmem:[%s265 + $0x70] sm:$0xff] %vm471, %v7998
        %8053 = vst.msk [vmem:[%s265 + $0x78] sm:$0xff] %vm471, %v7999
        %8054 = vst.msk [vmem:[%s265 + $0x80] sm:$0xff] %vm471, %v8000
        %8055 = vst.msk [vmem:[%s265 + $0x88] sm:$0xff] %vm471, %v8001
        %8056 = vst.msk [vmem:[%s265 + $0x90] sm:$0xff] %vm471, %v8002
        %8057 = vst.msk [vmem:[%s265 + $0x98] sm:$0xff] %vm471, %v8003
        %8058 = vst.msk [vmem:[%s265 + $0xa0] sm:$0xff] %vm471, %v8004
        %8059 = vst.msk [vmem:[%s265 + $0xa8] sm:$0xff] %vm471, %v8005
        %8060 = vst.msk [vmem:[%s265 + $0xb0] sm:$0xff] %vm471, %v8006
        %8061 = vst.msk [vmem:[%s265 + $0xb8] sm:$0xff] %vm471, %v8007
        %8062 = vst.msk [vmem:[%s265 + $0xc0] sm:$0xff] %vm471, %v8008
        %8063 = vst.msk [vmem:[%s265 + $0xc8] sm:$0xff] %vm471, %v8009
        %8064 = vst.msk [vmem:[%s265 + $0xd0] sm:$0xff] %vm471, %v8010
        %8065 = vst.msk [vmem:[%s265 + $0xd8] sm:$0xff] %vm471, %v8011
        %8066 = vst.msk [vmem:[%s265 + $0xe0] sm:$0xff] %vm471, %v8012
        %8067 = vst.msk [vmem:[%s265 + $0xe8] sm:$0xff] %vm471, %v8013
        %8068 = vst.msk [vmem:[%s265 + $0xf0] sm:$0xff] %vm471, %v8014
        %8069 = vst.msk [vmem:[%s265 + $0xf8] sm:$0xff] %vm471, %v8015
        %8070 = vst.msk [vmem:[%s265 + $0x100] sm:$0xff] %vm471, %v8016
        %8071 = vst.msk [vmem:[%s265 + $0x108] sm:$0xff] %vm471, %v8017
        %8072 = vst.msk [vmem:[%s265 + $0x110] sm:$0xff] %vm471, %v8018
        %8073 = vst.msk [vmem:[%s265 + $0x118] sm:$0xff] %vm471, %v8019
        %8074 = vst.msk [vmem:[%s265 + $0x120] sm:$0xff] %vm471, %v8020
        %8075 = vst.msk [vmem:[%s265 + $0x128] sm:$0xff] %vm471, %v8021
        %8076 = vst.msk [vmem:[%s265 + $0x130] sm:$0xff] %vm471, %v8022
        %8077 = vst.msk [vmem:[%s265 + $0x138] sm:$0xff] %vm471, %v8023
        %8078 = vst.msk [vmem:[%s265 + $0x140] sm:$0xff] %vm471, %v8024
        %8079 = vst.msk [vmem:[%s265 + $0x148] sm:$0xff] %vm471, %v8025
        %8080 = vst.msk [vmem:[%s265 + $0x150] sm:$0xff] %vm471, %v8026
        %8081 = vst.msk [vmem:[%s265 + $0x158] sm:$0xff] %vm471, %v8027
        %8082 = vst.msk [vmem:[%s265 + $0x160] sm:$0xff] %vm471, %v8028
        %8083 = vst.msk [vmem:[%s265 + $0x168] sm:$0xff] %vm471, %v8029
        %8084 = vst.msk [vmem:[%s265 + $0x170] sm:$0xff] %vm471, %v8030
        %8085 = vst.msk [vmem:[%s265 + $0x178] sm:$0xff] %vm471, %v8031
        %8086 = vst.msk [vmem:[%s265 + $0x180] sm:$0xff] %vm471, %v8032
        %8087 = vst.msk [vmem:[%s265 + $0x188] sm:$0xff] %vm471, %v8033
        %8088 = vst.msk [vmem:[%s265 + $0x190] sm:$0xff] %vm471, %v8034
        %8089 = vst.msk [vmem:[%s265 + $0x198] sm:$0xff] %vm471, %v8035
        %8090 = vst.msk [vmem:[%s265 + $0x1a0] sm:$0xff] %vm471, %v8036
        %8091 = vst.msk [vmem:[%s265 + $0x1a8] sm:$0xff] %vm471, %v8037
        %p8092 = scmp.lt.s32.totalorder %s18, 1
        %s8093 = scalar_select %p8092, %s18, 1
        %s8094 = smul.addr %s8093, 54
        %s8095 = smul.addr %s8094, 8
        %s8096 = scalar_lea.vmem %s6, %s8095
        // Predicated region
        $region56: #{dncnn_sn_forward.1} parent=43 // pred_check
          %p8097 = pneg %p167
        $region57: #{dncnn_sn_forward.1} parent=43 // pred_check_branch
          %8099 = sbr.rel (%p8097) target = $region59
        $region58: #{dncnn_sn_forward.1} parent=43 // pred_region
          _
        $region59: #{dncnn_sn_forward.1} parent=43 // pred_fallthru
          _
      $region44: #{dncnn_sn_forward.1} parent=5 // pred_fallthru
        _
      %p8100 = scmp.le.s32.totalorder 2, %s13
      // Predicated region
      $region60: #{dncnn_sn_forward.1} parent=5 // pred_check
        %p8101 = pneg %p8100
      $region61: #{dncnn_sn_forward.1} parent=5 // pred_check_branch
        %8103 = sbr.rel (%p8101) target = $region63
      $region62: #{dncnn_sn_forward.1} parent=5 // pred_region
        %s8104 = ssub.s32 %s13, 2
        // Predicated region
        $region64: #{dncnn_sn_forward.1} parent=62 // pred_check
          %p8105 = pneg %p173
        $region65: #{dncnn_sn_forward.1} parent=62 // pred_check_branch
          %8107 = sbr.rel (%p8105) target = $region67
        $region66: #{dncnn_sn_forward.1} parent=62 // pred_region
          %p8108 = scmp.lt.s32.totalorder %s19, 1
          %s8109 = scalar_select %p8108, %s19, 1
          %s8110 = smul.addr %s8109, 54
          %s8111 = smul.addr %s8110, 8
          %s8112 = scalar_lea.vmem %s6, %s8111
        $region67: #{dncnn_sn_forward.1} parent=62 // pred_fallthru
          _
      $region63: #{dncnn_sn_forward.1} parent=5 // pred_fallthru
        _
    $region6: #{dncnn_sn_forward.1} parent=1 // loop_footer
      %s17 = sadd.s32 1, %s13
    $region7: #{dncnn_sn_forward.1} parent=1 // loop_footer_branch
      %12 = sbr.rel target = $region3
    $region8: #{dncnn_sn_forward.1} parent=1 // loop_exit
      _
    %8113 = vsyncpa [#allocation5], 1
    %s8114 = scalar_lea.sflag [#allocation5], 1
    %8115 = vsyncpa %s8114, 1

</llo_original>
